<compile_context>
chip_gen: v7x
topology: tpu7x:2x2x1
jax: 0.10.0
libtpu: 0.0.40
codegen_flags: <defaults>
</compile_context>

<pallas_src>
import jax
import jax.numpy as jnp
from jax.experimental import pallas as pl
from jax.experimental.pallas import tpu as pltpu


# ---------------------------------------------------------------------------
# Pallas kernels
# ---------------------------------------------------------------------------
def _conv_bias_relu_pool_kernel(x_ref, w_ref, b_ref, o_ref):
    """Fused conv-as-matmul + 2x2/2 max-pool + bias + ReLU.

    x_ref: (2, 2, tm, K)  im2col patches; the two leading dims are the (row,
                          col) position of a pixel inside its 2x2 pool window.
    w_ref: (K, Cout)      flattened conv weight (bf16).
    b_ref: (1, Cout)      bias (f32).
    o_ref: (tm, Cout)     one pooled output row per 2x2 window.
    """
    w = w_ref[...]
    a00 = jnp.dot(x_ref[0, 0], w, preferred_element_type=jnp.float32)
    a01 = jnp.dot(x_ref[0, 1], w, preferred_element_type=jnp.float32)
    a10 = jnp.dot(x_ref[1, 0], w, preferred_element_type=jnp.float32)
    a11 = jnp.dot(x_ref[1, 1], w, preferred_element_type=jnp.float32)
    # pool(relu(conv + b)) == relu(max_window(conv) + b): the bias is constant
    # within a window and relu is monotone, so max first -> 1 add + 1 relu.
    m = jnp.maximum(jnp.maximum(a00, a01), jnp.maximum(a10, a11))
    m = jnp.maximum(m + b_ref[...], 0.0)
    o_ref[...] = m.astype(o_ref.dtype)


def _fc_fused_kernel(x_ref, w1_ref, b1_ref, w2_ref, b2_ref, w3_ref, b3_ref,
                     o_ref):
    # fc1 -> relu -> fc2 -> relu -> fc3 in a single kernel; all weights stay
    # resident in VMEM, intermediates never touch HBM.
    h = jnp.dot(x_ref[...], w1_ref[...], preferred_element_type=jnp.float32)
    h = jnp.maximum(h + b1_ref[...], 0.0)
    h = jnp.dot(h.astype(w2_ref.dtype), w2_ref[...],
                preferred_element_type=jnp.float32)
    h = jnp.maximum(h + b2_ref[...], 0.0)
    h = jnp.dot(h.astype(w3_ref.dtype), w3_ref[...],
                preferred_element_type=jnp.float32)
    o_ref[...] = (h + b3_ref[...]).astype(o_ref.dtype)


# ---------------------------------------------------------------------------
# Wrappers
# ---------------------------------------------------------------------------
def _im2col_pool_layout(x, kh, kw):
    """x: (N, H, W, C) NHWC -> patches (2, 2, N*Ho2*Wo2, kh*kw*C).

    Leading (2, 2) dims index the position of each conv-output pixel inside
    its 2x2 max-pool window (floor mode: trailing odd row/col dropped).
    Row order of the third dim is (n, pooled_h, pooled_w), row-major.
    """
    N, H, W, C = x.shape
    Ho, Wo = H - kh + 1, W - kw + 1
    Ho2, Wo2 = Ho // 2, Wo // 2
    cols = []
    for i in range(kh):
        for j in range(kw):
            cols.append(x[:, i:i + Ho, j:j + Wo, :])
    patches = jnp.concatenate(cols, axis=-1)            # (N, Ho, Wo, K)
    patches = patches[:, :2 * Ho2, :2 * Wo2, :]          # floor-mode crop
    K = kh * kw * C
    patches = patches.reshape(N, Ho2, 2, Wo2, 2, K)
    patches = jnp.transpose(patches, (2, 4, 0, 1, 3, 5))  # (2,2,N,Ho2,Wo2,K)
    patches = patches.reshape(2, 2, N * Ho2 * Wo2, K)
    return patches, Ho2, Wo2


def conv3x3_relu_pool(x, w, b, *, tile_m=512):
    """pool2x2(relu(conv3x3_valid(x) + b)).  x: NHWC, w: (3,3,Cin,Cout)."""
    N = x.shape[0]
    cout = w.shape[-1]
    patches, Ho2, Wo2 = _im2col_pool_layout(x.astype(jnp.bfloat16), 3, 3)
    _, _, M, K = patches.shape
    wb = w.reshape(-1, cout).astype(jnp.bfloat16)
    bf = b.astype(jnp.float32).reshape(1, cout)

    tm = M if M <= tile_m else tile_m          # full-M block or 8-aligned tile
    grid = (pl.cdiv(M, tm),)

    out = pl.pallas_call(
        _conv_bias_relu_pool_kernel,
        out_shape=jax.ShapeDtypeStruct((M, cout), jnp.bfloat16),
        grid=grid,
        in_specs=[
            pl.BlockSpec((2, 2, tm, K), lambda i: (0, 0, i, 0)),
            pl.BlockSpec((K, cout), lambda i: (0, 0)),
            pl.BlockSpec((1, cout), lambda i: (0, 0)),
        ],
        out_specs=pl.BlockSpec((tm, cout), lambda i: (i, 0)),
        compiler_params=pltpu.CompilerParams(
            dimension_semantics=("parallel",)),
    )(patches, wb, bf)
    return out.reshape(N, Ho2, Wo2, cout)


def fc_fused(x, w1, b1, w2, b2, w3, b3, *, tile_m=256):
    """relu(x@w1+b1) -> relu(.@w2+b2) -> .@w3+b3 in one pallas_call."""
    M, D = x.shape
    H1, H2, NO = w1.shape[1], w2.shape[1], w3.shape[1]
    xb = x.astype(jnp.bfloat16)
    w1b = w1.astype(jnp.bfloat16)
    w2b = w2.astype(jnp.bfloat16)
    w3b = w3.astype(jnp.bfloat16)
    b1f = b1.astype(jnp.float32).reshape(1, H1)
    b2f = b2.astype(jnp.float32).reshape(1, H2)
    b3f = b3.astype(jnp.float32).reshape(1, NO)

    tm = M if M <= tile_m else tile_m
    grid = (pl.cdiv(M, tm),)

    return pl.pallas_call(
        _fc_fused_kernel,
        out_shape=jax.ShapeDtypeStruct((M, NO), jnp.float32),
        grid=grid,
        in_specs=[
            pl.BlockSpec((tm, D), lambda i: (i, 0)),
            pl.BlockSpec((D, H1), lambda i: (0, 0)),
            pl.BlockSpec((1, H1), lambda i: (0, 0)),
            pl.BlockSpec((H1, H2), lambda i: (0, 0)),
            pl.BlockSpec((1, H2), lambda i: (0, 0)),
            pl.BlockSpec((H2, NO), lambda i: (0, 0)),
            pl.BlockSpec((1, NO), lambda i: (0, 0)),
        ],
        out_specs=pl.BlockSpec((tm, NO), lambda i: (i, 0)),
        compiler_params=pltpu.CompilerParams(
            dimension_semantics=("parallel",)),
    )(xb, w1b, b1f, w2b, b2f, w3b, b3f)


# ---------------------------------------------------------------------------
# Network
# ---------------------------------------------------------------------------
def init_params(key):
    """Deterministic synthetic parameters (PyTorch-like uniform fan-in init)."""
    ks = jax.random.split(key, 12)

    def u(k, shape, fan_in):
        bound = 1.0 / jnp.sqrt(fan_in)
        return jax.random.uniform(k, shape, jnp.float32, -bound, bound)

    p = {}
    # conv weights stored as (kh, kw, cin, cout)
    p["w1"] = u(ks[0], (3, 3, 3, 64), 3 * 9)
    p["b1"] = u(ks[1], (64,), 3 * 9)
    p["w2"] = u(ks[2], (3, 3, 64, 128), 64 * 9)
    p["b2"] = u(ks[3], (128,), 64 * 9)
    p["w3"] = u(ks[4], (3, 3, 128, 256), 128 * 9)
    p["b3"] = u(ks[5], (256,), 128 * 9)
    # fc weights stored as (in, out)
    p["fc1_w"] = u(ks[6], (1024, 128), 1024)
    p["fc1_b"] = u(ks[7], (128,), 1024)
    p["fc2_w"] = u(ks[8], (128, 256), 128)
    p["fc2_b"] = u(ks[9], (256,), 128)
    p["fc3_w"] = u(ks[10], (256, 10), 256)
    p["fc3_b"] = u(ks[11], (10,), 256)
    return p


def net_forward(x_nchw, p):
    # layout: input NCHW (PyTorch); conv path runs in NHWC, bf16 activations.
    x = jnp.transpose(x_nchw.astype(jnp.float32), (0, 2, 3, 1))
    x = x.astype(jnp.bfloat16)

    x = conv3x3_relu_pool(x, p["w1"], p["b1"])   # (N, 15, 15, 64)
    x = conv3x3_relu_pool(x, p["w2"], p["b2"])   # (N, 6, 6, 128)
    x = conv3x3_relu_pool(x, p["w3"], p["b3"])   # (N, 2, 2, 256)

    # flatten in PyTorch (C, H, W) order to match x.view(-1, 64*4*4)
    x = jnp.transpose(x, (0, 3, 1, 2)).reshape(x.shape[0], -1)    # (N, 1024)

    # drop1/drop2/drop3 are identity in eval; fc1->relu->fc2->relu->fc3 fused.
    return fc_fused(x, p["fc1_w"], p["fc1_b"], p["fc2_w"], p["fc2_b"],
                    p["fc3_w"], p["fc3_b"])    # (N, 10) float32


if __name__ == "__main__":
    key = jax.random.PRNGKey(0)
    k_params, k_x = jax.random.split(key)

    params = init_params(k_params)
    # batch=2, CIFAR-shaped input (3, 32, 32) -- the 32x32 spatial size is
    # required so the flatten produces 64*4*4 = 1024 features.
    x = jax.random.normal(k_x, (2, 3, 32, 32), jnp.float32)

    out = jax.jit(net_forward)(x, params)
    out = jax.block_until_ready(out)
    assert out.shape == (2, 10), out.shape
    assert out.dtype == jnp.float32
    print("KERNEL_OK")
</pallas_src>

<mosaic_0001>
module attributes {stable_mosaic.version = 11 : i64} {
  func.func @_conv_bias_relu_pool_kernel(%arg0: i32, %arg1: memref<2x2x450x27xbf16, #tpu.memory_space<vmem>>, %arg2: memref<27x64xbf16, #tpu.memory_space<vmem>>, %arg3: memref<1x64xf32, #tpu.memory_space<vmem>>, %arg4: memref<450x64xbf16, #tpu.memory_space<vmem>>) attributes {dimension_semantics = [#tpu.dimension_semantics<parallel>], iteration_bounds = array<i64: 1>, scalar_prefetch = 0 : i64, scratch_operands = 0 : i64, tpu.core_type = #tpu.core_type<tc>, window_params = [{transform_indices = @transform_0, window_bounds = array<i64: 2, 2, 450, 27>}, {pipeline_mode = #tpu.pipeline_mode<synchronous>, transform_indices = @transform_1, window_bounds = array<i64: 27, 64>}, {pipeline_mode = #tpu.pipeline_mode<synchronous>, transform_indices = @transform_2, window_bounds = array<i64: 1, 64>}, {transform_indices = @transform_3, window_bounds = array<i64: 450, 64>}]} {
    %c0 = arith.constant 0 : index
    %c0_0 = arith.constant 0 : index
    %0 = vector.load %arg2[%c0, %c0_0] : memref<27x64xbf16, #tpu.memory_space<vmem>>, vector<27x64xbf16>
    %c0_1 = arith.constant 0 : index
    %c0_2 = arith.constant 0 : index
    %c0_3 = arith.constant 0 : index
    %c0_4 = arith.constant 0 : index
    %1 = vector.load %arg1[%c0_1, %c0_2, %c0_3, %c0_4] : memref<2x2x450x27xbf16, #tpu.memory_space<vmem>>, vector<1x1x450x27xbf16>
    %2 = vector.shape_cast %1 : vector<1x1x450x27xbf16> to vector<450x27xbf16>
    %cst = arith.constant dense<0.000000e+00> : vector<450x64xf32>
    %3 = tpu.matmul %2, %0, %cst {dimension_numbers = #tpu.dot_dimension_numbers<[1], [0], [0], [1], [0, 0, 1, 1], [], []>} : vector<450x27xbf16>, vector<27x64xbf16>, vector<450x64xf32> -> vector<450x64xf32>
    %c0_5 = arith.constant 0 : index
    %c1 = arith.constant 1 : index
    %c0_6 = arith.constant 0 : index
    %c0_7 = arith.constant 0 : index
    %4 = vector.load %arg1[%c0_5, %c1, %c0_6, %c0_7] : memref<2x2x450x27xbf16, #tpu.memory_space<vmem>>, vector<1x1x450x27xbf16>
    %5 = vector.shape_cast %4 : vector<1x1x450x27xbf16> to vector<450x27xbf16>
    %cst_8 = arith.constant dense<0.000000e+00> : vector<450x64xf32>
    %6 = tpu.matmul %5, %0, %cst_8 {dimension_numbers = #tpu.dot_dimension_numbers<[1], [0], [0], [1], [0, 0, 1, 1], [], []>} : vector<450x27xbf16>, vector<27x64xbf16>, vector<450x64xf32> -> vector<450x64xf32>
    %c1_9 = arith.constant 1 : index
    %c0_10 = arith.constant 0 : index
    %c0_11 = arith.constant 0 : index
    %c0_12 = arith.constant 0 : index
    %7 = vector.load %arg1[%c1_9, %c0_10, %c0_11, %c0_12] : memref<2x2x450x27xbf16, #tpu.memory_space<vmem>>, vector<1x1x450x27xbf16>
    %8 = vector.shape_cast %7 : vector<1x1x450x27xbf16> to vector<450x27xbf16>
    %cst_13 = arith.constant dense<0.000000e+00> : vector<450x64xf32>
    %9 = tpu.matmul %8, %0, %cst_13 {dimension_numbers = #tpu.dot_dimension_numbers<[1], [0], [0], [1], [0, 0, 1, 1], [], []>} : vector<450x27xbf16>, vector<27x64xbf16>, vector<450x64xf32> -> vector<450x64xf32>
    %c1_14 = arith.constant 1 : index
    %c1_15 = arith.constant 1 : index
    %c0_16 = arith.constant 0 : index
    %c0_17 = arith.constant 0 : index
    %10 = vector.load %arg1[%c1_14, %c1_15, %c0_16, %c0_17] : memref<2x2x450x27xbf16, #tpu.memory_space<vmem>>, vector<1x1x450x27xbf16>
    %11 = vector.shape_cast %10 : vector<1x1x450x27xbf16> to vector<450x27xbf16>
    %cst_18 = arith.constant dense<0.000000e+00> : vector<450x64xf32>
    %12 = tpu.matmul %11, %0, %cst_18 {dimension_numbers = #tpu.dot_dimension_numbers<[1], [0], [0], [1], [0, 0, 1, 1], [], []>} : vector<450x27xbf16>, vector<27x64xbf16>, vector<450x64xf32> -> vector<450x64xf32>
    %13 = arith.maximumf %3, %6 : vector<450x64xf32>
    %14 = arith.maximumf %9, %12 : vector<450x64xf32>
    %15 = arith.maximumf %13, %14 : vector<450x64xf32>
    %c0_19 = arith.constant 0 : index
    %c0_20 = arith.constant 0 : index
    %16 = vector.load %arg3[%c0_19, %c0_20] : memref<1x64xf32, #tpu.memory_space<vmem>>, vector<1x64xf32>
    %17 = vector.broadcast %16 : vector<1x64xf32> to vector<450x64xf32>
    %18 = arith.addf %15, %17 : vector<450x64xf32>
    %cst_21 = arith.constant 0.000000e+00 : f32
    %19 = vector.broadcast %cst_21 : f32 to vector<450x64xf32>
    %20 = arith.maximumf %18, %19 : vector<450x64xf32>
    %21 = arith.truncf %20 : vector<450x64xf32> to vector<450x64xbf16>
    %c0_22 = arith.constant 0 : index
    %c0_23 = arith.constant 0 : index
    %22 = vector.load %arg4[%c0_22, %c0_23] : memref<450x64xbf16, #tpu.memory_space<vmem>>, vector<450x64xbf16>
    tpu.vector_store %arg4[%c0_22, %c0_23], %21 {strides = array<i32>} : memref<450x64xbf16, #tpu.memory_space<vmem>>, vector<450x64xbf16>,
    return
  }
  func.func @transform_0(%arg0: i32) -> (i32, i32, i32, i32) {
    %c0_i32 = arith.constant 0 : i32
    %c0_i32_0 = arith.constant 0 : i32
    %c0_i32_1 = arith.constant 0 : i32
    %c0_i32_2 = arith.constant 0 : i32
    return %c0_i32, %c0_i32_0, %arg0, %c0_i32_1 : i32, i32, i32, i32
  }
  func.func @transform_1(%arg0: i32) -> (i32, i32) {
    %c0_i32 = arith.constant 0 : i32
    %c0_i32_0 = arith.constant 0 : i32
    %c0_i32_1 = arith.constant 0 : i32
    return %c0_i32, %c0_i32_0 : i32, i32
  }
  func.func @transform_2(%arg0: i32) -> (i32, i32) {
    %c0_i32 = arith.constant 0 : i32
    %c0_i32_0 = arith.constant 0 : i32
    %c0_i32_1 = arith.constant 0 : i32
    return %c0_i32, %c0_i32_0 : i32, i32
  }
  func.func @transform_3(%arg0: i32) -> (i32, i32) {
    %c0_i32 = arith.constant 0 : i32
    %c0_i32_0 = arith.constant 0 : i32
    return %arg0, %c0_i32 : i32, i32
  }
}

module attributes {stable_mosaic.version = 11 : i64} {
  func.func @_conv_bias_relu_pool_kernel(%arg0: i32, %arg1: memref<2x2x72x576xbf16, #tpu.memory_space<vmem>>, %arg2: memref<576x128xbf16, #tpu.memory_space<vmem>>, %arg3: memref<1x128xf32, #tpu.memory_space<vmem>>, %arg4: memref<72x128xbf16, #tpu.memory_space<vmem>>) attributes {dimension_semantics = [#tpu.dimension_semantics<parallel>], iteration_bounds = array<i64: 1>, scalar_prefetch = 0 : i64, scratch_operands = 0 : i64, tpu.core_type = #tpu.core_type<tc>, window_params = [{transform_indices = @transform_0, window_bounds = array<i64: 2, 2, 72, 576>}, {pipeline_mode = #tpu.pipeline_mode<synchronous>, transform_indices = @transform_1, window_bounds = array<i64: 576, 128>}, {pipeline_mode = #tpu.pipeline_mode<synchronous>, transform_indices = @transform_2, window_bounds = array<i64: 1, 128>}, {transform_indices = @transform_3, window_bounds = array<i64: 72, 128>}]} {
    %c0 = arith.constant 0 : index
    %c0_0 = arith.constant 0 : index
    %0 = vector.load %arg2[%c0, %c0_0] : memref<576x128xbf16, #tpu.memory_space<vmem>>, vector<576x128xbf16>
    %c0_1 = arith.constant 0 : index
    %c0_2 = arith.constant 0 : index
    %c0_3 = arith.constant 0 : index
    %c0_4 = arith.constant 0 : index
    %1 = vector.load %arg1[%c0_1, %c0_2, %c0_3, %c0_4] : memref<2x2x72x576xbf16, #tpu.memory_space<vmem>>, vector<1x1x72x576xbf16>
    %2 = vector.shape_cast %1 : vector<1x1x72x576xbf16> to vector<72x576xbf16>
    %cst = arith.constant dense<0.000000e+00> : vector<72x128xf32>
    %3 = tpu.matmul %2, %0, %cst {dimension_numbers = #tpu.dot_dimension_numbers<[1], [0], [0], [1], [0, 0, 1, 1], [], []>} : vector<72x576xbf16>, vector<576x128xbf16>, vector<72x128xf32> -> vector<72x128xf32>
    %c0_5 = arith.constant 0 : index
    %c1 = arith.constant 1 : index
    %c0_6 = arith.constant 0 : index
    %c0_7 = arith.constant 0 : index
    %4 = vector.load %arg1[%c0_5, %c1, %c0_6, %c0_7] : memref<2x2x72x576xbf16, #tpu.memory_space<vmem>>, vector<1x1x72x576xbf16>
    %5 = vector.shape_cast %4 : vector<1x1x72x576xbf16> to vector<72x576xbf16>
    %cst_8 = arith.constant dense<0.000000e+00> : vector<72x128xf32>
    %6 = tpu.matmul %5, %0, %cst_8 {dimension_numbers = #tpu.dot_dimension_numbers<[1], [0], [0], [1], [0, 0, 1, 1], [], []>} : vector<72x576xbf16>, vector<576x128xbf16>, vector<72x128xf32> -> vector<72x128xf32>
    %c1_9 = arith.constant 1 : index
    %c0_10 = arith.constant 0 : index
    %c0_11 = arith.constant 0 : index
    %c0_12 = arith.constant 0 : index
    %7 = vector.load %arg1[%c1_9, %c0_10, %c0_11, %c0_12] : memref<2x2x72x576xbf16, #tpu.memory_space<vmem>>, vector<1x1x72x576xbf16>
    %8 = vector.shape_cast %7 : vector<1x1x72x576xbf16> to vector<72x576xbf16>
    %cst_13 = arith.constant dense<0.000000e+00> : vector<72x128xf32>
    %9 = tpu.matmul %8, %0, %cst_13 {dimension_numbers = #tpu.dot_dimension_numbers<[1], [0], [0], [1], [0, 0, 1, 1], [], []>} : vector<72x576xbf16>, vector<576x128xbf16>, vector<72x128xf32> -> vector<72x128xf32>
    %c1_14 = arith.constant 1 : index
    %c1_15 = arith.constant 1 : index
    %c0_16 = arith.constant 0 : index
    %c0_17 = arith.constant 0 : index
    %10 = vector.load %arg1[%c1_14, %c1_15, %c0_16, %c0_17] : memref<2x2x72x576xbf16, #tpu.memory_space<vmem>>, vector<1x1x72x576xbf16>
    %11 = vector.shape_cast %10 : vector<1x1x72x576xbf16> to vector<72x576xbf16>
    %cst_18 = arith.constant dense<0.000000e+00> : vector<72x128xf32>
    %12 = tpu.matmul %11, %0, %cst_18 {dimension_numbers = #tpu.dot_dimension_numbers<[1], [0], [0], [1], [0, 0, 1, 1], [], []>} : vector<72x576xbf16>, vector<576x128xbf16>, vector<72x128xf32> -> vector<72x128xf32>
    %13 = arith.maximumf %3, %6 : vector<72x128xf32>
    %14 = arith.maximumf %9, %12 : vector<72x128xf32>
    %15 = arith.maximumf %13, %14 : vector<72x128xf32>
    %c0_19 = arith.constant 0 : index
    %c0_20 = arith.constant 0 : index
    %16 = vector.load %arg3[%c0_19, %c0_20] : memref<1x128xf32, #tpu.memory_space<vmem>>, vector<1x128xf32>
    %17 = vector.broadcast %16 : vector<1x128xf32> to vector<72x128xf32>
    %18 = arith.addf %15, %17 : vector<72x128xf32>
    %cst_21 = arith.constant 0.000000e+00 : f32
    %19 = vector.broadcast %cst_21 : f32 to vector<72x128xf32>
    %20 = arith.maximumf %18, %19 : vector<72x128xf32>
    %21 = arith.truncf %20 : vector<72x128xf32> to vector<72x128xbf16>
    %c0_22 = arith.constant 0 : index
    %c0_23 = arith.constant 0 : index
    %22 = vector.load %arg4[%c0_22, %c0_23] : memref<72x128xbf16, #tpu.memory_space<vmem>>, vector<72x128xbf16>
    tpu.vector_store %arg4[%c0_22, %c0_23], %21 {strides = array<i32>} : memref<72x128xbf16, #tpu.memory_space<vmem>>, vector<72x128xbf16>,
    return
  }
  func.func @transform_0(%arg0: i32) -> (i32, i32, i32, i32) {
    %c0_i32 = arith.constant 0 : i32
    %c0_i32_0 = arith.constant 0 : i32
    %c0_i32_1 = arith.constant 0 : i32
    %c0_i32_2 = arith.constant 0 : i32
    return %c0_i32, %c0_i32_0, %arg0, %c0_i32_1 : i32, i32, i32, i32
  }
  func.func @transform_1(%arg0: i32) -> (i32, i32) {
    %c0_i32 = arith.constant 0 : i32
    %c0_i32_0 = arith.constant 0 : i32
    %c0_i32_1 = arith.constant 0 : i32
    return %c0_i32, %c0_i32_0 : i32, i32
  }
  func.func @transform_2(%arg0: i32) -> (i32, i32) {
    %c0_i32 = arith.constant 0 : i32
    %c0_i32_0 = arith.constant 0 : i32
    %c0_i32_1 = arith.constant 0 : i32
    return %c0_i32, %c0_i32_0 : i32, i32
  }
  func.func @transform_3(%arg0: i32) -> (i32, i32) {
    %c0_i32 = arith.constant 0 : i32
    %c0_i32_0 = arith.constant 0 : i32
    return %arg0, %c0_i32 : i32, i32
  }
}

module attributes {stable_mosaic.version = 11 : i64} {
  func.func @_conv_bias_relu_pool_kernel(%arg0: i32, %arg1: memref<2x2x8x1152xbf16, #tpu.memory_space<vmem>>, %arg2: memref<1152x256xbf16, #tpu.memory_space<vmem>>, %arg3: memref<1x256xf32, #tpu.memory_space<vmem>>, %arg4: memref<8x256xbf16, #tpu.memory_space<vmem>>) attributes {dimension_semantics = [#tpu.dimension_semantics<parallel>], iteration_bounds = array<i64: 1>, scalar_prefetch = 0 : i64, scratch_operands = 0 : i64, tpu.core_type = #tpu.core_type<tc>, window_params = [{transform_indices = @transform_0, window_bounds = array<i64: 2, 2, 8, 1152>}, {pipeline_mode = #tpu.pipeline_mode<synchronous>, transform_indices = @transform_1, window_bounds = array<i64: 1152, 256>}, {pipeline_mode = #tpu.pipeline_mode<synchronous>, transform_indices = @transform_2, window_bounds = array<i64: 1, 256>}, {transform_indices = @transform_3, window_bounds = array<i64: 8, 256>}]} {
    %c0 = arith.constant 0 : index
    %c0_0 = arith.constant 0 : index
    %0 = vector.load %arg2[%c0, %c0_0] : memref<1152x256xbf16, #tpu.memory_space<vmem>>, vector<1152x256xbf16>
    %c0_1 = arith.constant 0 : index
    %c0_2 = arith.constant 0 : index
    %c0_3 = arith.constant 0 : index
    %c0_4 = arith.constant 0 : index
    %1 = vector.load %arg1[%c0_1, %c0_2, %c0_3, %c0_4] : memref<2x2x8x1152xbf16, #tpu.memory_space<vmem>>, vector<1x1x8x1152xbf16>
    %2 = vector.shape_cast %1 : vector<1x1x8x1152xbf16> to vector<8x1152xbf16>
    %cst = arith.constant dense<0.000000e+00> : vector<8x256xf32>
    %3 = tpu.matmul %2, %0, %cst {dimension_numbers = #tpu.dot_dimension_numbers<[1], [0], [0], [1], [0, 0, 1, 1], [], []>} : vector<8x1152xbf16>, vector<1152x256xbf16>, vector<8x256xf32> -> vector<8x256xf32>
    %c0_5 = arith.constant 0 : index
    %c1 = arith.constant 1 : index
    %c0_6 = arith.constant 0 : index
    %c0_7 = arith.constant 0 : index
    %4 = vector.load %arg1[%c0_5, %c1, %c0_6, %c0_7] : memref<2x2x8x1152xbf16, #tpu.memory_space<vmem>>, vector<1x1x8x1152xbf16>
    %5 = vector.shape_cast %4 : vector<1x1x8x1152xbf16> to vector<8x1152xbf16>
    %cst_8 = arith.constant dense<0.000000e+00> : vector<8x256xf32>
    %6 = tpu.matmul %5, %0, %cst_8 {dimension_numbers = #tpu.dot_dimension_numbers<[1], [0], [0], [1], [0, 0, 1, 1], [], []>} : vector<8x1152xbf16>, vector<1152x256xbf16>, vector<8x256xf32> -> vector<8x256xf32>
    %c1_9 = arith.constant 1 : index
    %c0_10 = arith.constant 0 : index
    %c0_11 = arith.constant 0 : index
    %c0_12 = arith.constant 0 : index
    %7 = vector.load %arg1[%c1_9, %c0_10, %c0_11, %c0_12] : memref<2x2x8x1152xbf16, #tpu.memory_space<vmem>>, vector<1x1x8x1152xbf16>
    %8 = vector.shape_cast %7 : vector<1x1x8x1152xbf16> to vector<8x1152xbf16>
    %cst_13 = arith.constant dense<0.000000e+00> : vector<8x256xf32>
    %9 = tpu.matmul %8, %0, %cst_13 {dimension_numbers = #tpu.dot_dimension_numbers<[1], [0], [0], [1], [0, 0, 1, 1], [], []>} : vector<8x1152xbf16>, vector<1152x256xbf16>, vector<8x256xf32> -> vector<8x256xf32>
    %c1_14 = arith.constant 1 : index
    %c1_15 = arith.constant 1 : index
    %c0_16 = arith.constant 0 : index
    %c0_17 = arith.constant 0 : index
    %10 = vector.load %arg1[%c1_14, %c1_15, %c0_16, %c0_17] : memref<2x2x8x1152xbf16, #tpu.memory_space<vmem>>, vector<1x1x8x1152xbf16>
    %11 = vector.shape_cast %10 : vector<1x1x8x1152xbf16> to vector<8x1152xbf16>
    %cst_18 = arith.constant dense<0.000000e+00> : vector<8x256xf32>
    %12 = tpu.matmul %11, %0, %cst_18 {dimension_numbers = #tpu.dot_dimension_numbers<[1], [0], [0], [1], [0, 0, 1, 1], [], []>} : vector<8x1152xbf16>, vector<1152x256xbf16>, vector<8x256xf32> -> vector<8x256xf32>
    %13 = arith.maximumf %3, %6 : vector<8x256xf32>
    %14 = arith.maximumf %9, %12 : vector<8x256xf32>
    %15 = arith.maximumf %13, %14 : vector<8x256xf32>
    %c0_19 = arith.constant 0 : index
    %c0_20 = arith.constant 0 : index
    %16 = vector.load %arg3[%c0_19, %c0_20] : memref<1x256xf32, #tpu.memory_space<vmem>>, vector<1x256xf32>
    %17 = vector.broadcast %16 : vector<1x256xf32> to vector<8x256xf32>
    %18 = arith.addf %15, %17 : vector<8x256xf32>
    %cst_21 = arith.constant 0.000000e+00 : f32
    %19 = vector.broadcast %cst_21 : f32 to vector<8x256xf32>
    %20 = arith.maximumf %18, %19 : vector<8x256xf32>
    %21 = arith.truncf %20 : vector<8x256xf32> to vector<8x256xbf16>
    %c0_22 = arith.constant 0 : index
    %c0_23 = arith.constant 0 : index
    %22 = vector.load %arg4[%c0_22, %c0_23] : memref<8x256xbf16, #tpu.memory_space<vmem>>, vector<8x256xbf16>
    tpu.vector_store %arg4[%c0_22, %c0_23], %21 {strides = array<i32>} : memref<8x256xbf16, #tpu.memory_space<vmem>>, vector<8x256xbf16>,
    return
  }
  func.func @transform_0(%arg0: i32) -> (i32, i32, i32, i32) {
    %c0_i32 = arith.constant 0 : i32
    %c0_i32_0 = arith.constant 0 : i32
    %c0_i32_1 = arith.constant 0 : i32
    %c0_i32_2 = arith.constant 0 : i32
    return %c0_i32, %c0_i32_0, %arg0, %c0_i32_1 : i32, i32, i32, i32
  }
  func.func @transform_1(%arg0: i32) -> (i32, i32) {
    %c0_i32 = arith.constant 0 : i32
    %c0_i32_0 = arith.constant 0 : i32
    %c0_i32_1 = arith.constant 0 : i32
    return %c0_i32, %c0_i32_0 : i32, i32
  }
  func.func @transform_2(%arg0: i32) -> (i32, i32) {
    %c0_i32 = arith.constant 0 : i32
    %c0_i32_0 = arith.constant 0 : i32
    %c0_i32_1 = arith.constant 0 : i32
    return %c0_i32, %c0_i32_0 : i32, i32
  }
  func.func @transform_3(%arg0: i32) -> (i32, i32) {
    %c0_i32 = arith.constant 0 : i32
    %c0_i32_0 = arith.constant 0 : i32
    return %arg0, %c0_i32 : i32, i32
  }
}

module attributes {stable_mosaic.version = 11 : i64} {
  func.func @_fc_fused_kernel(%arg0: i32, %arg1: memref<2x1024xbf16, #tpu.memory_space<vmem>>, %arg2: memref<1024x128xbf16, #tpu.memory_space<vmem>>, %arg3: memref<1x128xf32, #tpu.memory_space<vmem>>, %arg4: memref<128x256xbf16, #tpu.memory_space<vmem>>, %arg5: memref<1x256xf32, #tpu.memory_space<vmem>>, %arg6: memref<256x10xbf16, #tpu.memory_space<vmem>>, %arg7: memref<1x10xf32, #tpu.memory_space<vmem>>, %arg8: memref<2x10xf32, #tpu.memory_space<vmem>>) attributes {dimension_semantics = [#tpu.dimension_semantics<parallel>], iteration_bounds = array<i64: 1>, scalar_prefetch = 0 : i64, scratch_operands = 0 : i64, tpu.core_type = #tpu.core_type<tc>, window_params = [{transform_indices = @transform_0, window_bounds = array<i64: 2, 1024>}, {pipeline_mode = #tpu.pipeline_mode<synchronous>, transform_indices = @transform_1, window_bounds = array<i64: 1024, 128>}, {pipeline_mode = #tpu.pipeline_mode<synchronous>, transform_indices = @transform_2, window_bounds = array<i64: 1, 128>}, {pipeline_mode = #tpu.pipeline_mode<synchronous>, transform_indices = @transform_3, window_bounds = array<i64: 128, 256>}, {pipeline_mode = #tpu.pipeline_mode<synchronous>, transform_indices = @transform_4, window_bounds = array<i64: 1, 256>}, {pipeline_mode = #tpu.pipeline_mode<synchronous>, transform_indices = @transform_5, window_bounds = array<i64: 256, 10>}, {pipeline_mode = #tpu.pipeline_mode<synchronous>, transform_indices = @transform_6, window_bounds = array<i64: 1, 10>}, {transform_indices = @transform_7, window_bounds = array<i64: 2, 10>}]} {
    %c0 = arith.constant 0 : index
    %c0_0 = arith.constant 0 : index
    %0 = vector.load %arg1[%c0, %c0_0] : memref<2x1024xbf16, #tpu.memory_space<vmem>>, vector<2x1024xbf16>
    %c0_1 = arith.constant 0 : index
    %c0_2 = arith.constant 0 : index
    %1 = vector.load %arg2[%c0_1, %c0_2] : memref<1024x128xbf16, #tpu.memory_space<vmem>>, vector<1024x128xbf16>
    %cst = arith.constant dense<0.000000e+00> : vector<2x128xf32>
    %2 = tpu.matmul %0, %1, %cst {dimension_numbers = #tpu.dot_dimension_numbers<[1], [0], [0], [1], [0, 0, 1, 1], [], []>} : vector<2x1024xbf16>, vector<1024x128xbf16>, vector<2x128xf32> -> vector<2x128xf32>
    %c0_3 = arith.constant 0 : index
    %c0_4 = arith.constant 0 : index
    %3 = vector.load %arg3[%c0_3, %c0_4] : memref<1x128xf32, #tpu.memory_space<vmem>>, vector<1x128xf32>
    %4 = vector.broadcast %3 : vector<1x128xf32> to vector<2x128xf32>
    %5 = arith.addf %2, %4 : vector<2x128xf32>
    %cst_5 = arith.constant 0.000000e+00 : f32
    %6 = vector.broadcast %cst_5 : f32 to vector<2x128xf32>
    %7 = arith.maximumf %5, %6 : vector<2x128xf32>
    %8 = arith.truncf %7 : vector<2x128xf32> to vector<2x128xbf16>
    %c0_6 = arith.constant 0 : index
    %c0_7 = arith.constant 0 : index
    %9 = vector.load %arg4[%c0_6, %c0_7] : memref<128x256xbf16, #tpu.memory_space<vmem>>, vector<128x256xbf16>
    %cst_8 = arith.constant dense<0.000000e+00> : vector<2x256xf32>
    %10 = tpu.matmul %8, %9, %cst_8 {dimension_numbers = #tpu.dot_dimension_numbers<[1], [0], [0], [1], [0, 0, 1, 1], [], []>} : vector<2x128xbf16>, vector<128x256xbf16>, vector<2x256xf32> -> vector<2x256xf32>
    %c0_9 = arith.constant 0 : index
    %c0_10 = arith.constant 0 : index
    %11 = vector.load %arg5[%c0_9, %c0_10] : memref<1x256xf32, #tpu.memory_space<vmem>>, vector<1x256xf32>
    %12 = vector.broadcast %11 : vector<1x256xf32> to vector<2x256xf32>
    %13 = arith.addf %10, %12 : vector<2x256xf32>
    %cst_11 = arith.constant 0.000000e+00 : f32
    %14 = vector.broadcast %cst_11 : f32 to vector<2x256xf32>
    %15 = arith.maximumf %13, %14 : vector<2x256xf32>
    %16 = arith.truncf %15 : vector<2x256xf32> to vector<2x256xbf16>
    %c0_12 = arith.constant 0 : index
    %c0_13 = arith.constant 0 : index
    %17 = vector.load %arg6[%c0_12, %c0_13] : memref<256x10xbf16, #tpu.memory_space<vmem>>, vector<256x10xbf16>
    %cst_14 = arith.constant dense<0.000000e+00> : vector<2x10xf32>
    %18 = tpu.matmul %16, %17, %cst_14 {dimension_numbers = #tpu.dot_dimension_numbers<[1], [0], [0], [1], [0, 0, 1, 1], [], []>} : vector<2x256xbf16>, vector<256x10xbf16>, vector<2x10xf32> -> vector<2x10xf32>
    %c0_15 = arith.constant 0 : index
    %c0_16 = arith.constant 0 : index
    %19 = vector.load %arg7[%c0_15, %c0_16] : memref<1x10xf32, #tpu.memory_space<vmem>>, vector<1x10xf32>
    %20 = vector.broadcast %19 : vector<1x10xf32> to vector<2x10xf32>
    %21 = arith.addf %18, %20 : vector<2x10xf32>
    %c0_17 = arith.constant 0 : index
    %c0_18 = arith.constant 0 : index
    %22 = vector.load %arg8[%c0_17, %c0_18] : memref<2x10xf32, #tpu.memory_space<vmem>>, vector<2x10xf32>
    tpu.vector_store %arg8[%c0_17, %c0_18], %21 {strides = array<i32>} : memref<2x10xf32, #tpu.memory_space<vmem>>, vector<2x10xf32>,
    return
  }
  func.func @transform_0(%arg0: i32) -> (i32, i32) {
    %c0_i32 = arith.constant 0 : i32
    %c0_i32_0 = arith.constant 0 : i32
    return %arg0, %c0_i32 : i32, i32
  }
  func.func @transform_1(%arg0: i32) -> (i32, i32) {
    %c0_i32 = arith.constant 0 : i32
    %c0_i32_0 = arith.constant 0 : i32
    %c0_i32_1 = arith.constant 0 : i32
    return %c0_i32, %c0_i32_0 : i32, i32
  }
  func.func @transform_2(%arg0: i32) -> (i32, i32) {
    %c0_i32 = arith.constant 0 : i32
    %c0_i32_0 = arith.constant 0 : i32
    %c0_i32_1 = arith.constant 0 : i32
    return %c0_i32, %c0_i32_0 : i32, i32
  }
  func.func @transform_3(%arg0: i32) -> (i32, i32) {
    %c0_i32 = arith.constant 0 : i32
    %c0_i32_0 = arith.constant 0 : i32
    %c0_i32_1 = arith.constant 0 : i32
    return %c0_i32, %c0_i32_0 : i32, i32
  }
  func.func @transform_4(%arg0: i32) -> (i32, i32) {
    %c0_i32 = arith.constant 0 : i32
    %c0_i32_0 = arith.constant 0 : i32
    %c0_i32_1 = arith.constant 0 : i32
    return %c0_i32, %c0_i32_0 : i32, i32
  }
  func.func @transform_5(%arg0: i32) -> (i32, i32) {
    %c0_i32 = arith.constant 0 : i32
    %c0_i32_0 = arith.constant 0 : i32
    %c0_i32_1 = arith.constant 0 : i32
    return %c0_i32, %c0_i32_0 : i32, i32
  }
  func.func @transform_6(%arg0: i32) -> (i32, i32) {
    %c0_i32 = arith.constant 0 : i32
    %c0_i32_0 = arith.constant 0 : i32
    %c0_i32_1 = arith.constant 0 : i32
    return %c0_i32, %c0_i32_0 : i32, i32
  }
  func.func @transform_7(%arg0: i32) -> (i32, i32) {
    %c0_i32 = arith.constant 0 : i32
    %c0_i32_0 = arith.constant 0 : i32
    return %arg0, %c0_i32 : i32, i32
  }
}

</mosaic_0001>

<llo_original>
// kernel: net_forward.4
$region0: #{net_forward.4}
  #allocation0 [shape = 'u32[]', space=smem, size = 0x4, offset = 0x4, fixed_abs, tag = 'smem constant byte address 0x4 - core index']
  #allocation1 [shape = 'u32[144,128]{1,0:T(1,128)}', space=vmem, size = 0x12000, scoped, tag = 'internal scratch']
  %s0 = inlined_call_operand.vmem [shape: bf16[2,2,450,27], index: 0, kind: input, shape index: {}]
  %s1 = inlined_call_operand.vmem [shape: bf16[27,64], index: 1, kind: input, shape index: {}]
  %s2 = inlined_call_operand.vmem [shape: f32[1,64], index: 2, kind: input, shape index: {}]
  %s3 = inlined_call_operand.vmem [shape: bf16[450,64], index: 3, kind: output, shape index: {}]
  %s4 = sld [smem:[#allocation0]]
  $region22: #{net_forward.4} parent=0
    _
  %s6 = ssub.s32 1, %s4
  %s7 = scalar_select 0, %s6, %s4
  // Predicated region
  $region2: #{net_forward.4} parent=0 // pred_check
    _
  $region3: #{net_forward.4} parent=0 // pred_check_branch
    %9 = sbr.rel (0) target = $region5
  $region4: #{net_forward.4} parent=0 // pred_region
    _
  $region5: #{net_forward.4} parent=0 // pred_fallthru
    _
  // Predicated region
  $region6: #{net_forward.4} parent=0 // pred_check
    _
  $region7: #{net_forward.4} parent=0 // pred_check_branch
    %11 = sbr.rel (0) target = $region9
  $region8: #{net_forward.4} parent=0 // pred_region
    _
  $region9: #{net_forward.4} parent=0 // pred_fallthru
    _
  // Predicated region
  $region10: #{net_forward.4} parent=0 // pred_check
    _
  $region11: #{net_forward.4} parent=0 // pred_check_branch
    %13 = sbr.rel (0) target = $region13
  $region12: #{net_forward.4} parent=0 // pred_region
    _
  $region13: #{net_forward.4} parent=0 // pred_fallthru
    _
  %v15 = vld [vmem:[%s1] sm:$0xf]
  %v16 = vld [vmem:[%s1 + $0x4] sm:$0xf]
  %v17 = vld [vmem:[%s1 + $0x8] sm:$0xf]
  %v18 = vld [vmem:[%s1 + $0xc] sm:$0x3]
  %v19 = vld [vmem:[%s0] sm:$0xf]
  %v20 = vld [vmem:[%s0 + $0x4] sm:$0xf]
  %v21 = vld [vmem:[%s0 + $0x8] sm:$0xf]
  %v22 = vld [vmem:[%s0 + $0xc] sm:$0xf]
  %v23 = vld [vmem:[%s0 + $0x10] sm:$0xf]
  %v24 = vld [vmem:[%s0 + $0x14] sm:$0xf]
  %v25 = vld [vmem:[%s0 + $0x18] sm:$0xf]
  %v26 = vld [vmem:[%s0 + $0x1c] sm:$0xf]
  %v27 = vld [vmem:[%s0 + $0x20] sm:$0xf]
  %v28 = vld [vmem:[%s0 + $0x24] sm:$0xf]
  %v29 = vld [vmem:[%s0 + $0x28] sm:$0xf]
  %v30 = vld [vmem:[%s0 + $0x2c] sm:$0xf]
  %v31 = vld [vmem:[%s0 + $0x30] sm:$0xf]
  %v32 = vld [vmem:[%s0 + $0x34] sm:$0xf]
  %v33 = vld [vmem:[%s0 + $0x38] sm:$0xf]
  %v34 = vld [vmem:[%s0 + $0x3c] sm:$0xf]
  %v35 = vld [vmem:[%s0 + $0x40] sm:$0xf]
  %v36 = vld [vmem:[%s0 + $0x44] sm:$0xf]
  %v37 = vld [vmem:[%s0 + $0x48] sm:$0xf]
  %v38 = vld [vmem:[%s0 + $0x4c] sm:$0xf]
  %v39 = vld [vmem:[%s0 + $0x50] sm:$0xf]
  %v40 = vld [vmem:[%s0 + $0x54] sm:$0xf]
  %v41 = vld [vmem:[%s0 + $0x58] sm:$0xf]
  %v42 = vld [vmem:[%s0 + $0x5c] sm:$0xf]
  %v43 = vld [vmem:[%s0 + $0x60] sm:$0xf]
  %v44 = vld [vmem:[%s0 + $0x64] sm:$0xf]
  %v45 = vld [vmem:[%s0 + $0x68] sm:$0xf]
  %v46 = vld [vmem:[%s0 + $0x6c] sm:$0xf]
  %v47 = vld [vmem:[%s0 + $0x70] sm:$0xf]
  %v48 = vld [vmem:[%s0 + $0x74] sm:$0xf]
  %v49 = vld [vmem:[%s0 + $0x78] sm:$0xf]
  %v50 = vld [vmem:[%s0 + $0x7c] sm:$0xf]
  %v51 = vld [vmem:[%s0 + $0x80] sm:$0xf]
  %v52 = vld [vmem:[%s0 + $0x84] sm:$0xf]
  %v53 = vld [vmem:[%s0 + $0x88] sm:$0xf]
  %v54 = vld [vmem:[%s0 + $0x8c] sm:$0xf]
  %v55 = vld [vmem:[%s0 + $0x90] sm:$0xf]
  %v56 = vld [vmem:[%s0 + $0x94] sm:$0xf]
  %v57 = vld [vmem:[%s0 + $0x98] sm:$0xf]
  %v58 = vld [vmem:[%s0 + $0x9c] sm:$0xf]
  %v59 = vld [vmem:[%s0 + $0xa0] sm:$0xf]
  %v60 = vld [vmem:[%s0 + $0xa4] sm:$0xf]
  %v61 = vld [vmem:[%s0 + $0xa8] sm:$0xf]
  %v62 = vld [vmem:[%s0 + $0xac] sm:$0xf]
  %v63 = vld [vmem:[%s0 + $0xb0] sm:$0xf]
  %v64 = vld [vmem:[%s0 + $0xb4] sm:$0xf]
  %v65 = vld [vmem:[%s0 + $0xb8] sm:$0xf]
  %v66 = vld [vmem:[%s0 + $0xbc] sm:$0xf]
  %v67 = vld [vmem:[%s0 + $0xc0] sm:$0xf]
  %v68 = vld [vmem:[%s0 + $0xc4] sm:$0xf]
  %v69 = vld [vmem:[%s0 + $0xc8] sm:$0xf]
  %v70 = vld [vmem:[%s0 + $0xcc] sm:$0xf]
  %v71 = vld [vmem:[%s0 + $0xd0] sm:$0xf]
  %v72 = vld [vmem:[%s0 + $0xd4] sm:$0xf]
  %v73 = vld [vmem:[%s0 + $0xd8] sm:$0xf]
  %v74 = vld [vmem:[%s0 + $0xdc] sm:$0xf]
  %v75 = vld [vmem:[%s0 + $0xe0] sm:$0x1]
  %v133 = vunpack.c.l.b16 %v19
  %v134 = vunpack.c.l.b16 %v20
  %v135 = vunpack.c.l.b16 %v21
  %v136 = vunpack.c.l.b16 %v22
  %v137 = vunpack.c.l.b16 %v23
  %v138 = vunpack.c.l.b16 %v24
  %v139 = vunpack.c.l.b16 %v25
  %v140 = vunpack.c.l.b16 %v26
  %v141 = vunpack.c.l.b16 %v27
  %v142 = vunpack.c.l.b16 %v28
  %v143 = vunpack.c.l.b16 %v29
  %v144 = vunpack.c.l.b16 %v30
  %v145 = vunpack.c.l.b16 %v31
  %v146 = vunpack.c.l.b16 %v32
  %v147 = vunpack.c.l.b16 %v33
  %v148 = vunpack.c.l.b16 %v34
  %v149 = vunpack.c.l.b16 %v35
  %v150 = vunpack.c.l.b16 %v36
  %v151 = vunpack.c.l.b16 %v37
  %v152 = vunpack.c.l.b16 %v38
  %v153 = vunpack.c.l.b16 %v39
  %v154 = vunpack.c.l.b16 %v40
  %v155 = vunpack.c.l.b16 %v41
  %v156 = vunpack.c.l.b16 %v42
  %v157 = vunpack.c.l.b16 %v43
  %v158 = vunpack.c.l.b16 %v44
  %v159 = vunpack.c.l.b16 %v45
  %v160 = vunpack.c.l.b16 %v46
  %v161 = vunpack.c.l.b16 %v47
  %v162 = vunpack.c.l.b16 %v48
  %v163 = vunpack.c.l.b16 %v49
  %v164 = vunpack.c.l.b16 %v50
  %v165 = vunpack.c.l.b16 %v51
  %v166 = vunpack.c.l.b16 %v52
  %v167 = vunpack.c.l.b16 %v53
  %v168 = vunpack.c.l.b16 %v54
  %v169 = vunpack.c.l.b16 %v55
  %v170 = vunpack.c.l.b16 %v56
  %v171 = vunpack.c.l.b16 %v57
  %v172 = vunpack.c.l.b16 %v58
  %v173 = vunpack.c.l.b16 %v59
  %v174 = vunpack.c.l.b16 %v60
  %v175 = vunpack.c.l.b16 %v61
  %v176 = vunpack.c.l.b16 %v62
  %v177 = vunpack.c.l.b16 %v63
  %v178 = vunpack.c.l.b16 %v64
  %v179 = vunpack.c.l.b16 %v65
  %v180 = vunpack.c.l.b16 %v66
  %v181 = vunpack.c.l.b16 %v67
  %v182 = vunpack.c.l.b16 %v68
  %v183 = vunpack.c.l.b16 %v69
  %v184 = vunpack.c.l.b16 %v70
  %v185 = vunpack.c.l.b16 %v71
  %v186 = vunpack.c.l.b16 %v72
  %v187 = vunpack.c.l.b16 %v73
  %v188 = vunpack.c.l.b16 %v74
  %v189 = vunpack.c.l.b16 %v75
  %v190 = vpack.c.b16 %v134, %v133
  %v191 = vpack.c.b16 %v136, %v135
  %v192 = vpack.c.b16 %v138, %v137
  %v193 = vpack.c.b16 %v140, %v139
  %v194 = vpack.c.b16 %v142, %v141
  %v195 = vpack.c.b16 %v144, %v143
  %v196 = vpack.c.b16 %v146, %v145
  %v197 = vpack.c.b16 %v148, %v147
  %v198 = vpack.c.b16 %v150, %v149
  %v199 = vpack.c.b16 %v152, %v151
  %v200 = vpack.c.b16 %v154, %v153
  %v201 = vpack.c.b16 %v156, %v155
  %v202 = vpack.c.b16 %v158, %v157
  %v203 = vpack.c.b16 %v160, %v159
  %v204 = vpack.c.b16 %v162, %v161
  %v205 = vpack.c.b16 %v164, %v163
  %v206 = vpack.c.b16 %v166, %v165
  %v207 = vpack.c.b16 %v168, %v167
  %v208 = vpack.c.b16 %v170, %v169
  %v209 = vpack.c.b16 %v172, %v171
  %v210 = vpack.c.b16 %v174, %v173
  %v211 = vpack.c.b16 %v176, %v175
  %v212 = vpack.c.b16 %v178, %v177
  %v213 = vpack.c.b16 %v180, %v179
  %v214 = vpack.c.b16 %v182, %v181
  %v215 = vpack.c.b16 %v184, %v183
  %v216 = vpack.c.b16 %v186, %v185
  %v217 = vpack.c.b16 %v188, %v187
  %v218 = vpack.c.b16 %v189, %v189
  %v223 = vunpack.c.l.b16 %v15
  %v224 = vunpack.c.l.b16 %v16
  %v225 = vunpack.c.l.b16 %v17
  %v226 = vunpack.c.l.b16 %v18
  %v227 = vpack.c.b16 %v224, %v223
  %v228 = vpack.c.b16 %v226, %v225
  %vm230 = vcmask 220160
  %v232 = vsel %vm230, %v190, 0
  %v235 = vsel %vm230, %v191, 0
  %v238 = vsel %vm230, %v192, 0
  %v241 = vsel %vm230, %v193, 0
  %v244 = vsel %vm230, %v194, 0
  %v247 = vsel %vm230, %v195, 0
  %v250 = vsel %vm230, %v196, 0
  %v253 = vsel %vm230, %v197, 0
  %v256 = vsel %vm230, %v198, 0
  %v259 = vsel %vm230, %v199, 0
  %v262 = vsel %vm230, %v200, 0
  %v265 = vsel %vm230, %v201, 0
  %v268 = vsel %vm230, %v202, 0
  %v271 = vsel %vm230, %v203, 0
  %v274 = vsel %vm230, %v204, 0
  %v277 = vsel %vm230, %v205, 0
  %v280 = vsel %vm230, %v206, 0
  %v283 = vsel %vm230, %v207, 0
  %v286 = vsel %vm230, %v208, 0
  %v289 = vsel %vm230, %v209, 0
  %v292 = vsel %vm230, %v210, 0
  %v295 = vsel %vm230, %v211, 0
  %v298 = vsel %vm230, %v212, 0
  %v301 = vsel %vm230, %v213, 0
  %v304 = vsel %vm230, %v214, 0
  %v307 = vsel %vm230, %v215, 0
  %v310 = vsel %vm230, %v216, 0
  %v313 = vsel %vm230, %v217, 0
  %v316 = vsel %vm230, %v218, 0
  %vm318 = vcmask 1044480
  %vm319 = vcmask 1045504
  %v320 = vsel %vm318, 4294967295, 65535
  %v321 = vsel %vm319, %v320, 0
  %v323 = vand.u32 %v228, %v321
  %325 = vmatprep.subr.bf16.mxu0 0
  %326 = vmatpush1.bf16.msra.mxu0 %v227
  %327 = vmatprep.subr.bf16.mxu0 0
  %328 = vmatpush1.bf16.msra.mxu0 %v323
  %329 = vmatprep.subr.bf16.mxu0 0
  %330 = vmatpush1.bf16.msra.mxu0 0
  %331 = vmatprep.subr.bf16.mxu0 0
  %332 = vmatpush1.bf16.msra.mxu0 0
  %333 = vmatprep.subr.bf16.mxu0 0
  %334 = vmatpush1.bf16.msra.mxu0 0
  %335 = vmatprep.subr.bf16.mxu0 0
  %336 = vmatpush1.bf16.msra.mxu0 0
  %337 = vmatprep.subr.bf16.mxu0 0
  %338 = vmatpush1.bf16.msra.mxu0 0
  %339 = vmatprep.subr.bf16.mxu0 0
  %340 = vmatpush1.bf16.msra.mxu0 0
  %341 = vmatprep.subr.bf16.mxu0 0
  %342 = vmatpush1.bf16.msra.mxu0 0
  %343 = vmatprep.subr.bf16.mxu0 0
  %344 = vmatpush1.bf16.msra.mxu0 0
  %345 = vmatprep.subr.bf16.mxu0 0
  %346 = vmatpush1.bf16.msra.mxu0 0
  %347 = vmatprep.subr.bf16.mxu0 0
  %348 = vmatpush1.bf16.msra.mxu0 0
  %349 = vmatprep.subr.bf16.mxu0 0
  %350 = vmatpush1.bf16.msra.mxu0 0
  %351 = vmatprep.subr.bf16.mxu0 0
  %352 = vmatpush1.bf16.msra.mxu0 0
  %353 = vmatprep.subr.bf16.mxu0 0
  %354 = vmatpush1.bf16.msra.mxu0 0
  %355 = vmatprep.subr.bf16.mxu0 0
  %356 = vmatpush1.bf16.msra.mxu0 0
  %357 = vmatprep.mubr.bf16.mxu0 0
  %358 = vmatmul.mubr.bf16.gmra.mrb[0].mxu0 %v232
  %v359 = vpop.f32.mrb[0].mxu0
  %v360 = vadd.f32 0.0, %v359
  %v361 = vpop.f32.mrb[0].mxu0
  %v362 = vpop.f32.mrb[0].mxu0
  %v363 = vadd.f32 0.0, %v362
  %v364 = vpop.f32.mrb[0].mxu0
  %365 = vmatprep.mubr.bf16.mxu0 0
  %366 = vmatmul.mubr.bf16.gmra.mrb[0].mxu0 %v235
  %v367 = vpop.f32.mrb[0].mxu0
  %v368 = vadd.f32 0.0, %v367
  %v369 = vpop.f32.mrb[0].mxu0
  %v370 = vpop.f32.mrb[0].mxu0
  %v371 = vadd.f32 0.0, %v370
  %v372 = vpop.f32.mrb[0].mxu0
  %373 = vmatprep.mubr.bf16.mxu0 0
  %374 = vmatmul.mubr.bf16.gmra.mrb[0].mxu0 %v238
  %v375 = vpop.f32.mrb[0].mxu0
  %v376 = vadd.f32 0.0, %v375
  %v377 = vpop.f32.mrb[0].mxu0
  %v378 = vpop.f32.mrb[0].mxu0
  %v379 = vadd.f32 0.0, %v378
  %v380 = vpop.f32.mrb[0].mxu0
  %381 = vmatprep.mubr.bf16.mxu0 0
  %382 = vmatmul.mubr.bf16.gmra.mrb[0].mxu0 %v241
  %v383 = vpop.f32.mrb[0].mxu0
  %v384 = vadd.f32 0.0, %v383
  %v385 = vpop.f32.mrb[0].mxu0
  %v386 = vpop.f32.mrb[0].mxu0
  %v387 = vadd.f32 0.0, %v386
  %v388 = vpop.f32.mrb[0].mxu0
  %389 = vmatprep.mubr.bf16.mxu0 0
  %390 = vmatmul.mubr.bf16.gmra.mrb[0].mxu0 %v244
  %v391 = vpop.f32.mrb[0].mxu0
  %v392 = vadd.f32 0.0, %v391
  %v393 = vpop.f32.mrb[0].mxu0
  %v394 = vpop.f32.mrb[0].mxu0
  %v395 = vadd.f32 0.0, %v394
  %v396 = vpop.f32.mrb[0].mxu0
  %397 = vmatprep.mubr.bf16.mxu0 0
  %398 = vmatmul.mubr.bf16.gmra.mrb[0].mxu0 %v247
  %v399 = vpop.f32.mrb[0].mxu0
  %v400 = vadd.f32 0.0, %v399
  %v401 = vpop.f32.mrb[0].mxu0
  %v402 = vpop.f32.mrb[0].mxu0
  %v403 = vadd.f32 0.0, %v402
  %v404 = vpop.f32.mrb[0].mxu0
  %405 = vmatprep.mubr.bf16.mxu0 0
  %406 = vmatmul.mubr.bf16.gmra.mrb[0].mxu0 %v250
  %v407 = vpop.f32.mrb[0].mxu0
  %v408 = vadd.f32 0.0, %v407
  %v409 = vpop.f32.mrb[0].mxu0
  %v410 = vpop.f32.mrb[0].mxu0
  %v411 = vadd.f32 0.0, %v410
  %v412 = vpop.f32.mrb[0].mxu0
  %413 = vmatprep.mubr.bf16.mxu0 0
  %414 = vmatmul.mubr.bf16.gmra.mrb[0].mxu0 %v253
  %v415 = vpop.f32.mrb[0].mxu0
  %v416 = vadd.f32 0.0, %v415
  %v417 = vpop.f32.mrb[0].mxu0
  %v418 = vpop.f32.mrb[0].mxu0
  %v419 = vadd.f32 0.0, %v418
  %v420 = vpop.f32.mrb[0].mxu0
  %421 = vmatprep.mubr.bf16.mxu0 0
  %422 = vmatmul.mubr.bf16.gmra.mrb[0].mxu0 %v256
  %v423 = vpop.f32.mrb[0].mxu0
  %v424 = vadd.f32 0.0, %v423
  %v425 = vpop.f32.mrb[0].mxu0
  %v426 = vpop.f32.mrb[0].mxu0
  %v427 = vadd.f32 0.0, %v426
  %v428 = vpop.f32.mrb[0].mxu0
  %429 = vmatprep.mubr.bf16.mxu0 0
  %430 = vmatmul.mubr.bf16.gmra.mrb[0].mxu0 %v259
  %v431 = vpop.f32.mrb[0].mxu0
  %v432 = vadd.f32 0.0, %v431
  %v433 = vpop.f32.mrb[0].mxu0
  %v434 = vpop.f32.mrb[0].mxu0
  %v435 = vadd.f32 0.0, %v434
  %v436 = vpop.f32.mrb[0].mxu0
  %437 = vmatprep.mubr.bf16.mxu0 0
  %438 = vmatmul.mubr.bf16.gmra.mrb[0].mxu0 %v262
  %v439 = vpop.f32.mrb[0].mxu0
  %v440 = vadd.f32 0.0, %v439
  %v441 = vpop.f32.mrb[0].mxu0
  %v442 = vpop.f32.mrb[0].mxu0
  %v443 = vadd.f32 0.0, %v442
  %v444 = vpop.f32.mrb[0].mxu0
  %445 = vmatprep.mubr.bf16.mxu0 0
  %446 = vmatmul.mubr.bf16.gmra.mrb[0].mxu0 %v265
  %v447 = vpop.f32.mrb[0].mxu0
  %v448 = vadd.f32 0.0, %v447
  %v449 = vpop.f32.mrb[0].mxu0
  %v450 = vpop.f32.mrb[0].mxu0
  %v451 = vadd.f32 0.0, %v450
  %v452 = vpop.f32.mrb[0].mxu0
  %453 = vmatprep.mubr.bf16.mxu0 0
  %454 = vmatmul.mubr.bf16.gmra.mrb[0].mxu0 %v268
  %v455 = vpop.f32.mrb[0].mxu0
  %v456 = vadd.f32 0.0, %v455
  %v457 = vpop.f32.mrb[0].mxu0
  %v458 = vpop.f32.mrb[0].mxu0
  %v459 = vadd.f32 0.0, %v458
  %v460 = vpop.f32.mrb[0].mxu0
  %461 = vmatprep.mubr.bf16.mxu0 0
  %462 = vmatmul.mubr.bf16.gmra.mrb[0].mxu0 %v271
  %v463 = vpop.f32.mrb[0].mxu0
  %v464 = vadd.f32 0.0, %v463
  %v465 = vpop.f32.mrb[0].mxu0
  %v466 = vpop.f32.mrb[0].mxu0
  %v467 = vadd.f32 0.0, %v466
  %v468 = vpop.f32.mrb[0].mxu0
  %469 = vmatprep.mubr.bf16.mxu0 0
  %470 = vmatmul.mubr.bf16.gmra.mrb[0].mxu0 %v274
  %v471 = vpop.f32.mrb[0].mxu0
  %v472 = vadd.f32 0.0, %v471
  %v473 = vpop.f32.mrb[0].mxu0
  %v474 = vpop.f32.mrb[0].mxu0
  %v475 = vadd.f32 0.0, %v474
  %v476 = vpop.f32.mrb[0].mxu0
  %477 = vmatprep.mubr.bf16.mxu0 0
  %478 = vmatmul.mubr.bf16.gmra.mrb[0].mxu0 %v277
  %v479 = vpop.f32.mrb[0].mxu0
  %v480 = vadd.f32 0.0, %v479
  %v481 = vpop.f32.mrb[0].mxu0
  %v482 = vpop.f32.mrb[0].mxu0
  %v483 = vadd.f32 0.0, %v482
  %v484 = vpop.f32.mrb[0].mxu0
  %485 = vmatprep.mubr.bf16.mxu0 0
  %486 = vmatmul.mubr.bf16.gmra.mrb[0].mxu0 %v280
  %v487 = vpop.f32.mrb[0].mxu0
  %v488 = vadd.f32 0.0, %v487
  %v489 = vpop.f32.mrb[0].mxu0
  %v490 = vpop.f32.mrb[0].mxu0
  %v491 = vadd.f32 0.0, %v490
  %v492 = vpop.f32.mrb[0].mxu0
  %493 = vmatprep.mubr.bf16.mxu0 0
  %494 = vmatmul.mubr.bf16.gmra.mrb[0].mxu0 %v283
  %v495 = vpop.f32.mrb[0].mxu0
  %v496 = vadd.f32 0.0, %v495
  %v497 = vpop.f32.mrb[0].mxu0
  %v498 = vpop.f32.mrb[0].mxu0
  %v499 = vadd.f32 0.0, %v498
  %v500 = vpop.f32.mrb[0].mxu0
  %501 = vmatprep.mubr.bf16.mxu0 0
  %502 = vmatmul.mubr.bf16.gmra.mrb[0].mxu0 %v286
  %v503 = vpop.f32.mrb[0].mxu0
  %v504 = vadd.f32 0.0, %v503
  %v505 = vpop.f32.mrb[0].mxu0
  %v506 = vpop.f32.mrb[0].mxu0
  %v507 = vadd.f32 0.0, %v506
  %v508 = vpop.f32.mrb[0].mxu0
  %509 = vmatprep.mubr.bf16.mxu0 0
  %510 = vmatmul.mubr.bf16.gmra.mrb[0].mxu0 %v289
  %v511 = vpop.f32.mrb[0].mxu0
  %v512 = vadd.f32 0.0, %v511
  %v513 = vpop.f32.mrb[0].mxu0
  %v514 = vpop.f32.mrb[0].mxu0
  %v515 = vadd.f32 0.0, %v514
  %v516 = vpop.f32.mrb[0].mxu0
  %517 = vmatprep.mubr.bf16.mxu0 0
  %518 = vmatmul.mubr.bf16.gmra.mrb[0].mxu0 %v292
  %v519 = vpop.f32.mrb[0].mxu0
  %v520 = vadd.f32 0.0, %v519
  %v521 = vpop.f32.mrb[0].mxu0
  %v522 = vpop.f32.mrb[0].mxu0
  %v523 = vadd.f32 0.0, %v522
  %v524 = vpop.f32.mrb[0].mxu0
  %525 = vmatprep.mubr.bf16.mxu0 0
  %526 = vmatmul.mubr.bf16.gmra.mrb[0].mxu0 %v295
  %v527 = vpop.f32.mrb[0].mxu0
  %v528 = vadd.f32 0.0, %v527
  %v529 = vpop.f32.mrb[0].mxu0
  %v530 = vpop.f32.mrb[0].mxu0
  %v531 = vadd.f32 0.0, %v530
  %v532 = vpop.f32.mrb[0].mxu0
  %533 = vmatprep.mubr.bf16.mxu0 0
  %534 = vmatmul.mubr.bf16.gmra.mrb[0].mxu0 %v298
  %v535 = vpop.f32.mrb[0].mxu0
  %v536 = vadd.f32 0.0, %v535
  %v537 = vpop.f32.mrb[0].mxu0
  %v538 = vpop.f32.mrb[0].mxu0
  %v539 = vadd.f32 0.0, %v538
  %v540 = vpop.f32.mrb[0].mxu0
  %541 = vmatprep.mubr.bf16.mxu0 0
  %542 = vmatmul.mubr.bf16.gmra.mrb[0].mxu0 %v301
  %v543 = vpop.f32.mrb[0].mxu0
  %v544 = vadd.f32 0.0, %v543
  %v545 = vpop.f32.mrb[0].mxu0
  %v546 = vpop.f32.mrb[0].mxu0
  %v547 = vadd.f32 0.0, %v546
  %v548 = vpop.f32.mrb[0].mxu0
  %549 = vmatprep.mubr.bf16.mxu0 0
  %550 = vmatmul.mubr.bf16.gmra.mrb[0].mxu0 %v304
  %v551 = vpop.f32.mrb[0].mxu0
  %v552 = vadd.f32 0.0, %v551
  %v553 = vpop.f32.mrb[0].mxu0
  %v554 = vpop.f32.mrb[0].mxu0
  %v555 = vadd.f32 0.0, %v554
  %v556 = vpop.f32.mrb[0].mxu0
  %557 = vmatprep.mubr.bf16.mxu0 0
  %558 = vmatmul.mubr.bf16.gmra.mrb[0].mxu0 %v307
  %v559 = vpop.f32.mrb[0].mxu0
  %v560 = vadd.f32 0.0, %v559
  %v561 = vpop.f32.mrb[0].mxu0
  %v562 = vpop.f32.mrb[0].mxu0
  %v563 = vadd.f32 0.0, %v562
  %v564 = vpop.f32.mrb[0].mxu0
  %565 = vmatprep.mubr.bf16.mxu0 0
  %566 = vmatmul.mubr.bf16.gmra.mrb[0].mxu0 %v310
  %v567 = vpop.f32.mrb[0].mxu0
  %v568 = vadd.f32 0.0, %v567
  %v569 = vpop.f32.mrb[0].mxu0
  %v570 = vpop.f32.mrb[0].mxu0
  %v571 = vadd.f32 0.0, %v570
  %v572 = vpop.f32.mrb[0].mxu0
  %573 = vmatprep.mubr.bf16.mxu0 0
  %574 = vmatmul.mubr.bf16.gmra.mrb[0].mxu0 %v313
  %v575 = vpop.f32.mrb[0].mxu0
  %v576 = vadd.f32 0.0, %v575
  %v577 = vpop.f32.mrb[0].mxu0
  %v578 = vpop.f32.mrb[0].mxu0
  %v579 = vadd.f32 0.0, %v578
  %v580 = vpop.f32.mrb[0].mxu0
  %581 = vmatprep.mubr.bf16.mxu0 0
  %582 = vmatmul.mubr.bf16.gmra.mrb[0].mxu0 %v316
  %v583 = vpop.f32.mrb[0].mxu0
  %v584 = vadd.f32 0.0, %v583
  %v585 = vpop.f32.mrb[0].mxu0
  %v586 = vpop.f32.mrb[0].mxu0
  %v587 = vpop.f32.mrb[0].mxu0
  %588 = vdwg.mxu0
  %s589 = scalar_lea.vmem %s0, 228
  %v590 = vld [vmem:[%s589] sm:$0xf]
  %v591 = vld [vmem:[%s589 + $0x4] sm:$0xf]
  %v592 = vld [vmem:[%s589 + $0x8] sm:$0xf]
  %v593 = vld [vmem:[%s589 + $0xc] sm:$0xf]
  %v594 = vld [vmem:[%s589 + $0x10] sm:$0xf]
  %v595 = vld [vmem:[%s589 + $0x14] sm:$0xf]
  %v596 = vld [vmem:[%s589 + $0x18] sm:$0xf]
  %v597 = vld [vmem:[%s589 + $0x1c] sm:$0xf]
  %v598 = vld [vmem:[%s589 + $0x20] sm:$0xf]
  %v599 = vld [vmem:[%s589 + $0x24] sm:$0xf]
  %v600 = vld [vmem:[%s589 + $0x28] sm:$0xf]
  %v601 = vld [vmem:[%s589 + $0x2c] sm:$0xf]
  %v602 = vld [vmem:[%s589 + $0x30] sm:$0xf]
  %v603 = vld [vmem:[%s589 + $0x34] sm:$0xf]
  %v604 = vld [vmem:[%s589 + $0x38] sm:$0xf]
  %v605 = vld [vmem:[%s589 + $0x3c] sm:$0xf]
  %v606 = vld [vmem:[%s589 + $0x40] sm:$0xf]
  %v607 = vld [vmem:[%s589 + $0x44] sm:$0xf]
  %v608 = vld [vmem:[%s589 + $0x48] sm:$0xf]
  %v609 = vld [vmem:[%s589 + $0x4c] sm:$0xf]
  %v610 = vld [vmem:[%s589 + $0x50] sm:$0xf]
  %v611 = vld [vmem:[%s589 + $0x54] sm:$0xf]
  %v612 = vld [vmem:[%s589 + $0x58] sm:$0xf]
  %v613 = vld [vmem:[%s589 + $0x5c] sm:$0xf]
  %v614 = vld [vmem:[%s589 + $0x60] sm:$0xf]
  %v615 = vld [vmem:[%s589 + $0x64] sm:$0xf]
  %v616 = vld [vmem:[%s589 + $0x68] sm:$0xf]
  %v617 = vld [vmem:[%s589 + $0x6c] sm:$0xf]
  %v618 = vld [vmem:[%s589 + $0x70] sm:$0xf]
  %v619 = vld [vmem:[%s589 + $0x74] sm:$0xf]
  %v620 = vld [vmem:[%s589 + $0x78] sm:$0xf]
  %v621 = vld [vmem:[%s589 + $0x7c] sm:$0xf]
  %v622 = vld [vmem:[%s589 + $0x80] sm:$0xf]
  %v623 = vld [vmem:[%s589 + $0x84] sm:$0xf]
  %v624 = vld [vmem:[%s589 + $0x88] sm:$0xf]
  %v625 = vld [vmem:[%s589 + $0x8c] sm:$0xf]
  %v626 = vld [vmem:[%s589 + $0x90] sm:$0xf]
  %v627 = vld [vmem:[%s589 + $0x94] sm:$0xf]
  %v628 = vld [vmem:[%s589 + $0x98] sm:$0xf]
  %v629 = vld [vmem:[%s589 + $0x9c] sm:$0xf]
  %v630 = vld [vmem:[%s589 + $0xa0] sm:$0xf]
  %v631 = vld [vmem:[%s589 + $0xa4] sm:$0xf]
  %v632 = vld [vmem:[%s589 + $0xa8] sm:$0xf]
  %v633 = vld [vmem:[%s589 + $0xac] sm:$0xf]
  %v634 = vld [vmem:[%s589 + $0xb0] sm:$0xf]
  %v635 = vld [vmem:[%s589 + $0xb4] sm:$0xf]
  %v636 = vld [vmem:[%s589 + $0xb8] sm:$0xf]
  %v637 = vld [vmem:[%s589 + $0xbc] sm:$0xf]
  %v638 = vld [vmem:[%s589 + $0xc0] sm:$0xf]
  %v639 = vld [vmem:[%s589 + $0xc4] sm:$0xf]
  %v640 = vld [vmem:[%s589 + $0xc8] sm:$0xf]
  %v641 = vld [vmem:[%s589 + $0xcc] sm:$0xf]
  %v642 = vld [vmem:[%s589 + $0xd0] sm:$0xf]
  %v643 = vld [vmem:[%s589 + $0xd4] sm:$0xf]
  %v644 = vld [vmem:[%s589 + $0xd8] sm:$0xf]
  %v645 = vld [vmem:[%s589 + $0xdc] sm:$0xf]
  %v646 = vld [vmem:[%s589 + $0xe0] sm:$0x1]
  %v704 = vunpack.c.l.b16 %v590
  %v705 = vunpack.c.l.b16 %v591
  %v706 = vunpack.c.l.b16 %v592
  %v707 = vunpack.c.l.b16 %v593
  %v708 = vunpack.c.l.b16 %v594
  %v709 = vunpack.c.l.b16 %v595
  %v710 = vunpack.c.l.b16 %v596
  %v711 = vunpack.c.l.b16 %v597
  %v712 = vunpack.c.l.b16 %v598
  %v713 = vunpack.c.l.b16 %v599
  %v714 = vunpack.c.l.b16 %v600
  %v715 = vunpack.c.l.b16 %v601
  %v716 = vunpack.c.l.b16 %v602
  %v717 = vunpack.c.l.b16 %v603
  %v718 = vunpack.c.l.b16 %v604
  %v719 = vunpack.c.l.b16 %v605
  %v720 = vunpack.c.l.b16 %v606
  %v721 = vunpack.c.l.b16 %v607
  %v722 = vunpack.c.l.b16 %v608
  %v723 = vunpack.c.l.b16 %v609
  %v724 = vunpack.c.l.b16 %v610
  %v725 = vunpack.c.l.b16 %v611
  %v726 = vunpack.c.l.b16 %v612
  %v727 = vunpack.c.l.b16 %v613
  %v728 = vunpack.c.l.b16 %v614
  %v729 = vunpack.c.l.b16 %v615
  %v730 = vunpack.c.l.b16 %v616
  %v731 = vunpack.c.l.b16 %v617
  %v732 = vunpack.c.l.b16 %v618
  %v733 = vunpack.c.l.b16 %v619
  %v734 = vunpack.c.l.b16 %v620
  %v735 = vunpack.c.l.b16 %v621
  %v736 = vunpack.c.l.b16 %v622
  %v737 = vunpack.c.l.b16 %v623
  %v738 = vunpack.c.l.b16 %v624
  %v739 = vunpack.c.l.b16 %v625
  %v740 = vunpack.c.l.b16 %v626
  %v741 = vunpack.c.l.b16 %v627
  %v742 = vunpack.c.l.b16 %v628
  %v743 = vunpack.c.l.b16 %v629
  %v744 = vunpack.c.l.b16 %v630
  %v745 = vunpack.c.l.b16 %v631
  %v746 = vunpack.c.l.b16 %v632
  %v747 = vunpack.c.l.b16 %v633
  %v748 = vunpack.c.l.b16 %v634
  %v749 = vunpack.c.l.b16 %v635
  %v750 = vunpack.c.l.b16 %v636
  %v751 = vunpack.c.l.b16 %v637
  %v752 = vunpack.c.l.b16 %v638
  %v753 = vunpack.c.l.b16 %v639
  %v754 = vunpack.c.l.b16 %v640
  %v755 = vunpack.c.l.b16 %v641
  %v756 = vunpack.c.l.b16 %v642
  %v757 = vunpack.c.l.b16 %v643
  %v758 = vunpack.c.l.b16 %v644
  %v759 = vunpack.c.l.b16 %v645
  %v760 = vunpack.c.l.b16 %v646
  %v761 = vpack.c.b16 %v705, %v704
  %v762 = vpack.c.b16 %v707, %v706
  %v763 = vpack.c.b16 %v709, %v708
  %v764 = vpack.c.b16 %v711, %v710
  %v765 = vpack.c.b16 %v713, %v712
  %v766 = vpack.c.b16 %v715, %v714
  %v767 = vpack.c.b16 %v717, %v716
  %v768 = vpack.c.b16 %v719, %v718
  %v769 = vpack.c.b16 %v721, %v720
  %v770 = vpack.c.b16 %v723, %v722
  %v771 = vpack.c.b16 %v725, %v724
  %v772 = vpack.c.b16 %v727, %v726
  %v773 = vpack.c.b16 %v729, %v728
  %v774 = vpack.c.b16 %v731, %v730
  %v775 = vpack.c.b16 %v733, %v732
  %v776 = vpack.c.b16 %v735, %v734
  %v777 = vpack.c.b16 %v737, %v736
  %v778 = vpack.c.b16 %v739, %v738
  %v779 = vpack.c.b16 %v741, %v740
  %v780 = vpack.c.b16 %v743, %v742
  %v781 = vpack.c.b16 %v745, %v744
  %v782 = vpack.c.b16 %v747, %v746
  %v783 = vpack.c.b16 %v749, %v748
  %v784 = vpack.c.b16 %v751, %v750
  %v785 = vpack.c.b16 %v753, %v752
  %v786 = vpack.c.b16 %v755, %v754
  %v787 = vpack.c.b16 %v757, %v756
  %v788 = vpack.c.b16 %v759, %v758
  %v789 = vpack.c.b16 %v760, %v760
  %v791 = vsel %vm230, %v761, 0
  %v794 = vsel %vm230, %v762, 0
  %v797 = vsel %vm230, %v763, 0
  %v800 = vsel %vm230, %v764, 0
  %v803 = vsel %vm230, %v765, 0
  %v806 = vsel %vm230, %v766, 0
  %v809 = vsel %vm230, %v767, 0
  %v812 = vsel %vm230, %v768, 0
  %v815 = vsel %vm230, %v769, 0
  %v818 = vsel %vm230, %v770, 0
  %v821 = vsel %vm230, %v771, 0
  %v824 = vsel %vm230, %v772, 0
  %v827 = vsel %vm230, %v773, 0
  %v830 = vsel %vm230, %v774, 0
  %v833 = vsel %vm230, %v775, 0
  %v836 = vsel %vm230, %v776, 0
  %v839 = vsel %vm230, %v777, 0
  %v842 = vsel %vm230, %v778, 0
  %v845 = vsel %vm230, %v779, 0
  %v848 = vsel %vm230, %v780, 0
  %v851 = vsel %vm230, %v781, 0
  %v854 = vsel %vm230, %v782, 0
  %v857 = vsel %vm230, %v783, 0
  %v860 = vsel %vm230, %v784, 0
  %v863 = vsel %vm230, %v785, 0
  %v866 = vsel %vm230, %v786, 0
  %v869 = vsel %vm230, %v787, 0
  %v872 = vsel %vm230, %v788, 0
  %v875 = vsel %vm230, %v789, 0
  %877 = vmatprep.subr.bf16.mxu0 0
  %878 = vmatpush1.bf16.msra.mxu0 %v227
  %879 = vmatprep.subr.bf16.mxu0 0
  %880 = vmatpush1.bf16.msra.mxu0 %v323
  %881 = vmatprep.subr.bf16.mxu0 0
  %882 = vmatpush1.bf16.msra.mxu0 0
  %883 = vmatprep.subr.bf16.mxu0 0
  %884 = vmatpush1.bf16.msra.mxu0 0
  %885 = vmatprep.subr.bf16.mxu0 0
  %886 = vmatpush1.bf16.msra.mxu0 0
  %887 = vmatprep.subr.bf16.mxu0 0
  %888 = vmatpush1.bf16.msra.mxu0 0
  %889 = vmatprep.subr.bf16.mxu0 0
  %890 = vmatpush1.bf16.msra.mxu0 0
  %891 = vmatprep.subr.bf16.mxu0 0
  %892 = vmatpush1.bf16.msra.mxu0 0
  %893 = vmatprep.subr.bf16.mxu0 0
  %894 = vmatpush1.bf16.msra.mxu0 0
  %895 = vmatprep.subr.bf16.mxu0 0
  %896 = vmatpush1.bf16.msra.mxu0 0
  %897 = vmatprep.subr.bf16.mxu0 0
  %898 = vmatpush1.bf16.msra.mxu0 0
  %899 = vmatprep.subr.bf16.mxu0 0
  %900 = vmatpush1.bf16.msra.mxu0 0
  %901 = vmatprep.subr.bf16.mxu0 0
  %902 = vmatpush1.bf16.msra.mxu0 0
  %903 = vmatprep.subr.bf16.mxu0 0
  %904 = vmatpush1.bf16.msra.mxu0 0
  %905 = vmatprep.subr.bf16.mxu0 0
  %906 = vmatpush1.bf16.msra.mxu0 0
  %907 = vmatprep.subr.bf16.mxu0 0
  %908 = vmatpush1.bf16.msra.mxu0 0
  %909 = vmatprep.mubr.bf16.mxu0 0
  %910 = vmatmul.mubr.bf16.gmra.mrb[0].mxu0 %v791
  %v911 = vpop.f32.mrb[0].mxu0
  %v912 = vadd.f32 0.0, %v911
  %v913 = vpop.f32.mrb[0].mxu0
  %v914 = vpop.f32.mrb[0].mxu0
  %v915 = vadd.f32 0.0, %v914
  %v916 = vpop.f32.mrb[0].mxu0
  %917 = vmatprep.mubr.bf16.mxu0 0
  %918 = vmatmul.mubr.bf16.gmra.mrb[0].mxu0 %v794
  %v919 = vpop.f32.mrb[0].mxu0
  %v920 = vadd.f32 0.0, %v919
  %v921 = vpop.f32.mrb[0].mxu0
  %v922 = vpop.f32.mrb[0].mxu0
  %v923 = vadd.f32 0.0, %v922
  %v924 = vpop.f32.mrb[0].mxu0
  %925 = vmatprep.mubr.bf16.mxu0 0
  %926 = vmatmul.mubr.bf16.gmra.mrb[0].mxu0 %v797
  %v927 = vpop.f32.mrb[0].mxu0
  %v928 = vadd.f32 0.0, %v927
  %v929 = vpop.f32.mrb[0].mxu0
  %v930 = vpop.f32.mrb[0].mxu0
  %v931 = vadd.f32 0.0, %v930
  %v932 = vpop.f32.mrb[0].mxu0
  %933 = vmatprep.mubr.bf16.mxu0 0
  %934 = vmatmul.mubr.bf16.gmra.mrb[0].mxu0 %v800
  %v935 = vpop.f32.mrb[0].mxu0
  %v936 = vadd.f32 0.0, %v935
  %v937 = vpop.f32.mrb[0].mxu0
  %v938 = vpop.f32.mrb[0].mxu0
  %v939 = vadd.f32 0.0, %v938
  %v940 = vpop.f32.mrb[0].mxu0
  %941 = vmatprep.mubr.bf16.mxu0 0
  %942 = vmatmul.mubr.bf16.gmra.mrb[0].mxu0 %v803
  %v943 = vpop.f32.mrb[0].mxu0
  %v944 = vadd.f32 0.0, %v943
  %v945 = vpop.f32.mrb[0].mxu0
  %v946 = vpop.f32.mrb[0].mxu0
  %v947 = vadd.f32 0.0, %v946
  %v948 = vpop.f32.mrb[0].mxu0
  %949 = vmatprep.mubr.bf16.mxu0 0
  %950 = vmatmul.mubr.bf16.gmra.mrb[0].mxu0 %v806
  %v951 = vpop.f32.mrb[0].mxu0
  %v952 = vadd.f32 0.0, %v951
  %v953 = vpop.f32.mrb[0].mxu0
  %v954 = vpop.f32.mrb[0].mxu0
  %v955 = vadd.f32 0.0, %v954
  %v956 = vpop.f32.mrb[0].mxu0
  %957 = vmatprep.mubr.bf16.mxu0 0
  %958 = vmatmul.mubr.bf16.gmra.mrb[0].mxu0 %v809
  %v959 = vpop.f32.mrb[0].mxu0
  %v960 = vadd.f32 0.0, %v959
  %v961 = vpop.f32.mrb[0].mxu0
  %v962 = vpop.f32.mrb[0].mxu0
  %v963 = vadd.f32 0.0, %v962
  %v964 = vpop.f32.mrb[0].mxu0
  %965 = vmatprep.mubr.bf16.mxu0 0
  %966 = vmatmul.mubr.bf16.gmra.mrb[0].mxu0 %v812
  %v967 = vpop.f32.mrb[0].mxu0
  %v968 = vadd.f32 0.0, %v967
  %v969 = vpop.f32.mrb[0].mxu0
  %v970 = vpop.f32.mrb[0].mxu0
  %v971 = vadd.f32 0.0, %v970
  %v972 = vpop.f32.mrb[0].mxu0
  %973 = vmatprep.mubr.bf16.mxu0 0
  %974 = vmatmul.mubr.bf16.gmra.mrb[0].mxu0 %v815
  %v975 = vpop.f32.mrb[0].mxu0
  %v976 = vadd.f32 0.0, %v975
  %v977 = vpop.f32.mrb[0].mxu0
  %v978 = vpop.f32.mrb[0].mxu0
  %v979 = vadd.f32 0.0, %v978
  %v980 = vpop.f32.mrb[0].mxu0
  %981 = vmatprep.mubr.bf16.mxu0 0
  %982 = vmatmul.mubr.bf16.gmra.mrb[0].mxu0 %v818
  %v983 = vpop.f32.mrb[0].mxu0
  %v984 = vadd.f32 0.0, %v983
  %v985 = vpop.f32.mrb[0].mxu0
  %v986 = vpop.f32.mrb[0].mxu0
  %v987 = vadd.f32 0.0, %v986
  %v988 = vpop.f32.mrb[0].mxu0
  %989 = vmatprep.mubr.bf16.mxu0 0
  %990 = vmatmul.mubr.bf16.gmra.mrb[0].mxu0 %v821
  %v991 = vpop.f32.mrb[0].mxu0
  %v992 = vadd.f32 0.0, %v991
  %v993 = vpop.f32.mrb[0].mxu0
  %v994 = vpop.f32.mrb[0].mxu0
  %v995 = vadd.f32 0.0, %v994
  %v996 = vpop.f32.mrb[0].mxu0
  %997 = vmatprep.mubr.bf16.mxu0 0
  %998 = vmatmul.mubr.bf16.gmra.mrb[0].mxu0 %v824
  %v999 = vpop.f32.mrb[0].mxu0
  %v1000 = vadd.f32 0.0, %v999
  %v1001 = vpop.f32.mrb[0].mxu0
  %v1002 = vpop.f32.mrb[0].mxu0
  %v1003 = vadd.f32 0.0, %v1002
  %v1004 = vpop.f32.mrb[0].mxu0
  %1005 = vmatprep.mubr.bf16.mxu0 0
  %1006 = vmatmul.mubr.bf16.gmra.mrb[0].mxu0 %v827
  %v1007 = vpop.f32.mrb[0].mxu0
  %v1008 = vadd.f32 0.0, %v1007
  %v1009 = vpop.f32.mrb[0].mxu0
  %v1010 = vpop.f32.mrb[0].mxu0
  %v1011 = vadd.f32 0.0, %v1010
  %v1012 = vpop.f32.mrb[0].mxu0
  %1013 = vmatprep.mubr.bf16.mxu0 0
  %1014 = vmatmul.mubr.bf16.gmra.mrb[0].mxu0 %v830
  %v1015 = vpop.f32.mrb[0].mxu0
  %v1016 = vadd.f32 0.0, %v1015
  %v1017 = vpop.f32.mrb[0].mxu0
  %v1018 = vpop.f32.mrb[0].mxu0
  %v1019 = vadd.f32 0.0, %v1018
  %v1020 = vpop.f32.mrb[0].mxu0
  %1021 = vmatprep.mubr.bf16.mxu0 0
  %1022 = vmatmul.mubr.bf16.gmra.mrb[0].mxu0 %v833
  %v1023 = vpop.f32.mrb[0].mxu0
  %v1024 = vadd.f32 0.0, %v1023
  %v1025 = vpop.f32.mrb[0].mxu0
  %v1026 = vpop.f32.mrb[0].mxu0
  %v1027 = vadd.f32 0.0, %v1026
  %v1028 = vpop.f32.mrb[0].mxu0
  %1029 = vmatprep.mubr.bf16.mxu0 0
  %1030 = vmatmul.mubr.bf16.gmra.mrb[0].mxu0 %v836
  %v1031 = vpop.f32.mrb[0].mxu0
  %v1032 = vadd.f32 0.0, %v1031
  %v1033 = vpop.f32.mrb[0].mxu0
  %v1034 = vpop.f32.mrb[0].mxu0
  %v1035 = vadd.f32 0.0, %v1034
  %v1036 = vpop.f32.mrb[0].mxu0
  %1037 = vmatprep.mubr.bf16.mxu0 0
  %1038 = vmatmul.mubr.bf16.gmra.mrb[0].mxu0 %v839
  %v1039 = vpop.f32.mrb[0].mxu0
  %v1040 = vadd.f32 0.0, %v1039
  %v1041 = vpop.f32.mrb[0].mxu0
  %v1042 = vpop.f32.mrb[0].mxu0
  %v1043 = vadd.f32 0.0, %v1042
  %v1044 = vpop.f32.mrb[0].mxu0
  %1045 = vmatprep.mubr.bf16.mxu0 0
  %1046 = vmatmul.mubr.bf16.gmra.mrb[0].mxu0 %v842
  %v1047 = vpop.f32.mrb[0].mxu0
  %v1048 = vadd.f32 0.0, %v1047
  %v1049 = vpop.f32.mrb[0].mxu0
  %v1050 = vpop.f32.mrb[0].mxu0
  %v1051 = vadd.f32 0.0, %v1050
  %v1052 = vpop.f32.mrb[0].mxu0
  %1053 = vmatprep.mubr.bf16.mxu0 0
  %1054 = vmatmul.mubr.bf16.gmra.mrb[0].mxu0 %v845
  %v1055 = vpop.f32.mrb[0].mxu0
  %v1056 = vadd.f32 0.0, %v1055
  %v1057 = vpop.f32.mrb[0].mxu0
  %v1058 = vpop.f32.mrb[0].mxu0
  %v1059 = vadd.f32 0.0, %v1058
  %v1060 = vpop.f32.mrb[0].mxu0
  %1061 = vmatprep.mubr.bf16.mxu0 0
  %1062 = vmatmul.mubr.bf16.gmra.mrb[0].mxu0 %v848
  %v1063 = vpop.f32.mrb[0].mxu0
  %v1064 = vadd.f32 0.0, %v1063
  %v1065 = vpop.f32.mrb[0].mxu0
  %v1066 = vpop.f32.mrb[0].mxu0
  %v1067 = vadd.f32 0.0, %v1066
  %v1068 = vpop.f32.mrb[0].mxu0
  %1069 = vmatprep.mubr.bf16.mxu0 0
  %1070 = vmatmul.mubr.bf16.gmra.mrb[0].mxu0 %v851
  %v1071 = vpop.f32.mrb[0].mxu0
  %v1072 = vadd.f32 0.0, %v1071
  %v1073 = vpop.f32.mrb[0].mxu0
  %v1074 = vpop.f32.mrb[0].mxu0
  %v1075 = vadd.f32 0.0, %v1074
  %v1076 = vpop.f32.mrb[0].mxu0
  %1077 = vmatprep.mubr.bf16.mxu0 0
  %1078 = vmatmul.mubr.bf16.gmra.mrb[0].mxu0 %v854
  %v1079 = vpop.f32.mrb[0].mxu0
  %v1080 = vadd.f32 0.0, %v1079
  %v1081 = vpop.f32.mrb[0].mxu0
  %v1082 = vpop.f32.mrb[0].mxu0
  %v1083 = vadd.f32 0.0, %v1082
  %v1084 = vpop.f32.mrb[0].mxu0
  %1085 = vmatprep.mubr.bf16.mxu0 0
  %1086 = vmatmul.mubr.bf16.gmra.mrb[0].mxu0 %v857
  %v1087 = vpop.f32.mrb[0].mxu0
  %v1088 = vadd.f32 0.0, %v1087
  %v1089 = vpop.f32.mrb[0].mxu0
  %v1090 = vpop.f32.mrb[0].mxu0
  %v1091 = vadd.f32 0.0, %v1090
  %v1092 = vpop.f32.mrb[0].mxu0
  %1093 = vmatprep.mubr.bf16.mxu0 0
  %1094 = vmatmul.mubr.bf16.gmra.mrb[0].mxu0 %v860
  %v1095 = vpop.f32.mrb[0].mxu0
  %v1096 = vadd.f32 0.0, %v1095
  %v1097 = vpop.f32.mrb[0].mxu0
  %v1098 = vpop.f32.mrb[0].mxu0
  %v1099 = vadd.f32 0.0, %v1098
  %v1100 = vpop.f32.mrb[0].mxu0
  %1101 = vmatprep.mubr.bf16.mxu0 0
  %1102 = vmatmul.mubr.bf16.gmra.mrb[0].mxu0 %v863
  %v1103 = vpop.f32.mrb[0].mxu0
  %v1104 = vadd.f32 0.0, %v1103
  %v1105 = vpop.f32.mrb[0].mxu0
  %v1106 = vpop.f32.mrb[0].mxu0
  %v1107 = vadd.f32 0.0, %v1106
  %v1108 = vpop.f32.mrb[0].mxu0
  %1109 = vmatprep.mubr.bf16.mxu0 0
  %1110 = vmatmul.mubr.bf16.gmra.mrb[0].mxu0 %v866
  %v1111 = vpop.f32.mrb[0].mxu0
  %v1112 = vadd.f32 0.0, %v1111
  %v1113 = vpop.f32.mrb[0].mxu0
  %v1114 = vpop.f32.mrb[0].mxu0
  %v1115 = vadd.f32 0.0, %v1114
  %v1116 = vpop.f32.mrb[0].mxu0
  %1117 = vmatprep.mubr.bf16.mxu0 0
  %1118 = vmatmul.mubr.bf16.gmra.mrb[0].mxu0 %v869
  %v1119 = vpop.f32.mrb[0].mxu0
  %v1120 = vadd.f32 0.0, %v1119
  %v1121 = vpop.f32.mrb[0].mxu0
  %v1122 = vpop.f32.mrb[0].mxu0
  %v1123 = vadd.f32 0.0, %v1122
  %v1124 = vpop.f32.mrb[0].mxu0
  %1125 = vmatprep.mubr.bf16.mxu0 0
  %1126 = vmatmul.mubr.bf16.gmra.mrb[0].mxu0 %v872
  %v1127 = vpop.f32.mrb[0].mxu0
  %v1128 = vadd.f32 0.0, %v1127
  %v1129 = vpop.f32.mrb[0].mxu0
  %v1130 = vpop.f32.mrb[0].mxu0
  %v1131 = vadd.f32 0.0, %v1130
  %v1132 = vpop.f32.mrb[0].mxu0
  %1133 = vmatprep.mubr.bf16.mxu0 0
  %1134 = vmatmul.mubr.bf16.gmra.mrb[0].mxu0 %v875
  %v1135 = vpop.f32.mrb[0].mxu0
  %v1136 = vadd.f32 0.0, %v1135
  %v1137 = vpop.f32.mrb[0].mxu0
  %v1138 = vpop.f32.mrb[0].mxu0
  %v1139 = vpop.f32.mrb[0].mxu0
  %1140 = vdwg.mxu0
  %s1141 = scalar_lea.vmem %s0, 456
  %v1142 = vld [vmem:[%s1141] sm:$0xf]
  %v1143 = vld [vmem:[%s1141 + $0x4] sm:$0xf]
  %v1144 = vld [vmem:[%s1141 + $0x8] sm:$0xf]
  %v1145 = vld [vmem:[%s1141 + $0xc] sm:$0xf]
  %v1146 = vld [vmem:[%s1141 + $0x10] sm:$0xf]
  %v1147 = vld [vmem:[%s1141 + $0x14] sm:$0xf]
  %v1148 = vld [vmem:[%s1141 + $0x18] sm:$0xf]
  %v1149 = vld [vmem:[%s1141 + $0x1c] sm:$0xf]
  %v1150 = vld [vmem:[%s1141 + $0x20] sm:$0xf]
  %v1151 = vld [vmem:[%s1141 + $0x24] sm:$0xf]
  %v1152 = vld [vmem:[%s1141 + $0x28] sm:$0xf]
  %v1153 = vld [vmem:[%s1141 + $0x2c] sm:$0xf]
  %v1154 = vld [vmem:[%s1141 + $0x30] sm:$0xf]
  %v1155 = vld [vmem:[%s1141 + $0x34] sm:$0xf]
  %v1156 = vld [vmem:[%s1141 + $0x38] sm:$0xf]
  %v1157 = vld [vmem:[%s1141 + $0x3c] sm:$0xf]
  %v1158 = vld [vmem:[%s1141 + $0x40] sm:$0xf]
  %v1159 = vld [vmem:[%s1141 + $0x44] sm:$0xf]
  %v1160 = vld [vmem:[%s1141 + $0x48] sm:$0xf]
  %v1161 = vld [vmem:[%s1141 + $0x4c] sm:$0xf]
  %v1162 = vld [vmem:[%s1141 + $0x50] sm:$0xf]
  %v1163 = vld [vmem:[%s1141 + $0x54] sm:$0xf]
  %v1164 = vld [vmem:[%s1141 + $0x58] sm:$0xf]
  %v1165 = vld [vmem:[%s1141 + $0x5c] sm:$0xf]
  %v1166 = vld [vmem:[%s1141 + $0x60] sm:$0xf]
  %v1167 = vld [vmem:[%s1141 + $0x64] sm:$0xf]
  %v1168 = vld [vmem:[%s1141 + $0x68] sm:$0xf]
  %v1169 = vld [vmem:[%s1141 + $0x6c] sm:$0xf]
  %v1170 = vld [vmem:[%s1141 + $0x70] sm:$0xf]
  %v1171 = vld [vmem:[%s1141 + $0x74] sm:$0xf]
  %v1172 = vld [vmem:[%s1141 + $0x78] sm:$0xf]
  %v1173 = vld [vmem:[%s1141 + $0x7c] sm:$0xf]
  %v1174 = vld [vmem:[%s1141 + $0x80] sm:$0xf]
  %v1175 = vld [vmem:[%s1141 + $0x84] sm:$0xf]
  %v1176 = vld [vmem:[%s1141 + $0x88] sm:$0xf]
  %v1177 = vld [vmem:[%s1141 + $0x8c] sm:$0xf]
  %v1178 = vld [vmem:[%s1141 + $0x90] sm:$0xf]
  %v1179 = vld [vmem:[%s1141 + $0x94] sm:$0xf]
  %v1180 = vld [vmem:[%s1141 + $0x98] sm:$0xf]
  %v1181 = vld [vmem:[%s1141 + $0x9c] sm:$0xf]
  %v1182 = vld [vmem:[%s1141 + $0xa0] sm:$0xf]
  %v1183 = vld [vmem:[%s1141 + $0xa4] sm:$0xf]
  %v1184 = vld [vmem:[%s1141 + $0xa8] sm:$0xf]
  %v1185 = vld [vmem:[%s1141 + $0xac] sm:$0xf]
  %v1186 = vld [vmem:[%s1141 + $0xb0] sm:$0xf]
  %v1187 = vld [vmem:[%s1141 + $0xb4] sm:$0xf]
  %v1188 = vld [vmem:[%s1141 + $0xb8] sm:$0xf]
  %v1189 = vld [vmem:[%s1141 + $0xbc] sm:$0xf]
  %v1190 = vld [vmem:[%s1141 + $0xc0] sm:$0xf]
  %v1191 = vld [vmem:[%s1141 + $0xc4] sm:$0xf]
  %v1192 = vld [vmem:[%s1141 + $0xc8] sm:$0xf]
  %v1193 = vld [vmem:[%s1141 + $0xcc] sm:$0xf]
  %v1194 = vld [vmem:[%s1141 + $0xd0] sm:$0xf]
  %v1195 = vld [vmem:[%s1141 + $0xd4] sm:$0xf]
  %v1196 = vld [vmem:[%s1141 + $0xd8] sm:$0xf]
  %v1197 = vld [vmem:[%s1141 + $0xdc] sm:$0xf]
  %v1198 = vld [vmem:[%s1141 + $0xe0] sm:$0x1]
  %v1256 = vunpack.c.l.b16 %v1142
  %v1257 = vunpack.c.l.b16 %v1143
  %v1258 = vunpack.c.l.b16 %v1144
  %v1259 = vunpack.c.l.b16 %v1145
  %v1260 = vunpack.c.l.b16 %v1146
  %v1261 = vunpack.c.l.b16 %v1147
  %v1262 = vunpack.c.l.b16 %v1148
  %v1263 = vunpack.c.l.b16 %v1149
  %v1264 = vunpack.c.l.b16 %v1150
  %v1265 = vunpack.c.l.b16 %v1151
  %v1266 = vunpack.c.l.b16 %v1152
  %v1267 = vunpack.c.l.b16 %v1153
  %v1268 = vunpack.c.l.b16 %v1154
  %v1269 = vunpack.c.l.b16 %v1155
  %v1270 = vunpack.c.l.b16 %v1156
  %v1271 = vunpack.c.l.b16 %v1157
  %v1272 = vunpack.c.l.b16 %v1158
  %v1273 = vunpack.c.l.b16 %v1159
  %v1274 = vunpack.c.l.b16 %v1160
  %v1275 = vunpack.c.l.b16 %v1161
  %v1276 = vunpack.c.l.b16 %v1162
  %v1277 = vunpack.c.l.b16 %v1163
  %v1278 = vunpack.c.l.b16 %v1164
  %v1279 = vunpack.c.l.b16 %v1165
  %v1280 = vunpack.c.l.b16 %v1166
  %v1281 = vunpack.c.l.b16 %v1167
  %v1282 = vunpack.c.l.b16 %v1168
  %v1283 = vunpack.c.l.b16 %v1169
  %v1284 = vunpack.c.l.b16 %v1170
  %v1285 = vunpack.c.l.b16 %v1171
  %v1286 = vunpack.c.l.b16 %v1172
  %v1287 = vunpack.c.l.b16 %v1173
  %v1288 = vunpack.c.l.b16 %v1174
  %v1289 = vunpack.c.l.b16 %v1175
  %v1290 = vunpack.c.l.b16 %v1176
  %v1291 = vunpack.c.l.b16 %v1177
  %v1292 = vunpack.c.l.b16 %v1178
  %v1293 = vunpack.c.l.b16 %v1179
  %v1294 = vunpack.c.l.b16 %v1180
  %v1295 = vunpack.c.l.b16 %v1181
  %v1296 = vunpack.c.l.b16 %v1182
  %v1297 = vunpack.c.l.b16 %v1183
  %v1298 = vunpack.c.l.b16 %v1184
  %v1299 = vunpack.c.l.b16 %v1185
  %v1300 = vunpack.c.l.b16 %v1186
  %v1301 = vunpack.c.l.b16 %v1187
  %v1302 = vunpack.c.l.b16 %v1188
  %v1303 = vunpack.c.l.b16 %v1189
  %v1304 = vunpack.c.l.b16 %v1190
  %v1305 = vunpack.c.l.b16 %v1191
  %v1306 = vunpack.c.l.b16 %v1192
  %v1307 = vunpack.c.l.b16 %v1193
  %v1308 = vunpack.c.l.b16 %v1194
  %v1309 = vunpack.c.l.b16 %v1195
  %v1310 = vunpack.c.l.b16 %v1196
  %v1311 = vunpack.c.l.b16 %v1197
  %v1312 = vunpack.c.l.b16 %v1198
  %v1313 = vpack.c.b16 %v1257, %v1256
  %v1314 = vpack.c.b16 %v1259, %v1258
  %v1315 = vpack.c.b16 %v1261, %v1260
  %v1316 = vpack.c.b16 %v1263, %v1262
  %v1317 = vpack.c.b16 %v1265, %v1264
  %v1318 = vpack.c.b16 %v1267, %v1266
  %v1319 = vpack.c.b16 %v1269, %v1268
  %v1320 = vpack.c.b16 %v1271, %v1270
  %v1321 = vpack.c.b16 %v1273, %v1272
  %v1322 = vpack.c.b16 %v1275, %v1274
  %v1323 = vpack.c.b16 %v1277, %v1276
  %v1324 = vpack.c.b16 %v1279, %v1278
  %v1325 = vpack.c.b16 %v1281, %v1280
  %v1326 = vpack.c.b16 %v1283, %v1282
  %v1327 = vpack.c.b16 %v1285, %v1284
  %v1328 = vpack.c.b16 %v1287, %v1286
  %v1329 = vpack.c.b16 %v1289, %v1288
  %v1330 = vpack.c.b16 %v1291, %v1290
  %v1331 = vpack.c.b16 %v1293, %v1292
  %v1332 = vpack.c.b16 %v1295, %v1294
  %v1333 = vpack.c.b16 %v1297, %v1296
  %v1334 = vpack.c.b16 %v1299, %v1298
  %v1335 = vpack.c.b16 %v1301, %v1300
  %v1336 = vpack.c.b16 %v1303, %v1302
  %v1337 = vpack.c.b16 %v1305, %v1304
  %v1338 = vpack.c.b16 %v1307, %v1306
  %v1339 = vpack.c.b16 %v1309, %v1308
  %v1340 = vpack.c.b16 %v1311, %v1310
  %v1341 = vpack.c.b16 %v1312, %v1312
  %v1343 = vsel %vm230, %v1313, 0
  %v1346 = vsel %vm230, %v1314, 0
  %v1349 = vsel %vm230, %v1315, 0
  %v1352 = vsel %vm230, %v1316, 0
  %v1355 = vsel %vm230, %v1317, 0
  %v1358 = vsel %vm230, %v1318, 0
  %v1361 = vsel %vm230, %v1319, 0
  %v1364 = vsel %vm230, %v1320, 0
  %v1367 = vsel %vm230, %v1321, 0
  %v1370 = vsel %vm230, %v1322, 0
  %v1373 = vsel %vm230, %v1323, 0
  %v1376 = vsel %vm230, %v1324, 0
  %v1379 = vsel %vm230, %v1325, 0
  %v1382 = vsel %vm230, %v1326, 0
  %v1385 = vsel %vm230, %v1327, 0
  %v1388 = vsel %vm230, %v1328, 0
  %v1391 = vsel %vm230, %v1329, 0
  %v1394 = vsel %vm230, %v1330, 0
  %v1397 = vsel %vm230, %v1331, 0
  %v1400 = vsel %vm230, %v1332, 0
  %v1403 = vsel %vm230, %v1333, 0
  %v1406 = vsel %vm230, %v1334, 0
  %v1409 = vsel %vm230, %v1335, 0
  %v1412 = vsel %vm230, %v1336, 0
  %v1415 = vsel %vm230, %v1337, 0
  %v1418 = vsel %vm230, %v1338, 0
  %v1421 = vsel %vm230, %v1339, 0
  %v1424 = vsel %vm230, %v1340, 0
  %v1427 = vsel %vm230, %v1341, 0
  %1429 = vmatprep.subr.bf16.mxu0 0
  %1430 = vmatpush1.bf16.msra.mxu0 %v227
  %1431 = vmatprep.subr.bf16.mxu0 0
  %1432 = vmatpush1.bf16.msra.mxu0 %v323
  %1433 = vmatprep.subr.bf16.mxu0 0
  %1434 = vmatpush1.bf16.msra.mxu0 0
  %1435 = vmatprep.subr.bf16.mxu0 0
  %1436 = vmatpush1.bf16.msra.mxu0 0
  %1437 = vmatprep.subr.bf16.mxu0 0
  %1438 = vmatpush1.bf16.msra.mxu0 0
  %1439 = vmatprep.subr.bf16.mxu0 0
  %1440 = vmatpush1.bf16.msra.mxu0 0
  %1441 = vmatprep.subr.bf16.mxu0 0
  %1442 = vmatpush1.bf16.msra.mxu0 0
  %1443 = vmatprep.subr.bf16.mxu0 0
  %1444 = vmatpush1.bf16.msra.mxu0 0
  %1445 = vmatprep.subr.bf16.mxu0 0
  %1446 = vmatpush1.bf16.msra.mxu0 0
  %1447 = vmatprep.subr.bf16.mxu0 0
  %1448 = vmatpush1.bf16.msra.mxu0 0
  %1449 = vmatprep.subr.bf16.mxu0 0
  %1450 = vmatpush1.bf16.msra.mxu0 0
  %1451 = vmatprep.subr.bf16.mxu0 0
  %1452 = vmatpush1.bf16.msra.mxu0 0
  %1453 = vmatprep.subr.bf16.mxu0 0
  %1454 = vmatpush1.bf16.msra.mxu0 0
  %1455 = vmatprep.subr.bf16.mxu0 0
  %1456 = vmatpush1.bf16.msra.mxu0 0
  %1457 = vmatprep.subr.bf16.mxu0 0
  %1458 = vmatpush1.bf16.msra.mxu0 0
  %1459 = vmatprep.subr.bf16.mxu0 0
  %1460 = vmatpush1.bf16.msra.mxu0 0
  %1461 = vmatprep.mubr.bf16.mxu0 0
  %1462 = vmatmul.mubr.bf16.gmra.mrb[0].mxu0 %v1343
  %v1463 = vpop.f32.mrb[0].mxu0
  %v1464 = vadd.f32 0.0, %v1463
  %v1465 = vpop.f32.mrb[0].mxu0
  %v1466 = vpop.f32.mrb[0].mxu0
  %v1467 = vadd.f32 0.0, %v1466
  %v1468 = vpop.f32.mrb[0].mxu0
  %1469 = vmatprep.mubr.bf16.mxu0 0
  %1470 = vmatmul.mubr.bf16.gmra.mrb[0].mxu0 %v1346
  %v1471 = vpop.f32.mrb[0].mxu0
  %v1472 = vadd.f32 0.0, %v1471
  %v1473 = vpop.f32.mrb[0].mxu0
  %v1474 = vpop.f32.mrb[0].mxu0
  %v1475 = vadd.f32 0.0, %v1474
  %v1476 = vpop.f32.mrb[0].mxu0
  %1477 = vmatprep.mubr.bf16.mxu0 0
  %1478 = vmatmul.mubr.bf16.gmra.mrb[0].mxu0 %v1349
  %v1479 = vpop.f32.mrb[0].mxu0
  %v1480 = vadd.f32 0.0, %v1479
  %v1481 = vpop.f32.mrb[0].mxu0
  %v1482 = vpop.f32.mrb[0].mxu0
  %v1483 = vadd.f32 0.0, %v1482
  %v1484 = vpop.f32.mrb[0].mxu0
  %1485 = vmatprep.mubr.bf16.mxu0 0
  %1486 = vmatmul.mubr.bf16.gmra.mrb[0].mxu0 %v1352
  %v1487 = vpop.f32.mrb[0].mxu0
  %v1488 = vadd.f32 0.0, %v1487
  %v1489 = vpop.f32.mrb[0].mxu0
  %v1490 = vpop.f32.mrb[0].mxu0
  %v1491 = vadd.f32 0.0, %v1490
  %v1492 = vpop.f32.mrb[0].mxu0
  %1493 = vmatprep.mubr.bf16.mxu0 0
  %1494 = vmatmul.mubr.bf16.gmra.mrb[0].mxu0 %v1355
  %v1495 = vpop.f32.mrb[0].mxu0
  %v1496 = vadd.f32 0.0, %v1495
  %v1497 = vpop.f32.mrb[0].mxu0
  %v1498 = vpop.f32.mrb[0].mxu0
  %v1499 = vadd.f32 0.0, %v1498
  %v1500 = vpop.f32.mrb[0].mxu0
  %1501 = vmatprep.mubr.bf16.mxu0 0
  %1502 = vmatmul.mubr.bf16.gmra.mrb[0].mxu0 %v1358
  %v1503 = vpop.f32.mrb[0].mxu0
  %v1504 = vadd.f32 0.0, %v1503
  %v1505 = vpop.f32.mrb[0].mxu0
  %v1506 = vpop.f32.mrb[0].mxu0
  %v1507 = vadd.f32 0.0, %v1506
  %v1508 = vpop.f32.mrb[0].mxu0
  %1509 = vmatprep.mubr.bf16.mxu0 0
  %1510 = vmatmul.mubr.bf16.gmra.mrb[0].mxu0 %v1361
  %v1511 = vpop.f32.mrb[0].mxu0
  %v1512 = vadd.f32 0.0, %v1511
  %v1513 = vpop.f32.mrb[0].mxu0
  %v1514 = vpop.f32.mrb[0].mxu0
  %v1515 = vadd.f32 0.0, %v1514
  %v1516 = vpop.f32.mrb[0].mxu0
  %1517 = vmatprep.mubr.bf16.mxu0 0
  %1518 = vmatmul.mubr.bf16.gmra.mrb[0].mxu0 %v1364
  %v1519 = vpop.f32.mrb[0].mxu0
  %v1520 = vadd.f32 0.0, %v1519
  %v1521 = vpop.f32.mrb[0].mxu0
  %v1522 = vpop.f32.mrb[0].mxu0
  %v1523 = vadd.f32 0.0, %v1522
  %v1524 = vpop.f32.mrb[0].mxu0
  %1525 = vmatprep.mubr.bf16.mxu0 0
  %1526 = vmatmul.mubr.bf16.gmra.mrb[0].mxu0 %v1367
  %v1527 = vpop.f32.mrb[0].mxu0
  %v1528 = vadd.f32 0.0, %v1527
  %v1529 = vpop.f32.mrb[0].mxu0
  %v1530 = vpop.f32.mrb[0].mxu0
  %v1531 = vadd.f32 0.0, %v1530
  %v1532 = vpop.f32.mrb[0].mxu0
  %1533 = vmatprep.mubr.bf16.mxu0 0
  %1534 = vmatmul.mubr.bf16.gmra.mrb[0].mxu0 %v1370
  %v1535 = vpop.f32.mrb[0].mxu0
  %v1536 = vadd.f32 0.0, %v1535
  %v1537 = vpop.f32.mrb[0].mxu0
  %v1538 = vpop.f32.mrb[0].mxu0
  %v1539 = vadd.f32 0.0, %v1538
  %v1540 = vpop.f32.mrb[0].mxu0
  %1541 = vmatprep.mubr.bf16.mxu0 0
  %1542 = vmatmul.mubr.bf16.gmra.mrb[0].mxu0 %v1373
  %v1543 = vpop.f32.mrb[0].mxu0
  %v1544 = vadd.f32 0.0, %v1543
  %v1545 = vpop.f32.mrb[0].mxu0
  %v1546 = vpop.f32.mrb[0].mxu0
  %v1547 = vadd.f32 0.0, %v1546
  %v1548 = vpop.f32.mrb[0].mxu0
  %1549 = vmatprep.mubr.bf16.mxu0 0
  %1550 = vmatmul.mubr.bf16.gmra.mrb[0].mxu0 %v1376
  %v1551 = vpop.f32.mrb[0].mxu0
  %v1552 = vadd.f32 0.0, %v1551
  %v1553 = vpop.f32.mrb[0].mxu0
  %v1554 = vpop.f32.mrb[0].mxu0
  %v1555 = vadd.f32 0.0, %v1554
  %v1556 = vpop.f32.mrb[0].mxu0
  %1557 = vmatprep.mubr.bf16.mxu0 0
  %1558 = vmatmul.mubr.bf16.gmra.mrb[0].mxu0 %v1379
  %v1559 = vpop.f32.mrb[0].mxu0
  %v1560 = vadd.f32 0.0, %v1559
  %v1561 = vpop.f32.mrb[0].mxu0
  %v1562 = vpop.f32.mrb[0].mxu0
  %v1563 = vadd.f32 0.0, %v1562
  %v1564 = vpop.f32.mrb[0].mxu0
  %1565 = vmatprep.mubr.bf16.mxu0 0
  %1566 = vmatmul.mubr.bf16.gmra.mrb[0].mxu0 %v1382
  %v1567 = vpop.f32.mrb[0].mxu0
  %v1568 = vadd.f32 0.0, %v1567
  %v1569 = vpop.f32.mrb[0].mxu0
  %v1570 = vpop.f32.mrb[0].mxu0
  %v1571 = vadd.f32 0.0, %v1570
  %v1572 = vpop.f32.mrb[0].mxu0
  %1573 = vmatprep.mubr.bf16.mxu0 0
  %1574 = vmatmul.mubr.bf16.gmra.mrb[0].mxu0 %v1385
  %v1575 = vpop.f32.mrb[0].mxu0
  %v1576 = vadd.f32 0.0, %v1575
  %v1577 = vpop.f32.mrb[0].mxu0
  %v1578 = vpop.f32.mrb[0].mxu0
  %v1579 = vadd.f32 0.0, %v1578
  %v1580 = vpop.f32.mrb[0].mxu0
  %1581 = vmatprep.mubr.bf16.mxu0 0
  %1582 = vmatmul.mubr.bf16.gmra.mrb[0].mxu0 %v1388
  %v1583 = vpop.f32.mrb[0].mxu0
  %v1584 = vadd.f32 0.0, %v1583
  %v1585 = vpop.f32.mrb[0].mxu0
  %v1586 = vpop.f32.mrb[0].mxu0
  %v1587 = vadd.f32 0.0, %v1586
  %v1588 = vpop.f32.mrb[0].mxu0
  %1589 = vmatprep.mubr.bf16.mxu0 0
  %1590 = vmatmul.mubr.bf16.gmra.mrb[0].mxu0 %v1391
  %v1591 = vpop.f32.mrb[0].mxu0
  %v1592 = vadd.f32 0.0, %v1591
  %v1593 = vpop.f32.mrb[0].mxu0
  %v1594 = vpop.f32.mrb[0].mxu0
  %v1595 = vadd.f32 0.0, %v1594
  %v1596 = vpop.f32.mrb[0].mxu0
  %1597 = vmatprep.mubr.bf16.mxu0 0
  %1598 = vmatmul.mubr.bf16.gmra.mrb[0].mxu0 %v1394
  %v1599 = vpop.f32.mrb[0].mxu0
  %v1600 = vadd.f32 0.0, %v1599
  %v1601 = vpop.f32.mrb[0].mxu0
  %v1602 = vpop.f32.mrb[0].mxu0
  %v1603 = vadd.f32 0.0, %v1602
  %v1604 = vpop.f32.mrb[0].mxu0
  %1605 = vmatprep.mubr.bf16.mxu0 0
  %1606 = vmatmul.mubr.bf16.gmra.mrb[0].mxu0 %v1397
  %v1607 = vpop.f32.mrb[0].mxu0
  %v1608 = vadd.f32 0.0, %v1607
  %v1609 = vpop.f32.mrb[0].mxu0
  %v1610 = vpop.f32.mrb[0].mxu0
  %v1611 = vadd.f32 0.0, %v1610
  %v1612 = vpop.f32.mrb[0].mxu0
  %1613 = vmatprep.mubr.bf16.mxu0 0
  %1614 = vmatmul.mubr.bf16.gmra.mrb[0].mxu0 %v1400
  %v1615 = vpop.f32.mrb[0].mxu0
  %v1616 = vadd.f32 0.0, %v1615
  %v1617 = vpop.f32.mrb[0].mxu0
  %v1618 = vpop.f32.mrb[0].mxu0
  %v1619 = vadd.f32 0.0, %v1618
  %v1620 = vpop.f32.mrb[0].mxu0
  %1621 = vmatprep.mubr.bf16.mxu0 0
  %1622 = vmatmul.mubr.bf16.gmra.mrb[0].mxu0 %v1403
  %v1623 = vpop.f32.mrb[0].mxu0
  %v1624 = vadd.f32 0.0, %v1623
  %v1625 = vpop.f32.mrb[0].mxu0
  %v1626 = vpop.f32.mrb[0].mxu0
  %v1627 = vadd.f32 0.0, %v1626
  %v1628 = vpop.f32.mrb[0].mxu0
  %1629 = vmatprep.mubr.bf16.mxu0 0
  %1630 = vmatmul.mubr.bf16.gmra.mrb[0].mxu0 %v1406
  %v1631 = vpop.f32.mrb[0].mxu0
  %v1632 = vadd.f32 0.0, %v1631
  %v1633 = vpop.f32.mrb[0].mxu0
  %v1634 = vpop.f32.mrb[0].mxu0
  %v1635 = vadd.f32 0.0, %v1634
  %v1636 = vpop.f32.mrb[0].mxu0
  %1637 = vmatprep.mubr.bf16.mxu0 0
  %1638 = vmatmul.mubr.bf16.gmra.mrb[0].mxu0 %v1409
  %v1639 = vpop.f32.mrb[0].mxu0
  %v1640 = vadd.f32 0.0, %v1639
  %v1641 = vpop.f32.mrb[0].mxu0
  %v1642 = vpop.f32.mrb[0].mxu0
  %v1643 = vadd.f32 0.0, %v1642
  %v1644 = vpop.f32.mrb[0].mxu0
  %1645 = vmatprep.mubr.bf16.mxu0 0
  %1646 = vmatmul.mubr.bf16.gmra.mrb[0].mxu0 %v1412
  %v1647 = vpop.f32.mrb[0].mxu0
  %v1648 = vadd.f32 0.0, %v1647
  %v1649 = vpop.f32.mrb[0].mxu0
  %v1650 = vpop.f32.mrb[0].mxu0
  %v1651 = vadd.f32 0.0, %v1650
  %v1652 = vpop.f32.mrb[0].mxu0
  %1653 = vmatprep.mubr.bf16.mxu0 0
  %1654 = vmatmul.mubr.bf16.gmra.mrb[0].mxu0 %v1415
  %v1655 = vpop.f32.mrb[0].mxu0
  %v1656 = vadd.f32 0.0, %v1655
  %v1657 = vpop.f32.mrb[0].mxu0
  %v1658 = vpop.f32.mrb[0].mxu0
  %v1659 = vadd.f32 0.0, %v1658
  %v1660 = vpop.f32.mrb[0].mxu0
  %1661 = vmatprep.mubr.bf16.mxu0 0
  %1662 = vmatmul.mubr.bf16.gmra.mrb[0].mxu0 %v1418
  %v1663 = vpop.f32.mrb[0].mxu0
  %v1664 = vadd.f32 0.0, %v1663
  %v1665 = vpop.f32.mrb[0].mxu0
  %v1666 = vpop.f32.mrb[0].mxu0
  %v1667 = vadd.f32 0.0, %v1666
  %v1668 = vpop.f32.mrb[0].mxu0
  %1669 = vmatprep.mubr.bf16.mxu0 0
  %1670 = vmatmul.mubr.bf16.gmra.mrb[0].mxu0 %v1421
  %v1671 = vpop.f32.mrb[0].mxu0
  %v1672 = vadd.f32 0.0, %v1671
  %v1673 = vpop.f32.mrb[0].mxu0
  %v1674 = vpop.f32.mrb[0].mxu0
  %v1675 = vadd.f32 0.0, %v1674
  %v1676 = vpop.f32.mrb[0].mxu0
  %1677 = vmatprep.mubr.bf16.mxu0 0
  %1678 = vmatmul.mubr.bf16.gmra.mrb[0].mxu0 %v1424
  %v1679 = vpop.f32.mrb[0].mxu0
  %v1680 = vadd.f32 0.0, %v1679
  %v1681 = vpop.f32.mrb[0].mxu0
  %v1682 = vpop.f32.mrb[0].mxu0
  %v1683 = vadd.f32 0.0, %v1682
  %v1684 = vpop.f32.mrb[0].mxu0
  %1685 = vmatprep.mubr.bf16.mxu0 0
  %1686 = vmatmul.mubr.bf16.gmra.mrb[0].mxu0 %v1427
  %v1687 = vpop.f32.mrb[0].mxu0
  %v1688 = vadd.f32 0.0, %v1687
  %v1689 = vpop.f32.mrb[0].mxu0
  %v1690 = vpop.f32.mrb[0].mxu0
  %v1691 = vpop.f32.mrb[0].mxu0
  %1692 = vdwg.mxu0
  %s1693 = scalar_lea.vmem %s0, 684
  %v1694 = vld [vmem:[%s1693] sm:$0xf]
  %v1695 = vld [vmem:[%s1693 + $0x4] sm:$0xf]
  %v1696 = vld [vmem:[%s1693 + $0x8] sm:$0xf]
  %v1697 = vld [vmem:[%s1693 + $0xc] sm:$0xf]
  %v1698 = vld [vmem:[%s1693 + $0x10] sm:$0xf]
  %v1699 = vld [vmem:[%s1693 + $0x14] sm:$0xf]
  %v1700 = vld [vmem:[%s1693 + $0x18] sm:$0xf]
  %v1701 = vld [vmem:[%s1693 + $0x1c] sm:$0xf]
  %v1702 = vld [vmem:[%s1693 + $0x20] sm:$0xf]
  %v1703 = vld [vmem:[%s1693 + $0x24] sm:$0xf]
  %v1704 = vld [vmem:[%s1693 + $0x28] sm:$0xf]
  %v1705 = vld [vmem:[%s1693 + $0x2c] sm:$0xf]
  %v1706 = vld [vmem:[%s1693 + $0x30] sm:$0xf]
  %v1707 = vld [vmem:[%s1693 + $0x34] sm:$0xf]
  %v1708 = vld [vmem:[%s1693 + $0x38] sm:$0xf]
  %v1709 = vld [vmem:[%s1693 + $0x3c] sm:$0xf]
  %v1710 = vld [vmem:[%s1693 + $0x40] sm:$0xf]
  %v1711 = vld [vmem:[%s1693 + $0x44] sm:$0xf]
  %v1712 = vld [vmem:[%s1693 + $0x48] sm:$0xf]
  %v1713 = vld [vmem:[%s1693 + $0x4c] sm:$0xf]
  %v1714 = vld [vmem:[%s1693 + $0x50] sm:$0xf]
  %v1715 = vld [vmem:[%s1693 + $0x54] sm:$0xf]
  %v1716 = vld [vmem:[%s1693 + $0x58] sm:$0xf]
  %v1717 = vld [vmem:[%s1693 + $0x5c] sm:$0xf]
  %v1718 = vld [vmem:[%s1693 + $0x60] sm:$0xf]
  %v1719 = vld [vmem:[%s1693 + $0x64] sm:$0xf]
  %v1720 = vld [vmem:[%s1693 + $0x68] sm:$0xf]
  %v1721 = vld [vmem:[%s1693 + $0x6c] sm:$0xf]
  %v1722 = vld [vmem:[%s1693 + $0x70] sm:$0xf]
  %v1723 = vld [vmem:[%s1693 + $0x74] sm:$0xf]
  %v1724 = vld [vmem:[%s1693 + $0x78] sm:$0xf]
  %v1725 = vld [vmem:[%s1693 + $0x7c] sm:$0xf]
  %v1726 = vld [vmem:[%s1693 + $0x80] sm:$0xf]
  %v1727 = vld [vmem:[%s1693 + $0x84] sm:$0xf]
  %v1728 = vld [vmem:[%s1693 + $0x88] sm:$0xf]
  %v1729 = vld [vmem:[%s1693 + $0x8c] sm:$0xf]
  %v1730 = vld [vmem:[%s1693 + $0x90] sm:$0xf]
  %v1731 = vld [vmem:[%s1693 + $0x94] sm:$0xf]
  %v1732 = vld [vmem:[%s1693 + $0x98] sm:$0xf]
  %v1733 = vld [vmem:[%s1693 + $0x9c] sm:$0xf]
  %v1734 = vld [vmem:[%s1693 + $0xa0] sm:$0xf]
  %v1735 = vld [vmem:[%s1693 + $0xa4] sm:$0xf]
  %v1736 = vld [vmem:[%s1693 + $0xa8] sm:$0xf]
  %v1737 = vld [vmem:[%s1693 + $0xac] sm:$0xf]
  %v1738 = vld [vmem:[%s1693 + $0xb0] sm:$0xf]
  %v1739 = vld [vmem:[%s1693 + $0xb4] sm:$0xf]
  %v1740 = vld [vmem:[%s1693 + $0xb8] sm:$0xf]
  %v1741 = vld [vmem:[%s1693 + $0xbc] sm:$0xf]
  %v1742 = vld [vmem:[%s1693 + $0xc0] sm:$0xf]
  %v1743 = vld [vmem:[%s1693 + $0xc4] sm:$0xf]
  %v1744 = vld [vmem:[%s1693 + $0xc8] sm:$0xf]
  %v1745 = vld [vmem:[%s1693 + $0xcc] sm:$0xf]
  %v1746 = vld [vmem:[%s1693 + $0xd0] sm:$0xf]
  %v1747 = vld [vmem:[%s1693 + $0xd4] sm:$0xf]
  %v1748 = vld [vmem:[%s1693 + $0xd8] sm:$0xf]
  %v1749 = vld [vmem:[%s1693 + $0xdc] sm:$0xf]
  %v1750 = vld [vmem:[%s1693 + $0xe0] sm:$0x1]
  %v1808 = vunpack.c.l.b16 %v1694
  %v1809 = vunpack.c.l.b16 %v1695
  %v1810 = vunpack.c.l.b16 %v1696
  %v1811 = vunpack.c.l.b16 %v1697
  %v1812 = vunpack.c.l.b16 %v1698
  %v1813 = vunpack.c.l.b16 %v1699
  %v1814 = vunpack.c.l.b16 %v1700
  %v1815 = vunpack.c.l.b16 %v1701
  %v1816 = vunpack.c.l.b16 %v1702
  %v1817 = vunpack.c.l.b16 %v1703
  %v1818 = vunpack.c.l.b16 %v1704
  %v1819 = vunpack.c.l.b16 %v1705
  %v1820 = vunpack.c.l.b16 %v1706
  %v1821 = vunpack.c.l.b16 %v1707
  %v1822 = vunpack.c.l.b16 %v1708
  %v1823 = vunpack.c.l.b16 %v1709
  %v1824 = vunpack.c.l.b16 %v1710
  %v1825 = vunpack.c.l.b16 %v1711
  %v1826 = vunpack.c.l.b16 %v1712
  %v1827 = vunpack.c.l.b16 %v1713
  %v1828 = vunpack.c.l.b16 %v1714
  %v1829 = vunpack.c.l.b16 %v1715
  %v1830 = vunpack.c.l.b16 %v1716
  %v1831 = vunpack.c.l.b16 %v1717
  %v1832 = vunpack.c.l.b16 %v1718
  %v1833 = vunpack.c.l.b16 %v1719
  %v1834 = vunpack.c.l.b16 %v1720
  %v1835 = vunpack.c.l.b16 %v1721
  %v1836 = vunpack.c.l.b16 %v1722
  %v1837 = vunpack.c.l.b16 %v1723
  %v1838 = vunpack.c.l.b16 %v1724
  %v1839 = vunpack.c.l.b16 %v1725
  %v1840 = vunpack.c.l.b16 %v1726
  %v1841 = vunpack.c.l.b16 %v1727
  %v1842 = vunpack.c.l.b16 %v1728
  %v1843 = vunpack.c.l.b16 %v1729
  %v1844 = vunpack.c.l.b16 %v1730
  %v1845 = vunpack.c.l.b16 %v1731
  %v1846 = vunpack.c.l.b16 %v1732
  %v1847 = vunpack.c.l.b16 %v1733
  %v1848 = vunpack.c.l.b16 %v1734
  %v1849 = vunpack.c.l.b16 %v1735
  %v1850 = vunpack.c.l.b16 %v1736
  %v1851 = vunpack.c.l.b16 %v1737
  %v1852 = vunpack.c.l.b16 %v1738
  %v1853 = vunpack.c.l.b16 %v1739
  %v1854 = vunpack.c.l.b16 %v1740
  %v1855 = vunpack.c.l.b16 %v1741
  %v1856 = vunpack.c.l.b16 %v1742
  %v1857 = vunpack.c.l.b16 %v1743
  %v1858 = vunpack.c.l.b16 %v1744
  %v1859 = vunpack.c.l.b16 %v1745
  %v1860 = vunpack.c.l.b16 %v1746
  %v1861 = vunpack.c.l.b16 %v1747
  %v1862 = vunpack.c.l.b16 %v1748
  %v1863 = vunpack.c.l.b16 %v1749
  %v1864 = vunpack.c.l.b16 %v1750
  %v1865 = vpack.c.b16 %v1809, %v1808
  %v1866 = vpack.c.b16 %v1811, %v1810
  %v1867 = vpack.c.b16 %v1813, %v1812
  %v1868 = vpack.c.b16 %v1815, %v1814
  %v1869 = vpack.c.b16 %v1817, %v1816
  %v1870 = vpack.c.b16 %v1819, %v1818
  %v1871 = vpack.c.b16 %v1821, %v1820
  %v1872 = vpack.c.b16 %v1823, %v1822
  %v1873 = vpack.c.b16 %v1825, %v1824
  %v1874 = vpack.c.b16 %v1827, %v1826
  %v1875 = vpack.c.b16 %v1829, %v1828
  %v1876 = vpack.c.b16 %v1831, %v1830
  %v1877 = vpack.c.b16 %v1833, %v1832
  %v1878 = vpack.c.b16 %v1835, %v1834
  %v1879 = vpack.c.b16 %v1837, %v1836
  %v1880 = vpack.c.b16 %v1839, %v1838
  %v1881 = vpack.c.b16 %v1841, %v1840
  %v1882 = vpack.c.b16 %v1843, %v1842
  %v1883 = vpack.c.b16 %v1845, %v1844
  %v1884 = vpack.c.b16 %v1847, %v1846
  %v1885 = vpack.c.b16 %v1849, %v1848
  %v1886 = vpack.c.b16 %v1851, %v1850
  %v1887 = vpack.c.b16 %v1853, %v1852
  %v1888 = vpack.c.b16 %v1855, %v1854
  %v1889 = vpack.c.b16 %v1857, %v1856
  %v1890 = vpack.c.b16 %v1859, %v1858
  %v1891 = vpack.c.b16 %v1861, %v1860
  %v1892 = vpack.c.b16 %v1863, %v1862
  %v1893 = vpack.c.b16 %v1864, %v1864
  %v1895 = vsel %vm230, %v1865, 0
  %v1898 = vsel %vm230, %v1866, 0
  %v1901 = vsel %vm230, %v1867, 0
  %v1904 = vsel %vm230, %v1868, 0
  %v1907 = vsel %vm230, %v1869, 0
  %v1910 = vsel %vm230, %v1870, 0
  %v1913 = vsel %vm230, %v1871, 0
  %v1916 = vsel %vm230, %v1872, 0
  %v1919 = vsel %vm230, %v1873, 0
  %v1922 = vsel %vm230, %v1874, 0
  %v1925 = vsel %vm230, %v1875, 0
  %v1928 = vsel %vm230, %v1876, 0
  %v1931 = vsel %vm230, %v1877, 0
  %v1934 = vsel %vm230, %v1878, 0
  %v1937 = vsel %vm230, %v1879, 0
  %v1940 = vsel %vm230, %v1880, 0
  %v1943 = vsel %vm230, %v1881, 0
  %v1946 = vsel %vm230, %v1882, 0
  %v1949 = vsel %vm230, %v1883, 0
  %v1952 = vsel %vm230, %v1884, 0
  %v1955 = vsel %vm230, %v1885, 0
  %v1958 = vsel %vm230, %v1886, 0
  %v1961 = vsel %vm230, %v1887, 0
  %v1964 = vsel %vm230, %v1888, 0
  %v1967 = vsel %vm230, %v1889, 0
  %v1970 = vsel %vm230, %v1890, 0
  %v1973 = vsel %vm230, %v1891, 0
  %v1976 = vsel %vm230, %v1892, 0
  %v1979 = vsel %vm230, %v1893, 0
  %1981 = vmatprep.subr.bf16.mxu0 0
  %1982 = vmatpush1.bf16.msra.mxu0 %v227
  %1983 = vmatprep.subr.bf16.mxu0 0
  %1984 = vmatpush1.bf16.msra.mxu0 %v323
  %1985 = vmatprep.subr.bf16.mxu0 0
  %1986 = vmatpush1.bf16.msra.mxu0 0
  %1987 = vmatprep.subr.bf16.mxu0 0
  %1988 = vmatpush1.bf16.msra.mxu0 0
  %1989 = vmatprep.subr.bf16.mxu0 0
  %1990 = vmatpush1.bf16.msra.mxu0 0
  %1991 = vmatprep.subr.bf16.mxu0 0
  %1992 = vmatpush1.bf16.msra.mxu0 0
  %1993 = vmatprep.subr.bf16.mxu0 0
  %1994 = vmatpush1.bf16.msra.mxu0 0
  %1995 = vmatprep.subr.bf16.mxu0 0
  %1996 = vmatpush1.bf16.msra.mxu0 0
  %1997 = vmatprep.subr.bf16.mxu0 0
  %1998 = vmatpush1.bf16.msra.mxu0 0
  %1999 = vmatprep.subr.bf16.mxu0 0
  %2000 = vmatpush1.bf16.msra.mxu0 0
  %2001 = vmatprep.subr.bf16.mxu0 0
  %2002 = vmatpush1.bf16.msra.mxu0 0
  %2003 = vmatprep.subr.bf16.mxu0 0
  %2004 = vmatpush1.bf16.msra.mxu0 0
  %2005 = vmatprep.subr.bf16.mxu0 0
  %2006 = vmatpush1.bf16.msra.mxu0 0
  %2007 = vmatprep.subr.bf16.mxu0 0
  %2008 = vmatpush1.bf16.msra.mxu0 0
  %2009 = vmatprep.subr.bf16.mxu0 0
  %2010 = vmatpush1.bf16.msra.mxu0 0
  %2011 = vmatprep.subr.bf16.mxu0 0
  %2012 = vmatpush1.bf16.msra.mxu0 0
  %2013 = vmatprep.mubr.bf16.mxu0 0
  %2014 = vmatmul.mubr.bf16.gmra.mrb[0].mxu0 %v1895
  %v2015 = vpop.f32.mrb[0].mxu0
  %v2016 = vadd.f32 0.0, %v2015
  %v2017 = vpop.f32.mrb[0].mxu0
  %v2018 = vpop.f32.mrb[0].mxu0
  %v2019 = vadd.f32 0.0, %v2018
  %v2020 = vpop.f32.mrb[0].mxu0
  %2021 = vmatprep.mubr.bf16.mxu0 0
  %2022 = vmatmul.mubr.bf16.gmra.mrb[0].mxu0 %v1898
  %v2023 = vpop.f32.mrb[0].mxu0
  %v2024 = vadd.f32 0.0, %v2023
  %v2025 = vpop.f32.mrb[0].mxu0
  %v2026 = vpop.f32.mrb[0].mxu0
  %v2027 = vadd.f32 0.0, %v2026
  %v2028 = vpop.f32.mrb[0].mxu0
  %2029 = vmatprep.mubr.bf16.mxu0 0
  %2030 = vmatmul.mubr.bf16.gmra.mrb[0].mxu0 %v1901
  %v2031 = vpop.f32.mrb[0].mxu0
  %v2032 = vadd.f32 0.0, %v2031
  %v2033 = vpop.f32.mrb[0].mxu0
  %v2034 = vpop.f32.mrb[0].mxu0
  %v2035 = vadd.f32 0.0, %v2034
  %v2036 = vpop.f32.mrb[0].mxu0
  %2037 = vmatprep.mubr.bf16.mxu0 0
  %2038 = vmatmul.mubr.bf16.gmra.mrb[0].mxu0 %v1904
  %v2039 = vpop.f32.mrb[0].mxu0
  %v2040 = vadd.f32 0.0, %v2039
  %v2041 = vpop.f32.mrb[0].mxu0
  %v2042 = vpop.f32.mrb[0].mxu0
  %v2043 = vadd.f32 0.0, %v2042
  %v2044 = vpop.f32.mrb[0].mxu0
  %2045 = vmatprep.mubr.bf16.mxu0 0
  %2046 = vmatmul.mubr.bf16.gmra.mrb[0].mxu0 %v1907
  %v2047 = vpop.f32.mrb[0].mxu0
  %v2048 = vadd.f32 0.0, %v2047
  %v2049 = vpop.f32.mrb[0].mxu0
  %v2050 = vpop.f32.mrb[0].mxu0
  %v2051 = vadd.f32 0.0, %v2050
  %v2052 = vpop.f32.mrb[0].mxu0
  %2053 = vmatprep.mubr.bf16.mxu0 0
  %2054 = vmatmul.mubr.bf16.gmra.mrb[0].mxu0 %v1910
  %v2055 = vpop.f32.mrb[0].mxu0
  %v2056 = vadd.f32 0.0, %v2055
  %v2057 = vpop.f32.mrb[0].mxu0
  %v2058 = vpop.f32.mrb[0].mxu0
  %v2059 = vadd.f32 0.0, %v2058
  %v2060 = vpop.f32.mrb[0].mxu0
  %2061 = vmatprep.mubr.bf16.mxu0 0
  %2062 = vmatmul.mubr.bf16.gmra.mrb[0].mxu0 %v1913
  %v2063 = vpop.f32.mrb[0].mxu0
  %v2064 = vadd.f32 0.0, %v2063
  %v2065 = vpop.f32.mrb[0].mxu0
  %v2066 = vpop.f32.mrb[0].mxu0
  %v2067 = vadd.f32 0.0, %v2066
  %v2068 = vpop.f32.mrb[0].mxu0
  %2069 = vmatprep.mubr.bf16.mxu0 0
  %2070 = vmatmul.mubr.bf16.gmra.mrb[0].mxu0 %v1916
  %v2071 = vpop.f32.mrb[0].mxu0
  %v2072 = vadd.f32 0.0, %v2071
  %v2073 = vpop.f32.mrb[0].mxu0
  %v2074 = vpop.f32.mrb[0].mxu0
  %v2075 = vadd.f32 0.0, %v2074
  %v2076 = vpop.f32.mrb[0].mxu0
  %2077 = vmatprep.mubr.bf16.mxu0 0
  %2078 = vmatmul.mubr.bf16.gmra.mrb[0].mxu0 %v1919
  %v2079 = vpop.f32.mrb[0].mxu0
  %v2080 = vadd.f32 0.0, %v2079
  %v2081 = vpop.f32.mrb[0].mxu0
  %v2082 = vpop.f32.mrb[0].mxu0
  %v2083 = vadd.f32 0.0, %v2082
  %v2084 = vpop.f32.mrb[0].mxu0
  %2085 = vmatprep.mubr.bf16.mxu0 0
  %2086 = vmatmul.mubr.bf16.gmra.mrb[0].mxu0 %v1922
  %v2087 = vpop.f32.mrb[0].mxu0
  %v2088 = vadd.f32 0.0, %v2087
  %v2089 = vpop.f32.mrb[0].mxu0
  %v2090 = vpop.f32.mrb[0].mxu0
  %v2091 = vadd.f32 0.0, %v2090
  %v2092 = vpop.f32.mrb[0].mxu0
  %2093 = vmatprep.mubr.bf16.mxu0 0
  %2094 = vmatmul.mubr.bf16.gmra.mrb[0].mxu0 %v1925
  %v2095 = vpop.f32.mrb[0].mxu0
  %v2096 = vadd.f32 0.0, %v2095
  %v2097 = vpop.f32.mrb[0].mxu0
  %v2098 = vpop.f32.mrb[0].mxu0
  %v2099 = vadd.f32 0.0, %v2098
  %v2100 = vpop.f32.mrb[0].mxu0
  %2101 = vmatprep.mubr.bf16.mxu0 0
  %2102 = vmatmul.mubr.bf16.gmra.mrb[0].mxu0 %v1928
  %v2103 = vpop.f32.mrb[0].mxu0
  %v2104 = vadd.f32 0.0, %v2103
  %v2105 = vpop.f32.mrb[0].mxu0
  %v2106 = vpop.f32.mrb[0].mxu0
  %v2107 = vadd.f32 0.0, %v2106
  %v2108 = vpop.f32.mrb[0].mxu0
  %2109 = vmatprep.mubr.bf16.mxu0 0
  %2110 = vmatmul.mubr.bf16.gmra.mrb[0].mxu0 %v1931
  %v2111 = vpop.f32.mrb[0].mxu0
  %v2112 = vadd.f32 0.0, %v2111
  %v2113 = vpop.f32.mrb[0].mxu0
  %v2114 = vpop.f32.mrb[0].mxu0
  %v2115 = vadd.f32 0.0, %v2114
  %v2116 = vpop.f32.mrb[0].mxu0
  %2117 = vmatprep.mubr.bf16.mxu0 0
  %2118 = vmatmul.mubr.bf16.gmra.mrb[0].mxu0 %v1934
  %v2119 = vpop.f32.mrb[0].mxu0
  %v2120 = vadd.f32 0.0, %v2119
  %v2121 = vpop.f32.mrb[0].mxu0
  %v2122 = vpop.f32.mrb[0].mxu0
  %v2123 = vadd.f32 0.0, %v2122
  %v2124 = vpop.f32.mrb[0].mxu0
  %2125 = vmatprep.mubr.bf16.mxu0 0
  %2126 = vmatmul.mubr.bf16.gmra.mrb[0].mxu0 %v1937
  %v2127 = vpop.f32.mrb[0].mxu0
  %v2128 = vadd.f32 0.0, %v2127
  %v2129 = vpop.f32.mrb[0].mxu0
  %v2130 = vpop.f32.mrb[0].mxu0
  %v2131 = vadd.f32 0.0, %v2130
  %v2132 = vpop.f32.mrb[0].mxu0
  %2133 = vmatprep.mubr.bf16.mxu0 0
  %2134 = vmatmul.mubr.bf16.gmra.mrb[0].mxu0 %v1940
  %v2135 = vpop.f32.mrb[0].mxu0
  %v2136 = vadd.f32 0.0, %v2135
  %v2137 = vpop.f32.mrb[0].mxu0
  %v2138 = vpop.f32.mrb[0].mxu0
  %v2139 = vadd.f32 0.0, %v2138
  %v2140 = vpop.f32.mrb[0].mxu0
  %2141 = vmatprep.mubr.bf16.mxu0 0
  %2142 = vmatmul.mubr.bf16.gmra.mrb[0].mxu0 %v1943
  %v2143 = vpop.f32.mrb[0].mxu0
  %v2144 = vadd.f32 0.0, %v2143
  %v2145 = vpop.f32.mrb[0].mxu0
  %v2146 = vpop.f32.mrb[0].mxu0
  %v2147 = vadd.f32 0.0, %v2146
  %v2148 = vpop.f32.mrb[0].mxu0
  %2149 = vmatprep.mubr.bf16.mxu0 0
  %2150 = vmatmul.mubr.bf16.gmra.mrb[0].mxu0 %v1946
  %v2151 = vpop.f32.mrb[0].mxu0
  %v2152 = vadd.f32 0.0, %v2151
  %v2153 = vpop.f32.mrb[0].mxu0
  %v2154 = vpop.f32.mrb[0].mxu0
  %v2155 = vadd.f32 0.0, %v2154
  %v2156 = vpop.f32.mrb[0].mxu0
  %2157 = vmatprep.mubr.bf16.mxu0 0
  %2158 = vmatmul.mubr.bf16.gmra.mrb[0].mxu0 %v1949
  %v2159 = vpop.f32.mrb[0].mxu0
  %v2160 = vadd.f32 0.0, %v2159
  %v2161 = vpop.f32.mrb[0].mxu0
  %v2162 = vpop.f32.mrb[0].mxu0
  %v2163 = vadd.f32 0.0, %v2162
  %v2164 = vpop.f32.mrb[0].mxu0
  %2165 = vmatprep.mubr.bf16.mxu0 0
  %2166 = vmatmul.mubr.bf16.gmra.mrb[0].mxu0 %v1952
  %v2167 = vpop.f32.mrb[0].mxu0
  %v2168 = vadd.f32 0.0, %v2167
  %v2169 = vpop.f32.mrb[0].mxu0
  %v2170 = vpop.f32.mrb[0].mxu0
  %v2171 = vadd.f32 0.0, %v2170
  %v2172 = vpop.f32.mrb[0].mxu0
  %2173 = vmatprep.mubr.bf16.mxu0 0
  %2174 = vmatmul.mubr.bf16.gmra.mrb[0].mxu0 %v1955
  %v2175 = vpop.f32.mrb[0].mxu0
  %v2176 = vadd.f32 0.0, %v2175
  %v2177 = vpop.f32.mrb[0].mxu0
  %v2178 = vpop.f32.mrb[0].mxu0
  %v2179 = vadd.f32 0.0, %v2178
  %v2180 = vpop.f32.mrb[0].mxu0
  %2181 = vmatprep.mubr.bf16.mxu0 0
  %2182 = vmatmul.mubr.bf16.gmra.mrb[0].mxu0 %v1958
  %v2183 = vpop.f32.mrb[0].mxu0
  %v2184 = vadd.f32 0.0, %v2183
  %v2185 = vpop.f32.mrb[0].mxu0
  %v2186 = vpop.f32.mrb[0].mxu0
  %v2187 = vadd.f32 0.0, %v2186
  %v2188 = vpop.f32.mrb[0].mxu0
  %2189 = vmatprep.mubr.bf16.mxu0 0
  %2190 = vmatmul.mubr.bf16.gmra.mrb[0].mxu0 %v1961
  %v2191 = vpop.f32.mrb[0].mxu0
  %v2192 = vadd.f32 0.0, %v2191
  %v2193 = vpop.f32.mrb[0].mxu0
  %v2194 = vpop.f32.mrb[0].mxu0
  %v2195 = vadd.f32 0.0, %v2194
  %v2196 = vpop.f32.mrb[0].mxu0
  %2197 = vmatprep.mubr.bf16.mxu0 0
  %2198 = vmatmul.mubr.bf16.gmra.mrb[0].mxu0 %v1964
  %v2199 = vpop.f32.mrb[0].mxu0
  %v2200 = vadd.f32 0.0, %v2199
  %v2201 = vpop.f32.mrb[0].mxu0
  %v2202 = vpop.f32.mrb[0].mxu0
  %v2203 = vadd.f32 0.0, %v2202
  %v2204 = vpop.f32.mrb[0].mxu0
  %2205 = vmatprep.mubr.bf16.mxu0 0
  %2206 = vmatmul.mubr.bf16.gmra.mrb[0].mxu0 %v1967
  %v2207 = vpop.f32.mrb[0].mxu0
  %v2208 = vadd.f32 0.0, %v2207
  %v2209 = vpop.f32.mrb[0].mxu0
  %v2210 = vpop.f32.mrb[0].mxu0
  %v2211 = vadd.f32 0.0, %v2210
  %v2212 = vpop.f32.mrb[0].mxu0
  %2213 = vmatprep.mubr.bf16.mxu0 0
  %2214 = vmatmul.mubr.bf16.gmra.mrb[0].mxu0 %v1970
  %v2215 = vpop.f32.mrb[0].mxu0
  %v2216 = vadd.f32 0.0, %v2215
  %v2217 = vpop.f32.mrb[0].mxu0
  %v2218 = vpop.f32.mrb[0].mxu0
  %v2219 = vadd.f32 0.0, %v2218
  %v2220 = vpop.f32.mrb[0].mxu0
  %2221 = vmatprep.mubr.bf16.mxu0 0
  %2222 = vmatmul.mubr.bf16.gmra.mrb[0].mxu0 %v1973
  %v2223 = vpop.f32.mrb[0].mxu0
  %v2224 = vadd.f32 0.0, %v2223
  %v2225 = vpop.f32.mrb[0].mxu0
  %v2226 = vpop.f32.mrb[0].mxu0
  %v2227 = vadd.f32 0.0, %v2226
  %v2228 = vpop.f32.mrb[0].mxu0
  %2229 = vmatprep.mubr.bf16.mxu0 0
  %2230 = vmatmul.mubr.bf16.gmra.mrb[0].mxu0 %v1976
  %v2231 = vpop.f32.mrb[0].mxu0
  %v2232 = vadd.f32 0.0, %v2231
  %v2233 = vpop.f32.mrb[0].mxu0
  %v2234 = vpop.f32.mrb[0].mxu0
  %v2235 = vadd.f32 0.0, %v2234
  %v2236 = vpop.f32.mrb[0].mxu0
  %2237 = vmatprep.mubr.bf16.mxu0 0
  %2238 = vmatmul.mubr.bf16.gmra.mrb[0].mxu0 %v1979
  %v2239 = vpop.f32.mrb[0].mxu0
  %v2240 = vadd.f32 0.0, %v2239
  %v2241 = vpop.f32.mrb[0].mxu0
  %v2242 = vpop.f32.mrb[0].mxu0
  %v2243 = vpop.f32.mrb[0].mxu0
  %2244 = vdwg.mxu0
  %v2245 = vmax.f32 %v360, %v912
  %v2246 = vmax.f32 %v363, %v915
  %v2247 = vmax.f32 %v368, %v920
  %v2248 = vmax.f32 %v371, %v923
  %v2249 = vmax.f32 %v376, %v928
  %v2250 = vmax.f32 %v379, %v931
  %v2251 = vmax.f32 %v384, %v936
  %v2252 = vmax.f32 %v387, %v939
  %v2253 = vmax.f32 %v392, %v944
  %v2254 = vmax.f32 %v395, %v947
  %v2255 = vmax.f32 %v400, %v952
  %v2256 = vmax.f32 %v403, %v955
  %v2257 = vmax.f32 %v408, %v960
  %v2258 = vmax.f32 %v411, %v963
  %v2259 = vmax.f32 %v416, %v968
  %v2260 = vmax.f32 %v419, %v971
  %v2261 = vmax.f32 %v424, %v976
  %v2262 = vmax.f32 %v427, %v979
  %v2263 = vmax.f32 %v432, %v984
  %v2264 = vmax.f32 %v435, %v987
  %v2265 = vmax.f32 %v440, %v992
  %v2266 = vmax.f32 %v443, %v995
  %v2267 = vmax.f32 %v448, %v1000
  %v2268 = vmax.f32 %v451, %v1003
  %v2269 = vmax.f32 %v456, %v1008
  %v2270 = vmax.f32 %v459, %v1011
  %v2271 = vmax.f32 %v464, %v1016
  %v2272 = vmax.f32 %v467, %v1019
  %v2273 = vmax.f32 %v472, %v1024
  %v2274 = vmax.f32 %v475, %v1027
  %v2275 = vmax.f32 %v480, %v1032
  %v2276 = vmax.f32 %v483, %v1035
  %v2277 = vmax.f32 %v488, %v1040
  %v2278 = vmax.f32 %v491, %v1043
  %v2279 = vmax.f32 %v496, %v1048
  %v2280 = vmax.f32 %v499, %v1051
  %v2281 = vmax.f32 %v504, %v1056
  %v2282 = vmax.f32 %v507, %v1059
  %v2283 = vmax.f32 %v512, %v1064
  %v2284 = vmax.f32 %v515, %v1067
  %v2285 = vmax.f32 %v520, %v1072
  %v2286 = vmax.f32 %v523, %v1075
  %v2287 = vmax.f32 %v528, %v1080
  %v2288 = vmax.f32 %v531, %v1083
  %v2289 = vmax.f32 %v536, %v1088
  %v2290 = vmax.f32 %v539, %v1091
  %v2291 = vmax.f32 %v544, %v1096
  %v2292 = vmax.f32 %v547, %v1099
  %v2293 = vmax.f32 %v552, %v1104
  %v2294 = vmax.f32 %v555, %v1107
  %v2295 = vmax.f32 %v560, %v1112
  %v2296 = vmax.f32 %v563, %v1115
  %v2297 = vmax.f32 %v568, %v1120
  %v2298 = vmax.f32 %v571, %v1123
  %v2299 = vmax.f32 %v576, %v1128
  %v2300 = vmax.f32 %v579, %v1131
  %v2301 = vmax.f32 %v584, %v1136
  %v2302 = vmax.f32 %v1464, %v2016
  %v2303 = vmax.f32 %v1467, %v2019
  %v2304 = vmax.f32 %v1472, %v2024
  %v2305 = vmax.f32 %v1475, %v2027
  %v2306 = vmax.f32 %v1480, %v2032
  %v2307 = vmax.f32 %v1483, %v2035
  %v2308 = vmax.f32 %v1488, %v2040
  %v2309 = vmax.f32 %v1491, %v2043
  %v2310 = vmax.f32 %v1496, %v2048
  %v2311 = vmax.f32 %v1499, %v2051
  %v2312 = vmax.f32 %v1504, %v2056
  %v2313 = vmax.f32 %v1507, %v2059
  %v2314 = vmax.f32 %v1512, %v2064
  %v2315 = vmax.f32 %v1515, %v2067
  %v2316 = vmax.f32 %v1520, %v2072
  %v2317 = vmax.f32 %v1523, %v2075
  %v2318 = vmax.f32 %v1528, %v2080
  %v2319 = vmax.f32 %v1531, %v2083
  %v2320 = vmax.f32 %v1536, %v2088
  %v2321 = vmax.f32 %v1539, %v2091
  %v2322 = vmax.f32 %v1544, %v2096
  %v2323 = vmax.f32 %v1547, %v2099
  %v2324 = vmax.f32 %v1552, %v2104
  %v2325 = vmax.f32 %v1555, %v2107
  %v2326 = vmax.f32 %v1560, %v2112
  %v2327 = vmax.f32 %v1563, %v2115
  %v2328 = vmax.f32 %v1568, %v2120
  %v2329 = vmax.f32 %v1571, %v2123
  %v2330 = vmax.f32 %v1576, %v2128
  %v2331 = vmax.f32 %v1579, %v2131
  %v2332 = vmax.f32 %v1584, %v2136
  %v2333 = vmax.f32 %v1587, %v2139
  %v2334 = vmax.f32 %v1592, %v2144
  %v2335 = vmax.f32 %v1595, %v2147
  %v2336 = vmax.f32 %v1600, %v2152
  %v2337 = vmax.f32 %v1603, %v2155
  %v2338 = vmax.f32 %v1608, %v2160
  %v2339 = vmax.f32 %v1611, %v2163
  %v2340 = vmax.f32 %v1616, %v2168
  %v2341 = vmax.f32 %v1619, %v2171
  %v2342 = vmax.f32 %v1624, %v2176
  %v2343 = vmax.f32 %v1627, %v2179
  %v2344 = vmax.f32 %v1632, %v2184
  %v2345 = vmax.f32 %v1635, %v2187
  %v2346 = vmax.f32 %v1640, %v2192
  %v2347 = vmax.f32 %v1643, %v2195
  %v2348 = vmax.f32 %v1648, %v2200
  %v2349 = vmax.f32 %v1651, %v2203
  %v2350 = vmax.f32 %v1656, %v2208
  %v2351 = vmax.f32 %v1659, %v2211
  %v2352 = vmax.f32 %v1664, %v2216
  %v2353 = vmax.f32 %v1667, %v2219
  %v2354 = vmax.f32 %v1672, %v2224
  %v2355 = vmax.f32 %v1675, %v2227
  %v2356 = vmax.f32 %v1680, %v2232
  %v2357 = vmax.f32 %v1683, %v2235
  %v2358 = vmax.f32 %v1688, %v2240
  %v2359 = vmax.f32 %v2245, %v2302
  %v2360 = vmax.f32 %v2246, %v2303
  %v2361 = vmax.f32 %v2247, %v2304
  %v2362 = vmax.f32 %v2248, %v2305
  %v2363 = vmax.f32 %v2249, %v2306
  %v2364 = vmax.f32 %v2250, %v2307
  %v2365 = vmax.f32 %v2251, %v2308
  %v2366 = vmax.f32 %v2252, %v2309
  %v2367 = vmax.f32 %v2253, %v2310
  %v2368 = vmax.f32 %v2254, %v2311
  %v2369 = vmax.f32 %v2255, %v2312
  %v2370 = vmax.f32 %v2256, %v2313
  %v2371 = vmax.f32 %v2257, %v2314
  %v2372 = vmax.f32 %v2258, %v2315
  %v2373 = vmax.f32 %v2259, %v2316
  %v2374 = vmax.f32 %v2260, %v2317
  %v2375 = vmax.f32 %v2261, %v2318
  %v2376 = vmax.f32 %v2262, %v2319
  %v2377 = vmax.f32 %v2263, %v2320
  %v2378 = vmax.f32 %v2264, %v2321
  %v2379 = vmax.f32 %v2265, %v2322
  %v2380 = vmax.f32 %v2266, %v2323
  %v2381 = vmax.f32 %v2267, %v2324
  %v2382 = vmax.f32 %v2268, %v2325
  %v2383 = vmax.f32 %v2269, %v2326
  %v2384 = vmax.f32 %v2270, %v2327
  %v2385 = vmax.f32 %v2271, %v2328
  %v2386 = vmax.f32 %v2272, %v2329
  %v2387 = vmax.f32 %v2273, %v2330
  %v2388 = vmax.f32 %v2274, %v2331
  %v2389 = vmax.f32 %v2275, %v2332
  %v2390 = vmax.f32 %v2276, %v2333
  %v2391 = vmax.f32 %v2277, %v2334
  %v2392 = vmax.f32 %v2278, %v2335
  %v2393 = vmax.f32 %v2279, %v2336
  %v2394 = vmax.f32 %v2280, %v2337
  %v2395 = vmax.f32 %v2281, %v2338
  %v2396 = vmax.f32 %v2282, %v2339
  %v2397 = vmax.f32 %v2283, %v2340
  %v2398 = vmax.f32 %v2284, %v2341
  %v2399 = vmax.f32 %v2285, %v2342
  %v2400 = vmax.f32 %v2286, %v2343
  %v2401 = vmax.f32 %v2287, %v2344
  %v2402 = vmax.f32 %v2288, %v2345
  %v2403 = vmax.f32 %v2289, %v2346
  %v2404 = vmax.f32 %v2290, %v2347
  %v2405 = vmax.f32 %v2291, %v2348
  %v2406 = vmax.f32 %v2292, %v2349
  %v2407 = vmax.f32 %v2293, %v2350
  %v2408 = vmax.f32 %v2294, %v2351
  %v2409 = vmax.f32 %v2295, %v2352
  %v2410 = vmax.f32 %v2296, %v2353
  %v2411 = vmax.f32 %v2297, %v2354
  %v2412 = vmax.f32 %v2298, %v2355
  %v2413 = vmax.f32 %v2299, %v2356
  %v2414 = vmax.f32 %v2300, %v2357
  %v2415 = vmax.f32 %v2301, %v2358
  %v2416 = vld [vmem:[%s2] sm:$0x1]
  %v2418 = vlaneseq
  %v2419 = vshrl.u32 %v2418, 7
  %v2420 = vsub.s32 0, %v2419
  %v2421 = vrot.slane %v2416, %v2420
  %v2423 = vadd.f32 %v2359, %v2421
  %v2424 = vadd.f32 %v2360, %v2421
  %v2425 = vadd.f32 %v2361, %v2421
  %v2426 = vadd.f32 %v2362, %v2421
  %v2427 = vadd.f32 %v2363, %v2421
  %v2428 = vadd.f32 %v2364, %v2421
  %v2429 = vadd.f32 %v2365, %v2421
  %v2430 = vadd.f32 %v2366, %v2421
  %v2431 = vadd.f32 %v2367, %v2421
  %v2432 = vadd.f32 %v2368, %v2421
  %v2433 = vadd.f32 %v2369, %v2421
  %v2434 = vadd.f32 %v2370, %v2421
  %v2435 = vadd.f32 %v2371, %v2421
  %v2436 = vadd.f32 %v2372, %v2421
  %v2437 = vadd.f32 %v2373, %v2421
  %v2438 = vadd.f32 %v2374, %v2421
  %v2439 = vadd.f32 %v2375, %v2421
  %v2440 = vadd.f32 %v2376, %v2421
  %v2441 = vadd.f32 %v2377, %v2421
  %v2442 = vadd.f32 %v2378, %v2421
  %v2443 = vadd.f32 %v2379, %v2421
  %v2444 = vadd.f32 %v2380, %v2421
  %v2445 = vadd.f32 %v2381, %v2421
  %v2446 = vadd.f32 %v2382, %v2421
  %v2447 = vadd.f32 %v2383, %v2421
  %v2448 = vadd.f32 %v2384, %v2421
  %v2449 = vadd.f32 %v2385, %v2421
  %v2450 = vadd.f32 %v2386, %v2421
  %v2451 = vadd.f32 %v2387, %v2421
  %v2452 = vadd.f32 %v2388, %v2421
  %v2453 = vadd.f32 %v2389, %v2421
  %v2454 = vadd.f32 %v2390, %v2421
  %v2455 = vadd.f32 %v2391, %v2421
  %v2456 = vadd.f32 %v2392, %v2421
  %v2457 = vadd.f32 %v2393, %v2421
  %v2458 = vadd.f32 %v2394, %v2421
  %v2459 = vadd.f32 %v2395, %v2421
  %v2460 = vadd.f32 %v2396, %v2421
  %v2461 = vadd.f32 %v2397, %v2421
  %v2462 = vadd.f32 %v2398, %v2421
  %v2463 = vadd.f32 %v2399, %v2421
  %v2464 = vadd.f32 %v2400, %v2421
  %v2465 = vadd.f32 %v2401, %v2421
  %v2466 = vadd.f32 %v2402, %v2421
  %v2467 = vadd.f32 %v2403, %v2421
  %v2468 = vadd.f32 %v2404, %v2421
  %v2469 = vadd.f32 %v2405, %v2421
  %v2470 = vadd.f32 %v2406, %v2421
  %v2471 = vadd.f32 %v2407, %v2421
  %v2472 = vadd.f32 %v2408, %v2421
  %v2473 = vadd.f32 %v2409, %v2421
  %v2474 = vadd.f32 %v2410, %v2421
  %v2475 = vadd.f32 %v2411, %v2421
  %v2476 = vadd.f32 %v2412, %v2421
  %v2477 = vadd.f32 %v2413, %v2421
  %v2478 = vadd.f32 %v2414, %v2421
  %v2479 = vadd.f32 %v2415, %v2421
  %v2480 = vmax.f32 %v2423, 0.0
  %v2481 = vmax.f32 %v2424, 0.0
  %v2482 = vmax.f32 %v2425, 0.0
  %v2483 = vmax.f32 %v2426, 0.0
  %v2484 = vmax.f32 %v2427, 0.0
  %v2485 = vmax.f32 %v2428, 0.0
  %v2486 = vmax.f32 %v2429, 0.0
  %v2487 = vmax.f32 %v2430, 0.0
  %v2488 = vmax.f32 %v2431, 0.0
  %v2489 = vmax.f32 %v2432, 0.0
  %v2490 = vmax.f32 %v2433, 0.0
  %v2491 = vmax.f32 %v2434, 0.0
  %v2492 = vmax.f32 %v2435, 0.0
  %v2493 = vmax.f32 %v2436, 0.0
  %v2494 = vmax.f32 %v2437, 0.0
  %v2495 = vmax.f32 %v2438, 0.0
  %v2496 = vmax.f32 %v2439, 0.0
  %v2497 = vmax.f32 %v2440, 0.0
  %v2498 = vmax.f32 %v2441, 0.0
  %v2499 = vmax.f32 %v2442, 0.0
  %v2500 = vmax.f32 %v2443, 0.0
  %v2501 = vmax.f32 %v2444, 0.0
  %v2502 = vmax.f32 %v2445, 0.0
  %v2503 = vmax.f32 %v2446, 0.0
  %v2504 = vmax.f32 %v2447, 0.0
  %v2505 = vmax.f32 %v2448, 0.0
  %v2506 = vmax.f32 %v2449, 0.0
  %v2507 = vmax.f32 %v2450, 0.0
  %v2508 = vmax.f32 %v2451, 0.0
  %v2509 = vmax.f32 %v2452, 0.0
  %v2510 = vmax.f32 %v2453, 0.0
  %v2511 = vmax.f32 %v2454, 0.0
  %v2512 = vmax.f32 %v2455, 0.0
  %v2513 = vmax.f32 %v2456, 0.0
  %v2514 = vmax.f32 %v2457, 0.0
  %v2515 = vmax.f32 %v2458, 0.0
  %v2516 = vmax.f32 %v2459, 0.0
  %v2517 = vmax.f32 %v2460, 0.0
  %v2518 = vmax.f32 %v2461, 0.0
  %v2519 = vmax.f32 %v2462, 0.0
  %v2520 = vmax.f32 %v2463, 0.0
  %v2521 = vmax.f32 %v2464, 0.0
  %v2522 = vmax.f32 %v2465, 0.0
  %v2523 = vmax.f32 %v2466, 0.0
  %v2524 = vmax.f32 %v2467, 0.0
  %v2525 = vmax.f32 %v2468, 0.0
  %v2526 = vmax.f32 %v2469, 0.0
  %v2527 = vmax.f32 %v2470, 0.0
  %v2528 = vmax.f32 %v2471, 0.0
  %v2529 = vmax.f32 %v2472, 0.0
  %v2530 = vmax.f32 %v2473, 0.0
  %v2531 = vmax.f32 %v2474, 0.0
  %v2532 = vmax.f32 %v2475, 0.0
  %v2533 = vmax.f32 %v2476, 0.0
  %v2534 = vmax.f32 %v2477, 0.0
  %v2535 = vmax.f32 %v2478, 0.0
  %v2536 = vmax.f32 %v2479, 0.0
  %v2537 = vpack.c.bf16 %v2481, %v2480
  %v2538 = vpack.c.bf16 %v2483, %v2482
  %v2539 = vpack.c.bf16 %v2485, %v2484
  %v2540 = vpack.c.bf16 %v2487, %v2486
  %v2541 = vpack.c.bf16 %v2489, %v2488
  %v2542 = vpack.c.bf16 %v2491, %v2490
  %v2543 = vpack.c.bf16 %v2493, %v2492
  %v2544 = vpack.c.bf16 %v2495, %v2494
  %v2545 = vpack.c.bf16 %v2497, %v2496
  %v2546 = vpack.c.bf16 %v2499, %v2498
  %v2547 = vpack.c.bf16 %v2501, %v2500
  %v2548 = vpack.c.bf16 %v2503, %v2502
  %v2549 = vpack.c.bf16 %v2505, %v2504
  %v2550 = vpack.c.bf16 %v2507, %v2506
  %v2551 = vpack.c.bf16 %v2509, %v2508
  %v2552 = vpack.c.bf16 %v2511, %v2510
  %v2553 = vpack.c.bf16 %v2513, %v2512
  %v2554 = vpack.c.bf16 %v2515, %v2514
  %v2555 = vpack.c.bf16 %v2517, %v2516
  %v2556 = vpack.c.bf16 %v2519, %v2518
  %v2557 = vpack.c.bf16 %v2521, %v2520
  %v2558 = vpack.c.bf16 %v2523, %v2522
  %v2559 = vpack.c.bf16 %v2525, %v2524
  %v2560 = vpack.c.bf16 %v2527, %v2526
  %v2561 = vpack.c.bf16 %v2529, %v2528
  %v2562 = vpack.c.bf16 %v2531, %v2530
  %v2563 = vpack.c.bf16 %v2533, %v2532
  %v2564 = vpack.c.bf16 %v2535, %v2534
  %v2565 = vpack.c.bf16 %v2536, %v2536
  %v2595 = vunpack.c.l.b16 %v2537
  %v2596 = vunpack.c.h.b16 %v2537
  %v2597 = vunpack.c.l.b16 %v2538
  %v2598 = vunpack.c.h.b16 %v2538
  %v2599 = vunpack.c.l.b16 %v2539
  %v2600 = vunpack.c.h.b16 %v2539
  %v2601 = vunpack.c.l.b16 %v2540
  %v2602 = vunpack.c.h.b16 %v2540
  %v2603 = vunpack.c.l.b16 %v2541
  %v2604 = vunpack.c.h.b16 %v2541
  %v2605 = vunpack.c.l.b16 %v2542
  %v2606 = vunpack.c.h.b16 %v2542
  %v2607 = vunpack.c.l.b16 %v2543
  %v2608 = vunpack.c.h.b16 %v2543
  %v2609 = vunpack.c.l.b16 %v2544
  %v2610 = vunpack.c.h.b16 %v2544
  %v2611 = vunpack.c.l.b16 %v2545
  %v2612 = vunpack.c.h.b16 %v2545
  %v2613 = vunpack.c.l.b16 %v2546
  %v2614 = vunpack.c.h.b16 %v2546
  %v2615 = vunpack.c.l.b16 %v2547
  %v2616 = vunpack.c.h.b16 %v2547
  %v2617 = vunpack.c.l.b16 %v2548
  %v2618 = vunpack.c.h.b16 %v2548
  %v2619 = vunpack.c.l.b16 %v2549
  %v2620 = vunpack.c.h.b16 %v2549
  %v2621 = vunpack.c.l.b16 %v2550
  %v2622 = vunpack.c.h.b16 %v2550
  %v2623 = vunpack.c.l.b16 %v2551
  %v2624 = vunpack.c.h.b16 %v2551
  %v2625 = vunpack.c.l.b16 %v2552
  %v2626 = vunpack.c.h.b16 %v2552
  %v2627 = vunpack.c.l.b16 %v2553
  %v2628 = vunpack.c.h.b16 %v2553
  %v2629 = vunpack.c.l.b16 %v2554
  %v2630 = vunpack.c.h.b16 %v2554
  %v2631 = vunpack.c.l.b16 %v2555
  %v2632 = vunpack.c.h.b16 %v2555
  %v2633 = vunpack.c.l.b16 %v2556
  %v2634 = vunpack.c.h.b16 %v2556
  %v2635 = vunpack.c.l.b16 %v2557
  %v2636 = vunpack.c.h.b16 %v2557
  %v2637 = vunpack.c.l.b16 %v2558
  %v2638 = vunpack.c.h.b16 %v2558
  %v2639 = vunpack.c.l.b16 %v2559
  %v2640 = vunpack.c.h.b16 %v2559
  %v2641 = vunpack.c.l.b16 %v2560
  %v2642 = vunpack.c.h.b16 %v2560
  %v2643 = vunpack.c.l.b16 %v2561
  %v2644 = vunpack.c.h.b16 %v2561
  %v2645 = vunpack.c.l.b16 %v2562
  %v2646 = vunpack.c.h.b16 %v2562
  %v2647 = vunpack.c.l.b16 %v2563
  %v2648 = vunpack.c.h.b16 %v2563
  %v2649 = vunpack.c.l.b16 %v2564
  %v2650 = vunpack.c.h.b16 %v2564
  %v2651 = vunpack.c.l.b16 %v2565
  %v2652 = vpack.c.b16 %v2595, %v2595
  %v2653 = vpack.c.b16 %v2596, %v2596
  %v2654 = vpack.c.b16 %v2597, %v2597
  %v2655 = vpack.c.b16 %v2598, %v2598
  %v2656 = vpack.c.b16 %v2599, %v2599
  %v2657 = vpack.c.b16 %v2600, %v2600
  %v2658 = vpack.c.b16 %v2601, %v2601
  %v2659 = vpack.c.b16 %v2602, %v2602
  %v2660 = vpack.c.b16 %v2603, %v2603
  %v2661 = vpack.c.b16 %v2604, %v2604
  %v2662 = vpack.c.b16 %v2605, %v2605
  %v2663 = vpack.c.b16 %v2606, %v2606
  %v2664 = vpack.c.b16 %v2607, %v2607
  %v2665 = vpack.c.b16 %v2608, %v2608
  %v2666 = vpack.c.b16 %v2609, %v2609
  %v2667 = vpack.c.b16 %v2610, %v2610
  %v2668 = vpack.c.b16 %v2611, %v2611
  %v2669 = vpack.c.b16 %v2612, %v2612
  %v2670 = vpack.c.b16 %v2613, %v2613
  %v2671 = vpack.c.b16 %v2614, %v2614
  %v2672 = vpack.c.b16 %v2615, %v2615
  %v2673 = vpack.c.b16 %v2616, %v2616
  %v2674 = vpack.c.b16 %v2617, %v2617
  %v2675 = vpack.c.b16 %v2618, %v2618
  %v2676 = vpack.c.b16 %v2619, %v2619
  %v2677 = vpack.c.b16 %v2620, %v2620
  %v2678 = vpack.c.b16 %v2621, %v2621
  %v2679 = vpack.c.b16 %v2622, %v2622
  %v2680 = vpack.c.b16 %v2623, %v2623
  %v2681 = vpack.c.b16 %v2624, %v2624
  %v2682 = vpack.c.b16 %v2625, %v2625
  %v2683 = vpack.c.b16 %v2626, %v2626
  %v2684 = vpack.c.b16 %v2627, %v2627
  %v2685 = vpack.c.b16 %v2628, %v2628
  %v2686 = vpack.c.b16 %v2629, %v2629
  %v2687 = vpack.c.b16 %v2630, %v2630
  %v2688 = vpack.c.b16 %v2631, %v2631
  %v2689 = vpack.c.b16 %v2632, %v2632
  %v2690 = vpack.c.b16 %v2633, %v2633
  %v2691 = vpack.c.b16 %v2634, %v2634
  %v2692 = vpack.c.b16 %v2635, %v2635
  %v2693 = vpack.c.b16 %v2636, %v2636
  %v2694 = vpack.c.b16 %v2637, %v2637
  %v2695 = vpack.c.b16 %v2638, %v2638
  %v2696 = vpack.c.b16 %v2639, %v2639
  %v2697 = vpack.c.b16 %v2640, %v2640
  %v2698 = vpack.c.b16 %v2641, %v2641
  %v2699 = vpack.c.b16 %v2642, %v2642
  %v2700 = vpack.c.b16 %v2643, %v2643
  %v2701 = vpack.c.b16 %v2644, %v2644
  %v2702 = vpack.c.b16 %v2645, %v2645
  %v2703 = vpack.c.b16 %v2646, %v2646
  %v2704 = vpack.c.b16 %v2647, %v2647
  %v2705 = vpack.c.b16 %v2648, %v2648
  %v2706 = vpack.c.b16 %v2649, %v2649
  %v2707 = vpack.c.b16 %v2650, %v2650
  %v2708 = vpack.c.b16 %v2651, %v2651
  %vm2766 = vcmask 519168
  %2767 = vst.msk [vmem:[%s3] sm:$0xf] %vm2766, %v2652
  %2768 = vst.msk [vmem:[%s3 + $0x4] sm:$0xf] %vm2766, %v2653
  %2769 = vst.msk [vmem:[%s3 + $0x8] sm:$0xf] %vm2766, %v2654
  %2770 = vst.msk [vmem:[%s3 + $0xc] sm:$0xf] %vm2766, %v2655
  %2771 = vst.msk [vmem:[%s3 + $0x10] sm:$0xf] %vm2766, %v2656
  %2772 = vst.msk [vmem:[%s3 + $0x14] sm:$0xf] %vm2766, %v2657
  %2773 = vst.msk [vmem:[%s3 + $0x18] sm:$0xf] %vm2766, %v2658
  %2774 = vst.msk [vmem:[%s3 + $0x1c] sm:$0xf] %vm2766, %v2659
  %2775 = vst.msk [vmem:[%s3 + $0x20] sm:$0xf] %vm2766, %v2660
  %2776 = vst.msk [vmem:[%s3 + $0x24] sm:$0xf] %vm2766, %v2661
  %2777 = vst.msk [vmem:[%s3 + $0x28] sm:$0xf] %vm2766, %v2662
  %2778 = vst.msk [vmem:[%s3 + $0x2c] sm:$0xf] %vm2766, %v2663
  %2779 = vst.msk [vmem:[%s3 + $0x30] sm:$0xf] %vm2766, %v2664
  %2780 = vst.msk [vmem:[%s3 + $0x34] sm:$0xf] %vm2766, %v2665
  %2781 = vst.msk [vmem:[%s3 + $0x38] sm:$0xf] %vm2766, %v2666
  %2782 = vst.msk [vmem:[%s3 + $0x3c] sm:$0xf] %vm2766, %v2667
  %2783 = vst.msk [vmem:[%s3 + $0x40] sm:$0xf] %vm2766, %v2668
  %2784 = vst.msk [vmem:[%s3 + $0x44] sm:$0xf] %vm2766, %v2669
  %2785 = vst.msk [vmem:[%s3 + $0x48] sm:$0xf] %vm2766, %v2670
  %2786 = vst.msk [vmem:[%s3 + $0x4c] sm:$0xf] %vm2766, %v2671
  %2787 = vst.msk [vmem:[%s3 + $0x50] sm:$0xf] %vm2766, %v2672
  %2788 = vst.msk [vmem:[%s3 + $0x54] sm:$0xf] %vm2766, %v2673
  %2789 = vst.msk [vmem:[%s3 + $0x58] sm:$0xf] %vm2766, %v2674
  %2790 = vst.msk [vmem:[%s3 + $0x5c] sm:$0xf] %vm2766, %v2675
  %2791 = vst.msk [vmem:[%s3 + $0x60] sm:$0xf] %vm2766, %v2676
  %2792 = vst.msk [vmem:[%s3 + $0x64] sm:$0xf] %vm2766, %v2677
  %2793 = vst.msk [vmem:[%s3 + $0x68] sm:$0xf] %vm2766, %v2678
  %2794 = vst.msk [vmem:[%s3 + $0x6c] sm:$0xf] %vm2766, %v2679
  %2795 = vst.msk [vmem:[%s3 + $0x70] sm:$0xf] %vm2766, %v2680
  %2796 = vst.msk [vmem:[%s3 + $0x74] sm:$0xf] %vm2766, %v2681
  %2797 = vst.msk [vmem:[%s3 + $0x78] sm:$0xf] %vm2766, %v2682
  %2798 = vst.msk [vmem:[%s3 + $0x7c] sm:$0xf] %vm2766, %v2683
  %2799 = vst.msk [vmem:[%s3 + $0x80] sm:$0xf] %vm2766, %v2684
  %2800 = vst.msk [vmem:[%s3 + $0x84] sm:$0xf] %vm2766, %v2685
  %2801 = vst.msk [vmem:[%s3 + $0x88] sm:$0xf] %vm2766, %v2686
  %2802 = vst.msk [vmem:[%s3 + $0x8c] sm:$0xf] %vm2766, %v2687
  %2803 = vst.msk [vmem:[%s3 + $0x90] sm:$0xf] %vm2766, %v2688
  %2804 = vst.msk [vmem:[%s3 + $0x94] sm:$0xf] %vm2766, %v2689
  %2805 = vst.msk [vmem:[%s3 + $0x98] sm:$0xf] %vm2766, %v2690
  %2806 = vst.msk [vmem:[%s3 + $0x9c] sm:$0xf] %vm2766, %v2691
  %2807 = vst.msk [vmem:[%s3 + $0xa0] sm:$0xf] %vm2766, %v2692
  %2808 = vst.msk [vmem:[%s3 + $0xa4] sm:$0xf] %vm2766, %v2693
  %2809 = vst.msk [vmem:[%s3 + $0xa8] sm:$0xf] %vm2766, %v2694
  %2810 = vst.msk [vmem:[%s3 + $0xac] sm:$0xf] %vm2766, %v2695
  %2811 = vst.msk [vmem:[%s3 + $0xb0] sm:$0xf] %vm2766, %v2696
  %2812 = vst.msk [vmem:[%s3 + $0xb4] sm:$0xf] %vm2766, %v2697
  %2813 = vst.msk [vmem:[%s3 + $0xb8] sm:$0xf] %vm2766, %v2698
  %2814 = vst.msk [vmem:[%s3 + $0xbc] sm:$0xf] %vm2766, %v2699
  %2815 = vst.msk [vmem:[%s3 + $0xc0] sm:$0xf] %vm2766, %v2700
  %2816 = vst.msk [vmem:[%s3 + $0xc4] sm:$0xf] %vm2766, %v2701
  %2817 = vst.msk [vmem:[%s3 + $0xc8] sm:$0xf] %vm2766, %v2702
  %2818 = vst.msk [vmem:[%s3 + $0xcc] sm:$0xf] %vm2766, %v2703
  %2819 = vst.msk [vmem:[%s3 + $0xd0] sm:$0xf] %vm2766, %v2704
  %2820 = vst.msk [vmem:[%s3 + $0xd4] sm:$0xf] %vm2766, %v2705
  %2821 = vst.msk [vmem:[%s3 + $0xd8] sm:$0xf] %vm2766, %v2706
  %2822 = vst.msk [vmem:[%s3 + $0xdc] sm:$0xf] %vm2766, %v2707
  %vm2823 = vcmask 516096
  %2824 = vst.msk [vmem:[%s3 + $0xe0] sm:$0x1] %vm2823, %v2708
  // Predicated region
  $region14: #{net_forward.4} parent=0 // pred_check
    _
  $region15: #{net_forward.4} parent=0 // pred_check_branch
    %2826 = sbr.rel (0) target = $region17
  $region16: #{net_forward.4} parent=0 // pred_region
    _
  $region17: #{net_forward.4} parent=0 // pred_fallthru
    _
  // Predicated region
  $region18: #{net_forward.4} parent=0 // pred_check
    _
  $region19: #{net_forward.4} parent=0 // pred_check_branch
    %2828 = sbr.rel (0) target = $region21
  $region20: #{net_forward.4} parent=0 // pred_region
    _
  $region21: #{net_forward.4} parent=0 // pred_fallthru
    _

// kernel: net_forward.5
$region0: #{net_forward.5}
  #allocation0 [shape = 'u32[]', space=smem, size = 0x4, offset = 0x4, fixed_abs, tag = 'smem constant byte address 0x4 - core index']
  #allocation1 [shape = 'u32[144,128]{1,0:T(1,128)}', space=vmem, size = 0x12000, scoped, tag = 'internal scratch']
  %s0 = inlined_call_operand.vmem [shape: bf16[2,2,72,576], index: 0, kind: input, shape index: {}]
  %s1 = inlined_call_operand.vmem [shape: bf16[576,128], index: 1, kind: input, shape index: {}]
  %s2 = inlined_call_operand.vmem [shape: f32[1,128], index: 2, kind: input, shape index: {}]
  %s3 = inlined_call_operand.vmem [shape: bf16[72,128], index: 3, kind: output, shape index: {}]
  %s4 = sld [smem:[#allocation0]]
  $region22: #{net_forward.5} parent=0
    _
  %s6 = ssub.s32 1, %s4
  %s7 = scalar_select 0, %s6, %s4
  // Predicated region
  $region2: #{net_forward.5} parent=0 // pred_check
    _
  $region3: #{net_forward.5} parent=0 // pred_check_branch
    %9 = sbr.rel (0) target = $region5
  $region4: #{net_forward.5} parent=0 // pred_region
    _
  $region5: #{net_forward.5} parent=0 // pred_fallthru
    _
  // Predicated region
  $region6: #{net_forward.5} parent=0 // pred_check
    _
  $region7: #{net_forward.5} parent=0 // pred_check_branch
    %11 = sbr.rel (0) target = $region9
  $region8: #{net_forward.5} parent=0 // pred_region
    _
  $region9: #{net_forward.5} parent=0 // pred_fallthru
    _
  // Predicated region
  $region10: #{net_forward.5} parent=0 // pred_check
    _
  $region11: #{net_forward.5} parent=0 // pred_check_branch
    %13 = sbr.rel (0) target = $region13
  $region12: #{net_forward.5} parent=0 // pred_region
    _
  $region13: #{net_forward.5} parent=0 // pred_fallthru
    _
  %v15 = vld [vmem:[%s1] sm:$0xf]
  %v16 = vld [vmem:[%s1 + $0x4] sm:$0xf]
  %v17 = vld [vmem:[%s1 + $0x8] sm:$0xf]
  %v18 = vld [vmem:[%s1 + $0xc] sm:$0xf]
  %v19 = vld [vmem:[%s1 + $0x10] sm:$0xf]
  %v20 = vld [vmem:[%s1 + $0x14] sm:$0xf]
  %v21 = vld [vmem:[%s1 + $0x18] sm:$0xf]
  %v22 = vld [vmem:[%s1 + $0x1c] sm:$0xf]
  %v23 = vld [vmem:[%s1 + $0x20] sm:$0xf]
  %v24 = vld [vmem:[%s1 + $0x24] sm:$0xf]
  %v25 = vld [vmem:[%s1 + $0x28] sm:$0xf]
  %v26 = vld [vmem:[%s1 + $0x2c] sm:$0xf]
  %v27 = vld [vmem:[%s1 + $0x30] sm:$0xf]
  %v28 = vld [vmem:[%s1 + $0x34] sm:$0xf]
  %v29 = vld [vmem:[%s1 + $0x38] sm:$0xf]
  %v30 = vld [vmem:[%s1 + $0x3c] sm:$0xf]
  %v31 = vld [vmem:[%s1 + $0x40] sm:$0xf]
  %v32 = vld [vmem:[%s1 + $0x44] sm:$0xf]
  %v33 = vld [vmem:[%s1 + $0x48] sm:$0xf]
  %v34 = vld [vmem:[%s1 + $0x4c] sm:$0xf]
  %v35 = vld [vmem:[%s1 + $0x50] sm:$0xf]
  %v36 = vld [vmem:[%s1 + $0x54] sm:$0xf]
  %v37 = vld [vmem:[%s1 + $0x58] sm:$0xf]
  %v38 = vld [vmem:[%s1 + $0x5c] sm:$0xf]
  %v39 = vld [vmem:[%s1 + $0x60] sm:$0xf]
  %v40 = vld [vmem:[%s1 + $0x64] sm:$0xf]
  %v41 = vld [vmem:[%s1 + $0x68] sm:$0xf]
  %v42 = vld [vmem:[%s1 + $0x6c] sm:$0xf]
  %v43 = vld [vmem:[%s1 + $0x70] sm:$0xf]
  %v44 = vld [vmem:[%s1 + $0x74] sm:$0xf]
  %v45 = vld [vmem:[%s1 + $0x78] sm:$0xf]
  %v46 = vld [vmem:[%s1 + $0x7c] sm:$0xf]
  %v47 = vld [vmem:[%s1 + $0x80] sm:$0xf]
  %v48 = vld [vmem:[%s1 + $0x84] sm:$0xf]
  %v49 = vld [vmem:[%s1 + $0x88] sm:$0xf]
  %v50 = vld [vmem:[%s1 + $0x8c] sm:$0xf]
  %v51 = vld [vmem:[%s1 + $0x90] sm:$0xf]
  %v52 = vld [vmem:[%s1 + $0x94] sm:$0xf]
  %v53 = vld [vmem:[%s1 + $0x98] sm:$0xf]
  %v54 = vld [vmem:[%s1 + $0x9c] sm:$0xf]
  %v55 = vld [vmem:[%s1 + $0xa0] sm:$0xf]
  %v56 = vld [vmem:[%s1 + $0xa4] sm:$0xf]
  %v57 = vld [vmem:[%s1 + $0xa8] sm:$0xf]
  %v58 = vld [vmem:[%s1 + $0xac] sm:$0xf]
  %v59 = vld [vmem:[%s1 + $0xb0] sm:$0xf]
  %v60 = vld [vmem:[%s1 + $0xb4] sm:$0xf]
  %v61 = vld [vmem:[%s1 + $0xb8] sm:$0xf]
  %v62 = vld [vmem:[%s1 + $0xbc] sm:$0xf]
  %v63 = vld [vmem:[%s1 + $0xc0] sm:$0xf]
  %v64 = vld [vmem:[%s1 + $0xc4] sm:$0xf]
  %v65 = vld [vmem:[%s1 + $0xc8] sm:$0xf]
  %v66 = vld [vmem:[%s1 + $0xcc] sm:$0xf]
  %v67 = vld [vmem:[%s1 + $0xd0] sm:$0xf]
  %v68 = vld [vmem:[%s1 + $0xd4] sm:$0xf]
  %v69 = vld [vmem:[%s1 + $0xd8] sm:$0xf]
  %v70 = vld [vmem:[%s1 + $0xdc] sm:$0xf]
  %v71 = vld [vmem:[%s1 + $0xe0] sm:$0xf]
  %v72 = vld [vmem:[%s1 + $0xe4] sm:$0xf]
  %v73 = vld [vmem:[%s1 + $0xe8] sm:$0xf]
  %v74 = vld [vmem:[%s1 + $0xec] sm:$0xf]
  %v75 = vld [vmem:[%s1 + $0xf0] sm:$0xf]
  %v76 = vld [vmem:[%s1 + $0xf4] sm:$0xf]
  %v77 = vld [vmem:[%s1 + $0xf8] sm:$0xf]
  %v78 = vld [vmem:[%s1 + $0xfc] sm:$0xf]
  %v79 = vld [vmem:[%s1 + $0x100] sm:$0xf]
  %v80 = vld [vmem:[%s1 + $0x104] sm:$0xf]
  %v81 = vld [vmem:[%s1 + $0x108] sm:$0xf]
  %v82 = vld [vmem:[%s1 + $0x10c] sm:$0xf]
  %v83 = vld [vmem:[%s1 + $0x110] sm:$0xf]
  %v84 = vld [vmem:[%s1 + $0x114] sm:$0xf]
  %v85 = vld [vmem:[%s1 + $0x118] sm:$0xf]
  %v86 = vld [vmem:[%s1 + $0x11c] sm:$0xf]
  %v87 = vld [vmem:[%s0] sm:$0xff]
  %v88 = vld [vmem:[%s0 + $0x8] sm:$0xff]
  %v89 = vld [vmem:[%s0 + $0x10] sm:$0xf]
  %v90 = vld [vmem:[%s0 + $0x14] sm:$0xff]
  %v91 = vld [vmem:[%s0 + $0x1c] sm:$0xff]
  %v92 = vld [vmem:[%s0 + $0x24] sm:$0xf]
  %v93 = vld [vmem:[%s0 + $0x28] sm:$0xff]
  %v94 = vld [vmem:[%s0 + $0x30] sm:$0xff]
  %v95 = vld [vmem:[%s0 + $0x38] sm:$0xf]
  %v96 = vld [vmem:[%s0 + $0x3c] sm:$0xff]
  %v97 = vld [vmem:[%s0 + $0x44] sm:$0xff]
  %v98 = vld [vmem:[%s0 + $0x4c] sm:$0xf]
  %v99 = vld [vmem:[%s0 + $0x50] sm:$0xff]
  %v100 = vld [vmem:[%s0 + $0x58] sm:$0xff]
  %v101 = vld [vmem:[%s0 + $0x60] sm:$0xf]
  %v102 = vld [vmem:[%s0 + $0x64] sm:$0xff]
  %v103 = vld [vmem:[%s0 + $0x6c] sm:$0xff]
  %v104 = vld [vmem:[%s0 + $0x74] sm:$0xf]
  %v105 = vld [vmem:[%s0 + $0x78] sm:$0xff]
  %v106 = vld [vmem:[%s0 + $0x80] sm:$0xff]
  %v107 = vld [vmem:[%s0 + $0x88] sm:$0xf]
  %v108 = vld [vmem:[%s0 + $0x8c] sm:$0xff]
  %v109 = vld [vmem:[%s0 + $0x94] sm:$0xff]
  %v110 = vld [vmem:[%s0 + $0x9c] sm:$0xf]
  %v111 = vld [vmem:[%s0 + $0xa0] sm:$0xff]
  %v112 = vld [vmem:[%s0 + $0xa8] sm:$0xff]
  %v113 = vld [vmem:[%s0 + $0xb0] sm:$0xf]
  %v141 = vunpack.c.l.b16 %v87
  %v142 = vunpack.c.h.b16 %v87
  %v143 = vunpack.c.l.b16 %v88
  %v144 = vunpack.c.h.b16 %v88
  %v145 = vunpack.c.l.b16 %v89
  %v146 = vunpack.c.l.b16 %v90
  %v147 = vunpack.c.h.b16 %v90
  %v148 = vunpack.c.l.b16 %v91
  %v149 = vunpack.c.h.b16 %v91
  %v150 = vunpack.c.l.b16 %v92
  %v151 = vunpack.c.l.b16 %v93
  %v152 = vunpack.c.h.b16 %v93
  %v153 = vunpack.c.l.b16 %v94
  %v154 = vunpack.c.h.b16 %v94
  %v155 = vunpack.c.l.b16 %v95
  %v156 = vunpack.c.l.b16 %v96
  %v157 = vunpack.c.h.b16 %v96
  %v158 = vunpack.c.l.b16 %v97
  %v159 = vunpack.c.h.b16 %v97
  %v160 = vunpack.c.l.b16 %v98
  %v161 = vunpack.c.l.b16 %v99
  %v162 = vunpack.c.h.b16 %v99
  %v163 = vunpack.c.l.b16 %v100
  %v164 = vunpack.c.h.b16 %v100
  %v165 = vunpack.c.l.b16 %v101
  %v166 = vunpack.c.l.b16 %v102
  %v167 = vunpack.c.h.b16 %v102
  %v168 = vunpack.c.l.b16 %v103
  %v169 = vunpack.c.h.b16 %v103
  %v170 = vunpack.c.l.b16 %v104
  %v171 = vunpack.c.l.b16 %v105
  %v172 = vunpack.c.h.b16 %v105
  %v173 = vunpack.c.l.b16 %v106
  %v174 = vunpack.c.h.b16 %v106
  %v175 = vunpack.c.l.b16 %v107
  %v176 = vunpack.c.l.b16 %v108
  %v177 = vunpack.c.h.b16 %v108
  %v178 = vunpack.c.l.b16 %v109
  %v179 = vunpack.c.h.b16 %v109
  %v180 = vunpack.c.l.b16 %v110
  %v181 = vunpack.c.l.b16 %v111
  %v182 = vunpack.c.h.b16 %v111
  %v183 = vunpack.c.l.b16 %v112
  %v184 = vunpack.c.h.b16 %v112
  %v185 = vunpack.c.l.b16 %v113
  %v186 = vpack.c.b16 %v146, %v141
  %v187 = vpack.c.b16 %v147, %v142
  %v188 = vpack.c.b16 %v148, %v143
  %v189 = vpack.c.b16 %v149, %v144
  %v190 = vpack.c.b16 %v150, %v145
  %v191 = vpack.c.b16 %v156, %v151
  %v192 = vpack.c.b16 %v157, %v152
  %v193 = vpack.c.b16 %v158, %v153
  %v194 = vpack.c.b16 %v159, %v154
  %v195 = vpack.c.b16 %v160, %v155
  %v196 = vpack.c.b16 %v166, %v161
  %v197 = vpack.c.b16 %v167, %v162
  %v198 = vpack.c.b16 %v168, %v163
  %v199 = vpack.c.b16 %v169, %v164
  %v200 = vpack.c.b16 %v170, %v165
  %v201 = vpack.c.b16 %v176, %v171
  %v202 = vpack.c.b16 %v177, %v172
  %v203 = vpack.c.b16 %v178, %v173
  %v204 = vpack.c.b16 %v179, %v174
  %v205 = vpack.c.b16 %v180, %v175
  %v206 = vpack.c.b16 %v181, %v181
  %v207 = vpack.c.b16 %v182, %v182
  %v208 = vpack.c.b16 %v183, %v183
  %v209 = vpack.c.b16 %v184, %v184
  %v210 = vpack.c.b16 %v185, %v185
  %v303 = vunpack.c.l.b16 %v15
  %v304 = vunpack.c.l.b16 %v16
  %v305 = vunpack.c.l.b16 %v17
  %v306 = vunpack.c.l.b16 %v18
  %v307 = vunpack.c.l.b16 %v19
  %v308 = vunpack.c.l.b16 %v20
  %v309 = vunpack.c.l.b16 %v21
  %v310 = vunpack.c.l.b16 %v22
  %v311 = vunpack.c.l.b16 %v23
  %v312 = vunpack.c.l.b16 %v24
  %v313 = vunpack.c.l.b16 %v25
  %v314 = vunpack.c.l.b16 %v26
  %v315 = vunpack.c.l.b16 %v27
  %v316 = vunpack.c.l.b16 %v28
  %v317 = vunpack.c.l.b16 %v29
  %v318 = vunpack.c.l.b16 %v30
  %v319 = vunpack.c.l.b16 %v31
  %v320 = vunpack.c.l.b16 %v32
  %v321 = vunpack.c.l.b16 %v33
  %v322 = vunpack.c.l.b16 %v34
  %v323 = vunpack.c.l.b16 %v35
  %v324 = vunpack.c.l.b16 %v36
  %v325 = vunpack.c.l.b16 %v37
  %v326 = vunpack.c.l.b16 %v38
  %v327 = vunpack.c.l.b16 %v39
  %v328 = vunpack.c.l.b16 %v40
  %v329 = vunpack.c.l.b16 %v41
  %v330 = vunpack.c.l.b16 %v42
  %v331 = vunpack.c.l.b16 %v43
  %v332 = vunpack.c.l.b16 %v44
  %v333 = vunpack.c.l.b16 %v45
  %v334 = vunpack.c.l.b16 %v46
  %v335 = vunpack.c.l.b16 %v47
  %v336 = vunpack.c.l.b16 %v48
  %v337 = vunpack.c.l.b16 %v49
  %v338 = vunpack.c.l.b16 %v50
  %v339 = vunpack.c.l.b16 %v51
  %v340 = vunpack.c.l.b16 %v52
  %v341 = vunpack.c.l.b16 %v53
  %v342 = vunpack.c.l.b16 %v54
  %v343 = vunpack.c.l.b16 %v55
  %v344 = vunpack.c.l.b16 %v56
  %v345 = vunpack.c.l.b16 %v57
  %v346 = vunpack.c.l.b16 %v58
  %v347 = vunpack.c.l.b16 %v59
  %v348 = vunpack.c.l.b16 %v60
  %v349 = vunpack.c.l.b16 %v61
  %v350 = vunpack.c.l.b16 %v62
  %v351 = vunpack.c.l.b16 %v63
  %v352 = vunpack.c.l.b16 %v64
  %v353 = vunpack.c.l.b16 %v65
  %v354 = vunpack.c.l.b16 %v66
  %v355 = vunpack.c.l.b16 %v67
  %v356 = vunpack.c.l.b16 %v68
  %v357 = vunpack.c.l.b16 %v69
  %v358 = vunpack.c.l.b16 %v70
  %v359 = vunpack.c.l.b16 %v71
  %v360 = vunpack.c.l.b16 %v72
  %v361 = vunpack.c.l.b16 %v73
  %v362 = vunpack.c.l.b16 %v74
  %v363 = vunpack.c.l.b16 %v75
  %v364 = vunpack.c.l.b16 %v76
  %v365 = vunpack.c.l.b16 %v77
  %v366 = vunpack.c.l.b16 %v78
  %v367 = vunpack.c.l.b16 %v79
  %v368 = vunpack.c.l.b16 %v80
  %v369 = vunpack.c.l.b16 %v81
  %v370 = vunpack.c.l.b16 %v82
  %v371 = vunpack.c.l.b16 %v83
  %v372 = vunpack.c.l.b16 %v84
  %v373 = vunpack.c.l.b16 %v85
  %v374 = vunpack.c.l.b16 %v86
  %v375 = vpack.c.b16 %v304, %v303
  %v376 = vpack.c.b16 %v306, %v305
  %v377 = vpack.c.b16 %v308, %v307
  %v378 = vpack.c.b16 %v310, %v309
  %v379 = vpack.c.b16 %v312, %v311
  %v380 = vpack.c.b16 %v314, %v313
  %v381 = vpack.c.b16 %v316, %v315
  %v382 = vpack.c.b16 %v318, %v317
  %v383 = vpack.c.b16 %v320, %v319
  %v384 = vpack.c.b16 %v322, %v321
  %v385 = vpack.c.b16 %v324, %v323
  %v386 = vpack.c.b16 %v326, %v325
  %v387 = vpack.c.b16 %v328, %v327
  %v388 = vpack.c.b16 %v330, %v329
  %v389 = vpack.c.b16 %v332, %v331
  %v390 = vpack.c.b16 %v334, %v333
  %v391 = vpack.c.b16 %v336, %v335
  %v392 = vpack.c.b16 %v338, %v337
  %v393 = vpack.c.b16 %v340, %v339
  %v394 = vpack.c.b16 %v342, %v341
  %v395 = vpack.c.b16 %v344, %v343
  %v396 = vpack.c.b16 %v346, %v345
  %v397 = vpack.c.b16 %v348, %v347
  %v398 = vpack.c.b16 %v350, %v349
  %v399 = vpack.c.b16 %v352, %v351
  %v400 = vpack.c.b16 %v354, %v353
  %v401 = vpack.c.b16 %v356, %v355
  %v402 = vpack.c.b16 %v358, %v357
  %v403 = vpack.c.b16 %v360, %v359
  %v404 = vpack.c.b16 %v362, %v361
  %v405 = vpack.c.b16 %v364, %v363
  %v406 = vpack.c.b16 %v366, %v365
  %v407 = vpack.c.b16 %v368, %v367
  %v408 = vpack.c.b16 %v370, %v369
  %v409 = vpack.c.b16 %v372, %v371
  %v410 = vpack.c.b16 %v374, %v373
  %vm447 = vcmask 523264
  %v449 = vsel %vm447, %v190, 0
  %v452 = vsel %vm447, %v195, 0
  %v455 = vsel %vm447, %v200, 0
  %v458 = vsel %vm447, %v205, 0
  %v461 = vsel %vm447, %v210, 0
  %463 = vmatprep.subr.bf16.mxu0 0
  %464 = vmatpush1.bf16.msra.mxu0 %v375
  %465 = vmatprep.subr.bf16.mxu0 0
  %466 = vmatpush1.bf16.msra.mxu0 %v376
  %467 = vmatprep.subr.bf16.mxu0 0
  %468 = vmatpush1.bf16.msra.mxu0 %v377
  %469 = vmatprep.subr.bf16.mxu0 0
  %470 = vmatpush1.bf16.msra.mxu0 %v378
  %471 = vmatprep.subr.bf16.mxu0 0
  %472 = vmatpush1.bf16.msra.mxu0 %v379
  %473 = vmatprep.subr.bf16.mxu0 0
  %474 = vmatpush1.bf16.msra.mxu0 %v380
  %475 = vmatprep.subr.bf16.mxu0 0
  %476 = vmatpush1.bf16.msra.mxu0 %v381
  %477 = vmatprep.subr.bf16.mxu0 0
  %478 = vmatpush1.bf16.msra.mxu0 %v382
  %479 = vmatprep.subr.bf16.mxu0 0
  %480 = vmatpush1.bf16.msra.mxu0 %v383
  %481 = vmatprep.subr.bf16.mxu0 0
  %482 = vmatpush1.bf16.msra.mxu0 %v384
  %483 = vmatprep.subr.bf16.mxu0 0
  %484 = vmatpush1.bf16.msra.mxu0 %v385
  %485 = vmatprep.subr.bf16.mxu0 0
  %486 = vmatpush1.bf16.msra.mxu0 %v386
  %487 = vmatprep.subr.bf16.mxu0 0
  %488 = vmatpush1.bf16.msra.mxu0 %v387
  %489 = vmatprep.subr.bf16.mxu0 0
  %490 = vmatpush1.bf16.msra.mxu0 %v388
  %491 = vmatprep.subr.bf16.mxu0 0
  %492 = vmatpush1.bf16.msra.mxu0 %v389
  %493 = vmatprep.subr.bf16.mxu0 0
  %494 = vmatpush1.bf16.msra.mxu0 %v390
  %495 = vmatprep.mubr.bf16.mxu0 %v187
  %496 = vmatmul.mubr.bf16.gmra.mrb[0].mxu0 %v186
  %v497 = vpop.f32.mrb[0].mxu0
  %v498 = vadd.f32 0.0, %v497
  %v499 = vpop.f32.mrb[0].mxu0
  %v500 = vpop.f32.mrb[0].mxu0
  %v501 = vadd.f32 0.0, %v500
  %v502 = vpop.f32.mrb[0].mxu0
  %503 = vmatprep.mubr.bf16.mxu0 %v192
  %504 = vmatmul.mubr.bf16.gmra.mrb[0].mxu0 %v191
  %v505 = vpop.f32.mrb[0].mxu0
  %v506 = vadd.f32 0.0, %v505
  %v507 = vpop.f32.mrb[0].mxu0
  %v508 = vpop.f32.mrb[0].mxu0
  %v509 = vadd.f32 0.0, %v508
  %v510 = vpop.f32.mrb[0].mxu0
  %511 = vmatprep.mubr.bf16.mxu0 %v197
  %512 = vmatmul.mubr.bf16.gmra.mrb[0].mxu0 %v196
  %v513 = vpop.f32.mrb[0].mxu0
  %v514 = vadd.f32 0.0, %v513
  %v515 = vpop.f32.mrb[0].mxu0
  %v516 = vpop.f32.mrb[0].mxu0
  %v517 = vadd.f32 0.0, %v516
  %v518 = vpop.f32.mrb[0].mxu0
  %519 = vmatprep.mubr.bf16.mxu0 %v202
  %520 = vmatmul.mubr.bf16.gmra.mrb[0].mxu0 %v201
  %v521 = vpop.f32.mrb[0].mxu0
  %v522 = vadd.f32 0.0, %v521
  %v523 = vpop.f32.mrb[0].mxu0
  %v524 = vpop.f32.mrb[0].mxu0
  %v525 = vadd.f32 0.0, %v524
  %v526 = vpop.f32.mrb[0].mxu0
  %527 = vmatprep.mubr.bf16.mxu0 %v207
  %528 = vmatmul.mubr.bf16.gmra.mrb[0].mxu0 %v206
  %v529 = vpop.f32.mrb[0].mxu0
  %v530 = vadd.f32 0.0, %v529
  %v531 = vpop.f32.mrb[0].mxu0
  %v532 = vpop.f32.mrb[0].mxu0
  %v533 = vpop.f32.mrb[0].mxu0
  %534 = vdwg.mxu0
  %535 = vmatprep.subr.bf16.mxu0 0
  %536 = vmatpush1.bf16.msra.mxu0 %v391
  %537 = vmatprep.subr.bf16.mxu0 0
  %538 = vmatpush1.bf16.msra.mxu0 %v392
  %539 = vmatprep.subr.bf16.mxu0 0
  %540 = vmatpush1.bf16.msra.mxu0 %v393
  %541 = vmatprep.subr.bf16.mxu0 0
  %542 = vmatpush1.bf16.msra.mxu0 %v394
  %543 = vmatprep.subr.bf16.mxu0 0
  %544 = vmatpush1.bf16.msra.mxu0 %v395
  %545 = vmatprep.subr.bf16.mxu0 0
  %546 = vmatpush1.bf16.msra.mxu0 %v396
  %547 = vmatprep.subr.bf16.mxu0 0
  %548 = vmatpush1.bf16.msra.mxu0 %v397
  %549 = vmatprep.subr.bf16.mxu0 0
  %550 = vmatpush1.bf16.msra.mxu0 %v398
  %551 = vmatprep.subr.bf16.mxu0 0
  %552 = vmatpush1.bf16.msra.mxu0 %v399
  %553 = vmatprep.subr.bf16.mxu0 0
  %554 = vmatpush1.bf16.msra.mxu0 %v400
  %555 = vmatprep.subr.bf16.mxu0 0
  %556 = vmatpush1.bf16.msra.mxu0 %v401
  %557 = vmatprep.subr.bf16.mxu0 0
  %558 = vmatpush1.bf16.msra.mxu0 %v402
  %559 = vmatprep.subr.bf16.mxu0 0
  %560 = vmatpush1.bf16.msra.mxu0 %v403
  %561 = vmatprep.subr.bf16.mxu0 0
  %562 = vmatpush1.bf16.msra.mxu0 %v404
  %563 = vmatprep.subr.bf16.mxu0 0
  %564 = vmatpush1.bf16.msra.mxu0 %v405
  %565 = vmatprep.subr.bf16.mxu0 0
  %566 = vmatpush1.bf16.msra.mxu0 %v406
  %567 = vmatprep.mubr.bf16.mxu0 %v189
  %568 = vmatmul.mubr.bf16.gmra.mrb[0].mxu0 %v188
  %v569 = vpop.f32.mrb[0].mxu0
  %v570 = vadd.f32 %v498, %v569
  %v571 = vpop.f32.mrb[0].mxu0
  %v572 = vpop.f32.mrb[0].mxu0
  %v573 = vadd.f32 %v501, %v572
  %v574 = vpop.f32.mrb[0].mxu0
  %575 = vmatprep.mubr.bf16.mxu0 %v194
  %576 = vmatmul.mubr.bf16.gmra.mrb[0].mxu0 %v193
  %v577 = vpop.f32.mrb[0].mxu0
  %v578 = vadd.f32 %v506, %v577
  %v579 = vpop.f32.mrb[0].mxu0
  %v580 = vpop.f32.mrb[0].mxu0
  %v581 = vadd.f32 %v509, %v580
  %v582 = vpop.f32.mrb[0].mxu0
  %583 = vmatprep.mubr.bf16.mxu0 %v199
  %584 = vmatmul.mubr.bf16.gmra.mrb[0].mxu0 %v198
  %v585 = vpop.f32.mrb[0].mxu0
  %v586 = vadd.f32 %v514, %v585
  %v587 = vpop.f32.mrb[0].mxu0
  %v588 = vpop.f32.mrb[0].mxu0
  %v589 = vadd.f32 %v517, %v588
  %v590 = vpop.f32.mrb[0].mxu0
  %591 = vmatprep.mubr.bf16.mxu0 %v204
  %592 = vmatmul.mubr.bf16.gmra.mrb[0].mxu0 %v203
  %v593 = vpop.f32.mrb[0].mxu0
  %v594 = vadd.f32 %v522, %v593
  %v595 = vpop.f32.mrb[0].mxu0
  %v596 = vpop.f32.mrb[0].mxu0
  %v597 = vadd.f32 %v525, %v596
  %v598 = vpop.f32.mrb[0].mxu0
  %599 = vmatprep.mubr.bf16.mxu0 %v209
  %600 = vmatmul.mubr.bf16.gmra.mrb[0].mxu0 %v208
  %v601 = vpop.f32.mrb[0].mxu0
  %v602 = vadd.f32 %v530, %v601
  %v603 = vpop.f32.mrb[0].mxu0
  %v604 = vpop.f32.mrb[0].mxu0
  %v605 = vpop.f32.mrb[0].mxu0
  %606 = vdwg.mxu0
  %607 = vmatprep.subr.bf16.mxu0 0
  %608 = vmatpush1.bf16.msra.mxu0 %v407
  %609 = vmatprep.subr.bf16.mxu0 0
  %610 = vmatpush1.bf16.msra.mxu0 %v408
  %611 = vmatprep.subr.bf16.mxu0 0
  %612 = vmatpush1.bf16.msra.mxu0 %v409
  %613 = vmatprep.subr.bf16.mxu0 0
  %614 = vmatpush1.bf16.msra.mxu0 %v410
  %615 = vmatprep.subr.bf16.mxu0 0
  %616 = vmatpush1.bf16.msra.mxu0 0
  %617 = vmatprep.subr.bf16.mxu0 0
  %618 = vmatpush1.bf16.msra.mxu0 0
  %619 = vmatprep.subr.bf16.mxu0 0
  %620 = vmatpush1.bf16.msra.mxu0 0
  %621 = vmatprep.subr.bf16.mxu0 0
  %622 = vmatpush1.bf16.msra.mxu0 0
  %623 = vmatprep.subr.bf16.mxu0 0
  %624 = vmatpush1.bf16.msra.mxu0 0
  %625 = vmatprep.subr.bf16.mxu0 0
  %626 = vmatpush1.bf16.msra.mxu0 0
  %627 = vmatprep.subr.bf16.mxu0 0
  %628 = vmatpush1.bf16.msra.mxu0 0
  %629 = vmatprep.subr.bf16.mxu0 0
  %630 = vmatpush1.bf16.msra.mxu0 0
  %631 = vmatprep.subr.bf16.mxu0 0
  %632 = vmatpush1.bf16.msra.mxu0 0
  %633 = vmatprep.subr.bf16.mxu0 0
  %634 = vmatpush1.bf16.msra.mxu0 0
  %635 = vmatprep.subr.bf16.mxu0 0
  %636 = vmatpush1.bf16.msra.mxu0 0
  %637 = vmatprep.subr.bf16.mxu0 0
  %638 = vmatpush1.bf16.msra.mxu0 0
  %639 = vmatprep.mubr.bf16.mxu0 0
  %640 = vmatmul.mubr.bf16.gmra.mrb[0].mxu0 %v449
  %v641 = vpop.f32.mrb[0].mxu0
  %v642 = vadd.f32 %v570, %v641
  %v643 = vpop.f32.mrb[0].mxu0
  %v644 = vpop.f32.mrb[0].mxu0
  %v645 = vadd.f32 %v573, %v644
  %v646 = vpop.f32.mrb[0].mxu0
  %647 = vmatprep.mubr.bf16.mxu0 0
  %648 = vmatmul.mubr.bf16.gmra.mrb[0].mxu0 %v452
  %v649 = vpop.f32.mrb[0].mxu0
  %v650 = vadd.f32 %v578, %v649
  %v651 = vpop.f32.mrb[0].mxu0
  %v652 = vpop.f32.mrb[0].mxu0
  %v653 = vadd.f32 %v581, %v652
  %v654 = vpop.f32.mrb[0].mxu0
  %655 = vmatprep.mubr.bf16.mxu0 0
  %656 = vmatmul.mubr.bf16.gmra.mrb[0].mxu0 %v455
  %v657 = vpop.f32.mrb[0].mxu0
  %v658 = vadd.f32 %v586, %v657
  %v659 = vpop.f32.mrb[0].mxu0
  %v660 = vpop.f32.mrb[0].mxu0
  %v661 = vadd.f32 %v589, %v660
  %v662 = vpop.f32.mrb[0].mxu0
  %663 = vmatprep.mubr.bf16.mxu0 0
  %664 = vmatmul.mubr.bf16.gmra.mrb[0].mxu0 %v458
  %v665 = vpop.f32.mrb[0].mxu0
  %v666 = vadd.f32 %v594, %v665
  %v667 = vpop.f32.mrb[0].mxu0
  %v668 = vpop.f32.mrb[0].mxu0
  %v669 = vadd.f32 %v597, %v668
  %v670 = vpop.f32.mrb[0].mxu0
  %671 = vmatprep.mubr.bf16.mxu0 0
  %672 = vmatmul.mubr.bf16.gmra.mrb[0].mxu0 %v461
  %v673 = vpop.f32.mrb[0].mxu0
  %v674 = vadd.f32 %v602, %v673
  %v675 = vpop.f32.mrb[0].mxu0
  %v676 = vpop.f32.mrb[0].mxu0
  %v677 = vpop.f32.mrb[0].mxu0
  %678 = vdwg.mxu0
  %s679 = scalar_lea.vmem %s0, 180
  %v680 = vld [vmem:[%s679] sm:$0xff]
  %v681 = vld [vmem:[%s679 + $0x8] sm:$0xff]
  %v682 = vld [vmem:[%s679 + $0x10] sm:$0xf]
  %v683 = vld [vmem:[%s679 + $0x14] sm:$0xff]
  %v684 = vld [vmem:[%s679 + $0x1c] sm:$0xff]
  %v685 = vld [vmem:[%s679 + $0x24] sm:$0xf]
  %v686 = vld [vmem:[%s679 + $0x28] sm:$0xff]
  %v687 = vld [vmem:[%s679 + $0x30] sm:$0xff]
  %v688 = vld [vmem:[%s679 + $0x38] sm:$0xf]
  %v689 = vld [vmem:[%s679 + $0x3c] sm:$0xff]
  %v690 = vld [vmem:[%s679 + $0x44] sm:$0xff]
  %v691 = vld [vmem:[%s679 + $0x4c] sm:$0xf]
  %v692 = vld [vmem:[%s679 + $0x50] sm:$0xff]
  %v693 = vld [vmem:[%s679 + $0x58] sm:$0xff]
  %v694 = vld [vmem:[%s679 + $0x60] sm:$0xf]
  %v695 = vld [vmem:[%s679 + $0x64] sm:$0xff]
  %v696 = vld [vmem:[%s679 + $0x6c] sm:$0xff]
  %v697 = vld [vmem:[%s679 + $0x74] sm:$0xf]
  %v698 = vld [vmem:[%s679 + $0x78] sm:$0xff]
  %v699 = vld [vmem:[%s679 + $0x80] sm:$0xff]
  %v700 = vld [vmem:[%s679 + $0x88] sm:$0xf]
  %v701 = vld [vmem:[%s679 + $0x8c] sm:$0xff]
  %v702 = vld [vmem:[%s679 + $0x94] sm:$0xff]
  %v703 = vld [vmem:[%s679 + $0x9c] sm:$0xf]
  %v704 = vld [vmem:[%s679 + $0xa0] sm:$0xff]
  %v705 = vld [vmem:[%s679 + $0xa8] sm:$0xff]
  %v706 = vld [vmem:[%s679 + $0xb0] sm:$0xf]
  %v734 = vunpack.c.l.b16 %v680
  %v735 = vunpack.c.h.b16 %v680
  %v736 = vunpack.c.l.b16 %v681
  %v737 = vunpack.c.h.b16 %v681
  %v738 = vunpack.c.l.b16 %v682
  %v739 = vunpack.c.l.b16 %v683
  %v740 = vunpack.c.h.b16 %v683
  %v741 = vunpack.c.l.b16 %v684
  %v742 = vunpack.c.h.b16 %v684
  %v743 = vunpack.c.l.b16 %v685
  %v744 = vunpack.c.l.b16 %v686
  %v745 = vunpack.c.h.b16 %v686
  %v746 = vunpack.c.l.b16 %v687
  %v747 = vunpack.c.h.b16 %v687
  %v748 = vunpack.c.l.b16 %v688
  %v749 = vunpack.c.l.b16 %v689
  %v750 = vunpack.c.h.b16 %v689
  %v751 = vunpack.c.l.b16 %v690
  %v752 = vunpack.c.h.b16 %v690
  %v753 = vunpack.c.l.b16 %v691
  %v754 = vunpack.c.l.b16 %v692
  %v755 = vunpack.c.h.b16 %v692
  %v756 = vunpack.c.l.b16 %v693
  %v757 = vunpack.c.h.b16 %v693
  %v758 = vunpack.c.l.b16 %v694
  %v759 = vunpack.c.l.b16 %v695
  %v760 = vunpack.c.h.b16 %v695
  %v761 = vunpack.c.l.b16 %v696
  %v762 = vunpack.c.h.b16 %v696
  %v763 = vunpack.c.l.b16 %v697
  %v764 = vunpack.c.l.b16 %v698
  %v765 = vunpack.c.h.b16 %v698
  %v766 = vunpack.c.l.b16 %v699
  %v767 = vunpack.c.h.b16 %v699
  %v768 = vunpack.c.l.b16 %v700
  %v769 = vunpack.c.l.b16 %v701
  %v770 = vunpack.c.h.b16 %v701
  %v771 = vunpack.c.l.b16 %v702
  %v772 = vunpack.c.h.b16 %v702
  %v773 = vunpack.c.l.b16 %v703
  %v774 = vunpack.c.l.b16 %v704
  %v775 = vunpack.c.h.b16 %v704
  %v776 = vunpack.c.l.b16 %v705
  %v777 = vunpack.c.h.b16 %v705
  %v778 = vunpack.c.l.b16 %v706
  %v779 = vpack.c.b16 %v739, %v734
  %v780 = vpack.c.b16 %v740, %v735
  %v781 = vpack.c.b16 %v741, %v736
  %v782 = vpack.c.b16 %v742, %v737
  %v783 = vpack.c.b16 %v743, %v738
  %v784 = vpack.c.b16 %v749, %v744
  %v785 = vpack.c.b16 %v750, %v745
  %v786 = vpack.c.b16 %v751, %v746
  %v787 = vpack.c.b16 %v752, %v747
  %v788 = vpack.c.b16 %v753, %v748
  %v789 = vpack.c.b16 %v759, %v754
  %v790 = vpack.c.b16 %v760, %v755
  %v791 = vpack.c.b16 %v761, %v756
  %v792 = vpack.c.b16 %v762, %v757
  %v793 = vpack.c.b16 %v763, %v758
  %v794 = vpack.c.b16 %v769, %v764
  %v795 = vpack.c.b16 %v770, %v765
  %v796 = vpack.c.b16 %v771, %v766
  %v797 = vpack.c.b16 %v772, %v767
  %v798 = vpack.c.b16 %v773, %v768
  %v799 = vpack.c.b16 %v774, %v774
  %v800 = vpack.c.b16 %v775, %v775
  %v801 = vpack.c.b16 %v776, %v776
  %v802 = vpack.c.b16 %v777, %v777
  %v803 = vpack.c.b16 %v778, %v778
  %v825 = vsel %vm447, %v783, 0
  %v828 = vsel %vm447, %v788, 0
  %v831 = vsel %vm447, %v793, 0
  %v834 = vsel %vm447, %v798, 0
  %v837 = vsel %vm447, %v803, 0
  %839 = vmatprep.subr.bf16.mxu0 0
  %840 = vmatpush1.bf16.msra.mxu0 %v375
  %841 = vmatprep.subr.bf16.mxu0 0
  %842 = vmatpush1.bf16.msra.mxu0 %v376
  %843 = vmatprep.subr.bf16.mxu0 0
  %844 = vmatpush1.bf16.msra.mxu0 %v377
  %845 = vmatprep.subr.bf16.mxu0 0
  %846 = vmatpush1.bf16.msra.mxu0 %v378
  %847 = vmatprep.subr.bf16.mxu0 0
  %848 = vmatpush1.bf16.msra.mxu0 %v379
  %849 = vmatprep.subr.bf16.mxu0 0
  %850 = vmatpush1.bf16.msra.mxu0 %v380
  %851 = vmatprep.subr.bf16.mxu0 0
  %852 = vmatpush1.bf16.msra.mxu0 %v381
  %853 = vmatprep.subr.bf16.mxu0 0
  %854 = vmatpush1.bf16.msra.mxu0 %v382
  %855 = vmatprep.subr.bf16.mxu0 0
  %856 = vmatpush1.bf16.msra.mxu0 %v383
  %857 = vmatprep.subr.bf16.mxu0 0
  %858 = vmatpush1.bf16.msra.mxu0 %v384
  %859 = vmatprep.subr.bf16.mxu0 0
  %860 = vmatpush1.bf16.msra.mxu0 %v385
  %861 = vmatprep.subr.bf16.mxu0 0
  %862 = vmatpush1.bf16.msra.mxu0 %v386
  %863 = vmatprep.subr.bf16.mxu0 0
  %864 = vmatpush1.bf16.msra.mxu0 %v387
  %865 = vmatprep.subr.bf16.mxu0 0
  %866 = vmatpush1.bf16.msra.mxu0 %v388
  %867 = vmatprep.subr.bf16.mxu0 0
  %868 = vmatpush1.bf16.msra.mxu0 %v389
  %869 = vmatprep.subr.bf16.mxu0 0
  %870 = vmatpush1.bf16.msra.mxu0 %v390
  %871 = vmatprep.mubr.bf16.mxu0 %v780
  %872 = vmatmul.mubr.bf16.gmra.mrb[0].mxu0 %v779
  %v873 = vpop.f32.mrb[0].mxu0
  %v874 = vadd.f32 0.0, %v873
  %v875 = vpop.f32.mrb[0].mxu0
  %v876 = vpop.f32.mrb[0].mxu0
  %v877 = vadd.f32 0.0, %v876
  %v878 = vpop.f32.mrb[0].mxu0
  %879 = vmatprep.mubr.bf16.mxu0 %v785
  %880 = vmatmul.mubr.bf16.gmra.mrb[0].mxu0 %v784
  %v881 = vpop.f32.mrb[0].mxu0
  %v882 = vadd.f32 0.0, %v881
  %v883 = vpop.f32.mrb[0].mxu0
  %v884 = vpop.f32.mrb[0].mxu0
  %v885 = vadd.f32 0.0, %v884
  %v886 = vpop.f32.mrb[0].mxu0
  %887 = vmatprep.mubr.bf16.mxu0 %v790
  %888 = vmatmul.mubr.bf16.gmra.mrb[0].mxu0 %v789
  %v889 = vpop.f32.mrb[0].mxu0
  %v890 = vadd.f32 0.0, %v889
  %v891 = vpop.f32.mrb[0].mxu0
  %v892 = vpop.f32.mrb[0].mxu0
  %v893 = vadd.f32 0.0, %v892
  %v894 = vpop.f32.mrb[0].mxu0
  %895 = vmatprep.mubr.bf16.mxu0 %v795
  %896 = vmatmul.mubr.bf16.gmra.mrb[0].mxu0 %v794
  %v897 = vpop.f32.mrb[0].mxu0
  %v898 = vadd.f32 0.0, %v897
  %v899 = vpop.f32.mrb[0].mxu0
  %v900 = vpop.f32.mrb[0].mxu0
  %v901 = vadd.f32 0.0, %v900
  %v902 = vpop.f32.mrb[0].mxu0
  %903 = vmatprep.mubr.bf16.mxu0 %v800
  %904 = vmatmul.mubr.bf16.gmra.mrb[0].mxu0 %v799
  %v905 = vpop.f32.mrb[0].mxu0
  %v906 = vadd.f32 0.0, %v905
  %v907 = vpop.f32.mrb[0].mxu0
  %v908 = vpop.f32.mrb[0].mxu0
  %v909 = vpop.f32.mrb[0].mxu0
  %910 = vdwg.mxu0
  %911 = vmatprep.subr.bf16.mxu0 0
  %912 = vmatpush1.bf16.msra.mxu0 %v391
  %913 = vmatprep.subr.bf16.mxu0 0
  %914 = vmatpush1.bf16.msra.mxu0 %v392
  %915 = vmatprep.subr.bf16.mxu0 0
  %916 = vmatpush1.bf16.msra.mxu0 %v393
  %917 = vmatprep.subr.bf16.mxu0 0
  %918 = vmatpush1.bf16.msra.mxu0 %v394
  %919 = vmatprep.subr.bf16.mxu0 0
  %920 = vmatpush1.bf16.msra.mxu0 %v395
  %921 = vmatprep.subr.bf16.mxu0 0
  %922 = vmatpush1.bf16.msra.mxu0 %v396
  %923 = vmatprep.subr.bf16.mxu0 0
  %924 = vmatpush1.bf16.msra.mxu0 %v397
  %925 = vmatprep.subr.bf16.mxu0 0
  %926 = vmatpush1.bf16.msra.mxu0 %v398
  %927 = vmatprep.subr.bf16.mxu0 0
  %928 = vmatpush1.bf16.msra.mxu0 %v399
  %929 = vmatprep.subr.bf16.mxu0 0
  %930 = vmatpush1.bf16.msra.mxu0 %v400
  %931 = vmatprep.subr.bf16.mxu0 0
  %932 = vmatpush1.bf16.msra.mxu0 %v401
  %933 = vmatprep.subr.bf16.mxu0 0
  %934 = vmatpush1.bf16.msra.mxu0 %v402
  %935 = vmatprep.subr.bf16.mxu0 0
  %936 = vmatpush1.bf16.msra.mxu0 %v403
  %937 = vmatprep.subr.bf16.mxu0 0
  %938 = vmatpush1.bf16.msra.mxu0 %v404
  %939 = vmatprep.subr.bf16.mxu0 0
  %940 = vmatpush1.bf16.msra.mxu0 %v405
  %941 = vmatprep.subr.bf16.mxu0 0
  %942 = vmatpush1.bf16.msra.mxu0 %v406
  %943 = vmatprep.mubr.bf16.mxu0 %v782
  %944 = vmatmul.mubr.bf16.gmra.mrb[0].mxu0 %v781
  %v945 = vpop.f32.mrb[0].mxu0
  %v946 = vadd.f32 %v874, %v945
  %v947 = vpop.f32.mrb[0].mxu0
  %v948 = vpop.f32.mrb[0].mxu0
  %v949 = vadd.f32 %v877, %v948
  %v950 = vpop.f32.mrb[0].mxu0
  %951 = vmatprep.mubr.bf16.mxu0 %v787
  %952 = vmatmul.mubr.bf16.gmra.mrb[0].mxu0 %v786
  %v953 = vpop.f32.mrb[0].mxu0
  %v954 = vadd.f32 %v882, %v953
  %v955 = vpop.f32.mrb[0].mxu0
  %v956 = vpop.f32.mrb[0].mxu0
  %v957 = vadd.f32 %v885, %v956
  %v958 = vpop.f32.mrb[0].mxu0
  %959 = vmatprep.mubr.bf16.mxu0 %v792
  %960 = vmatmul.mubr.bf16.gmra.mrb[0].mxu0 %v791
  %v961 = vpop.f32.mrb[0].mxu0
  %v962 = vadd.f32 %v890, %v961
  %v963 = vpop.f32.mrb[0].mxu0
  %v964 = vpop.f32.mrb[0].mxu0
  %v965 = vadd.f32 %v893, %v964
  %v966 = vpop.f32.mrb[0].mxu0
  %967 = vmatprep.mubr.bf16.mxu0 %v797
  %968 = vmatmul.mubr.bf16.gmra.mrb[0].mxu0 %v796
  %v969 = vpop.f32.mrb[0].mxu0
  %v970 = vadd.f32 %v898, %v969
  %v971 = vpop.f32.mrb[0].mxu0
  %v972 = vpop.f32.mrb[0].mxu0
  %v973 = vadd.f32 %v901, %v972
  %v974 = vpop.f32.mrb[0].mxu0
  %975 = vmatprep.mubr.bf16.mxu0 %v802
  %976 = vmatmul.mubr.bf16.gmra.mrb[0].mxu0 %v801
  %v977 = vpop.f32.mrb[0].mxu0
  %v978 = vadd.f32 %v906, %v977
  %v979 = vpop.f32.mrb[0].mxu0
  %v980 = vpop.f32.mrb[0].mxu0
  %v981 = vpop.f32.mrb[0].mxu0
  %982 = vdwg.mxu0
  %983 = vmatprep.subr.bf16.mxu0 0
  %984 = vmatpush1.bf16.msra.mxu0 %v407
  %985 = vmatprep.subr.bf16.mxu0 0
  %986 = vmatpush1.bf16.msra.mxu0 %v408
  %987 = vmatprep.subr.bf16.mxu0 0
  %988 = vmatpush1.bf16.msra.mxu0 %v409
  %989 = vmatprep.subr.bf16.mxu0 0
  %990 = vmatpush1.bf16.msra.mxu0 %v410
  %991 = vmatprep.subr.bf16.mxu0 0
  %992 = vmatpush1.bf16.msra.mxu0 0
  %993 = vmatprep.subr.bf16.mxu0 0
  %994 = vmatpush1.bf16.msra.mxu0 0
  %995 = vmatprep.subr.bf16.mxu0 0
  %996 = vmatpush1.bf16.msra.mxu0 0
  %997 = vmatprep.subr.bf16.mxu0 0
  %998 = vmatpush1.bf16.msra.mxu0 0
  %999 = vmatprep.subr.bf16.mxu0 0
  %1000 = vmatpush1.bf16.msra.mxu0 0
  %1001 = vmatprep.subr.bf16.mxu0 0
  %1002 = vmatpush1.bf16.msra.mxu0 0
  %1003 = vmatprep.subr.bf16.mxu0 0
  %1004 = vmatpush1.bf16.msra.mxu0 0
  %1005 = vmatprep.subr.bf16.mxu0 0
  %1006 = vmatpush1.bf16.msra.mxu0 0
  %1007 = vmatprep.subr.bf16.mxu0 0
  %1008 = vmatpush1.bf16.msra.mxu0 0
  %1009 = vmatprep.subr.bf16.mxu0 0
  %1010 = vmatpush1.bf16.msra.mxu0 0
  %1011 = vmatprep.subr.bf16.mxu0 0
  %1012 = vmatpush1.bf16.msra.mxu0 0
  %1013 = vmatprep.subr.bf16.mxu0 0
  %1014 = vmatpush1.bf16.msra.mxu0 0
  %1015 = vmatprep.mubr.bf16.mxu0 0
  %1016 = vmatmul.mubr.bf16.gmra.mrb[0].mxu0 %v825
  %v1017 = vpop.f32.mrb[0].mxu0
  %v1018 = vadd.f32 %v946, %v1017
  %v1019 = vpop.f32.mrb[0].mxu0
  %v1020 = vpop.f32.mrb[0].mxu0
  %v1021 = vadd.f32 %v949, %v1020
  %v1022 = vpop.f32.mrb[0].mxu0
  %1023 = vmatprep.mubr.bf16.mxu0 0
  %1024 = vmatmul.mubr.bf16.gmra.mrb[0].mxu0 %v828
  %v1025 = vpop.f32.mrb[0].mxu0
  %v1026 = vadd.f32 %v954, %v1025
  %v1027 = vpop.f32.mrb[0].mxu0
  %v1028 = vpop.f32.mrb[0].mxu0
  %v1029 = vadd.f32 %v957, %v1028
  %v1030 = vpop.f32.mrb[0].mxu0
  %1031 = vmatprep.mubr.bf16.mxu0 0
  %1032 = vmatmul.mubr.bf16.gmra.mrb[0].mxu0 %v831
  %v1033 = vpop.f32.mrb[0].mxu0
  %v1034 = vadd.f32 %v962, %v1033
  %v1035 = vpop.f32.mrb[0].mxu0
  %v1036 = vpop.f32.mrb[0].mxu0
  %v1037 = vadd.f32 %v965, %v1036
  %v1038 = vpop.f32.mrb[0].mxu0
  %1039 = vmatprep.mubr.bf16.mxu0 0
  %1040 = vmatmul.mubr.bf16.gmra.mrb[0].mxu0 %v834
  %v1041 = vpop.f32.mrb[0].mxu0
  %v1042 = vadd.f32 %v970, %v1041
  %v1043 = vpop.f32.mrb[0].mxu0
  %v1044 = vpop.f32.mrb[0].mxu0
  %v1045 = vadd.f32 %v973, %v1044
  %v1046 = vpop.f32.mrb[0].mxu0
  %1047 = vmatprep.mubr.bf16.mxu0 0
  %1048 = vmatmul.mubr.bf16.gmra.mrb[0].mxu0 %v837
  %v1049 = vpop.f32.mrb[0].mxu0
  %v1050 = vadd.f32 %v978, %v1049
  %v1051 = vpop.f32.mrb[0].mxu0
  %v1052 = vpop.f32.mrb[0].mxu0
  %v1053 = vpop.f32.mrb[0].mxu0
  %1054 = vdwg.mxu0
  %s1055 = scalar_lea.vmem %s0, 360
  %v1056 = vld [vmem:[%s1055] sm:$0xff]
  %v1057 = vld [vmem:[%s1055 + $0x8] sm:$0xff]
  %v1058 = vld [vmem:[%s1055 + $0x10] sm:$0xf]
  %v1059 = vld [vmem:[%s1055 + $0x14] sm:$0xff]
  %v1060 = vld [vmem:[%s1055 + $0x1c] sm:$0xff]
  %v1061 = vld [vmem:[%s1055 + $0x24] sm:$0xf]
  %v1062 = vld [vmem:[%s1055 + $0x28] sm:$0xff]
  %v1063 = vld [vmem:[%s1055 + $0x30] sm:$0xff]
  %v1064 = vld [vmem:[%s1055 + $0x38] sm:$0xf]
  %v1065 = vld [vmem:[%s1055 + $0x3c] sm:$0xff]
  %v1066 = vld [vmem:[%s1055 + $0x44] sm:$0xff]
  %v1067 = vld [vmem:[%s1055 + $0x4c] sm:$0xf]
  %v1068 = vld [vmem:[%s1055 + $0x50] sm:$0xff]
  %v1069 = vld [vmem:[%s1055 + $0x58] sm:$0xff]
  %v1070 = vld [vmem:[%s1055 + $0x60] sm:$0xf]
  %v1071 = vld [vmem:[%s1055 + $0x64] sm:$0xff]
  %v1072 = vld [vmem:[%s1055 + $0x6c] sm:$0xff]
  %v1073 = vld [vmem:[%s1055 + $0x74] sm:$0xf]
  %v1074 = vld [vmem:[%s1055 + $0x78] sm:$0xff]
  %v1075 = vld [vmem:[%s1055 + $0x80] sm:$0xff]
  %v1076 = vld [vmem:[%s1055 + $0x88] sm:$0xf]
  %v1077 = vld [vmem:[%s1055 + $0x8c] sm:$0xff]
  %v1078 = vld [vmem:[%s1055 + $0x94] sm:$0xff]
  %v1079 = vld [vmem:[%s1055 + $0x9c] sm:$0xf]
  %v1080 = vld [vmem:[%s1055 + $0xa0] sm:$0xff]
  %v1081 = vld [vmem:[%s1055 + $0xa8] sm:$0xff]
  %v1082 = vld [vmem:[%s1055 + $0xb0] sm:$0xf]
  %v1110 = vunpack.c.l.b16 %v1056
  %v1111 = vunpack.c.h.b16 %v1056
  %v1112 = vunpack.c.l.b16 %v1057
  %v1113 = vunpack.c.h.b16 %v1057
  %v1114 = vunpack.c.l.b16 %v1058
  %v1115 = vunpack.c.l.b16 %v1059
  %v1116 = vunpack.c.h.b16 %v1059
  %v1117 = vunpack.c.l.b16 %v1060
  %v1118 = vunpack.c.h.b16 %v1060
  %v1119 = vunpack.c.l.b16 %v1061
  %v1120 = vunpack.c.l.b16 %v1062
  %v1121 = vunpack.c.h.b16 %v1062
  %v1122 = vunpack.c.l.b16 %v1063
  %v1123 = vunpack.c.h.b16 %v1063
  %v1124 = vunpack.c.l.b16 %v1064
  %v1125 = vunpack.c.l.b16 %v1065
  %v1126 = vunpack.c.h.b16 %v1065
  %v1127 = vunpack.c.l.b16 %v1066
  %v1128 = vunpack.c.h.b16 %v1066
  %v1129 = vunpack.c.l.b16 %v1067
  %v1130 = vunpack.c.l.b16 %v1068
  %v1131 = vunpack.c.h.b16 %v1068
  %v1132 = vunpack.c.l.b16 %v1069
  %v1133 = vunpack.c.h.b16 %v1069
  %v1134 = vunpack.c.l.b16 %v1070
  %v1135 = vunpack.c.l.b16 %v1071
  %v1136 = vunpack.c.h.b16 %v1071
  %v1137 = vunpack.c.l.b16 %v1072
  %v1138 = vunpack.c.h.b16 %v1072
  %v1139 = vunpack.c.l.b16 %v1073
  %v1140 = vunpack.c.l.b16 %v1074
  %v1141 = vunpack.c.h.b16 %v1074
  %v1142 = vunpack.c.l.b16 %v1075
  %v1143 = vunpack.c.h.b16 %v1075
  %v1144 = vunpack.c.l.b16 %v1076
  %v1145 = vunpack.c.l.b16 %v1077
  %v1146 = vunpack.c.h.b16 %v1077
  %v1147 = vunpack.c.l.b16 %v1078
  %v1148 = vunpack.c.h.b16 %v1078
  %v1149 = vunpack.c.l.b16 %v1079
  %v1150 = vunpack.c.l.b16 %v1080
  %v1151 = vunpack.c.h.b16 %v1080
  %v1152 = vunpack.c.l.b16 %v1081
  %v1153 = vunpack.c.h.b16 %v1081
  %v1154 = vunpack.c.l.b16 %v1082
  %v1155 = vpack.c.b16 %v1115, %v1110
  %v1156 = vpack.c.b16 %v1116, %v1111
  %v1157 = vpack.c.b16 %v1117, %v1112
  %v1158 = vpack.c.b16 %v1118, %v1113
  %v1159 = vpack.c.b16 %v1119, %v1114
  %v1160 = vpack.c.b16 %v1125, %v1120
  %v1161 = vpack.c.b16 %v1126, %v1121
  %v1162 = vpack.c.b16 %v1127, %v1122
  %v1163 = vpack.c.b16 %v1128, %v1123
  %v1164 = vpack.c.b16 %v1129, %v1124
  %v1165 = vpack.c.b16 %v1135, %v1130
  %v1166 = vpack.c.b16 %v1136, %v1131
  %v1167 = vpack.c.b16 %v1137, %v1132
  %v1168 = vpack.c.b16 %v1138, %v1133
  %v1169 = vpack.c.b16 %v1139, %v1134
  %v1170 = vpack.c.b16 %v1145, %v1140
  %v1171 = vpack.c.b16 %v1146, %v1141
  %v1172 = vpack.c.b16 %v1147, %v1142
  %v1173 = vpack.c.b16 %v1148, %v1143
  %v1174 = vpack.c.b16 %v1149, %v1144
  %v1175 = vpack.c.b16 %v1150, %v1150
  %v1176 = vpack.c.b16 %v1151, %v1151
  %v1177 = vpack.c.b16 %v1152, %v1152
  %v1178 = vpack.c.b16 %v1153, %v1153
  %v1179 = vpack.c.b16 %v1154, %v1154
  %v1201 = vsel %vm447, %v1159, 0
  %v1204 = vsel %vm447, %v1164, 0
  %v1207 = vsel %vm447, %v1169, 0
  %v1210 = vsel %vm447, %v1174, 0
  %v1213 = vsel %vm447, %v1179, 0
  %1215 = vmatprep.subr.bf16.mxu0 0
  %1216 = vmatpush1.bf16.msra.mxu0 %v375
  %1217 = vmatprep.subr.bf16.mxu0 0
  %1218 = vmatpush1.bf16.msra.mxu0 %v376
  %1219 = vmatprep.subr.bf16.mxu0 0
  %1220 = vmatpush1.bf16.msra.mxu0 %v377
  %1221 = vmatprep.subr.bf16.mxu0 0
  %1222 = vmatpush1.bf16.msra.mxu0 %v378
  %1223 = vmatprep.subr.bf16.mxu0 0
  %1224 = vmatpush1.bf16.msra.mxu0 %v379
  %1225 = vmatprep.subr.bf16.mxu0 0
  %1226 = vmatpush1.bf16.msra.mxu0 %v380
  %1227 = vmatprep.subr.bf16.mxu0 0
  %1228 = vmatpush1.bf16.msra.mxu0 %v381
  %1229 = vmatprep.subr.bf16.mxu0 0
  %1230 = vmatpush1.bf16.msra.mxu0 %v382
  %1231 = vmatprep.subr.bf16.mxu0 0
  %1232 = vmatpush1.bf16.msra.mxu0 %v383
  %1233 = vmatprep.subr.bf16.mxu0 0
  %1234 = vmatpush1.bf16.msra.mxu0 %v384
  %1235 = vmatprep.subr.bf16.mxu0 0
  %1236 = vmatpush1.bf16.msra.mxu0 %v385
  %1237 = vmatprep.subr.bf16.mxu0 0
  %1238 = vmatpush1.bf16.msra.mxu0 %v386
  %1239 = vmatprep.subr.bf16.mxu0 0
  %1240 = vmatpush1.bf16.msra.mxu0 %v387
  %1241 = vmatprep.subr.bf16.mxu0 0
  %1242 = vmatpush1.bf16.msra.mxu0 %v388
  %1243 = vmatprep.subr.bf16.mxu0 0
  %1244 = vmatpush1.bf16.msra.mxu0 %v389
  %1245 = vmatprep.subr.bf16.mxu0 0
  %1246 = vmatpush1.bf16.msra.mxu0 %v390
  %1247 = vmatprep.mubr.bf16.mxu0 %v1156
  %1248 = vmatmul.mubr.bf16.gmra.mrb[0].mxu0 %v1155
  %v1249 = vpop.f32.mrb[0].mxu0
  %v1250 = vadd.f32 0.0, %v1249
  %v1251 = vpop.f32.mrb[0].mxu0
  %v1252 = vpop.f32.mrb[0].mxu0
  %v1253 = vadd.f32 0.0, %v1252
  %v1254 = vpop.f32.mrb[0].mxu0
  %1255 = vmatprep.mubr.bf16.mxu0 %v1161
  %1256 = vmatmul.mubr.bf16.gmra.mrb[0].mxu0 %v1160
  %v1257 = vpop.f32.mrb[0].mxu0
  %v1258 = vadd.f32 0.0, %v1257
  %v1259 = vpop.f32.mrb[0].mxu0
  %v1260 = vpop.f32.mrb[0].mxu0
  %v1261 = vadd.f32 0.0, %v1260
  %v1262 = vpop.f32.mrb[0].mxu0
  %1263 = vmatprep.mubr.bf16.mxu0 %v1166
  %1264 = vmatmul.mubr.bf16.gmra.mrb[0].mxu0 %v1165
  %v1265 = vpop.f32.mrb[0].mxu0
  %v1266 = vadd.f32 0.0, %v1265
  %v1267 = vpop.f32.mrb[0].mxu0
  %v1268 = vpop.f32.mrb[0].mxu0
  %v1269 = vadd.f32 0.0, %v1268
  %v1270 = vpop.f32.mrb[0].mxu0
  %1271 = vmatprep.mubr.bf16.mxu0 %v1171
  %1272 = vmatmul.mubr.bf16.gmra.mrb[0].mxu0 %v1170
  %v1273 = vpop.f32.mrb[0].mxu0
  %v1274 = vadd.f32 0.0, %v1273
  %v1275 = vpop.f32.mrb[0].mxu0
  %v1276 = vpop.f32.mrb[0].mxu0
  %v1277 = vadd.f32 0.0, %v1276
  %v1278 = vpop.f32.mrb[0].mxu0
  %1279 = vmatprep.mubr.bf16.mxu0 %v1176
  %1280 = vmatmul.mubr.bf16.gmra.mrb[0].mxu0 %v1175
  %v1281 = vpop.f32.mrb[0].mxu0
  %v1282 = vadd.f32 0.0, %v1281
  %v1283 = vpop.f32.mrb[0].mxu0
  %v1284 = vpop.f32.mrb[0].mxu0
  %v1285 = vpop.f32.mrb[0].mxu0
  %1286 = vdwg.mxu0
  %1287 = vmatprep.subr.bf16.mxu0 0
  %1288 = vmatpush1.bf16.msra.mxu0 %v391
  %1289 = vmatprep.subr.bf16.mxu0 0
  %1290 = vmatpush1.bf16.msra.mxu0 %v392
  %1291 = vmatprep.subr.bf16.mxu0 0
  %1292 = vmatpush1.bf16.msra.mxu0 %v393
  %1293 = vmatprep.subr.bf16.mxu0 0
  %1294 = vmatpush1.bf16.msra.mxu0 %v394
  %1295 = vmatprep.subr.bf16.mxu0 0
  %1296 = vmatpush1.bf16.msra.mxu0 %v395
  %1297 = vmatprep.subr.bf16.mxu0 0
  %1298 = vmatpush1.bf16.msra.mxu0 %v396
  %1299 = vmatprep.subr.bf16.mxu0 0
  %1300 = vmatpush1.bf16.msra.mxu0 %v397
  %1301 = vmatprep.subr.bf16.mxu0 0
  %1302 = vmatpush1.bf16.msra.mxu0 %v398
  %1303 = vmatprep.subr.bf16.mxu0 0
  %1304 = vmatpush1.bf16.msra.mxu0 %v399
  %1305 = vmatprep.subr.bf16.mxu0 0
  %1306 = vmatpush1.bf16.msra.mxu0 %v400
  %1307 = vmatprep.subr.bf16.mxu0 0
  %1308 = vmatpush1.bf16.msra.mxu0 %v401
  %1309 = vmatprep.subr.bf16.mxu0 0
  %1310 = vmatpush1.bf16.msra.mxu0 %v402
  %1311 = vmatprep.subr.bf16.mxu0 0
  %1312 = vmatpush1.bf16.msra.mxu0 %v403
  %1313 = vmatprep.subr.bf16.mxu0 0
  %1314 = vmatpush1.bf16.msra.mxu0 %v404
  %1315 = vmatprep.subr.bf16.mxu0 0
  %1316 = vmatpush1.bf16.msra.mxu0 %v405
  %1317 = vmatprep.subr.bf16.mxu0 0
  %1318 = vmatpush1.bf16.msra.mxu0 %v406
  %1319 = vmatprep.mubr.bf16.mxu0 %v1158
  %1320 = vmatmul.mubr.bf16.gmra.mrb[0].mxu0 %v1157
  %v1321 = vpop.f32.mrb[0].mxu0
  %v1322 = vadd.f32 %v1250, %v1321
  %v1323 = vpop.f32.mrb[0].mxu0
  %v1324 = vpop.f32.mrb[0].mxu0
  %v1325 = vadd.f32 %v1253, %v1324
  %v1326 = vpop.f32.mrb[0].mxu0
  %1327 = vmatprep.mubr.bf16.mxu0 %v1163
  %1328 = vmatmul.mubr.bf16.gmra.mrb[0].mxu0 %v1162
  %v1329 = vpop.f32.mrb[0].mxu0
  %v1330 = vadd.f32 %v1258, %v1329
  %v1331 = vpop.f32.mrb[0].mxu0
  %v1332 = vpop.f32.mrb[0].mxu0
  %v1333 = vadd.f32 %v1261, %v1332
  %v1334 = vpop.f32.mrb[0].mxu0
  %1335 = vmatprep.mubr.bf16.mxu0 %v1168
  %1336 = vmatmul.mubr.bf16.gmra.mrb[0].mxu0 %v1167
  %v1337 = vpop.f32.mrb[0].mxu0
  %v1338 = vadd.f32 %v1266, %v1337
  %v1339 = vpop.f32.mrb[0].mxu0
  %v1340 = vpop.f32.mrb[0].mxu0
  %v1341 = vadd.f32 %v1269, %v1340
  %v1342 = vpop.f32.mrb[0].mxu0
  %1343 = vmatprep.mubr.bf16.mxu0 %v1173
  %1344 = vmatmul.mubr.bf16.gmra.mrb[0].mxu0 %v1172
  %v1345 = vpop.f32.mrb[0].mxu0
  %v1346 = vadd.f32 %v1274, %v1345
  %v1347 = vpop.f32.mrb[0].mxu0
  %v1348 = vpop.f32.mrb[0].mxu0
  %v1349 = vadd.f32 %v1277, %v1348
  %v1350 = vpop.f32.mrb[0].mxu0
  %1351 = vmatprep.mubr.bf16.mxu0 %v1178
  %1352 = vmatmul.mubr.bf16.gmra.mrb[0].mxu0 %v1177
  %v1353 = vpop.f32.mrb[0].mxu0
  %v1354 = vadd.f32 %v1282, %v1353
  %v1355 = vpop.f32.mrb[0].mxu0
  %v1356 = vpop.f32.mrb[0].mxu0
  %v1357 = vpop.f32.mrb[0].mxu0
  %1358 = vdwg.mxu0
  %1359 = vmatprep.subr.bf16.mxu0 0
  %1360 = vmatpush1.bf16.msra.mxu0 %v407
  %1361 = vmatprep.subr.bf16.mxu0 0
  %1362 = vmatpush1.bf16.msra.mxu0 %v408
  %1363 = vmatprep.subr.bf16.mxu0 0
  %1364 = vmatpush1.bf16.msra.mxu0 %v409
  %1365 = vmatprep.subr.bf16.mxu0 0
  %1366 = vmatpush1.bf16.msra.mxu0 %v410
  %1367 = vmatprep.subr.bf16.mxu0 0
  %1368 = vmatpush1.bf16.msra.mxu0 0
  %1369 = vmatprep.subr.bf16.mxu0 0
  %1370 = vmatpush1.bf16.msra.mxu0 0
  %1371 = vmatprep.subr.bf16.mxu0 0
  %1372 = vmatpush1.bf16.msra.mxu0 0
  %1373 = vmatprep.subr.bf16.mxu0 0
  %1374 = vmatpush1.bf16.msra.mxu0 0
  %1375 = vmatprep.subr.bf16.mxu0 0
  %1376 = vmatpush1.bf16.msra.mxu0 0
  %1377 = vmatprep.subr.bf16.mxu0 0
  %1378 = vmatpush1.bf16.msra.mxu0 0
  %1379 = vmatprep.subr.bf16.mxu0 0
  %1380 = vmatpush1.bf16.msra.mxu0 0
  %1381 = vmatprep.subr.bf16.mxu0 0
  %1382 = vmatpush1.bf16.msra.mxu0 0
  %1383 = vmatprep.subr.bf16.mxu0 0
  %1384 = vmatpush1.bf16.msra.mxu0 0
  %1385 = vmatprep.subr.bf16.mxu0 0
  %1386 = vmatpush1.bf16.msra.mxu0 0
  %1387 = vmatprep.subr.bf16.mxu0 0
  %1388 = vmatpush1.bf16.msra.mxu0 0
  %1389 = vmatprep.subr.bf16.mxu0 0
  %1390 = vmatpush1.bf16.msra.mxu0 0
  %1391 = vmatprep.mubr.bf16.mxu0 0
  %1392 = vmatmul.mubr.bf16.gmra.mrb[0].mxu0 %v1201
  %v1393 = vpop.f32.mrb[0].mxu0
  %v1394 = vadd.f32 %v1322, %v1393
  %v1395 = vpop.f32.mrb[0].mxu0
  %v1396 = vpop.f32.mrb[0].mxu0
  %v1397 = vadd.f32 %v1325, %v1396
  %v1398 = vpop.f32.mrb[0].mxu0
  %1399 = vmatprep.mubr.bf16.mxu0 0
  %1400 = vmatmul.mubr.bf16.gmra.mrb[0].mxu0 %v1204
  %v1401 = vpop.f32.mrb[0].mxu0
  %v1402 = vadd.f32 %v1330, %v1401
  %v1403 = vpop.f32.mrb[0].mxu0
  %v1404 = vpop.f32.mrb[0].mxu0
  %v1405 = vadd.f32 %v1333, %v1404
  %v1406 = vpop.f32.mrb[0].mxu0
  %1407 = vmatprep.mubr.bf16.mxu0 0
  %1408 = vmatmul.mubr.bf16.gmra.mrb[0].mxu0 %v1207
  %v1409 = vpop.f32.mrb[0].mxu0
  %v1410 = vadd.f32 %v1338, %v1409
  %v1411 = vpop.f32.mrb[0].mxu0
  %v1412 = vpop.f32.mrb[0].mxu0
  %v1413 = vadd.f32 %v1341, %v1412
  %v1414 = vpop.f32.mrb[0].mxu0
  %1415 = vmatprep.mubr.bf16.mxu0 0
  %1416 = vmatmul.mubr.bf16.gmra.mrb[0].mxu0 %v1210
  %v1417 = vpop.f32.mrb[0].mxu0
  %v1418 = vadd.f32 %v1346, %v1417
  %v1419 = vpop.f32.mrb[0].mxu0
  %v1420 = vpop.f32.mrb[0].mxu0
  %v1421 = vadd.f32 %v1349, %v1420
  %v1422 = vpop.f32.mrb[0].mxu0
  %1423 = vmatprep.mubr.bf16.mxu0 0
  %1424 = vmatmul.mubr.bf16.gmra.mrb[0].mxu0 %v1213
  %v1425 = vpop.f32.mrb[0].mxu0
  %v1426 = vadd.f32 %v1354, %v1425
  %v1427 = vpop.f32.mrb[0].mxu0
  %v1428 = vpop.f32.mrb[0].mxu0
  %v1429 = vpop.f32.mrb[0].mxu0
  %1430 = vdwg.mxu0
  %s1431 = scalar_lea.vmem %s0, 540
  %v1432 = vld [vmem:[%s1431] sm:$0xff]
  %v1433 = vld [vmem:[%s1431 + $0x8] sm:$0xff]
  %v1434 = vld [vmem:[%s1431 + $0x10] sm:$0xf]
  %v1435 = vld [vmem:[%s1431 + $0x14] sm:$0xff]
  %v1436 = vld [vmem:[%s1431 + $0x1c] sm:$0xff]
  %v1437 = vld [vmem:[%s1431 + $0x24] sm:$0xf]
  %v1438 = vld [vmem:[%s1431 + $0x28] sm:$0xff]
  %v1439 = vld [vmem:[%s1431 + $0x30] sm:$0xff]
  %v1440 = vld [vmem:[%s1431 + $0x38] sm:$0xf]
  %v1441 = vld [vmem:[%s1431 + $0x3c] sm:$0xff]
  %v1442 = vld [vmem:[%s1431 + $0x44] sm:$0xff]
  %v1443 = vld [vmem:[%s1431 + $0x4c] sm:$0xf]
  %v1444 = vld [vmem:[%s1431 + $0x50] sm:$0xff]
  %v1445 = vld [vmem:[%s1431 + $0x58] sm:$0xff]
  %v1446 = vld [vmem:[%s1431 + $0x60] sm:$0xf]
  %v1447 = vld [vmem:[%s1431 + $0x64] sm:$0xff]
  %v1448 = vld [vmem:[%s1431 + $0x6c] sm:$0xff]
  %v1449 = vld [vmem:[%s1431 + $0x74] sm:$0xf]
  %v1450 = vld [vmem:[%s1431 + $0x78] sm:$0xff]
  %v1451 = vld [vmem:[%s1431 + $0x80] sm:$0xff]
  %v1452 = vld [vmem:[%s1431 + $0x88] sm:$0xf]
  %v1453 = vld [vmem:[%s1431 + $0x8c] sm:$0xff]
  %v1454 = vld [vmem:[%s1431 + $0x94] sm:$0xff]
  %v1455 = vld [vmem:[%s1431 + $0x9c] sm:$0xf]
  %v1456 = vld [vmem:[%s1431 + $0xa0] sm:$0xff]
  %v1457 = vld [vmem:[%s1431 + $0xa8] sm:$0xff]
  %v1458 = vld [vmem:[%s1431 + $0xb0] sm:$0xf]
  %v1486 = vunpack.c.l.b16 %v1432
  %v1487 = vunpack.c.h.b16 %v1432
  %v1488 = vunpack.c.l.b16 %v1433
  %v1489 = vunpack.c.h.b16 %v1433
  %v1490 = vunpack.c.l.b16 %v1434
  %v1491 = vunpack.c.l.b16 %v1435
  %v1492 = vunpack.c.h.b16 %v1435
  %v1493 = vunpack.c.l.b16 %v1436
  %v1494 = vunpack.c.h.b16 %v1436
  %v1495 = vunpack.c.l.b16 %v1437
  %v1496 = vunpack.c.l.b16 %v1438
  %v1497 = vunpack.c.h.b16 %v1438
  %v1498 = vunpack.c.l.b16 %v1439
  %v1499 = vunpack.c.h.b16 %v1439
  %v1500 = vunpack.c.l.b16 %v1440
  %v1501 = vunpack.c.l.b16 %v1441
  %v1502 = vunpack.c.h.b16 %v1441
  %v1503 = vunpack.c.l.b16 %v1442
  %v1504 = vunpack.c.h.b16 %v1442
  %v1505 = vunpack.c.l.b16 %v1443
  %v1506 = vunpack.c.l.b16 %v1444
  %v1507 = vunpack.c.h.b16 %v1444
  %v1508 = vunpack.c.l.b16 %v1445
  %v1509 = vunpack.c.h.b16 %v1445
  %v1510 = vunpack.c.l.b16 %v1446
  %v1511 = vunpack.c.l.b16 %v1447
  %v1512 = vunpack.c.h.b16 %v1447
  %v1513 = vunpack.c.l.b16 %v1448
  %v1514 = vunpack.c.h.b16 %v1448
  %v1515 = vunpack.c.l.b16 %v1449
  %v1516 = vunpack.c.l.b16 %v1450
  %v1517 = vunpack.c.h.b16 %v1450
  %v1518 = vunpack.c.l.b16 %v1451
  %v1519 = vunpack.c.h.b16 %v1451
  %v1520 = vunpack.c.l.b16 %v1452
  %v1521 = vunpack.c.l.b16 %v1453
  %v1522 = vunpack.c.h.b16 %v1453
  %v1523 = vunpack.c.l.b16 %v1454
  %v1524 = vunpack.c.h.b16 %v1454
  %v1525 = vunpack.c.l.b16 %v1455
  %v1526 = vunpack.c.l.b16 %v1456
  %v1527 = vunpack.c.h.b16 %v1456
  %v1528 = vunpack.c.l.b16 %v1457
  %v1529 = vunpack.c.h.b16 %v1457
  %v1530 = vunpack.c.l.b16 %v1458
  %v1531 = vpack.c.b16 %v1491, %v1486
  %v1532 = vpack.c.b16 %v1492, %v1487
  %v1533 = vpack.c.b16 %v1493, %v1488
  %v1534 = vpack.c.b16 %v1494, %v1489
  %v1535 = vpack.c.b16 %v1495, %v1490
  %v1536 = vpack.c.b16 %v1501, %v1496
  %v1537 = vpack.c.b16 %v1502, %v1497
  %v1538 = vpack.c.b16 %v1503, %v1498
  %v1539 = vpack.c.b16 %v1504, %v1499
  %v1540 = vpack.c.b16 %v1505, %v1500
  %v1541 = vpack.c.b16 %v1511, %v1506
  %v1542 = vpack.c.b16 %v1512, %v1507
  %v1543 = vpack.c.b16 %v1513, %v1508
  %v1544 = vpack.c.b16 %v1514, %v1509
  %v1545 = vpack.c.b16 %v1515, %v1510
  %v1546 = vpack.c.b16 %v1521, %v1516
  %v1547 = vpack.c.b16 %v1522, %v1517
  %v1548 = vpack.c.b16 %v1523, %v1518
  %v1549 = vpack.c.b16 %v1524, %v1519
  %v1550 = vpack.c.b16 %v1525, %v1520
  %v1551 = vpack.c.b16 %v1526, %v1526
  %v1552 = vpack.c.b16 %v1527, %v1527
  %v1553 = vpack.c.b16 %v1528, %v1528
  %v1554 = vpack.c.b16 %v1529, %v1529
  %v1555 = vpack.c.b16 %v1530, %v1530
  %v1577 = vsel %vm447, %v1535, 0
  %v1580 = vsel %vm447, %v1540, 0
  %v1583 = vsel %vm447, %v1545, 0
  %v1586 = vsel %vm447, %v1550, 0
  %v1589 = vsel %vm447, %v1555, 0
  %1591 = vmatprep.subr.bf16.mxu0 0
  %1592 = vmatpush1.bf16.msra.mxu0 %v375
  %1593 = vmatprep.subr.bf16.mxu0 0
  %1594 = vmatpush1.bf16.msra.mxu0 %v376
  %1595 = vmatprep.subr.bf16.mxu0 0
  %1596 = vmatpush1.bf16.msra.mxu0 %v377
  %1597 = vmatprep.subr.bf16.mxu0 0
  %1598 = vmatpush1.bf16.msra.mxu0 %v378
  %1599 = vmatprep.subr.bf16.mxu0 0
  %1600 = vmatpush1.bf16.msra.mxu0 %v379
  %1601 = vmatprep.subr.bf16.mxu0 0
  %1602 = vmatpush1.bf16.msra.mxu0 %v380
  %1603 = vmatprep.subr.bf16.mxu0 0
  %1604 = vmatpush1.bf16.msra.mxu0 %v381
  %1605 = vmatprep.subr.bf16.mxu0 0
  %1606 = vmatpush1.bf16.msra.mxu0 %v382
  %1607 = vmatprep.subr.bf16.mxu0 0
  %1608 = vmatpush1.bf16.msra.mxu0 %v383
  %1609 = vmatprep.subr.bf16.mxu0 0
  %1610 = vmatpush1.bf16.msra.mxu0 %v384
  %1611 = vmatprep.subr.bf16.mxu0 0
  %1612 = vmatpush1.bf16.msra.mxu0 %v385
  %1613 = vmatprep.subr.bf16.mxu0 0
  %1614 = vmatpush1.bf16.msra.mxu0 %v386
  %1615 = vmatprep.subr.bf16.mxu0 0
  %1616 = vmatpush1.bf16.msra.mxu0 %v387
  %1617 = vmatprep.subr.bf16.mxu0 0
  %1618 = vmatpush1.bf16.msra.mxu0 %v388
  %1619 = vmatprep.subr.bf16.mxu0 0
  %1620 = vmatpush1.bf16.msra.mxu0 %v389
  %1621 = vmatprep.subr.bf16.mxu0 0
  %1622 = vmatpush1.bf16.msra.mxu0 %v390
  %1623 = vmatprep.mubr.bf16.mxu0 %v1532
  %1624 = vmatmul.mubr.bf16.gmra.mrb[0].mxu0 %v1531
  %v1625 = vpop.f32.mrb[0].mxu0
  %v1626 = vadd.f32 0.0, %v1625
  %v1627 = vpop.f32.mrb[0].mxu0
  %v1628 = vpop.f32.mrb[0].mxu0
  %v1629 = vadd.f32 0.0, %v1628
  %v1630 = vpop.f32.mrb[0].mxu0
  %1631 = vmatprep.mubr.bf16.mxu0 %v1537
  %1632 = vmatmul.mubr.bf16.gmra.mrb[0].mxu0 %v1536
  %v1633 = vpop.f32.mrb[0].mxu0
  %v1634 = vadd.f32 0.0, %v1633
  %v1635 = vpop.f32.mrb[0].mxu0
  %v1636 = vpop.f32.mrb[0].mxu0
  %v1637 = vadd.f32 0.0, %v1636
  %v1638 = vpop.f32.mrb[0].mxu0
  %1639 = vmatprep.mubr.bf16.mxu0 %v1542
  %1640 = vmatmul.mubr.bf16.gmra.mrb[0].mxu0 %v1541
  %v1641 = vpop.f32.mrb[0].mxu0
  %v1642 = vadd.f32 0.0, %v1641
  %v1643 = vpop.f32.mrb[0].mxu0
  %v1644 = vpop.f32.mrb[0].mxu0
  %v1645 = vadd.f32 0.0, %v1644
  %v1646 = vpop.f32.mrb[0].mxu0
  %1647 = vmatprep.mubr.bf16.mxu0 %v1547
  %1648 = vmatmul.mubr.bf16.gmra.mrb[0].mxu0 %v1546
  %v1649 = vpop.f32.mrb[0].mxu0
  %v1650 = vadd.f32 0.0, %v1649
  %v1651 = vpop.f32.mrb[0].mxu0
  %v1652 = vpop.f32.mrb[0].mxu0
  %v1653 = vadd.f32 0.0, %v1652
  %v1654 = vpop.f32.mrb[0].mxu0
  %1655 = vmatprep.mubr.bf16.mxu0 %v1552
  %1656 = vmatmul.mubr.bf16.gmra.mrb[0].mxu0 %v1551
  %v1657 = vpop.f32.mrb[0].mxu0
  %v1658 = vadd.f32 0.0, %v1657
  %v1659 = vpop.f32.mrb[0].mxu0
  %v1660 = vpop.f32.mrb[0].mxu0
  %v1661 = vpop.f32.mrb[0].mxu0
  %1662 = vdwg.mxu0
  %1663 = vmatprep.subr.bf16.mxu0 0
  %1664 = vmatpush1.bf16.msra.mxu0 %v391
  %1665 = vmatprep.subr.bf16.mxu0 0
  %1666 = vmatpush1.bf16.msra.mxu0 %v392
  %1667 = vmatprep.subr.bf16.mxu0 0
  %1668 = vmatpush1.bf16.msra.mxu0 %v393
  %1669 = vmatprep.subr.bf16.mxu0 0
  %1670 = vmatpush1.bf16.msra.mxu0 %v394
  %1671 = vmatprep.subr.bf16.mxu0 0
  %1672 = vmatpush1.bf16.msra.mxu0 %v395
  %1673 = vmatprep.subr.bf16.mxu0 0
  %1674 = vmatpush1.bf16.msra.mxu0 %v396
  %1675 = vmatprep.subr.bf16.mxu0 0
  %1676 = vmatpush1.bf16.msra.mxu0 %v397
  %1677 = vmatprep.subr.bf16.mxu0 0
  %1678 = vmatpush1.bf16.msra.mxu0 %v398
  %1679 = vmatprep.subr.bf16.mxu0 0
  %1680 = vmatpush1.bf16.msra.mxu0 %v399
  %1681 = vmatprep.subr.bf16.mxu0 0
  %1682 = vmatpush1.bf16.msra.mxu0 %v400
  %1683 = vmatprep.subr.bf16.mxu0 0
  %1684 = vmatpush1.bf16.msra.mxu0 %v401
  %1685 = vmatprep.subr.bf16.mxu0 0
  %1686 = vmatpush1.bf16.msra.mxu0 %v402
  %1687 = vmatprep.subr.bf16.mxu0 0
  %1688 = vmatpush1.bf16.msra.mxu0 %v403
  %1689 = vmatprep.subr.bf16.mxu0 0
  %1690 = vmatpush1.bf16.msra.mxu0 %v404
  %1691 = vmatprep.subr.bf16.mxu0 0
  %1692 = vmatpush1.bf16.msra.mxu0 %v405
  %1693 = vmatprep.subr.bf16.mxu0 0
  %1694 = vmatpush1.bf16.msra.mxu0 %v406
  %1695 = vmatprep.mubr.bf16.mxu0 %v1534
  %1696 = vmatmul.mubr.bf16.gmra.mrb[0].mxu0 %v1533
  %v1697 = vpop.f32.mrb[0].mxu0
  %v1698 = vadd.f32 %v1626, %v1697
  %v1699 = vpop.f32.mrb[0].mxu0
  %v1700 = vpop.f32.mrb[0].mxu0
  %v1701 = vadd.f32 %v1629, %v1700
  %v1702 = vpop.f32.mrb[0].mxu0
  %1703 = vmatprep.mubr.bf16.mxu0 %v1539
  %1704 = vmatmul.mubr.bf16.gmra.mrb[0].mxu0 %v1538
  %v1705 = vpop.f32.mrb[0].mxu0
  %v1706 = vadd.f32 %v1634, %v1705
  %v1707 = vpop.f32.mrb[0].mxu0
  %v1708 = vpop.f32.mrb[0].mxu0
  %v1709 = vadd.f32 %v1637, %v1708
  %v1710 = vpop.f32.mrb[0].mxu0
  %1711 = vmatprep.mubr.bf16.mxu0 %v1544
  %1712 = vmatmul.mubr.bf16.gmra.mrb[0].mxu0 %v1543
  %v1713 = vpop.f32.mrb[0].mxu0
  %v1714 = vadd.f32 %v1642, %v1713
  %v1715 = vpop.f32.mrb[0].mxu0
  %v1716 = vpop.f32.mrb[0].mxu0
  %v1717 = vadd.f32 %v1645, %v1716
  %v1718 = vpop.f32.mrb[0].mxu0
  %1719 = vmatprep.mubr.bf16.mxu0 %v1549
  %1720 = vmatmul.mubr.bf16.gmra.mrb[0].mxu0 %v1548
  %v1721 = vpop.f32.mrb[0].mxu0
  %v1722 = vadd.f32 %v1650, %v1721
  %v1723 = vpop.f32.mrb[0].mxu0
  %v1724 = vpop.f32.mrb[0].mxu0
  %v1725 = vadd.f32 %v1653, %v1724
  %v1726 = vpop.f32.mrb[0].mxu0
  %1727 = vmatprep.mubr.bf16.mxu0 %v1554
  %1728 = vmatmul.mubr.bf16.gmra.mrb[0].mxu0 %v1553
  %v1729 = vpop.f32.mrb[0].mxu0
  %v1730 = vadd.f32 %v1658, %v1729
  %v1731 = vpop.f32.mrb[0].mxu0
  %v1732 = vpop.f32.mrb[0].mxu0
  %v1733 = vpop.f32.mrb[0].mxu0
  %1734 = vdwg.mxu0
  %1735 = vmatprep.subr.bf16.mxu0 0
  %1736 = vmatpush1.bf16.msra.mxu0 %v407
  %1737 = vmatprep.subr.bf16.mxu0 0
  %1738 = vmatpush1.bf16.msra.mxu0 %v408
  %1739 = vmatprep.subr.bf16.mxu0 0
  %1740 = vmatpush1.bf16.msra.mxu0 %v409
  %1741 = vmatprep.subr.bf16.mxu0 0
  %1742 = vmatpush1.bf16.msra.mxu0 %v410
  %1743 = vmatprep.subr.bf16.mxu0 0
  %1744 = vmatpush1.bf16.msra.mxu0 0
  %1745 = vmatprep.subr.bf16.mxu0 0
  %1746 = vmatpush1.bf16.msra.mxu0 0
  %1747 = vmatprep.subr.bf16.mxu0 0
  %1748 = vmatpush1.bf16.msra.mxu0 0
  %1749 = vmatprep.subr.bf16.mxu0 0
  %1750 = vmatpush1.bf16.msra.mxu0 0
  %1751 = vmatprep.subr.bf16.mxu0 0
  %1752 = vmatpush1.bf16.msra.mxu0 0
  %1753 = vmatprep.subr.bf16.mxu0 0
  %1754 = vmatpush1.bf16.msra.mxu0 0
  %1755 = vmatprep.subr.bf16.mxu0 0
  %1756 = vmatpush1.bf16.msra.mxu0 0
  %1757 = vmatprep.subr.bf16.mxu0 0
  %1758 = vmatpush1.bf16.msra.mxu0 0
  %1759 = vmatprep.subr.bf16.mxu0 0
  %1760 = vmatpush1.bf16.msra.mxu0 0
  %1761 = vmatprep.subr.bf16.mxu0 0
  %1762 = vmatpush1.bf16.msra.mxu0 0
  %1763 = vmatprep.subr.bf16.mxu0 0
  %1764 = vmatpush1.bf16.msra.mxu0 0
  %1765 = vmatprep.subr.bf16.mxu0 0
  %1766 = vmatpush1.bf16.msra.mxu0 0
  %1767 = vmatprep.mubr.bf16.mxu0 0
  %1768 = vmatmul.mubr.bf16.gmra.mrb[0].mxu0 %v1577
  %v1769 = vpop.f32.mrb[0].mxu0
  %v1770 = vadd.f32 %v1698, %v1769
  %v1771 = vpop.f32.mrb[0].mxu0
  %v1772 = vpop.f32.mrb[0].mxu0
  %v1773 = vadd.f32 %v1701, %v1772
  %v1774 = vpop.f32.mrb[0].mxu0
  %1775 = vmatprep.mubr.bf16.mxu0 0
  %1776 = vmatmul.mubr.bf16.gmra.mrb[0].mxu0 %v1580
  %v1777 = vpop.f32.mrb[0].mxu0
  %v1778 = vadd.f32 %v1706, %v1777
  %v1779 = vpop.f32.mrb[0].mxu0
  %v1780 = vpop.f32.mrb[0].mxu0
  %v1781 = vadd.f32 %v1709, %v1780
  %v1782 = vpop.f32.mrb[0].mxu0
  %1783 = vmatprep.mubr.bf16.mxu0 0
  %1784 = vmatmul.mubr.bf16.gmra.mrb[0].mxu0 %v1583
  %v1785 = vpop.f32.mrb[0].mxu0
  %v1786 = vadd.f32 %v1714, %v1785
  %v1787 = vpop.f32.mrb[0].mxu0
  %v1788 = vpop.f32.mrb[0].mxu0
  %v1789 = vadd.f32 %v1717, %v1788
  %v1790 = vpop.f32.mrb[0].mxu0
  %1791 = vmatprep.mubr.bf16.mxu0 0
  %1792 = vmatmul.mubr.bf16.gmra.mrb[0].mxu0 %v1586
  %v1793 = vpop.f32.mrb[0].mxu0
  %v1794 = vadd.f32 %v1722, %v1793
  %v1795 = vpop.f32.mrb[0].mxu0
  %v1796 = vpop.f32.mrb[0].mxu0
  %v1797 = vadd.f32 %v1725, %v1796
  %v1798 = vpop.f32.mrb[0].mxu0
  %1799 = vmatprep.mubr.bf16.mxu0 0
  %1800 = vmatmul.mubr.bf16.gmra.mrb[0].mxu0 %v1589
  %v1801 = vpop.f32.mrb[0].mxu0
  %v1802 = vadd.f32 %v1730, %v1801
  %v1803 = vpop.f32.mrb[0].mxu0
  %v1804 = vpop.f32.mrb[0].mxu0
  %v1805 = vpop.f32.mrb[0].mxu0
  %1806 = vdwg.mxu0
  %v1807 = vmax.f32 %v642, %v1018
  %v1808 = vmax.f32 %v645, %v1021
  %v1809 = vmax.f32 %v650, %v1026
  %v1810 = vmax.f32 %v653, %v1029
  %v1811 = vmax.f32 %v658, %v1034
  %v1812 = vmax.f32 %v661, %v1037
  %v1813 = vmax.f32 %v666, %v1042
  %v1814 = vmax.f32 %v669, %v1045
  %v1815 = vmax.f32 %v674, %v1050
  %v1816 = vmax.f32 %v1394, %v1770
  %v1817 = vmax.f32 %v1397, %v1773
  %v1818 = vmax.f32 %v1402, %v1778
  %v1819 = vmax.f32 %v1405, %v1781
  %v1820 = vmax.f32 %v1410, %v1786
  %v1821 = vmax.f32 %v1413, %v1789
  %v1822 = vmax.f32 %v1418, %v1794
  %v1823 = vmax.f32 %v1421, %v1797
  %v1824 = vmax.f32 %v1426, %v1802
  %v1825 = vmax.f32 %v1807, %v1816
  %v1826 = vmax.f32 %v1808, %v1817
  %v1827 = vmax.f32 %v1809, %v1818
  %v1828 = vmax.f32 %v1810, %v1819
  %v1829 = vmax.f32 %v1811, %v1820
  %v1830 = vmax.f32 %v1812, %v1821
  %v1831 = vmax.f32 %v1813, %v1822
  %v1832 = vmax.f32 %v1814, %v1823
  %v1833 = vmax.f32 %v1815, %v1824
  %v1834 = vld [vmem:[%s2] sm:$0x1]
  %v1836 = vlaneseq
  %v1837 = vshrl.u32 %v1836, 7
  %v1838 = vsub.s32 0, %v1837
  %v1839 = vrot.slane %v1834, %v1838
  %v1841 = vadd.f32 %v1825, %v1839
  %v1842 = vadd.f32 %v1826, %v1839
  %v1843 = vadd.f32 %v1827, %v1839
  %v1844 = vadd.f32 %v1828, %v1839
  %v1845 = vadd.f32 %v1829, %v1839
  %v1846 = vadd.f32 %v1830, %v1839
  %v1847 = vadd.f32 %v1831, %v1839
  %v1848 = vadd.f32 %v1832, %v1839
  %v1849 = vadd.f32 %v1833, %v1839
  %v1850 = vmax.f32 %v1841, 0.0
  %v1851 = vmax.f32 %v1842, 0.0
  %v1852 = vmax.f32 %v1843, 0.0
  %v1853 = vmax.f32 %v1844, 0.0
  %v1854 = vmax.f32 %v1845, 0.0
  %v1855 = vmax.f32 %v1846, 0.0
  %v1856 = vmax.f32 %v1847, 0.0
  %v1857 = vmax.f32 %v1848, 0.0
  %v1858 = vmax.f32 %v1849, 0.0
  %v1859 = vpack.c.bf16 %v1851, %v1850
  %v1860 = vpack.c.bf16 %v1853, %v1852
  %v1861 = vpack.c.bf16 %v1855, %v1854
  %v1862 = vpack.c.bf16 %v1857, %v1856
  %v1863 = vpack.c.bf16 %v1858, %v1858
  %v1869 = vunpack.c.l.b16 %v1859
  %v1870 = vunpack.c.h.b16 %v1859
  %v1871 = vunpack.c.l.b16 %v1860
  %v1872 = vunpack.c.h.b16 %v1860
  %v1873 = vunpack.c.l.b16 %v1861
  %v1874 = vunpack.c.h.b16 %v1861
  %v1875 = vunpack.c.l.b16 %v1862
  %v1876 = vunpack.c.h.b16 %v1862
  %v1877 = vunpack.c.l.b16 %v1863
  %v1878 = vpack.c.b16 %v1869, %v1869
  %v1879 = vpack.c.b16 %v1870, %v1870
  %v1880 = vpack.c.b16 %v1871, %v1871
  %v1881 = vpack.c.b16 %v1872, %v1872
  %v1882 = vpack.c.b16 %v1873, %v1873
  %v1883 = vpack.c.b16 %v1874, %v1874
  %v1884 = vpack.c.b16 %v1875, %v1875
  %v1885 = vpack.c.b16 %v1876, %v1876
  %v1886 = vpack.c.b16 %v1877, %v1877
  %1896 = vst [vmem:[%s3] sm:$0xf] %v1878
  %1897 = vst [vmem:[%s3 + $0x4] sm:$0xf] %v1879
  %1898 = vst [vmem:[%s3 + $0x8] sm:$0xf] %v1880
  %1899 = vst [vmem:[%s3 + $0xc] sm:$0xf] %v1881
  %1900 = vst [vmem:[%s3 + $0x10] sm:$0xf] %v1882
  %1901 = vst [vmem:[%s3 + $0x14] sm:$0xf] %v1883
  %1902 = vst [vmem:[%s3 + $0x18] sm:$0xf] %v1884
  %1903 = vst [vmem:[%s3 + $0x1c] sm:$0xf] %v1885
  %1904 = vst [vmem:[%s3 + $0x20] sm:$0xf] %v1886
  // Predicated region
  $region14: #{net_forward.5} parent=0 // pred_check
    _
  $region15: #{net_forward.5} parent=0 // pred_check_branch
    %1906 = sbr.rel (0) target = $region17
  $region16: #{net_forward.5} parent=0 // pred_region
    _
  $region17: #{net_forward.5} parent=0 // pred_fallthru
    _
  // Predicated region
  $region18: #{net_forward.5} parent=0 // pred_check
    _
  $region19: #{net_forward.5} parent=0 // pred_check_branch
    %1908 = sbr.rel (0) target = $region21
  $region20: #{net_forward.5} parent=0 // pred_region
    _
  $region21: #{net_forward.5} parent=0 // pred_fallthru
    _

// kernel: net_forward.6
$region0: #{net_forward.6}
  #allocation0 [shape = 'u32[]', space=smem, size = 0x4, offset = 0x4, fixed_abs, tag = 'smem constant byte address 0x4 - core index']
  #allocation1 [shape = 'u32[144,128]{1,0:T(1,128)}', space=vmem, size = 0x12000, scoped, tag = 'internal scratch']
  %s0 = inlined_call_operand.vmem [shape: bf16[2,2,8,1152], index: 0, kind: input, shape index: {}]
  %s1 = inlined_call_operand.vmem [shape: bf16[1152,256], index: 1, kind: input, shape index: {}]
  %s2 = inlined_call_operand.vmem [shape: f32[1,256], index: 2, kind: input, shape index: {}]
  %s3 = inlined_call_operand.vmem [shape: bf16[8,256], index: 3, kind: output, shape index: {}]
  %s4 = sld [smem:[#allocation0]]
  $region22: #{net_forward.6} parent=0
    _
  %s6 = ssub.s32 1, %s4
  %s7 = scalar_select 0, %s6, %s4
  // Predicated region
  $region2: #{net_forward.6} parent=0 // pred_check
    _
  $region3: #{net_forward.6} parent=0 // pred_check_branch
    %9 = sbr.rel (0) target = $region5
  $region4: #{net_forward.6} parent=0 // pred_region
    _
  $region5: #{net_forward.6} parent=0 // pred_fallthru
    _
  // Predicated region
  $region6: #{net_forward.6} parent=0 // pred_check
    _
  $region7: #{net_forward.6} parent=0 // pred_check_branch
    %11 = sbr.rel (0) target = $region9
  $region8: #{net_forward.6} parent=0 // pred_region
    _
  $region9: #{net_forward.6} parent=0 // pred_fallthru
    _
  // Predicated region
  $region10: #{net_forward.6} parent=0 // pred_check
    _
  $region11: #{net_forward.6} parent=0 // pred_check_branch
    %13 = sbr.rel (0) target = $region13
  $region12: #{net_forward.6} parent=0 // pred_region
    _
  $region13: #{net_forward.6} parent=0 // pred_fallthru
    _
  %v15 = vld [vmem:[%s1] sm:$0xff]
  %v16 = vld [vmem:[%s1 + $0x8] sm:$0xff]
  %v17 = vld [vmem:[%s1 + $0x10] sm:$0xff]
  %v18 = vld [vmem:[%s1 + $0x18] sm:$0xff]
  %v19 = vld [vmem:[%s1 + $0x20] sm:$0xff]
  %v20 = vld [vmem:[%s1 + $0x28] sm:$0xff]
  %v21 = vld [vmem:[%s1 + $0x30] sm:$0xff]
  %v22 = vld [vmem:[%s1 + $0x38] sm:$0xff]
  %v23 = vld [vmem:[%s1 + $0x40] sm:$0xff]
  %v24 = vld [vmem:[%s1 + $0x48] sm:$0xff]
  %v25 = vld [vmem:[%s1 + $0x50] sm:$0xff]
  %v26 = vld [vmem:[%s1 + $0x58] sm:$0xff]
  %v27 = vld [vmem:[%s1 + $0x60] sm:$0xff]
  %v28 = vld [vmem:[%s1 + $0x68] sm:$0xff]
  %v29 = vld [vmem:[%s1 + $0x70] sm:$0xff]
  %v30 = vld [vmem:[%s1 + $0x78] sm:$0xff]
  %v31 = vld [vmem:[%s1 + $0x80] sm:$0xff]
  %v32 = vld [vmem:[%s1 + $0x88] sm:$0xff]
  %v33 = vld [vmem:[%s1 + $0x90] sm:$0xff]
  %v34 = vld [vmem:[%s1 + $0x98] sm:$0xff]
  %v35 = vld [vmem:[%s1 + $0xa0] sm:$0xff]
  %v36 = vld [vmem:[%s1 + $0xa8] sm:$0xff]
  %v37 = vld [vmem:[%s1 + $0xb0] sm:$0xff]
  %v38 = vld [vmem:[%s1 + $0xb8] sm:$0xff]
  %v39 = vld [vmem:[%s1 + $0xc0] sm:$0xff]
  %v40 = vld [vmem:[%s1 + $0xc8] sm:$0xff]
  %v41 = vld [vmem:[%s1 + $0xd0] sm:$0xff]
  %v42 = vld [vmem:[%s1 + $0xd8] sm:$0xff]
  %v43 = vld [vmem:[%s1 + $0xe0] sm:$0xff]
  %v44 = vld [vmem:[%s1 + $0xe8] sm:$0xff]
  %v45 = vld [vmem:[%s1 + $0xf0] sm:$0xff]
  %v46 = vld [vmem:[%s1 + $0xf8] sm:$0xff]
  %v47 = vld [vmem:[%s1 + $0x100] sm:$0xff]
  %v48 = vld [vmem:[%s1 + $0x108] sm:$0xff]
  %v49 = vld [vmem:[%s1 + $0x110] sm:$0xff]
  %v50 = vld [vmem:[%s1 + $0x118] sm:$0xff]
  %v51 = vld [vmem:[%s1 + $0x120] sm:$0xff]
  %v52 = vld [vmem:[%s1 + $0x128] sm:$0xff]
  %v53 = vld [vmem:[%s1 + $0x130] sm:$0xff]
  %v54 = vld [vmem:[%s1 + $0x138] sm:$0xff]
  %v55 = vld [vmem:[%s1 + $0x140] sm:$0xff]
  %v56 = vld [vmem:[%s1 + $0x148] sm:$0xff]
  %v57 = vld [vmem:[%s1 + $0x150] sm:$0xff]
  %v58 = vld [vmem:[%s1 + $0x158] sm:$0xff]
  %v59 = vld [vmem:[%s1 + $0x160] sm:$0xff]
  %v60 = vld [vmem:[%s1 + $0x168] sm:$0xff]
  %v61 = vld [vmem:[%s1 + $0x170] sm:$0xff]
  %v62 = vld [vmem:[%s1 + $0x178] sm:$0xff]
  %v63 = vld [vmem:[%s1 + $0x180] sm:$0xff]
  %v64 = vld [vmem:[%s1 + $0x188] sm:$0xff]
  %v65 = vld [vmem:[%s1 + $0x190] sm:$0xff]
  %v66 = vld [vmem:[%s1 + $0x198] sm:$0xff]
  %v67 = vld [vmem:[%s1 + $0x1a0] sm:$0xff]
  %v68 = vld [vmem:[%s1 + $0x1a8] sm:$0xff]
  %v69 = vld [vmem:[%s1 + $0x1b0] sm:$0xff]
  %v70 = vld [vmem:[%s1 + $0x1b8] sm:$0xff]
  %v71 = vld [vmem:[%s1 + $0x1c0] sm:$0xff]
  %v72 = vld [vmem:[%s1 + $0x1c8] sm:$0xff]
  %v73 = vld [vmem:[%s1 + $0x1d0] sm:$0xff]
  %v74 = vld [vmem:[%s1 + $0x1d8] sm:$0xff]
  %v75 = vld [vmem:[%s1 + $0x1e0] sm:$0xff]
  %v76 = vld [vmem:[%s1 + $0x1e8] sm:$0xff]
  %v77 = vld [vmem:[%s1 + $0x1f0] sm:$0xff]
  %v78 = vld [vmem:[%s1 + $0x1f8] sm:$0xff]
  %v79 = vld [vmem:[%s1 + $0x200] sm:$0xff]
  %v80 = vld [vmem:[%s1 + $0x208] sm:$0xff]
  %v81 = vld [vmem:[%s1 + $0x210] sm:$0xff]
  %v82 = vld [vmem:[%s1 + $0x218] sm:$0xff]
  %v83 = vld [vmem:[%s1 + $0x220] sm:$0xff]
  %v84 = vld [vmem:[%s1 + $0x228] sm:$0xff]
  %v85 = vld [vmem:[%s1 + $0x230] sm:$0xff]
  %v86 = vld [vmem:[%s1 + $0x238] sm:$0xff]
  %v87 = vld [vmem:[%s1 + $0x240] sm:$0xff]
  %v88 = vld [vmem:[%s1 + $0x248] sm:$0xff]
  %v89 = vld [vmem:[%s1 + $0x250] sm:$0xff]
  %v90 = vld [vmem:[%s1 + $0x258] sm:$0xff]
  %v91 = vld [vmem:[%s1 + $0x260] sm:$0xff]
  %v92 = vld [vmem:[%s1 + $0x268] sm:$0xff]
  %v93 = vld [vmem:[%s1 + $0x270] sm:$0xff]
  %v94 = vld [vmem:[%s1 + $0x278] sm:$0xff]
  %v95 = vld [vmem:[%s1 + $0x280] sm:$0xff]
  %v96 = vld [vmem:[%s1 + $0x288] sm:$0xff]
  %v97 = vld [vmem:[%s1 + $0x290] sm:$0xff]
  %v98 = vld [vmem:[%s1 + $0x298] sm:$0xff]
  %v99 = vld [vmem:[%s1 + $0x2a0] sm:$0xff]
  %v100 = vld [vmem:[%s1 + $0x2a8] sm:$0xff]
  %v101 = vld [vmem:[%s1 + $0x2b0] sm:$0xff]
  %v102 = vld [vmem:[%s1 + $0x2b8] sm:$0xff]
  %v103 = vld [vmem:[%s1 + $0x2c0] sm:$0xff]
  %v104 = vld [vmem:[%s1 + $0x2c8] sm:$0xff]
  %v105 = vld [vmem:[%s1 + $0x2d0] sm:$0xff]
  %v106 = vld [vmem:[%s1 + $0x2d8] sm:$0xff]
  %v107 = vld [vmem:[%s1 + $0x2e0] sm:$0xff]
  %v108 = vld [vmem:[%s1 + $0x2e8] sm:$0xff]
  %v109 = vld [vmem:[%s1 + $0x2f0] sm:$0xff]
  %v110 = vld [vmem:[%s1 + $0x2f8] sm:$0xff]
  %v111 = vld [vmem:[%s1 + $0x300] sm:$0xff]
  %v112 = vld [vmem:[%s1 + $0x308] sm:$0xff]
  %v113 = vld [vmem:[%s1 + $0x310] sm:$0xff]
  %v114 = vld [vmem:[%s1 + $0x318] sm:$0xff]
  %v115 = vld [vmem:[%s1 + $0x320] sm:$0xff]
  %v116 = vld [vmem:[%s1 + $0x328] sm:$0xff]
  %v117 = vld [vmem:[%s1 + $0x330] sm:$0xff]
  %v118 = vld [vmem:[%s1 + $0x338] sm:$0xff]
  %v119 = vld [vmem:[%s1 + $0x340] sm:$0xff]
  %v120 = vld [vmem:[%s1 + $0x348] sm:$0xff]
  %v121 = vld [vmem:[%s1 + $0x350] sm:$0xff]
  %v122 = vld [vmem:[%s1 + $0x358] sm:$0xff]
  %v123 = vld [vmem:[%s1 + $0x360] sm:$0xff]
  %v124 = vld [vmem:[%s1 + $0x368] sm:$0xff]
  %v125 = vld [vmem:[%s1 + $0x370] sm:$0xff]
  %v126 = vld [vmem:[%s1 + $0x378] sm:$0xff]
  %v127 = vld [vmem:[%s1 + $0x380] sm:$0xff]
  %v128 = vld [vmem:[%s1 + $0x388] sm:$0xff]
  %v129 = vld [vmem:[%s1 + $0x390] sm:$0xff]
  %v130 = vld [vmem:[%s1 + $0x398] sm:$0xff]
  %v131 = vld [vmem:[%s1 + $0x3a0] sm:$0xff]
  %v132 = vld [vmem:[%s1 + $0x3a8] sm:$0xff]
  %v133 = vld [vmem:[%s1 + $0x3b0] sm:$0xff]
  %v134 = vld [vmem:[%s1 + $0x3b8] sm:$0xff]
  %v135 = vld [vmem:[%s1 + $0x3c0] sm:$0xff]
  %v136 = vld [vmem:[%s1 + $0x3c8] sm:$0xff]
  %v137 = vld [vmem:[%s1 + $0x3d0] sm:$0xff]
  %v138 = vld [vmem:[%s1 + $0x3d8] sm:$0xff]
  %v139 = vld [vmem:[%s1 + $0x3e0] sm:$0xff]
  %v140 = vld [vmem:[%s1 + $0x3e8] sm:$0xff]
  %v141 = vld [vmem:[%s1 + $0x3f0] sm:$0xff]
  %v142 = vld [vmem:[%s1 + $0x3f8] sm:$0xff]
  %v143 = vld [vmem:[%s1 + $0x400] sm:$0xff]
  %v144 = vld [vmem:[%s1 + $0x408] sm:$0xff]
  %v145 = vld [vmem:[%s1 + $0x410] sm:$0xff]
  %v146 = vld [vmem:[%s1 + $0x418] sm:$0xff]
  %v147 = vld [vmem:[%s1 + $0x420] sm:$0xff]
  %v148 = vld [vmem:[%s1 + $0x428] sm:$0xff]
  %v149 = vld [vmem:[%s1 + $0x430] sm:$0xff]
  %v150 = vld [vmem:[%s1 + $0x438] sm:$0xff]
  %v151 = vld [vmem:[%s1 + $0x440] sm:$0xff]
  %v152 = vld [vmem:[%s1 + $0x448] sm:$0xff]
  %v153 = vld [vmem:[%s1 + $0x450] sm:$0xff]
  %v154 = vld [vmem:[%s1 + $0x458] sm:$0xff]
  %v155 = vld [vmem:[%s1 + $0x460] sm:$0xff]
  %v156 = vld [vmem:[%s1 + $0x468] sm:$0xff]
  %v157 = vld [vmem:[%s1 + $0x470] sm:$0xff]
  %v158 = vld [vmem:[%s1 + $0x478] sm:$0xff]
  %v159 = vld [vmem:[%s0] sm:$0xff]
  %v160 = vld [vmem:[%s0 + $0x8] sm:$0xff]
  %v161 = vld [vmem:[%s0 + $0x10] sm:$0xff]
  %v162 = vld [vmem:[%s0 + $0x18] sm:$0xff]
  %v163 = vld [vmem:[%s0 + $0x20] sm:$0xf]
  %v169 = vunpack.c.l.b16 %v159
  %v170 = vunpack.c.h.b16 %v159
  %v171 = vunpack.c.l.b16 %v160
  %v172 = vunpack.c.h.b16 %v160
  %v173 = vunpack.c.l.b16 %v161
  %v174 = vunpack.c.h.b16 %v161
  %v175 = vunpack.c.l.b16 %v162
  %v176 = vunpack.c.h.b16 %v162
  %v177 = vunpack.c.l.b16 %v163
  %v178 = vpack.c.b16 %v169, %v169
  %v179 = vpack.c.b16 %v170, %v170
  %v180 = vpack.c.b16 %v171, %v171
  %v181 = vpack.c.b16 %v172, %v172
  %v182 = vpack.c.b16 %v173, %v173
  %v183 = vpack.c.b16 %v174, %v174
  %v184 = vpack.c.b16 %v175, %v175
  %v185 = vpack.c.b16 %v176, %v176
  %v186 = vpack.c.b16 %v177, %v177
  %v340 = vunpack.c.l.b16 %v15
  %v341 = vunpack.c.h.b16 %v15
  %v342 = vunpack.c.l.b16 %v16
  %v343 = vunpack.c.h.b16 %v16
  %v344 = vunpack.c.l.b16 %v17
  %v345 = vunpack.c.h.b16 %v17
  %v346 = vunpack.c.l.b16 %v18
  %v347 = vunpack.c.h.b16 %v18
  %v348 = vunpack.c.l.b16 %v19
  %v349 = vunpack.c.h.b16 %v19
  %v350 = vunpack.c.l.b16 %v20
  %v351 = vunpack.c.h.b16 %v20
  %v352 = vunpack.c.l.b16 %v21
  %v353 = vunpack.c.h.b16 %v21
  %v354 = vunpack.c.l.b16 %v22
  %v355 = vunpack.c.h.b16 %v22
  %v356 = vunpack.c.l.b16 %v23
  %v357 = vunpack.c.h.b16 %v23
  %v358 = vunpack.c.l.b16 %v24
  %v359 = vunpack.c.h.b16 %v24
  %v360 = vunpack.c.l.b16 %v25
  %v361 = vunpack.c.h.b16 %v25
  %v362 = vunpack.c.l.b16 %v26
  %v363 = vunpack.c.h.b16 %v26
  %v364 = vunpack.c.l.b16 %v27
  %v365 = vunpack.c.h.b16 %v27
  %v366 = vunpack.c.l.b16 %v28
  %v367 = vunpack.c.h.b16 %v28
  %v368 = vunpack.c.l.b16 %v29
  %v369 = vunpack.c.h.b16 %v29
  %v370 = vunpack.c.l.b16 %v30
  %v371 = vunpack.c.h.b16 %v30
  %v372 = vunpack.c.l.b16 %v31
  %v373 = vunpack.c.h.b16 %v31
  %v374 = vunpack.c.l.b16 %v32
  %v375 = vunpack.c.h.b16 %v32
  %v376 = vunpack.c.l.b16 %v33
  %v377 = vunpack.c.h.b16 %v33
  %v378 = vunpack.c.l.b16 %v34
  %v379 = vunpack.c.h.b16 %v34
  %v380 = vunpack.c.l.b16 %v35
  %v381 = vunpack.c.h.b16 %v35
  %v382 = vunpack.c.l.b16 %v36
  %v383 = vunpack.c.h.b16 %v36
  %v384 = vunpack.c.l.b16 %v37
  %v385 = vunpack.c.h.b16 %v37
  %v386 = vunpack.c.l.b16 %v38
  %v387 = vunpack.c.h.b16 %v38
  %v388 = vunpack.c.l.b16 %v39
  %v389 = vunpack.c.h.b16 %v39
  %v390 = vunpack.c.l.b16 %v40
  %v391 = vunpack.c.h.b16 %v40
  %v392 = vunpack.c.l.b16 %v41
  %v393 = vunpack.c.h.b16 %v41
  %v394 = vunpack.c.l.b16 %v42
  %v395 = vunpack.c.h.b16 %v42
  %v396 = vunpack.c.l.b16 %v43
  %v397 = vunpack.c.h.b16 %v43
  %v398 = vunpack.c.l.b16 %v44
  %v399 = vunpack.c.h.b16 %v44
  %v400 = vunpack.c.l.b16 %v45
  %v401 = vunpack.c.h.b16 %v45
  %v402 = vunpack.c.l.b16 %v46
  %v403 = vunpack.c.h.b16 %v46
  %v404 = vunpack.c.l.b16 %v47
  %v405 = vunpack.c.h.b16 %v47
  %v406 = vunpack.c.l.b16 %v48
  %v407 = vunpack.c.h.b16 %v48
  %v408 = vunpack.c.l.b16 %v49
  %v409 = vunpack.c.h.b16 %v49
  %v410 = vunpack.c.l.b16 %v50
  %v411 = vunpack.c.h.b16 %v50
  %v412 = vunpack.c.l.b16 %v51
  %v413 = vunpack.c.h.b16 %v51
  %v414 = vunpack.c.l.b16 %v52
  %v415 = vunpack.c.h.b16 %v52
  %v416 = vunpack.c.l.b16 %v53
  %v417 = vunpack.c.h.b16 %v53
  %v418 = vunpack.c.l.b16 %v54
  %v419 = vunpack.c.h.b16 %v54
  %v420 = vunpack.c.l.b16 %v55
  %v421 = vunpack.c.h.b16 %v55
  %v422 = vunpack.c.l.b16 %v56
  %v423 = vunpack.c.h.b16 %v56
  %v424 = vunpack.c.l.b16 %v57
  %v425 = vunpack.c.h.b16 %v57
  %v426 = vunpack.c.l.b16 %v58
  %v427 = vunpack.c.h.b16 %v58
  %v428 = vunpack.c.l.b16 %v59
  %v429 = vunpack.c.h.b16 %v59
  %v430 = vunpack.c.l.b16 %v60
  %v431 = vunpack.c.h.b16 %v60
  %v432 = vunpack.c.l.b16 %v61
  %v433 = vunpack.c.h.b16 %v61
  %v434 = vunpack.c.l.b16 %v62
  %v435 = vunpack.c.h.b16 %v62
  %v436 = vunpack.c.l.b16 %v63
  %v437 = vunpack.c.h.b16 %v63
  %v438 = vunpack.c.l.b16 %v64
  %v439 = vunpack.c.h.b16 %v64
  %v440 = vunpack.c.l.b16 %v65
  %v441 = vunpack.c.h.b16 %v65
  %v442 = vunpack.c.l.b16 %v66
  %v443 = vunpack.c.h.b16 %v66
  %v444 = vunpack.c.l.b16 %v67
  %v445 = vunpack.c.h.b16 %v67
  %v446 = vunpack.c.l.b16 %v68
  %v447 = vunpack.c.h.b16 %v68
  %v448 = vunpack.c.l.b16 %v69
  %v449 = vunpack.c.h.b16 %v69
  %v450 = vunpack.c.l.b16 %v70
  %v451 = vunpack.c.h.b16 %v70
  %v452 = vunpack.c.l.b16 %v71
  %v453 = vunpack.c.h.b16 %v71
  %v454 = vunpack.c.l.b16 %v72
  %v455 = vunpack.c.h.b16 %v72
  %v456 = vunpack.c.l.b16 %v73
  %v457 = vunpack.c.h.b16 %v73
  %v458 = vunpack.c.l.b16 %v74
  %v459 = vunpack.c.h.b16 %v74
  %v460 = vunpack.c.l.b16 %v75
  %v461 = vunpack.c.h.b16 %v75
  %v462 = vunpack.c.l.b16 %v76
  %v463 = vunpack.c.h.b16 %v76
  %v464 = vunpack.c.l.b16 %v77
  %v465 = vunpack.c.h.b16 %v77
  %v466 = vunpack.c.l.b16 %v78
  %v467 = vunpack.c.h.b16 %v78
  %v468 = vunpack.c.l.b16 %v79
  %v469 = vunpack.c.h.b16 %v79
  %v470 = vunpack.c.l.b16 %v80
  %v471 = vunpack.c.h.b16 %v80
  %v472 = vunpack.c.l.b16 %v81
  %v473 = vunpack.c.h.b16 %v81
  %v474 = vunpack.c.l.b16 %v82
  %v475 = vunpack.c.h.b16 %v82
  %v476 = vunpack.c.l.b16 %v83
  %v477 = vunpack.c.h.b16 %v83
  %v478 = vunpack.c.l.b16 %v84
  %v479 = vunpack.c.h.b16 %v84
  %v480 = vunpack.c.l.b16 %v85
  %v481 = vunpack.c.h.b16 %v85
  %v482 = vunpack.c.l.b16 %v86
  %v483 = vunpack.c.h.b16 %v86
  %v484 = vunpack.c.l.b16 %v87
  %v485 = vunpack.c.h.b16 %v87
  %v486 = vunpack.c.l.b16 %v88
  %v487 = vunpack.c.h.b16 %v88
  %v488 = vunpack.c.l.b16 %v89
  %v489 = vunpack.c.h.b16 %v89
  %v490 = vunpack.c.l.b16 %v90
  %v491 = vunpack.c.h.b16 %v90
  %v492 = vunpack.c.l.b16 %v91
  %v493 = vunpack.c.h.b16 %v91
  %v494 = vunpack.c.l.b16 %v92
  %v495 = vunpack.c.h.b16 %v92
  %v496 = vunpack.c.l.b16 %v93
  %v497 = vunpack.c.h.b16 %v93
  %v498 = vunpack.c.l.b16 %v94
  %v499 = vunpack.c.h.b16 %v94
  %v500 = vunpack.c.l.b16 %v95
  %v501 = vunpack.c.h.b16 %v95
  %v502 = vunpack.c.l.b16 %v96
  %v503 = vunpack.c.h.b16 %v96
  %v504 = vunpack.c.l.b16 %v97
  %v505 = vunpack.c.h.b16 %v97
  %v506 = vunpack.c.l.b16 %v98
  %v507 = vunpack.c.h.b16 %v98
  %v508 = vunpack.c.l.b16 %v99
  %v509 = vunpack.c.h.b16 %v99
  %v510 = vunpack.c.l.b16 %v100
  %v511 = vunpack.c.h.b16 %v100
  %v512 = vunpack.c.l.b16 %v101
  %v513 = vunpack.c.h.b16 %v101
  %v514 = vunpack.c.l.b16 %v102
  %v515 = vunpack.c.h.b16 %v102
  %v516 = vunpack.c.l.b16 %v103
  %v517 = vunpack.c.h.b16 %v103
  %v518 = vunpack.c.l.b16 %v104
  %v519 = vunpack.c.h.b16 %v104
  %v520 = vunpack.c.l.b16 %v105
  %v521 = vunpack.c.h.b16 %v105
  %v522 = vunpack.c.l.b16 %v106
  %v523 = vunpack.c.h.b16 %v106
  %v524 = vunpack.c.l.b16 %v107
  %v525 = vunpack.c.h.b16 %v107
  %v526 = vunpack.c.l.b16 %v108
  %v527 = vunpack.c.h.b16 %v108
  %v528 = vunpack.c.l.b16 %v109
  %v529 = vunpack.c.h.b16 %v109
  %v530 = vunpack.c.l.b16 %v110
  %v531 = vunpack.c.h.b16 %v110
  %v532 = vunpack.c.l.b16 %v111
  %v533 = vunpack.c.h.b16 %v111
  %v534 = vunpack.c.l.b16 %v112
  %v535 = vunpack.c.h.b16 %v112
  %v536 = vunpack.c.l.b16 %v113
  %v537 = vunpack.c.h.b16 %v113
  %v538 = vunpack.c.l.b16 %v114
  %v539 = vunpack.c.h.b16 %v114
  %v540 = vunpack.c.l.b16 %v115
  %v541 = vunpack.c.h.b16 %v115
  %v542 = vunpack.c.l.b16 %v116
  %v543 = vunpack.c.h.b16 %v116
  %v544 = vunpack.c.l.b16 %v117
  %v545 = vunpack.c.h.b16 %v117
  %v546 = vunpack.c.l.b16 %v118
  %v547 = vunpack.c.h.b16 %v118
  %v548 = vunpack.c.l.b16 %v119
  %v549 = vunpack.c.h.b16 %v119
  %v550 = vunpack.c.l.b16 %v120
  %v551 = vunpack.c.h.b16 %v120
  %v552 = vunpack.c.l.b16 %v121
  %v553 = vunpack.c.h.b16 %v121
  %v554 = vunpack.c.l.b16 %v122
  %v555 = vunpack.c.h.b16 %v122
  %v556 = vunpack.c.l.b16 %v123
  %v557 = vunpack.c.h.b16 %v123
  %v558 = vunpack.c.l.b16 %v124
  %v559 = vunpack.c.h.b16 %v124
  %v560 = vunpack.c.l.b16 %v125
  %v561 = vunpack.c.h.b16 %v125
  %v562 = vunpack.c.l.b16 %v126
  %v563 = vunpack.c.h.b16 %v126
  %v564 = vunpack.c.l.b16 %v127
  %v565 = vunpack.c.h.b16 %v127
  %v566 = vunpack.c.l.b16 %v128
  %v567 = vunpack.c.h.b16 %v128
  %v568 = vunpack.c.l.b16 %v129
  %v569 = vunpack.c.h.b16 %v129
  %v570 = vunpack.c.l.b16 %v130
  %v571 = vunpack.c.h.b16 %v130
  %v572 = vunpack.c.l.b16 %v131
  %v573 = vunpack.c.h.b16 %v131
  %v574 = vunpack.c.l.b16 %v132
  %v575 = vunpack.c.h.b16 %v132
  %v576 = vunpack.c.l.b16 %v133
  %v577 = vunpack.c.h.b16 %v133
  %v578 = vunpack.c.l.b16 %v134
  %v579 = vunpack.c.h.b16 %v134
  %v580 = vunpack.c.l.b16 %v135
  %v581 = vunpack.c.h.b16 %v135
  %v582 = vunpack.c.l.b16 %v136
  %v583 = vunpack.c.h.b16 %v136
  %v584 = vunpack.c.l.b16 %v137
  %v585 = vunpack.c.h.b16 %v137
  %v586 = vunpack.c.l.b16 %v138
  %v587 = vunpack.c.h.b16 %v138
  %v588 = vunpack.c.l.b16 %v139
  %v589 = vunpack.c.h.b16 %v139
  %v590 = vunpack.c.l.b16 %v140
  %v591 = vunpack.c.h.b16 %v140
  %v592 = vunpack.c.l.b16 %v141
  %v593 = vunpack.c.h.b16 %v141
  %v594 = vunpack.c.l.b16 %v142
  %v595 = vunpack.c.h.b16 %v142
  %v596 = vunpack.c.l.b16 %v143
  %v597 = vunpack.c.h.b16 %v143
  %v598 = vunpack.c.l.b16 %v144
  %v599 = vunpack.c.h.b16 %v144
  %v600 = vunpack.c.l.b16 %v145
  %v601 = vunpack.c.h.b16 %v145
  %v602 = vunpack.c.l.b16 %v146
  %v603 = vunpack.c.h.b16 %v146
  %v604 = vunpack.c.l.b16 %v147
  %v605 = vunpack.c.h.b16 %v147
  %v606 = vunpack.c.l.b16 %v148
  %v607 = vunpack.c.h.b16 %v148
  %v608 = vunpack.c.l.b16 %v149
  %v609 = vunpack.c.h.b16 %v149
  %v610 = vunpack.c.l.b16 %v150
  %v611 = vunpack.c.h.b16 %v150
  %v612 = vunpack.c.l.b16 %v151
  %v613 = vunpack.c.h.b16 %v151
  %v614 = vunpack.c.l.b16 %v152
  %v615 = vunpack.c.h.b16 %v152
  %v616 = vunpack.c.l.b16 %v153
  %v617 = vunpack.c.h.b16 %v153
  %v618 = vunpack.c.l.b16 %v154
  %v619 = vunpack.c.h.b16 %v154
  %v620 = vunpack.c.l.b16 %v155
  %v621 = vunpack.c.h.b16 %v155
  %v622 = vunpack.c.l.b16 %v156
  %v623 = vunpack.c.h.b16 %v156
  %v624 = vunpack.c.l.b16 %v157
  %v625 = vunpack.c.h.b16 %v157
  %v626 = vunpack.c.l.b16 %v158
  %v627 = vunpack.c.h.b16 %v158
  %v628 = vpack.c.b16 %v342, %v340
  %v629 = vpack.c.b16 %v343, %v341
  %v630 = vpack.c.b16 %v346, %v344
  %v631 = vpack.c.b16 %v347, %v345
  %v632 = vpack.c.b16 %v350, %v348
  %v633 = vpack.c.b16 %v351, %v349
  %v634 = vpack.c.b16 %v354, %v352
  %v635 = vpack.c.b16 %v355, %v353
  %v636 = vpack.c.b16 %v358, %v356
  %v637 = vpack.c.b16 %v359, %v357
  %v638 = vpack.c.b16 %v362, %v360
  %v639 = vpack.c.b16 %v363, %v361
  %v640 = vpack.c.b16 %v366, %v364
  %v641 = vpack.c.b16 %v367, %v365
  %v642 = vpack.c.b16 %v370, %v368
  %v643 = vpack.c.b16 %v371, %v369
  %v644 = vpack.c.b16 %v374, %v372
  %v645 = vpack.c.b16 %v375, %v373
  %v646 = vpack.c.b16 %v378, %v376
  %v647 = vpack.c.b16 %v379, %v377
  %v648 = vpack.c.b16 %v382, %v380
  %v649 = vpack.c.b16 %v383, %v381
  %v650 = vpack.c.b16 %v386, %v384
  %v651 = vpack.c.b16 %v387, %v385
  %v652 = vpack.c.b16 %v390, %v388
  %v653 = vpack.c.b16 %v391, %v389
  %v654 = vpack.c.b16 %v394, %v392
  %v655 = vpack.c.b16 %v395, %v393
  %v656 = vpack.c.b16 %v398, %v396
  %v657 = vpack.c.b16 %v399, %v397
  %v658 = vpack.c.b16 %v402, %v400
  %v659 = vpack.c.b16 %v403, %v401
  %v660 = vpack.c.b16 %v406, %v404
  %v661 = vpack.c.b16 %v407, %v405
  %v662 = vpack.c.b16 %v410, %v408
  %v663 = vpack.c.b16 %v411, %v409
  %v664 = vpack.c.b16 %v414, %v412
  %v665 = vpack.c.b16 %v415, %v413
  %v666 = vpack.c.b16 %v418, %v416
  %v667 = vpack.c.b16 %v419, %v417
  %v668 = vpack.c.b16 %v422, %v420
  %v669 = vpack.c.b16 %v423, %v421
  %v670 = vpack.c.b16 %v426, %v424
  %v671 = vpack.c.b16 %v427, %v425
  %v672 = vpack.c.b16 %v430, %v428
  %v673 = vpack.c.b16 %v431, %v429
  %v674 = vpack.c.b16 %v434, %v432
  %v675 = vpack.c.b16 %v435, %v433
  %v676 = vpack.c.b16 %v438, %v436
  %v677 = vpack.c.b16 %v439, %v437
  %v678 = vpack.c.b16 %v442, %v440
  %v679 = vpack.c.b16 %v443, %v441
  %v680 = vpack.c.b16 %v446, %v444
  %v681 = vpack.c.b16 %v447, %v445
  %v682 = vpack.c.b16 %v450, %v448
  %v683 = vpack.c.b16 %v451, %v449
  %v684 = vpack.c.b16 %v454, %v452
  %v685 = vpack.c.b16 %v455, %v453
  %v686 = vpack.c.b16 %v458, %v456
  %v687 = vpack.c.b16 %v459, %v457
  %v688 = vpack.c.b16 %v462, %v460
  %v689 = vpack.c.b16 %v463, %v461
  %v690 = vpack.c.b16 %v466, %v464
  %v691 = vpack.c.b16 %v467, %v465
  %v692 = vpack.c.b16 %v470, %v468
  %v693 = vpack.c.b16 %v471, %v469
  %v694 = vpack.c.b16 %v474, %v472
  %v695 = vpack.c.b16 %v475, %v473
  %v696 = vpack.c.b16 %v478, %v476
  %v697 = vpack.c.b16 %v479, %v477
  %v698 = vpack.c.b16 %v482, %v480
  %v699 = vpack.c.b16 %v483, %v481
  %v700 = vpack.c.b16 %v486, %v484
  %v701 = vpack.c.b16 %v487, %v485
  %v702 = vpack.c.b16 %v490, %v488
  %v703 = vpack.c.b16 %v491, %v489
  %v704 = vpack.c.b16 %v494, %v492
  %v705 = vpack.c.b16 %v495, %v493
  %v706 = vpack.c.b16 %v498, %v496
  %v707 = vpack.c.b16 %v499, %v497
  %v708 = vpack.c.b16 %v502, %v500
  %v709 = vpack.c.b16 %v503, %v501
  %v710 = vpack.c.b16 %v506, %v504
  %v711 = vpack.c.b16 %v507, %v505
  %v712 = vpack.c.b16 %v510, %v508
  %v713 = vpack.c.b16 %v511, %v509
  %v714 = vpack.c.b16 %v514, %v512
  %v715 = vpack.c.b16 %v515, %v513
  %v716 = vpack.c.b16 %v518, %v516
  %v717 = vpack.c.b16 %v519, %v517
  %v718 = vpack.c.b16 %v522, %v520
  %v719 = vpack.c.b16 %v523, %v521
  %v720 = vpack.c.b16 %v526, %v524
  %v721 = vpack.c.b16 %v527, %v525
  %v722 = vpack.c.b16 %v530, %v528
  %v723 = vpack.c.b16 %v531, %v529
  %v724 = vpack.c.b16 %v534, %v532
  %v725 = vpack.c.b16 %v535, %v533
  %v726 = vpack.c.b16 %v538, %v536
  %v727 = vpack.c.b16 %v539, %v537
  %v728 = vpack.c.b16 %v542, %v540
  %v729 = vpack.c.b16 %v543, %v541
  %v730 = vpack.c.b16 %v546, %v544
  %v731 = vpack.c.b16 %v547, %v545
  %v732 = vpack.c.b16 %v550, %v548
  %v733 = vpack.c.b16 %v551, %v549
  %v734 = vpack.c.b16 %v554, %v552
  %v735 = vpack.c.b16 %v555, %v553
  %v736 = vpack.c.b16 %v558, %v556
  %v737 = vpack.c.b16 %v559, %v557
  %v738 = vpack.c.b16 %v562, %v560
  %v739 = vpack.c.b16 %v563, %v561
  %v740 = vpack.c.b16 %v566, %v564
  %v741 = vpack.c.b16 %v567, %v565
  %v742 = vpack.c.b16 %v570, %v568
  %v743 = vpack.c.b16 %v571, %v569
  %v744 = vpack.c.b16 %v574, %v572
  %v745 = vpack.c.b16 %v575, %v573
  %v746 = vpack.c.b16 %v578, %v576
  %v747 = vpack.c.b16 %v579, %v577
  %v748 = vpack.c.b16 %v582, %v580
  %v749 = vpack.c.b16 %v583, %v581
  %v750 = vpack.c.b16 %v586, %v584
  %v751 = vpack.c.b16 %v587, %v585
  %v752 = vpack.c.b16 %v590, %v588
  %v753 = vpack.c.b16 %v591, %v589
  %v754 = vpack.c.b16 %v594, %v592
  %v755 = vpack.c.b16 %v595, %v593
  %v756 = vpack.c.b16 %v598, %v596
  %v757 = vpack.c.b16 %v599, %v597
  %v758 = vpack.c.b16 %v602, %v600
  %v759 = vpack.c.b16 %v603, %v601
  %v760 = vpack.c.b16 %v606, %v604
  %v761 = vpack.c.b16 %v607, %v605
  %v762 = vpack.c.b16 %v610, %v608
  %v763 = vpack.c.b16 %v611, %v609
  %v764 = vpack.c.b16 %v614, %v612
  %v765 = vpack.c.b16 %v615, %v613
  %v766 = vpack.c.b16 %v618, %v616
  %v767 = vpack.c.b16 %v619, %v617
  %v768 = vpack.c.b16 %v622, %v620
  %v769 = vpack.c.b16 %v623, %v621
  %v770 = vpack.c.b16 %v626, %v624
  %v771 = vpack.c.b16 %v627, %v625
  %916 = vmatprep.subr.bf16.mxu0 %v629
  %917 = vmatpush1.bf16.msra.mxu0 %v628
  %918 = vmatprep.subr.bf16.mxu0 %v631
  %919 = vmatpush1.bf16.msra.mxu0 %v630
  %920 = vmatprep.subr.bf16.mxu0 %v633
  %921 = vmatpush1.bf16.msra.mxu0 %v632
  %922 = vmatprep.subr.bf16.mxu0 %v635
  %923 = vmatpush1.bf16.msra.mxu0 %v634
  %924 = vmatprep.subr.bf16.mxu0 %v637
  %925 = vmatpush1.bf16.msra.mxu0 %v636
  %926 = vmatprep.subr.bf16.mxu0 %v639
  %927 = vmatpush1.bf16.msra.mxu0 %v638
  %928 = vmatprep.subr.bf16.mxu0 %v641
  %929 = vmatpush1.bf16.msra.mxu0 %v640
  %930 = vmatprep.subr.bf16.mxu0 %v643
  %931 = vmatpush1.bf16.msra.mxu0 %v642
  %932 = vmatprep.subr.bf16.mxu0 %v645
  %933 = vmatpush1.bf16.msra.mxu0 %v644
  %934 = vmatprep.subr.bf16.mxu0 %v647
  %935 = vmatpush1.bf16.msra.mxu0 %v646
  %936 = vmatprep.subr.bf16.mxu0 %v649
  %937 = vmatpush1.bf16.msra.mxu0 %v648
  %938 = vmatprep.subr.bf16.mxu0 %v651
  %939 = vmatpush1.bf16.msra.mxu0 %v650
  %940 = vmatprep.subr.bf16.mxu0 %v653
  %941 = vmatpush1.bf16.msra.mxu0 %v652
  %942 = vmatprep.subr.bf16.mxu0 %v655
  %943 = vmatpush1.bf16.msra.mxu0 %v654
  %944 = vmatprep.subr.bf16.mxu0 %v657
  %945 = vmatpush1.bf16.msra.mxu0 %v656
  %946 = vmatprep.subr.bf16.mxu0 %v659
  %947 = vmatpush1.bf16.msra.mxu0 %v658
  %948 = vmatprep.mubr.bf16.mxu0 %v179
  %949 = vmatmul.mubr.bf16.gmra.mrb[0].mxu0 %v178
  %v950 = vpop.f32.mrb[0].mxu0
  %v951 = vadd.f32 0.0, %v950
  %v952 = vpop.f32.mrb[0].mxu0
  %v953 = vadd.f32 0.0, %v952
  %v954 = vpop.f32.mrb[0].mxu0
  %v955 = vpop.f32.mrb[0].mxu0
  %956 = vdwg.mxu0
  %957 = vmatprep.subr.bf16.mxu0 %v661
  %958 = vmatpush1.bf16.msra.mxu0 %v660
  %959 = vmatprep.subr.bf16.mxu0 %v663
  %960 = vmatpush1.bf16.msra.mxu0 %v662
  %961 = vmatprep.subr.bf16.mxu0 %v665
  %962 = vmatpush1.bf16.msra.mxu0 %v664
  %963 = vmatprep.subr.bf16.mxu0 %v667
  %964 = vmatpush1.bf16.msra.mxu0 %v666
  %965 = vmatprep.subr.bf16.mxu0 %v669
  %966 = vmatpush1.bf16.msra.mxu0 %v668
  %967 = vmatprep.subr.bf16.mxu0 %v671
  %968 = vmatpush1.bf16.msra.mxu0 %v670
  %969 = vmatprep.subr.bf16.mxu0 %v673
  %970 = vmatpush1.bf16.msra.mxu0 %v672
  %971 = vmatprep.subr.bf16.mxu0 %v675
  %972 = vmatpush1.bf16.msra.mxu0 %v674
  %973 = vmatprep.subr.bf16.mxu0 %v677
  %974 = vmatpush1.bf16.msra.mxu0 %v676
  %975 = vmatprep.subr.bf16.mxu0 %v679
  %976 = vmatpush1.bf16.msra.mxu0 %v678
  %977 = vmatprep.subr.bf16.mxu0 %v681
  %978 = vmatpush1.bf16.msra.mxu0 %v680
  %979 = vmatprep.subr.bf16.mxu0 %v683
  %980 = vmatpush1.bf16.msra.mxu0 %v682
  %981 = vmatprep.subr.bf16.mxu0 %v685
  %982 = vmatpush1.bf16.msra.mxu0 %v684
  %983 = vmatprep.subr.bf16.mxu0 %v687
  %984 = vmatpush1.bf16.msra.mxu0 %v686
  %985 = vmatprep.subr.bf16.mxu0 %v689
  %986 = vmatpush1.bf16.msra.mxu0 %v688
  %987 = vmatprep.subr.bf16.mxu0 %v691
  %988 = vmatpush1.bf16.msra.mxu0 %v690
  %989 = vmatprep.mubr.bf16.mxu0 %v181
  %990 = vmatmul.mubr.bf16.gmra.mrb[0].mxu0 %v180
  %v991 = vpop.f32.mrb[0].mxu0
  %v992 = vadd.f32 %v951, %v991
  %v993 = vpop.f32.mrb[0].mxu0
  %v994 = vadd.f32 %v953, %v993
  %v995 = vpop.f32.mrb[0].mxu0
  %v996 = vpop.f32.mrb[0].mxu0
  %997 = vdwg.mxu0
  %998 = vmatprep.subr.bf16.mxu0 %v693
  %999 = vmatpush1.bf16.msra.mxu0 %v692
  %1000 = vmatprep.subr.bf16.mxu0 %v695
  %1001 = vmatpush1.bf16.msra.mxu0 %v694
  %1002 = vmatprep.subr.bf16.mxu0 %v697
  %1003 = vmatpush1.bf16.msra.mxu0 %v696
  %1004 = vmatprep.subr.bf16.mxu0 %v699
  %1005 = vmatpush1.bf16.msra.mxu0 %v698
  %1006 = vmatprep.subr.bf16.mxu0 %v701
  %1007 = vmatpush1.bf16.msra.mxu0 %v700
  %1008 = vmatprep.subr.bf16.mxu0 %v703
  %1009 = vmatpush1.bf16.msra.mxu0 %v702
  %1010 = vmatprep.subr.bf16.mxu0 %v705
  %1011 = vmatpush1.bf16.msra.mxu0 %v704
  %1012 = vmatprep.subr.bf16.mxu0 %v707
  %1013 = vmatpush1.bf16.msra.mxu0 %v706
  %1014 = vmatprep.subr.bf16.mxu0 %v709
  %1015 = vmatpush1.bf16.msra.mxu0 %v708
  %1016 = vmatprep.subr.bf16.mxu0 %v711
  %1017 = vmatpush1.bf16.msra.mxu0 %v710
  %1018 = vmatprep.subr.bf16.mxu0 %v713
  %1019 = vmatpush1.bf16.msra.mxu0 %v712
  %1020 = vmatprep.subr.bf16.mxu0 %v715
  %1021 = vmatpush1.bf16.msra.mxu0 %v714
  %1022 = vmatprep.subr.bf16.mxu0 %v717
  %1023 = vmatpush1.bf16.msra.mxu0 %v716
  %1024 = vmatprep.subr.bf16.mxu0 %v719
  %1025 = vmatpush1.bf16.msra.mxu0 %v718
  %1026 = vmatprep.subr.bf16.mxu0 %v721
  %1027 = vmatpush1.bf16.msra.mxu0 %v720
  %1028 = vmatprep.subr.bf16.mxu0 %v723
  %1029 = vmatpush1.bf16.msra.mxu0 %v722
  %1030 = vmatprep.mubr.bf16.mxu0 %v183
  %1031 = vmatmul.mubr.bf16.gmra.mrb[0].mxu0 %v182
  %v1032 = vpop.f32.mrb[0].mxu0
  %v1033 = vadd.f32 %v992, %v1032
  %v1034 = vpop.f32.mrb[0].mxu0
  %v1035 = vadd.f32 %v994, %v1034
  %v1036 = vpop.f32.mrb[0].mxu0
  %v1037 = vpop.f32.mrb[0].mxu0
  %1038 = vdwg.mxu0
  %1039 = vmatprep.subr.bf16.mxu0 %v725
  %1040 = vmatpush1.bf16.msra.mxu0 %v724
  %1041 = vmatprep.subr.bf16.mxu0 %v727
  %1042 = vmatpush1.bf16.msra.mxu0 %v726
  %1043 = vmatprep.subr.bf16.mxu0 %v729
  %1044 = vmatpush1.bf16.msra.mxu0 %v728
  %1045 = vmatprep.subr.bf16.mxu0 %v731
  %1046 = vmatpush1.bf16.msra.mxu0 %v730
  %1047 = vmatprep.subr.bf16.mxu0 %v733
  %1048 = vmatpush1.bf16.msra.mxu0 %v732
  %1049 = vmatprep.subr.bf16.mxu0 %v735
  %1050 = vmatpush1.bf16.msra.mxu0 %v734
  %1051 = vmatprep.subr.bf16.mxu0 %v737
  %1052 = vmatpush1.bf16.msra.mxu0 %v736
  %1053 = vmatprep.subr.bf16.mxu0 %v739
  %1054 = vmatpush1.bf16.msra.mxu0 %v738
  %1055 = vmatprep.subr.bf16.mxu0 %v741
  %1056 = vmatpush1.bf16.msra.mxu0 %v740
  %1057 = vmatprep.subr.bf16.mxu0 %v743
  %1058 = vmatpush1.bf16.msra.mxu0 %v742
  %1059 = vmatprep.subr.bf16.mxu0 %v745
  %1060 = vmatpush1.bf16.msra.mxu0 %v744
  %1061 = vmatprep.subr.bf16.mxu0 %v747
  %1062 = vmatpush1.bf16.msra.mxu0 %v746
  %1063 = vmatprep.subr.bf16.mxu0 %v749
  %1064 = vmatpush1.bf16.msra.mxu0 %v748
  %1065 = vmatprep.subr.bf16.mxu0 %v751
  %1066 = vmatpush1.bf16.msra.mxu0 %v750
  %1067 = vmatprep.subr.bf16.mxu0 %v753
  %1068 = vmatpush1.bf16.msra.mxu0 %v752
  %1069 = vmatprep.subr.bf16.mxu0 %v755
  %1070 = vmatpush1.bf16.msra.mxu0 %v754
  %1071 = vmatprep.mubr.bf16.mxu0 %v185
  %1072 = vmatmul.mubr.bf16.gmra.mrb[0].mxu0 %v184
  %v1073 = vpop.f32.mrb[0].mxu0
  %v1074 = vadd.f32 %v1033, %v1073
  %v1075 = vpop.f32.mrb[0].mxu0
  %v1076 = vadd.f32 %v1035, %v1075
  %v1077 = vpop.f32.mrb[0].mxu0
  %v1078 = vpop.f32.mrb[0].mxu0
  %1079 = vdwg.mxu0
  %1080 = vmatprep.subr.bf16.mxu0 %v757
  %1081 = vmatpush1.bf16.msra.mxu0 %v756
  %1082 = vmatprep.subr.bf16.mxu0 %v759
  %1083 = vmatpush1.bf16.msra.mxu0 %v758
  %1084 = vmatprep.subr.bf16.mxu0 %v761
  %1085 = vmatpush1.bf16.msra.mxu0 %v760
  %1086 = vmatprep.subr.bf16.mxu0 %v763
  %1087 = vmatpush1.bf16.msra.mxu0 %v762
  %1088 = vmatprep.subr.bf16.mxu0 %v765
  %1089 = vmatpush1.bf16.msra.mxu0 %v764
  %1090 = vmatprep.subr.bf16.mxu0 %v767
  %1091 = vmatpush1.bf16.msra.mxu0 %v766
  %1092 = vmatprep.subr.bf16.mxu0 %v769
  %1093 = vmatpush1.bf16.msra.mxu0 %v768
  %1094 = vmatprep.subr.bf16.mxu0 %v771
  %1095 = vmatpush1.bf16.msra.mxu0 %v770
  %1096 = vmatprep.subr.bf16.mxu0 0
  %1097 = vmatpush1.bf16.msra.mxu0 0
  %1098 = vmatprep.subr.bf16.mxu0 0
  %1099 = vmatpush1.bf16.msra.mxu0 0
  %1100 = vmatprep.subr.bf16.mxu0 0
  %1101 = vmatpush1.bf16.msra.mxu0 0
  %1102 = vmatprep.subr.bf16.mxu0 0
  %1103 = vmatpush1.bf16.msra.mxu0 0
  %1104 = vmatprep.subr.bf16.mxu0 0
  %1105 = vmatpush1.bf16.msra.mxu0 0
  %1106 = vmatprep.subr.bf16.mxu0 0
  %1107 = vmatpush1.bf16.msra.mxu0 0
  %1108 = vmatprep.subr.bf16.mxu0 0
  %1109 = vmatpush1.bf16.msra.mxu0 0
  %1110 = vmatprep.subr.bf16.mxu0 0
  %1111 = vmatpush1.bf16.msra.mxu0 0
  %1112 = vmatprep.mubr.bf16.mxu0 0
  %1113 = vmatmul.mubr.bf16.gmra.mrb[0].mxu0 %v186
  %v1114 = vpop.f32.mrb[0].mxu0
  %v1115 = vadd.f32 %v1074, %v1114
  %v1116 = vpop.f32.mrb[0].mxu0
  %v1117 = vadd.f32 %v1076, %v1116
  %v1118 = vpop.f32.mrb[0].mxu0
  %v1119 = vpop.f32.mrb[0].mxu0
  %1120 = vdwg.mxu0
  %s1121 = scalar_lea.vmem %s0, 36
  %v1122 = vld [vmem:[%s1121] sm:$0xff]
  %v1123 = vld [vmem:[%s1121 + $0x8] sm:$0xff]
  %v1124 = vld [vmem:[%s1121 + $0x10] sm:$0xff]
  %v1125 = vld [vmem:[%s1121 + $0x18] sm:$0xff]
  %v1126 = vld [vmem:[%s1121 + $0x20] sm:$0xf]
  %v1132 = vunpack.c.l.b16 %v1122
  %v1133 = vunpack.c.h.b16 %v1122
  %v1134 = vunpack.c.l.b16 %v1123
  %v1135 = vunpack.c.h.b16 %v1123
  %v1136 = vunpack.c.l.b16 %v1124
  %v1137 = vunpack.c.h.b16 %v1124
  %v1138 = vunpack.c.l.b16 %v1125
  %v1139 = vunpack.c.h.b16 %v1125
  %v1140 = vunpack.c.l.b16 %v1126
  %v1141 = vpack.c.b16 %v1132, %v1132
  %v1142 = vpack.c.b16 %v1133, %v1133
  %v1143 = vpack.c.b16 %v1134, %v1134
  %v1144 = vpack.c.b16 %v1135, %v1135
  %v1145 = vpack.c.b16 %v1136, %v1136
  %v1146 = vpack.c.b16 %v1137, %v1137
  %v1147 = vpack.c.b16 %v1138, %v1138
  %v1148 = vpack.c.b16 %v1139, %v1139
  %v1149 = vpack.c.b16 %v1140, %v1140
  %1159 = vmatprep.subr.bf16.mxu0 %v629
  %1160 = vmatpush1.bf16.msra.mxu0 %v628
  %1161 = vmatprep.subr.bf16.mxu0 %v631
  %1162 = vmatpush1.bf16.msra.mxu0 %v630
  %1163 = vmatprep.subr.bf16.mxu0 %v633
  %1164 = vmatpush1.bf16.msra.mxu0 %v632
  %1165 = vmatprep.subr.bf16.mxu0 %v635
  %1166 = vmatpush1.bf16.msra.mxu0 %v634
  %1167 = vmatprep.subr.bf16.mxu0 %v637
  %1168 = vmatpush1.bf16.msra.mxu0 %v636
  %1169 = vmatprep.subr.bf16.mxu0 %v639
  %1170 = vmatpush1.bf16.msra.mxu0 %v638
  %1171 = vmatprep.subr.bf16.mxu0 %v641
  %1172 = vmatpush1.bf16.msra.mxu0 %v640
  %1173 = vmatprep.subr.bf16.mxu0 %v643
  %1174 = vmatpush1.bf16.msra.mxu0 %v642
  %1175 = vmatprep.subr.bf16.mxu0 %v645
  %1176 = vmatpush1.bf16.msra.mxu0 %v644
  %1177 = vmatprep.subr.bf16.mxu0 %v647
  %1178 = vmatpush1.bf16.msra.mxu0 %v646
  %1179 = vmatprep.subr.bf16.mxu0 %v649
  %1180 = vmatpush1.bf16.msra.mxu0 %v648
  %1181 = vmatprep.subr.bf16.mxu0 %v651
  %1182 = vmatpush1.bf16.msra.mxu0 %v650
  %1183 = vmatprep.subr.bf16.mxu0 %v653
  %1184 = vmatpush1.bf16.msra.mxu0 %v652
  %1185 = vmatprep.subr.bf16.mxu0 %v655
  %1186 = vmatpush1.bf16.msra.mxu0 %v654
  %1187 = vmatprep.subr.bf16.mxu0 %v657
  %1188 = vmatpush1.bf16.msra.mxu0 %v656
  %1189 = vmatprep.subr.bf16.mxu0 %v659
  %1190 = vmatpush1.bf16.msra.mxu0 %v658
  %1191 = vmatprep.mubr.bf16.mxu0 %v1142
  %1192 = vmatmul.mubr.bf16.gmra.mrb[0].mxu0 %v1141
  %v1193 = vpop.f32.mrb[0].mxu0
  %v1194 = vadd.f32 0.0, %v1193
  %v1195 = vpop.f32.mrb[0].mxu0
  %v1196 = vadd.f32 0.0, %v1195
  %v1197 = vpop.f32.mrb[0].mxu0
  %v1198 = vpop.f32.mrb[0].mxu0
  %1199 = vdwg.mxu0
  %1200 = vmatprep.subr.bf16.mxu0 %v661
  %1201 = vmatpush1.bf16.msra.mxu0 %v660
  %1202 = vmatprep.subr.bf16.mxu0 %v663
  %1203 = vmatpush1.bf16.msra.mxu0 %v662
  %1204 = vmatprep.subr.bf16.mxu0 %v665
  %1205 = vmatpush1.bf16.msra.mxu0 %v664
  %1206 = vmatprep.subr.bf16.mxu0 %v667
  %1207 = vmatpush1.bf16.msra.mxu0 %v666
  %1208 = vmatprep.subr.bf16.mxu0 %v669
  %1209 = vmatpush1.bf16.msra.mxu0 %v668
  %1210 = vmatprep.subr.bf16.mxu0 %v671
  %1211 = vmatpush1.bf16.msra.mxu0 %v670
  %1212 = vmatprep.subr.bf16.mxu0 %v673
  %1213 = vmatpush1.bf16.msra.mxu0 %v672
  %1214 = vmatprep.subr.bf16.mxu0 %v675
  %1215 = vmatpush1.bf16.msra.mxu0 %v674
  %1216 = vmatprep.subr.bf16.mxu0 %v677
  %1217 = vmatpush1.bf16.msra.mxu0 %v676
  %1218 = vmatprep.subr.bf16.mxu0 %v679
  %1219 = vmatpush1.bf16.msra.mxu0 %v678
  %1220 = vmatprep.subr.bf16.mxu0 %v681
  %1221 = vmatpush1.bf16.msra.mxu0 %v680
  %1222 = vmatprep.subr.bf16.mxu0 %v683
  %1223 = vmatpush1.bf16.msra.mxu0 %v682
  %1224 = vmatprep.subr.bf16.mxu0 %v685
  %1225 = vmatpush1.bf16.msra.mxu0 %v684
  %1226 = vmatprep.subr.bf16.mxu0 %v687
  %1227 = vmatpush1.bf16.msra.mxu0 %v686
  %1228 = vmatprep.subr.bf16.mxu0 %v689
  %1229 = vmatpush1.bf16.msra.mxu0 %v688
  %1230 = vmatprep.subr.bf16.mxu0 %v691
  %1231 = vmatpush1.bf16.msra.mxu0 %v690
  %1232 = vmatprep.mubr.bf16.mxu0 %v1144
  %1233 = vmatmul.mubr.bf16.gmra.mrb[0].mxu0 %v1143
  %v1234 = vpop.f32.mrb[0].mxu0
  %v1235 = vadd.f32 %v1194, %v1234
  %v1236 = vpop.f32.mrb[0].mxu0
  %v1237 = vadd.f32 %v1196, %v1236
  %v1238 = vpop.f32.mrb[0].mxu0
  %v1239 = vpop.f32.mrb[0].mxu0
  %1240 = vdwg.mxu0
  %1241 = vmatprep.subr.bf16.mxu0 %v693
  %1242 = vmatpush1.bf16.msra.mxu0 %v692
  %1243 = vmatprep.subr.bf16.mxu0 %v695
  %1244 = vmatpush1.bf16.msra.mxu0 %v694
  %1245 = vmatprep.subr.bf16.mxu0 %v697
  %1246 = vmatpush1.bf16.msra.mxu0 %v696
  %1247 = vmatprep.subr.bf16.mxu0 %v699
  %1248 = vmatpush1.bf16.msra.mxu0 %v698
  %1249 = vmatprep.subr.bf16.mxu0 %v701
  %1250 = vmatpush1.bf16.msra.mxu0 %v700
  %1251 = vmatprep.subr.bf16.mxu0 %v703
  %1252 = vmatpush1.bf16.msra.mxu0 %v702
  %1253 = vmatprep.subr.bf16.mxu0 %v705
  %1254 = vmatpush1.bf16.msra.mxu0 %v704
  %1255 = vmatprep.subr.bf16.mxu0 %v707
  %1256 = vmatpush1.bf16.msra.mxu0 %v706
  %1257 = vmatprep.subr.bf16.mxu0 %v709
  %1258 = vmatpush1.bf16.msra.mxu0 %v708
  %1259 = vmatprep.subr.bf16.mxu0 %v711
  %1260 = vmatpush1.bf16.msra.mxu0 %v710
  %1261 = vmatprep.subr.bf16.mxu0 %v713
  %1262 = vmatpush1.bf16.msra.mxu0 %v712
  %1263 = vmatprep.subr.bf16.mxu0 %v715
  %1264 = vmatpush1.bf16.msra.mxu0 %v714
  %1265 = vmatprep.subr.bf16.mxu0 %v717
  %1266 = vmatpush1.bf16.msra.mxu0 %v716
  %1267 = vmatprep.subr.bf16.mxu0 %v719
  %1268 = vmatpush1.bf16.msra.mxu0 %v718
  %1269 = vmatprep.subr.bf16.mxu0 %v721
  %1270 = vmatpush1.bf16.msra.mxu0 %v720
  %1271 = vmatprep.subr.bf16.mxu0 %v723
  %1272 = vmatpush1.bf16.msra.mxu0 %v722
  %1273 = vmatprep.mubr.bf16.mxu0 %v1146
  %1274 = vmatmul.mubr.bf16.gmra.mrb[0].mxu0 %v1145
  %v1275 = vpop.f32.mrb[0].mxu0
  %v1276 = vadd.f32 %v1235, %v1275
  %v1277 = vpop.f32.mrb[0].mxu0
  %v1278 = vadd.f32 %v1237, %v1277
  %v1279 = vpop.f32.mrb[0].mxu0
  %v1280 = vpop.f32.mrb[0].mxu0
  %1281 = vdwg.mxu0
  %1282 = vmatprep.subr.bf16.mxu0 %v725
  %1283 = vmatpush1.bf16.msra.mxu0 %v724
  %1284 = vmatprep.subr.bf16.mxu0 %v727
  %1285 = vmatpush1.bf16.msra.mxu0 %v726
  %1286 = vmatprep.subr.bf16.mxu0 %v729
  %1287 = vmatpush1.bf16.msra.mxu0 %v728
  %1288 = vmatprep.subr.bf16.mxu0 %v731
  %1289 = vmatpush1.bf16.msra.mxu0 %v730
  %1290 = vmatprep.subr.bf16.mxu0 %v733
  %1291 = vmatpush1.bf16.msra.mxu0 %v732
  %1292 = vmatprep.subr.bf16.mxu0 %v735
  %1293 = vmatpush1.bf16.msra.mxu0 %v734
  %1294 = vmatprep.subr.bf16.mxu0 %v737
  %1295 = vmatpush1.bf16.msra.mxu0 %v736
  %1296 = vmatprep.subr.bf16.mxu0 %v739
  %1297 = vmatpush1.bf16.msra.mxu0 %v738
  %1298 = vmatprep.subr.bf16.mxu0 %v741
  %1299 = vmatpush1.bf16.msra.mxu0 %v740
  %1300 = vmatprep.subr.bf16.mxu0 %v743
  %1301 = vmatpush1.bf16.msra.mxu0 %v742
  %1302 = vmatprep.subr.bf16.mxu0 %v745
  %1303 = vmatpush1.bf16.msra.mxu0 %v744
  %1304 = vmatprep.subr.bf16.mxu0 %v747
  %1305 = vmatpush1.bf16.msra.mxu0 %v746
  %1306 = vmatprep.subr.bf16.mxu0 %v749
  %1307 = vmatpush1.bf16.msra.mxu0 %v748
  %1308 = vmatprep.subr.bf16.mxu0 %v751
  %1309 = vmatpush1.bf16.msra.mxu0 %v750
  %1310 = vmatprep.subr.bf16.mxu0 %v753
  %1311 = vmatpush1.bf16.msra.mxu0 %v752
  %1312 = vmatprep.subr.bf16.mxu0 %v755
  %1313 = vmatpush1.bf16.msra.mxu0 %v754
  %1314 = vmatprep.mubr.bf16.mxu0 %v1148
  %1315 = vmatmul.mubr.bf16.gmra.mrb[0].mxu0 %v1147
  %v1316 = vpop.f32.mrb[0].mxu0
  %v1317 = vadd.f32 %v1276, %v1316
  %v1318 = vpop.f32.mrb[0].mxu0
  %v1319 = vadd.f32 %v1278, %v1318
  %v1320 = vpop.f32.mrb[0].mxu0
  %v1321 = vpop.f32.mrb[0].mxu0
  %1322 = vdwg.mxu0
  %1323 = vmatprep.subr.bf16.mxu0 %v757
  %1324 = vmatpush1.bf16.msra.mxu0 %v756
  %1325 = vmatprep.subr.bf16.mxu0 %v759
  %1326 = vmatpush1.bf16.msra.mxu0 %v758
  %1327 = vmatprep.subr.bf16.mxu0 %v761
  %1328 = vmatpush1.bf16.msra.mxu0 %v760
  %1329 = vmatprep.subr.bf16.mxu0 %v763
  %1330 = vmatpush1.bf16.msra.mxu0 %v762
  %1331 = vmatprep.subr.bf16.mxu0 %v765
  %1332 = vmatpush1.bf16.msra.mxu0 %v764
  %1333 = vmatprep.subr.bf16.mxu0 %v767
  %1334 = vmatpush1.bf16.msra.mxu0 %v766
  %1335 = vmatprep.subr.bf16.mxu0 %v769
  %1336 = vmatpush1.bf16.msra.mxu0 %v768
  %1337 = vmatprep.subr.bf16.mxu0 %v771
  %1338 = vmatpush1.bf16.msra.mxu0 %v770
  %1339 = vmatprep.subr.bf16.mxu0 0
  %1340 = vmatpush1.bf16.msra.mxu0 0
  %1341 = vmatprep.subr.bf16.mxu0 0
  %1342 = vmatpush1.bf16.msra.mxu0 0
  %1343 = vmatprep.subr.bf16.mxu0 0
  %1344 = vmatpush1.bf16.msra.mxu0 0
  %1345 = vmatprep.subr.bf16.mxu0 0
  %1346 = vmatpush1.bf16.msra.mxu0 0
  %1347 = vmatprep.subr.bf16.mxu0 0
  %1348 = vmatpush1.bf16.msra.mxu0 0
  %1349 = vmatprep.subr.bf16.mxu0 0
  %1350 = vmatpush1.bf16.msra.mxu0 0
  %1351 = vmatprep.subr.bf16.mxu0 0
  %1352 = vmatpush1.bf16.msra.mxu0 0
  %1353 = vmatprep.subr.bf16.mxu0 0
  %1354 = vmatpush1.bf16.msra.mxu0 0
  %1355 = vmatprep.mubr.bf16.mxu0 0
  %1356 = vmatmul.mubr.bf16.gmra.mrb[0].mxu0 %v1149
  %v1357 = vpop.f32.mrb[0].mxu0
  %v1358 = vadd.f32 %v1317, %v1357
  %v1359 = vpop.f32.mrb[0].mxu0
  %v1360 = vadd.f32 %v1319, %v1359
  %v1361 = vpop.f32.mrb[0].mxu0
  %v1362 = vpop.f32.mrb[0].mxu0
  %1363 = vdwg.mxu0
  %s1364 = scalar_lea.vmem %s0, 72
  %v1365 = vld [vmem:[%s1364] sm:$0xff]
  %v1366 = vld [vmem:[%s1364 + $0x8] sm:$0xff]
  %v1367 = vld [vmem:[%s1364 + $0x10] sm:$0xff]
  %v1368 = vld [vmem:[%s1364 + $0x18] sm:$0xff]
  %v1369 = vld [vmem:[%s1364 + $0x20] sm:$0xf]
  %v1375 = vunpack.c.l.b16 %v1365
  %v1376 = vunpack.c.h.b16 %v1365
  %v1377 = vunpack.c.l.b16 %v1366
  %v1378 = vunpack.c.h.b16 %v1366
  %v1379 = vunpack.c.l.b16 %v1367
  %v1380 = vunpack.c.h.b16 %v1367
  %v1381 = vunpack.c.l.b16 %v1368
  %v1382 = vunpack.c.h.b16 %v1368
  %v1383 = vunpack.c.l.b16 %v1369
  %v1384 = vpack.c.b16 %v1375, %v1375
  %v1385 = vpack.c.b16 %v1376, %v1376
  %v1386 = vpack.c.b16 %v1377, %v1377
  %v1387 = vpack.c.b16 %v1378, %v1378
  %v1388 = vpack.c.b16 %v1379, %v1379
  %v1389 = vpack.c.b16 %v1380, %v1380
  %v1390 = vpack.c.b16 %v1381, %v1381
  %v1391 = vpack.c.b16 %v1382, %v1382
  %v1392 = vpack.c.b16 %v1383, %v1383
  %1402 = vmatprep.subr.bf16.mxu0 %v629
  %1403 = vmatpush1.bf16.msra.mxu0 %v628
  %1404 = vmatprep.subr.bf16.mxu0 %v631
  %1405 = vmatpush1.bf16.msra.mxu0 %v630
  %1406 = vmatprep.subr.bf16.mxu0 %v633
  %1407 = vmatpush1.bf16.msra.mxu0 %v632
  %1408 = vmatprep.subr.bf16.mxu0 %v635
  %1409 = vmatpush1.bf16.msra.mxu0 %v634
  %1410 = vmatprep.subr.bf16.mxu0 %v637
  %1411 = vmatpush1.bf16.msra.mxu0 %v636
  %1412 = vmatprep.subr.bf16.mxu0 %v639
  %1413 = vmatpush1.bf16.msra.mxu0 %v638
  %1414 = vmatprep.subr.bf16.mxu0 %v641
  %1415 = vmatpush1.bf16.msra.mxu0 %v640
  %1416 = vmatprep.subr.bf16.mxu0 %v643
  %1417 = vmatpush1.bf16.msra.mxu0 %v642
  %1418 = vmatprep.subr.bf16.mxu0 %v645
  %1419 = vmatpush1.bf16.msra.mxu0 %v644
  %1420 = vmatprep.subr.bf16.mxu0 %v647
  %1421 = vmatpush1.bf16.msra.mxu0 %v646
  %1422 = vmatprep.subr.bf16.mxu0 %v649
  %1423 = vmatpush1.bf16.msra.mxu0 %v648
  %1424 = vmatprep.subr.bf16.mxu0 %v651
  %1425 = vmatpush1.bf16.msra.mxu0 %v650
  %1426 = vmatprep.subr.bf16.mxu0 %v653
  %1427 = vmatpush1.bf16.msra.mxu0 %v652
  %1428 = vmatprep.subr.bf16.mxu0 %v655
  %1429 = vmatpush1.bf16.msra.mxu0 %v654
  %1430 = vmatprep.subr.bf16.mxu0 %v657
  %1431 = vmatpush1.bf16.msra.mxu0 %v656
  %1432 = vmatprep.subr.bf16.mxu0 %v659
  %1433 = vmatpush1.bf16.msra.mxu0 %v658
  %1434 = vmatprep.mubr.bf16.mxu0 %v1385
  %1435 = vmatmul.mubr.bf16.gmra.mrb[0].mxu0 %v1384
  %v1436 = vpop.f32.mrb[0].mxu0
  %v1437 = vadd.f32 0.0, %v1436
  %v1438 = vpop.f32.mrb[0].mxu0
  %v1439 = vadd.f32 0.0, %v1438
  %v1440 = vpop.f32.mrb[0].mxu0
  %v1441 = vpop.f32.mrb[0].mxu0
  %1442 = vdwg.mxu0
  %1443 = vmatprep.subr.bf16.mxu0 %v661
  %1444 = vmatpush1.bf16.msra.mxu0 %v660
  %1445 = vmatprep.subr.bf16.mxu0 %v663
  %1446 = vmatpush1.bf16.msra.mxu0 %v662
  %1447 = vmatprep.subr.bf16.mxu0 %v665
  %1448 = vmatpush1.bf16.msra.mxu0 %v664
  %1449 = vmatprep.subr.bf16.mxu0 %v667
  %1450 = vmatpush1.bf16.msra.mxu0 %v666
  %1451 = vmatprep.subr.bf16.mxu0 %v669
  %1452 = vmatpush1.bf16.msra.mxu0 %v668
  %1453 = vmatprep.subr.bf16.mxu0 %v671
  %1454 = vmatpush1.bf16.msra.mxu0 %v670
  %1455 = vmatprep.subr.bf16.mxu0 %v673
  %1456 = vmatpush1.bf16.msra.mxu0 %v672
  %1457 = vmatprep.subr.bf16.mxu0 %v675
  %1458 = vmatpush1.bf16.msra.mxu0 %v674
  %1459 = vmatprep.subr.bf16.mxu0 %v677
  %1460 = vmatpush1.bf16.msra.mxu0 %v676
  %1461 = vmatprep.subr.bf16.mxu0 %v679
  %1462 = vmatpush1.bf16.msra.mxu0 %v678
  %1463 = vmatprep.subr.bf16.mxu0 %v681
  %1464 = vmatpush1.bf16.msra.mxu0 %v680
  %1465 = vmatprep.subr.bf16.mxu0 %v683
  %1466 = vmatpush1.bf16.msra.mxu0 %v682
  %1467 = vmatprep.subr.bf16.mxu0 %v685
  %1468 = vmatpush1.bf16.msra.mxu0 %v684
  %1469 = vmatprep.subr.bf16.mxu0 %v687
  %1470 = vmatpush1.bf16.msra.mxu0 %v686
  %1471 = vmatprep.subr.bf16.mxu0 %v689
  %1472 = vmatpush1.bf16.msra.mxu0 %v688
  %1473 = vmatprep.subr.bf16.mxu0 %v691
  %1474 = vmatpush1.bf16.msra.mxu0 %v690
  %1475 = vmatprep.mubr.bf16.mxu0 %v1387
  %1476 = vmatmul.mubr.bf16.gmra.mrb[0].mxu0 %v1386
  %v1477 = vpop.f32.mrb[0].mxu0
  %v1478 = vadd.f32 %v1437, %v1477
  %v1479 = vpop.f32.mrb[0].mxu0
  %v1480 = vadd.f32 %v1439, %v1479
  %v1481 = vpop.f32.mrb[0].mxu0
  %v1482 = vpop.f32.mrb[0].mxu0
  %1483 = vdwg.mxu0
  %1484 = vmatprep.subr.bf16.mxu0 %v693
  %1485 = vmatpush1.bf16.msra.mxu0 %v692
  %1486 = vmatprep.subr.bf16.mxu0 %v695
  %1487 = vmatpush1.bf16.msra.mxu0 %v694
  %1488 = vmatprep.subr.bf16.mxu0 %v697
  %1489 = vmatpush1.bf16.msra.mxu0 %v696
  %1490 = vmatprep.subr.bf16.mxu0 %v699
  %1491 = vmatpush1.bf16.msra.mxu0 %v698
  %1492 = vmatprep.subr.bf16.mxu0 %v701
  %1493 = vmatpush1.bf16.msra.mxu0 %v700
  %1494 = vmatprep.subr.bf16.mxu0 %v703
  %1495 = vmatpush1.bf16.msra.mxu0 %v702
  %1496 = vmatprep.subr.bf16.mxu0 %v705
  %1497 = vmatpush1.bf16.msra.mxu0 %v704
  %1498 = vmatprep.subr.bf16.mxu0 %v707
  %1499 = vmatpush1.bf16.msra.mxu0 %v706
  %1500 = vmatprep.subr.bf16.mxu0 %v709
  %1501 = vmatpush1.bf16.msra.mxu0 %v708
  %1502 = vmatprep.subr.bf16.mxu0 %v711
  %1503 = vmatpush1.bf16.msra.mxu0 %v710
  %1504 = vmatprep.subr.bf16.mxu0 %v713
  %1505 = vmatpush1.bf16.msra.mxu0 %v712
  %1506 = vmatprep.subr.bf16.mxu0 %v715
  %1507 = vmatpush1.bf16.msra.mxu0 %v714
  %1508 = vmatprep.subr.bf16.mxu0 %v717
  %1509 = vmatpush1.bf16.msra.mxu0 %v716
  %1510 = vmatprep.subr.bf16.mxu0 %v719
  %1511 = vmatpush1.bf16.msra.mxu0 %v718
  %1512 = vmatprep.subr.bf16.mxu0 %v721
  %1513 = vmatpush1.bf16.msra.mxu0 %v720
  %1514 = vmatprep.subr.bf16.mxu0 %v723
  %1515 = vmatpush1.bf16.msra.mxu0 %v722
  %1516 = vmatprep.mubr.bf16.mxu0 %v1389
  %1517 = vmatmul.mubr.bf16.gmra.mrb[0].mxu0 %v1388
  %v1518 = vpop.f32.mrb[0].mxu0
  %v1519 = vadd.f32 %v1478, %v1518
  %v1520 = vpop.f32.mrb[0].mxu0
  %v1521 = vadd.f32 %v1480, %v1520
  %v1522 = vpop.f32.mrb[0].mxu0
  %v1523 = vpop.f32.mrb[0].mxu0
  %1524 = vdwg.mxu0
  %1525 = vmatprep.subr.bf16.mxu0 %v725
  %1526 = vmatpush1.bf16.msra.mxu0 %v724
  %1527 = vmatprep.subr.bf16.mxu0 %v727
  %1528 = vmatpush1.bf16.msra.mxu0 %v726
  %1529 = vmatprep.subr.bf16.mxu0 %v729
  %1530 = vmatpush1.bf16.msra.mxu0 %v728
  %1531 = vmatprep.subr.bf16.mxu0 %v731
  %1532 = vmatpush1.bf16.msra.mxu0 %v730
  %1533 = vmatprep.subr.bf16.mxu0 %v733
  %1534 = vmatpush1.bf16.msra.mxu0 %v732
  %1535 = vmatprep.subr.bf16.mxu0 %v735
  %1536 = vmatpush1.bf16.msra.mxu0 %v734
  %1537 = vmatprep.subr.bf16.mxu0 %v737
  %1538 = vmatpush1.bf16.msra.mxu0 %v736
  %1539 = vmatprep.subr.bf16.mxu0 %v739
  %1540 = vmatpush1.bf16.msra.mxu0 %v738
  %1541 = vmatprep.subr.bf16.mxu0 %v741
  %1542 = vmatpush1.bf16.msra.mxu0 %v740
  %1543 = vmatprep.subr.bf16.mxu0 %v743
  %1544 = vmatpush1.bf16.msra.mxu0 %v742
  %1545 = vmatprep.subr.bf16.mxu0 %v745
  %1546 = vmatpush1.bf16.msra.mxu0 %v744
  %1547 = vmatprep.subr.bf16.mxu0 %v747
  %1548 = vmatpush1.bf16.msra.mxu0 %v746
  %1549 = vmatprep.subr.bf16.mxu0 %v749
  %1550 = vmatpush1.bf16.msra.mxu0 %v748
  %1551 = vmatprep.subr.bf16.mxu0 %v751
  %1552 = vmatpush1.bf16.msra.mxu0 %v750
  %1553 = vmatprep.subr.bf16.mxu0 %v753
  %1554 = vmatpush1.bf16.msra.mxu0 %v752
  %1555 = vmatprep.subr.bf16.mxu0 %v755
  %1556 = vmatpush1.bf16.msra.mxu0 %v754
  %1557 = vmatprep.mubr.bf16.mxu0 %v1391
  %1558 = vmatmul.mubr.bf16.gmra.mrb[0].mxu0 %v1390
  %v1559 = vpop.f32.mrb[0].mxu0
  %v1560 = vadd.f32 %v1519, %v1559
  %v1561 = vpop.f32.mrb[0].mxu0
  %v1562 = vadd.f32 %v1521, %v1561
  %v1563 = vpop.f32.mrb[0].mxu0
  %v1564 = vpop.f32.mrb[0].mxu0
  %1565 = vdwg.mxu0
  %1566 = vmatprep.subr.bf16.mxu0 %v757
  %1567 = vmatpush1.bf16.msra.mxu0 %v756
  %1568 = vmatprep.subr.bf16.mxu0 %v759
  %1569 = vmatpush1.bf16.msra.mxu0 %v758
  %1570 = vmatprep.subr.bf16.mxu0 %v761
  %1571 = vmatpush1.bf16.msra.mxu0 %v760
  %1572 = vmatprep.subr.bf16.mxu0 %v763
  %1573 = vmatpush1.bf16.msra.mxu0 %v762
  %1574 = vmatprep.subr.bf16.mxu0 %v765
  %1575 = vmatpush1.bf16.msra.mxu0 %v764
  %1576 = vmatprep.subr.bf16.mxu0 %v767
  %1577 = vmatpush1.bf16.msra.mxu0 %v766
  %1578 = vmatprep.subr.bf16.mxu0 %v769
  %1579 = vmatpush1.bf16.msra.mxu0 %v768
  %1580 = vmatprep.subr.bf16.mxu0 %v771
  %1581 = vmatpush1.bf16.msra.mxu0 %v770
  %1582 = vmatprep.subr.bf16.mxu0 0
  %1583 = vmatpush1.bf16.msra.mxu0 0
  %1584 = vmatprep.subr.bf16.mxu0 0
  %1585 = vmatpush1.bf16.msra.mxu0 0
  %1586 = vmatprep.subr.bf16.mxu0 0
  %1587 = vmatpush1.bf16.msra.mxu0 0
  %1588 = vmatprep.subr.bf16.mxu0 0
  %1589 = vmatpush1.bf16.msra.mxu0 0
  %1590 = vmatprep.subr.bf16.mxu0 0
  %1591 = vmatpush1.bf16.msra.mxu0 0
  %1592 = vmatprep.subr.bf16.mxu0 0
  %1593 = vmatpush1.bf16.msra.mxu0 0
  %1594 = vmatprep.subr.bf16.mxu0 0
  %1595 = vmatpush1.bf16.msra.mxu0 0
  %1596 = vmatprep.subr.bf16.mxu0 0
  %1597 = vmatpush1.bf16.msra.mxu0 0
  %1598 = vmatprep.mubr.bf16.mxu0 0
  %1599 = vmatmul.mubr.bf16.gmra.mrb[0].mxu0 %v1392
  %v1600 = vpop.f32.mrb[0].mxu0
  %v1601 = vadd.f32 %v1560, %v1600
  %v1602 = vpop.f32.mrb[0].mxu0
  %v1603 = vadd.f32 %v1562, %v1602
  %v1604 = vpop.f32.mrb[0].mxu0
  %v1605 = vpop.f32.mrb[0].mxu0
  %1606 = vdwg.mxu0
  %s1607 = scalar_lea.vmem %s0, 108
  %v1608 = vld [vmem:[%s1607] sm:$0xff]
  %v1609 = vld [vmem:[%s1607 + $0x8] sm:$0xff]
  %v1610 = vld [vmem:[%s1607 + $0x10] sm:$0xff]
  %v1611 = vld [vmem:[%s1607 + $0x18] sm:$0xff]
  %v1612 = vld [vmem:[%s1607 + $0x20] sm:$0xf]
  %v1618 = vunpack.c.l.b16 %v1608
  %v1619 = vunpack.c.h.b16 %v1608
  %v1620 = vunpack.c.l.b16 %v1609
  %v1621 = vunpack.c.h.b16 %v1609
  %v1622 = vunpack.c.l.b16 %v1610
  %v1623 = vunpack.c.h.b16 %v1610
  %v1624 = vunpack.c.l.b16 %v1611
  %v1625 = vunpack.c.h.b16 %v1611
  %v1626 = vunpack.c.l.b16 %v1612
  %v1627 = vpack.c.b16 %v1618, %v1618
  %v1628 = vpack.c.b16 %v1619, %v1619
  %v1629 = vpack.c.b16 %v1620, %v1620
  %v1630 = vpack.c.b16 %v1621, %v1621
  %v1631 = vpack.c.b16 %v1622, %v1622
  %v1632 = vpack.c.b16 %v1623, %v1623
  %v1633 = vpack.c.b16 %v1624, %v1624
  %v1634 = vpack.c.b16 %v1625, %v1625
  %v1635 = vpack.c.b16 %v1626, %v1626
  %1645 = vmatprep.subr.bf16.mxu0 %v629
  %1646 = vmatpush1.bf16.msra.mxu0 %v628
  %1647 = vmatprep.subr.bf16.mxu0 %v631
  %1648 = vmatpush1.bf16.msra.mxu0 %v630
  %1649 = vmatprep.subr.bf16.mxu0 %v633
  %1650 = vmatpush1.bf16.msra.mxu0 %v632
  %1651 = vmatprep.subr.bf16.mxu0 %v635
  %1652 = vmatpush1.bf16.msra.mxu0 %v634
  %1653 = vmatprep.subr.bf16.mxu0 %v637
  %1654 = vmatpush1.bf16.msra.mxu0 %v636
  %1655 = vmatprep.subr.bf16.mxu0 %v639
  %1656 = vmatpush1.bf16.msra.mxu0 %v638
  %1657 = vmatprep.subr.bf16.mxu0 %v641
  %1658 = vmatpush1.bf16.msra.mxu0 %v640
  %1659 = vmatprep.subr.bf16.mxu0 %v643
  %1660 = vmatpush1.bf16.msra.mxu0 %v642
  %1661 = vmatprep.subr.bf16.mxu0 %v645
  %1662 = vmatpush1.bf16.msra.mxu0 %v644
  %1663 = vmatprep.subr.bf16.mxu0 %v647
  %1664 = vmatpush1.bf16.msra.mxu0 %v646
  %1665 = vmatprep.subr.bf16.mxu0 %v649
  %1666 = vmatpush1.bf16.msra.mxu0 %v648
  %1667 = vmatprep.subr.bf16.mxu0 %v651
  %1668 = vmatpush1.bf16.msra.mxu0 %v650
  %1669 = vmatprep.subr.bf16.mxu0 %v653
  %1670 = vmatpush1.bf16.msra.mxu0 %v652
  %1671 = vmatprep.subr.bf16.mxu0 %v655
  %1672 = vmatpush1.bf16.msra.mxu0 %v654
  %1673 = vmatprep.subr.bf16.mxu0 %v657
  %1674 = vmatpush1.bf16.msra.mxu0 %v656
  %1675 = vmatprep.subr.bf16.mxu0 %v659
  %1676 = vmatpush1.bf16.msra.mxu0 %v658
  %1677 = vmatprep.mubr.bf16.mxu0 %v1628
  %1678 = vmatmul.mubr.bf16.gmra.mrb[0].mxu0 %v1627
  %v1679 = vpop.f32.mrb[0].mxu0
  %v1680 = vadd.f32 0.0, %v1679
  %v1681 = vpop.f32.mrb[0].mxu0
  %v1682 = vadd.f32 0.0, %v1681
  %v1683 = vpop.f32.mrb[0].mxu0
  %v1684 = vpop.f32.mrb[0].mxu0
  %1685 = vdwg.mxu0
  %1686 = vmatprep.subr.bf16.mxu0 %v661
  %1687 = vmatpush1.bf16.msra.mxu0 %v660
  %1688 = vmatprep.subr.bf16.mxu0 %v663
  %1689 = vmatpush1.bf16.msra.mxu0 %v662
  %1690 = vmatprep.subr.bf16.mxu0 %v665
  %1691 = vmatpush1.bf16.msra.mxu0 %v664
  %1692 = vmatprep.subr.bf16.mxu0 %v667
  %1693 = vmatpush1.bf16.msra.mxu0 %v666
  %1694 = vmatprep.subr.bf16.mxu0 %v669
  %1695 = vmatpush1.bf16.msra.mxu0 %v668
  %1696 = vmatprep.subr.bf16.mxu0 %v671
  %1697 = vmatpush1.bf16.msra.mxu0 %v670
  %1698 = vmatprep.subr.bf16.mxu0 %v673
  %1699 = vmatpush1.bf16.msra.mxu0 %v672
  %1700 = vmatprep.subr.bf16.mxu0 %v675
  %1701 = vmatpush1.bf16.msra.mxu0 %v674
  %1702 = vmatprep.subr.bf16.mxu0 %v677
  %1703 = vmatpush1.bf16.msra.mxu0 %v676
  %1704 = vmatprep.subr.bf16.mxu0 %v679
  %1705 = vmatpush1.bf16.msra.mxu0 %v678
  %1706 = vmatprep.subr.bf16.mxu0 %v681
  %1707 = vmatpush1.bf16.msra.mxu0 %v680
  %1708 = vmatprep.subr.bf16.mxu0 %v683
  %1709 = vmatpush1.bf16.msra.mxu0 %v682
  %1710 = vmatprep.subr.bf16.mxu0 %v685
  %1711 = vmatpush1.bf16.msra.mxu0 %v684
  %1712 = vmatprep.subr.bf16.mxu0 %v687
  %1713 = vmatpush1.bf16.msra.mxu0 %v686
  %1714 = vmatprep.subr.bf16.mxu0 %v689
  %1715 = vmatpush1.bf16.msra.mxu0 %v688
  %1716 = vmatprep.subr.bf16.mxu0 %v691
  %1717 = vmatpush1.bf16.msra.mxu0 %v690
  %1718 = vmatprep.mubr.bf16.mxu0 %v1630
  %1719 = vmatmul.mubr.bf16.gmra.mrb[0].mxu0 %v1629
  %v1720 = vpop.f32.mrb[0].mxu0
  %v1721 = vadd.f32 %v1680, %v1720
  %v1722 = vpop.f32.mrb[0].mxu0
  %v1723 = vadd.f32 %v1682, %v1722
  %v1724 = vpop.f32.mrb[0].mxu0
  %v1725 = vpop.f32.mrb[0].mxu0
  %1726 = vdwg.mxu0
  %1727 = vmatprep.subr.bf16.mxu0 %v693
  %1728 = vmatpush1.bf16.msra.mxu0 %v692
  %1729 = vmatprep.subr.bf16.mxu0 %v695
  %1730 = vmatpush1.bf16.msra.mxu0 %v694
  %1731 = vmatprep.subr.bf16.mxu0 %v697
  %1732 = vmatpush1.bf16.msra.mxu0 %v696
  %1733 = vmatprep.subr.bf16.mxu0 %v699
  %1734 = vmatpush1.bf16.msra.mxu0 %v698
  %1735 = vmatprep.subr.bf16.mxu0 %v701
  %1736 = vmatpush1.bf16.msra.mxu0 %v700
  %1737 = vmatprep.subr.bf16.mxu0 %v703
  %1738 = vmatpush1.bf16.msra.mxu0 %v702
  %1739 = vmatprep.subr.bf16.mxu0 %v705
  %1740 = vmatpush1.bf16.msra.mxu0 %v704
  %1741 = vmatprep.subr.bf16.mxu0 %v707
  %1742 = vmatpush1.bf16.msra.mxu0 %v706
  %1743 = vmatprep.subr.bf16.mxu0 %v709
  %1744 = vmatpush1.bf16.msra.mxu0 %v708
  %1745 = vmatprep.subr.bf16.mxu0 %v711
  %1746 = vmatpush1.bf16.msra.mxu0 %v710
  %1747 = vmatprep.subr.bf16.mxu0 %v713
  %1748 = vmatpush1.bf16.msra.mxu0 %v712
  %1749 = vmatprep.subr.bf16.mxu0 %v715
  %1750 = vmatpush1.bf16.msra.mxu0 %v714
  %1751 = vmatprep.subr.bf16.mxu0 %v717
  %1752 = vmatpush1.bf16.msra.mxu0 %v716
  %1753 = vmatprep.subr.bf16.mxu0 %v719
  %1754 = vmatpush1.bf16.msra.mxu0 %v718
  %1755 = vmatprep.subr.bf16.mxu0 %v721
  %1756 = vmatpush1.bf16.msra.mxu0 %v720
  %1757 = vmatprep.subr.bf16.mxu0 %v723
  %1758 = vmatpush1.bf16.msra.mxu0 %v722
  %1759 = vmatprep.mubr.bf16.mxu0 %v1632
  %1760 = vmatmul.mubr.bf16.gmra.mrb[0].mxu0 %v1631
  %v1761 = vpop.f32.mrb[0].mxu0
  %v1762 = vadd.f32 %v1721, %v1761
  %v1763 = vpop.f32.mrb[0].mxu0
  %v1764 = vadd.f32 %v1723, %v1763
  %v1765 = vpop.f32.mrb[0].mxu0
  %v1766 = vpop.f32.mrb[0].mxu0
  %1767 = vdwg.mxu0
  %1768 = vmatprep.subr.bf16.mxu0 %v725
  %1769 = vmatpush1.bf16.msra.mxu0 %v724
  %1770 = vmatprep.subr.bf16.mxu0 %v727
  %1771 = vmatpush1.bf16.msra.mxu0 %v726
  %1772 = vmatprep.subr.bf16.mxu0 %v729
  %1773 = vmatpush1.bf16.msra.mxu0 %v728
  %1774 = vmatprep.subr.bf16.mxu0 %v731
  %1775 = vmatpush1.bf16.msra.mxu0 %v730
  %1776 = vmatprep.subr.bf16.mxu0 %v733
  %1777 = vmatpush1.bf16.msra.mxu0 %v732
  %1778 = vmatprep.subr.bf16.mxu0 %v735
  %1779 = vmatpush1.bf16.msra.mxu0 %v734
  %1780 = vmatprep.subr.bf16.mxu0 %v737
  %1781 = vmatpush1.bf16.msra.mxu0 %v736
  %1782 = vmatprep.subr.bf16.mxu0 %v739
  %1783 = vmatpush1.bf16.msra.mxu0 %v738
  %1784 = vmatprep.subr.bf16.mxu0 %v741
  %1785 = vmatpush1.bf16.msra.mxu0 %v740
  %1786 = vmatprep.subr.bf16.mxu0 %v743
  %1787 = vmatpush1.bf16.msra.mxu0 %v742
  %1788 = vmatprep.subr.bf16.mxu0 %v745
  %1789 = vmatpush1.bf16.msra.mxu0 %v744
  %1790 = vmatprep.subr.bf16.mxu0 %v747
  %1791 = vmatpush1.bf16.msra.mxu0 %v746
  %1792 = vmatprep.subr.bf16.mxu0 %v749
  %1793 = vmatpush1.bf16.msra.mxu0 %v748
  %1794 = vmatprep.subr.bf16.mxu0 %v751
  %1795 = vmatpush1.bf16.msra.mxu0 %v750
  %1796 = vmatprep.subr.bf16.mxu0 %v753
  %1797 = vmatpush1.bf16.msra.mxu0 %v752
  %1798 = vmatprep.subr.bf16.mxu0 %v755
  %1799 = vmatpush1.bf16.msra.mxu0 %v754
  %1800 = vmatprep.mubr.bf16.mxu0 %v1634
  %1801 = vmatmul.mubr.bf16.gmra.mrb[0].mxu0 %v1633
  %v1802 = vpop.f32.mrb[0].mxu0
  %v1803 = vadd.f32 %v1762, %v1802
  %v1804 = vpop.f32.mrb[0].mxu0
  %v1805 = vadd.f32 %v1764, %v1804
  %v1806 = vpop.f32.mrb[0].mxu0
  %v1807 = vpop.f32.mrb[0].mxu0
  %1808 = vdwg.mxu0
  %1809 = vmatprep.subr.bf16.mxu0 %v757
  %1810 = vmatpush1.bf16.msra.mxu0 %v756
  %1811 = vmatprep.subr.bf16.mxu0 %v759
  %1812 = vmatpush1.bf16.msra.mxu0 %v758
  %1813 = vmatprep.subr.bf16.mxu0 %v761
  %1814 = vmatpush1.bf16.msra.mxu0 %v760
  %1815 = vmatprep.subr.bf16.mxu0 %v763
  %1816 = vmatpush1.bf16.msra.mxu0 %v762
  %1817 = vmatprep.subr.bf16.mxu0 %v765
  %1818 = vmatpush1.bf16.msra.mxu0 %v764
  %1819 = vmatprep.subr.bf16.mxu0 %v767
  %1820 = vmatpush1.bf16.msra.mxu0 %v766
  %1821 = vmatprep.subr.bf16.mxu0 %v769
  %1822 = vmatpush1.bf16.msra.mxu0 %v768
  %1823 = vmatprep.subr.bf16.mxu0 %v771
  %1824 = vmatpush1.bf16.msra.mxu0 %v770
  %1825 = vmatprep.subr.bf16.mxu0 0
  %1826 = vmatpush1.bf16.msra.mxu0 0
  %1827 = vmatprep.subr.bf16.mxu0 0
  %1828 = vmatpush1.bf16.msra.mxu0 0
  %1829 = vmatprep.subr.bf16.mxu0 0
  %1830 = vmatpush1.bf16.msra.mxu0 0
  %1831 = vmatprep.subr.bf16.mxu0 0
  %1832 = vmatpush1.bf16.msra.mxu0 0
  %1833 = vmatprep.subr.bf16.mxu0 0
  %1834 = vmatpush1.bf16.msra.mxu0 0
  %1835 = vmatprep.subr.bf16.mxu0 0
  %1836 = vmatpush1.bf16.msra.mxu0 0
  %1837 = vmatprep.subr.bf16.mxu0 0
  %1838 = vmatpush1.bf16.msra.mxu0 0
  %1839 = vmatprep.subr.bf16.mxu0 0
  %1840 = vmatpush1.bf16.msra.mxu0 0
  %1841 = vmatprep.mubr.bf16.mxu0 0
  %1842 = vmatmul.mubr.bf16.gmra.mrb[0].mxu0 %v1635
  %v1843 = vpop.f32.mrb[0].mxu0
  %v1844 = vadd.f32 %v1803, %v1843
  %v1845 = vpop.f32.mrb[0].mxu0
  %v1846 = vadd.f32 %v1805, %v1845
  %v1847 = vpop.f32.mrb[0].mxu0
  %v1848 = vpop.f32.mrb[0].mxu0
  %1849 = vdwg.mxu0
  %v1850 = vmax.f32 %v1115, %v1358
  %v1851 = vmax.f32 %v1117, %v1360
  %v1852 = vmax.f32 %v1601, %v1844
  %v1853 = vmax.f32 %v1603, %v1846
  %v1854 = vmax.f32 %v1850, %v1852
  %v1855 = vmax.f32 %v1851, %v1853
  %v1856 = vld [vmem:[%s2] sm:$0x3]
  %v1858 = vlaneseq
  %v1859 = vshrl.u32 %v1858, 7
  %v1860 = vsub.s32 0, %v1859
  %v1861 = vrot.slane %v1856, %v1860
  %v1862 = vlaneseq
  %v1863 = vshrl.u32 %v1862, 7
  %v1864 = vsub.s32 1, %v1863
  %v1865 = vrot.slane %v1856, %v1864
  %v1868 = vadd.f32 %v1854, %v1861
  %v1869 = vadd.f32 %v1855, %v1865
  %v1870 = vmax.f32 %v1868, 0.0
  %v1871 = vmax.f32 %v1869, 0.0
  %v1872 = vpack.c.bf16 %v1870, %v1870
  %v1873 = vpack.c.bf16 %v1871, %v1871
  %v1876 = vunpack.c.l.b16 %v1872
  %v1877 = vunpack.c.l.b16 %v1873
  %v1878 = vpack.c.b16 %v1877, %v1876
  %1880 = vst [vmem:[%s3] sm:$0xff] %v1878
  // Predicated region
  $region14: #{net_forward.6} parent=0 // pred_check
    _
  $region15: #{net_forward.6} parent=0 // pred_check_branch
    %1882 = sbr.rel (0) target = $region17
  $region16: #{net_forward.6} parent=0 // pred_region
    _
  $region17: #{net_forward.6} parent=0 // pred_fallthru
    _
  // Predicated region
  $region18: #{net_forward.6} parent=0 // pred_check
    _
  $region19: #{net_forward.6} parent=0 // pred_check_branch
    %1884 = sbr.rel (0) target = $region21
  $region20: #{net_forward.6} parent=0 // pred_region
    _
  $region21: #{net_forward.6} parent=0 // pred_fallthru
    _

// kernel: net_forward.7
$region0: #{net_forward.7}
  #allocation0 [shape = 'u32[]', space=smem, size = 0x4, offset = 0x4, fixed_abs, tag = 'smem constant byte address 0x4 - core index']
  #allocation1 [shape = 'u32[144,128]{1,0:T(1,128)}', space=vmem, size = 0x12000, scoped, tag = 'internal scratch']
  %s0 = inlined_call_operand.vmem [shape: bf16[2,1024], index: 0, kind: input, shape index: {}]
  %s1 = inlined_call_operand.vmem [shape: bf16[1024,128], index: 1, kind: input, shape index: {}]
  %s2 = inlined_call_operand.vmem [shape: f32[1,128], index: 2, kind: input, shape index: {}]
  %s3 = inlined_call_operand.vmem [shape: bf16[128,256], index: 3, kind: input, shape index: {}]
  %s4 = inlined_call_operand.vmem [shape: f32[1,256], index: 4, kind: input, shape index: {}]
  %s5 = inlined_call_operand.vmem [shape: bf16[256,10], index: 5, kind: input, shape index: {}]
  %s6 = inlined_call_operand.vmem [shape: f32[1,10], index: 6, kind: input, shape index: {}]
  %s7 = inlined_call_operand.hbm [shape: f32[2,10], index: 7, kind: output, shape index: {}]
  %s8 = sld [smem:[#allocation0]]
  $region38: #{net_forward.7} parent=0
    _
  %s10 = ssub.s32 1, %s8
  %s11 = scalar_select 0, %s10, %s8
  $region1: #{net_forward.7} parent=0
    #allocation2 [shape = 'u8[1024]{0}', space=vmem, size = 0x400, scoped, tag = 'output window, operand 0, single buffered']
    #allocation3 [shape = 's32[1]{0}', space=sflag, size = 0x4, scoped, tag = 'scoped memory for net_forward.7']
    %12 = vsyncpa [#allocation3], 0
    // Predicated region
    $region2: #{net_forward.7} parent=1 // pred_check
      _
    $region3: #{net_forward.7} parent=1 // pred_check_branch
      %14 = sbr.rel (0) target = $region5
    $region4: #{net_forward.7} parent=1 // pred_region
      _
    $region5: #{net_forward.7} parent=1 // pred_fallthru
      _
    // Predicated region
    $region6: #{net_forward.7} parent=1 // pred_check
      _
    $region7: #{net_forward.7} parent=1 // pred_check_branch
      %16 = sbr.rel (0) target = $region9
    $region8: #{net_forward.7} parent=1 // pred_region
      _
    $region9: #{net_forward.7} parent=1 // pred_fallthru
      _
    // Predicated region
    $region10: #{net_forward.7} parent=1 // pred_check
      _
    $region11: #{net_forward.7} parent=1 // pred_check_branch
      %18 = sbr.rel (0) target = $region13
    $region12: #{net_forward.7} parent=1 // pred_region
      _
    $region13: #{net_forward.7} parent=1 // pred_fallthru
      _
    // Predicated region
    $region14: #{net_forward.7} parent=1 // pred_check
      _
    $region15: #{net_forward.7} parent=1 // pred_check_branch
      %20 = sbr.rel (0) target = $region17
    $region16: #{net_forward.7} parent=1 // pred_region
      _
    $region17: #{net_forward.7} parent=1 // pred_fallthru
      _
    // Predicated region
    $region18: #{net_forward.7} parent=1 // pred_check
      _
    $region19: #{net_forward.7} parent=1 // pred_check_branch
      %22 = sbr.rel (0) target = $region21
    $region20: #{net_forward.7} parent=1 // pred_region
      _
    $region21: #{net_forward.7} parent=1 // pred_fallthru
      _
    // Predicated region
    $region22: #{net_forward.7} parent=1 // pred_check
      _
    $region23: #{net_forward.7} parent=1 // pred_check_branch
      %24 = sbr.rel (0) target = $region25
    $region24: #{net_forward.7} parent=1 // pred_region
      _
    $region25: #{net_forward.7} parent=1 // pred_fallthru
      _
    // Predicated region
    $region26: #{net_forward.7} parent=1 // pred_check
      _
    $region27: #{net_forward.7} parent=1 // pred_check_branch
      %26 = sbr.rel (0) target = $region29
    $region28: #{net_forward.7} parent=1 // pred_region
      _
    $region29: #{net_forward.7} parent=1 // pred_fallthru
      _
    %v28 = vld [vmem:[%s0] sm:$0xff]
    %v29 = vld [vmem:[%s1] sm:$0xf]
    %v30 = vld [vmem:[%s1 + $0x4] sm:$0xf]
    %v31 = vld [vmem:[%s1 + $0x8] sm:$0xf]
    %v32 = vld [vmem:[%s1 + $0xc] sm:$0xf]
    %v33 = vld [vmem:[%s1 + $0x10] sm:$0xf]
    %v34 = vld [vmem:[%s1 + $0x14] sm:$0xf]
    %v35 = vld [vmem:[%s1 + $0x18] sm:$0xf]
    %v36 = vld [vmem:[%s1 + $0x1c] sm:$0xf]
    %v37 = vld [vmem:[%s1 + $0x20] sm:$0xf]
    %v38 = vld [vmem:[%s1 + $0x24] sm:$0xf]
    %v39 = vld [vmem:[%s1 + $0x28] sm:$0xf]
    %v40 = vld [vmem:[%s1 + $0x2c] sm:$0xf]
    %v41 = vld [vmem:[%s1 + $0x30] sm:$0xf]
    %v42 = vld [vmem:[%s1 + $0x34] sm:$0xf]
    %v43 = vld [vmem:[%s1 + $0x38] sm:$0xf]
    %v44 = vld [vmem:[%s1 + $0x3c] sm:$0xf]
    %v45 = vld [vmem:[%s1 + $0x40] sm:$0xf]
    %v46 = vld [vmem:[%s1 + $0x44] sm:$0xf]
    %v47 = vld [vmem:[%s1 + $0x48] sm:$0xf]
    %v48 = vld [vmem:[%s1 + $0x4c] sm:$0xf]
    %v49 = vld [vmem:[%s1 + $0x50] sm:$0xf]
    %v50 = vld [vmem:[%s1 + $0x54] sm:$0xf]
    %v51 = vld [vmem:[%s1 + $0x58] sm:$0xf]
    %v52 = vld [vmem:[%s1 + $0x5c] sm:$0xf]
    %v53 = vld [vmem:[%s1 + $0x60] sm:$0xf]
    %v54 = vld [vmem:[%s1 + $0x64] sm:$0xf]
    %v55 = vld [vmem:[%s1 + $0x68] sm:$0xf]
    %v56 = vld [vmem:[%s1 + $0x6c] sm:$0xf]
    %v57 = vld [vmem:[%s1 + $0x70] sm:$0xf]
    %v58 = vld [vmem:[%s1 + $0x74] sm:$0xf]
    %v59 = vld [vmem:[%s1 + $0x78] sm:$0xf]
    %v60 = vld [vmem:[%s1 + $0x7c] sm:$0xf]
    %v61 = vld [vmem:[%s1 + $0x80] sm:$0xf]
    %v62 = vld [vmem:[%s1 + $0x84] sm:$0xf]
    %v63 = vld [vmem:[%s1 + $0x88] sm:$0xf]
    %v64 = vld [vmem:[%s1 + $0x8c] sm:$0xf]
    %v65 = vld [vmem:[%s1 + $0x90] sm:$0xf]
    %v66 = vld [vmem:[%s1 + $0x94] sm:$0xf]
    %v67 = vld [vmem:[%s1 + $0x98] sm:$0xf]
    %v68 = vld [vmem:[%s1 + $0x9c] sm:$0xf]
    %v69 = vld [vmem:[%s1 + $0xa0] sm:$0xf]
    %v70 = vld [vmem:[%s1 + $0xa4] sm:$0xf]
    %v71 = vld [vmem:[%s1 + $0xa8] sm:$0xf]
    %v72 = vld [vmem:[%s1 + $0xac] sm:$0xf]
    %v73 = vld [vmem:[%s1 + $0xb0] sm:$0xf]
    %v74 = vld [vmem:[%s1 + $0xb4] sm:$0xf]
    %v75 = vld [vmem:[%s1 + $0xb8] sm:$0xf]
    %v76 = vld [vmem:[%s1 + $0xbc] sm:$0xf]
    %v77 = vld [vmem:[%s1 + $0xc0] sm:$0xf]
    %v78 = vld [vmem:[%s1 + $0xc4] sm:$0xf]
    %v79 = vld [vmem:[%s1 + $0xc8] sm:$0xf]
    %v80 = vld [vmem:[%s1 + $0xcc] sm:$0xf]
    %v81 = vld [vmem:[%s1 + $0xd0] sm:$0xf]
    %v82 = vld [vmem:[%s1 + $0xd4] sm:$0xf]
    %v83 = vld [vmem:[%s1 + $0xd8] sm:$0xf]
    %v84 = vld [vmem:[%s1 + $0xdc] sm:$0xf]
    %v85 = vld [vmem:[%s1 + $0xe0] sm:$0xf]
    %v86 = vld [vmem:[%s1 + $0xe4] sm:$0xf]
    %v87 = vld [vmem:[%s1 + $0xe8] sm:$0xf]
    %v88 = vld [vmem:[%s1 + $0xec] sm:$0xf]
    %v89 = vld [vmem:[%s1 + $0xf0] sm:$0xf]
    %v90 = vld [vmem:[%s1 + $0xf4] sm:$0xf]
    %v91 = vld [vmem:[%s1 + $0xf8] sm:$0xf]
    %v92 = vld [vmem:[%s1 + $0xfc] sm:$0xf]
    %v93 = vld [vmem:[%s1 + $0x100] sm:$0xf]
    %v94 = vld [vmem:[%s1 + $0x104] sm:$0xf]
    %v95 = vld [vmem:[%s1 + $0x108] sm:$0xf]
    %v96 = vld [vmem:[%s1 + $0x10c] sm:$0xf]
    %v97 = vld [vmem:[%s1 + $0x110] sm:$0xf]
    %v98 = vld [vmem:[%s1 + $0x114] sm:$0xf]
    %v99 = vld [vmem:[%s1 + $0x118] sm:$0xf]
    %v100 = vld [vmem:[%s1 + $0x11c] sm:$0xf]
    %v101 = vld [vmem:[%s1 + $0x120] sm:$0xf]
    %v102 = vld [vmem:[%s1 + $0x124] sm:$0xf]
    %v103 = vld [vmem:[%s1 + $0x128] sm:$0xf]
    %v104 = vld [vmem:[%s1 + $0x12c] sm:$0xf]
    %v105 = vld [vmem:[%s1 + $0x130] sm:$0xf]
    %v106 = vld [vmem:[%s1 + $0x134] sm:$0xf]
    %v107 = vld [vmem:[%s1 + $0x138] sm:$0xf]
    %v108 = vld [vmem:[%s1 + $0x13c] sm:$0xf]
    %v109 = vld [vmem:[%s1 + $0x140] sm:$0xf]
    %v110 = vld [vmem:[%s1 + $0x144] sm:$0xf]
    %v111 = vld [vmem:[%s1 + $0x148] sm:$0xf]
    %v112 = vld [vmem:[%s1 + $0x14c] sm:$0xf]
    %v113 = vld [vmem:[%s1 + $0x150] sm:$0xf]
    %v114 = vld [vmem:[%s1 + $0x154] sm:$0xf]
    %v115 = vld [vmem:[%s1 + $0x158] sm:$0xf]
    %v116 = vld [vmem:[%s1 + $0x15c] sm:$0xf]
    %v117 = vld [vmem:[%s1 + $0x160] sm:$0xf]
    %v118 = vld [vmem:[%s1 + $0x164] sm:$0xf]
    %v119 = vld [vmem:[%s1 + $0x168] sm:$0xf]
    %v120 = vld [vmem:[%s1 + $0x16c] sm:$0xf]
    %v121 = vld [vmem:[%s1 + $0x170] sm:$0xf]
    %v122 = vld [vmem:[%s1 + $0x174] sm:$0xf]
    %v123 = vld [vmem:[%s1 + $0x178] sm:$0xf]
    %v124 = vld [vmem:[%s1 + $0x17c] sm:$0xf]
    %v125 = vld [vmem:[%s1 + $0x180] sm:$0xf]
    %v126 = vld [vmem:[%s1 + $0x184] sm:$0xf]
    %v127 = vld [vmem:[%s1 + $0x188] sm:$0xf]
    %v128 = vld [vmem:[%s1 + $0x18c] sm:$0xf]
    %v129 = vld [vmem:[%s1 + $0x190] sm:$0xf]
    %v130 = vld [vmem:[%s1 + $0x194] sm:$0xf]
    %v131 = vld [vmem:[%s1 + $0x198] sm:$0xf]
    %v132 = vld [vmem:[%s1 + $0x19c] sm:$0xf]
    %v133 = vld [vmem:[%s1 + $0x1a0] sm:$0xf]
    %v134 = vld [vmem:[%s1 + $0x1a4] sm:$0xf]
    %v135 = vld [vmem:[%s1 + $0x1a8] sm:$0xf]
    %v136 = vld [vmem:[%s1 + $0x1ac] sm:$0xf]
    %v137 = vld [vmem:[%s1 + $0x1b0] sm:$0xf]
    %v138 = vld [vmem:[%s1 + $0x1b4] sm:$0xf]
    %v139 = vld [vmem:[%s1 + $0x1b8] sm:$0xf]
    %v140 = vld [vmem:[%s1 + $0x1bc] sm:$0xf]
    %v141 = vld [vmem:[%s1 + $0x1c0] sm:$0xf]
    %v142 = vld [vmem:[%s1 + $0x1c4] sm:$0xf]
    %v143 = vld [vmem:[%s1 + $0x1c8] sm:$0xf]
    %v144 = vld [vmem:[%s1 + $0x1cc] sm:$0xf]
    %v145 = vld [vmem:[%s1 + $0x1d0] sm:$0xf]
    %v146 = vld [vmem:[%s1 + $0x1d4] sm:$0xf]
    %v147 = vld [vmem:[%s1 + $0x1d8] sm:$0xf]
    %v148 = vld [vmem:[%s1 + $0x1dc] sm:$0xf]
    %v149 = vld [vmem:[%s1 + $0x1e0] sm:$0xf]
    %v150 = vld [vmem:[%s1 + $0x1e4] sm:$0xf]
    %v151 = vld [vmem:[%s1 + $0x1e8] sm:$0xf]
    %v152 = vld [vmem:[%s1 + $0x1ec] sm:$0xf]
    %v153 = vld [vmem:[%s1 + $0x1f0] sm:$0xf]
    %v154 = vld [vmem:[%s1 + $0x1f4] sm:$0xf]
    %v155 = vld [vmem:[%s1 + $0x1f8] sm:$0xf]
    %v156 = vld [vmem:[%s1 + $0x1fc] sm:$0xf]
    %v157 = vld [vmem:[%s2] sm:$0x1]
    %v159 = vlaneseq
    %v160 = vshrl.u32 %v159, 7
    %v161 = vsub.s32 0, %v160
    %v162 = vrot.slane %v157, %v161
    %v165 = vcombine.high %v28, %v28
    %v167 = vunpack.c.l.s4 1966171168
    %v168 = vunpack.c.0.s8 %v167
    %v169 = vlaneseq
    %v170 = vshrl.u32 %v169, 7
    %v171 = vsub.s32 %v168, %v170
    %v172 = vrot.slane %v28, %v171
    %v174 = vunpack.c.l.s4 1966171168
    %v175 = vunpack.c.0.s8 %v174
    %v176 = vlaneseq
    %v177 = vshrl.u32 %v176, 7
    %v178 = vsub.s32 %v175, %v177
    %v179 = vrot.slane %v165, %v178
    %v180 = vcombine.high %v172, %v172
    %v181 = vcombine.high %v179, %v179
    %v183 = vunpack.c.l.s4 1966171168
    %v184 = vunpack.c.0.s8 %v183
    %v185 = vlaneseq
    %v186 = vshrl.u32 %v185, 7
    %v187 = vsub.s32 %v184, %v186
    %v188 = vrot.slane %v172, %v187
    %v190 = vunpack.c.l.s4 1966171168
    %v191 = vunpack.c.0.s8 %v190
    %v192 = vlaneseq
    %v193 = vshrl.u32 %v192, 7
    %v194 = vsub.s32 %v191, %v193
    %v195 = vrot.slane %v179, %v194
    %v197 = vunpack.c.l.s4 1966171168
    %v198 = vunpack.c.0.s8 %v197
    %v199 = vlaneseq
    %v200 = vshrl.u32 %v199, 7
    %v201 = vsub.s32 %v198, %v200
    %v202 = vrot.slane %v180, %v201
    %v204 = vunpack.c.l.s4 1966171168
    %v205 = vunpack.c.0.s8 %v204
    %v206 = vlaneseq
    %v207 = vshrl.u32 %v206, 7
    %v208 = vsub.s32 %v205, %v207
    %v209 = vrot.slane %v181, %v208
    %v210 = vcombine.high %v188, %v188
    %v211 = vcombine.high %v195, %v195
    %v212 = vcombine.high %v202, %v202
    %v213 = vcombine.high %v209, %v209
    %v350 = vunpack.c.l.b16 %v29
    %v351 = vunpack.c.l.b16 %v30
    %v352 = vunpack.c.l.b16 %v31
    %v353 = vunpack.c.l.b16 %v32
    %v354 = vunpack.c.l.b16 %v33
    %v355 = vunpack.c.l.b16 %v34
    %v356 = vunpack.c.l.b16 %v35
    %v357 = vunpack.c.l.b16 %v36
    %v358 = vunpack.c.l.b16 %v37
    %v359 = vunpack.c.l.b16 %v38
    %v360 = vunpack.c.l.b16 %v39
    %v361 = vunpack.c.l.b16 %v40
    %v362 = vunpack.c.l.b16 %v41
    %v363 = vunpack.c.l.b16 %v42
    %v364 = vunpack.c.l.b16 %v43
    %v365 = vunpack.c.l.b16 %v44
    %v366 = vunpack.c.l.b16 %v45
    %v367 = vunpack.c.l.b16 %v46
    %v368 = vunpack.c.l.b16 %v47
    %v369 = vunpack.c.l.b16 %v48
    %v370 = vunpack.c.l.b16 %v49
    %v371 = vunpack.c.l.b16 %v50
    %v372 = vunpack.c.l.b16 %v51
    %v373 = vunpack.c.l.b16 %v52
    %v374 = vunpack.c.l.b16 %v53
    %v375 = vunpack.c.l.b16 %v54
    %v376 = vunpack.c.l.b16 %v55
    %v377 = vunpack.c.l.b16 %v56
    %v378 = vunpack.c.l.b16 %v57
    %v379 = vunpack.c.l.b16 %v58
    %v380 = vunpack.c.l.b16 %v59
    %v381 = vunpack.c.l.b16 %v60
    %v382 = vunpack.c.l.b16 %v61
    %v383 = vunpack.c.l.b16 %v62
    %v384 = vunpack.c.l.b16 %v63
    %v385 = vunpack.c.l.b16 %v64
    %v386 = vunpack.c.l.b16 %v65
    %v387 = vunpack.c.l.b16 %v66
    %v388 = vunpack.c.l.b16 %v67
    %v389 = vunpack.c.l.b16 %v68
    %v390 = vunpack.c.l.b16 %v69
    %v391 = vunpack.c.l.b16 %v70
    %v392 = vunpack.c.l.b16 %v71
    %v393 = vunpack.c.l.b16 %v72
    %v394 = vunpack.c.l.b16 %v73
    %v395 = vunpack.c.l.b16 %v74
    %v396 = vunpack.c.l.b16 %v75
    %v397 = vunpack.c.l.b16 %v76
    %v398 = vunpack.c.l.b16 %v77
    %v399 = vunpack.c.l.b16 %v78
    %v400 = vunpack.c.l.b16 %v79
    %v401 = vunpack.c.l.b16 %v80
    %v402 = vunpack.c.l.b16 %v81
    %v403 = vunpack.c.l.b16 %v82
    %v404 = vunpack.c.l.b16 %v83
    %v405 = vunpack.c.l.b16 %v84
    %v406 = vunpack.c.l.b16 %v85
    %v407 = vunpack.c.l.b16 %v86
    %v408 = vunpack.c.l.b16 %v87
    %v409 = vunpack.c.l.b16 %v88
    %v410 = vunpack.c.l.b16 %v89
    %v411 = vunpack.c.l.b16 %v90
    %v412 = vunpack.c.l.b16 %v91
    %v413 = vunpack.c.l.b16 %v92
    %v414 = vunpack.c.l.b16 %v93
    %v415 = vunpack.c.l.b16 %v94
    %v416 = vunpack.c.l.b16 %v95
    %v417 = vunpack.c.l.b16 %v96
    %v418 = vunpack.c.l.b16 %v97
    %v419 = vunpack.c.l.b16 %v98
    %v420 = vunpack.c.l.b16 %v99
    %v421 = vunpack.c.l.b16 %v100
    %v422 = vunpack.c.l.b16 %v101
    %v423 = vunpack.c.l.b16 %v102
    %v424 = vunpack.c.l.b16 %v103
    %v425 = vunpack.c.l.b16 %v104
    %v426 = vunpack.c.l.b16 %v105
    %v427 = vunpack.c.l.b16 %v106
    %v428 = vunpack.c.l.b16 %v107
    %v429 = vunpack.c.l.b16 %v108
    %v430 = vunpack.c.l.b16 %v109
    %v431 = vunpack.c.l.b16 %v110
    %v432 = vunpack.c.l.b16 %v111
    %v433 = vunpack.c.l.b16 %v112
    %v434 = vunpack.c.l.b16 %v113
    %v435 = vunpack.c.l.b16 %v114
    %v436 = vunpack.c.l.b16 %v115
    %v437 = vunpack.c.l.b16 %v116
    %v438 = vunpack.c.l.b16 %v117
    %v439 = vunpack.c.l.b16 %v118
    %v440 = vunpack.c.l.b16 %v119
    %v441 = vunpack.c.l.b16 %v120
    %v442 = vunpack.c.l.b16 %v121
    %v443 = vunpack.c.l.b16 %v122
    %v444 = vunpack.c.l.b16 %v123
    %v445 = vunpack.c.l.b16 %v124
    %v446 = vunpack.c.l.b16 %v125
    %v447 = vunpack.c.l.b16 %v126
    %v448 = vunpack.c.l.b16 %v127
    %v449 = vunpack.c.l.b16 %v128
    %v450 = vunpack.c.l.b16 %v129
    %v451 = vunpack.c.l.b16 %v130
    %v452 = vunpack.c.l.b16 %v131
    %v453 = vunpack.c.l.b16 %v132
    %v454 = vunpack.c.l.b16 %v133
    %v455 = vunpack.c.l.b16 %v134
    %v456 = vunpack.c.l.b16 %v135
    %v457 = vunpack.c.l.b16 %v136
    %v458 = vunpack.c.l.b16 %v137
    %v459 = vunpack.c.l.b16 %v138
    %v460 = vunpack.c.l.b16 %v139
    %v461 = vunpack.c.l.b16 %v140
    %v462 = vunpack.c.l.b16 %v141
    %v463 = vunpack.c.l.b16 %v142
    %v464 = vunpack.c.l.b16 %v143
    %v465 = vunpack.c.l.b16 %v144
    %v466 = vunpack.c.l.b16 %v145
    %v467 = vunpack.c.l.b16 %v146
    %v468 = vunpack.c.l.b16 %v147
    %v469 = vunpack.c.l.b16 %v148
    %v470 = vunpack.c.l.b16 %v149
    %v471 = vunpack.c.l.b16 %v150
    %v472 = vunpack.c.l.b16 %v151
    %v473 = vunpack.c.l.b16 %v152
    %v474 = vunpack.c.l.b16 %v153
    %v475 = vunpack.c.l.b16 %v154
    %v476 = vunpack.c.l.b16 %v155
    %v477 = vunpack.c.l.b16 %v156
    %v478 = vpack.c.b16 %v351, %v350
    %v479 = vpack.c.b16 %v353, %v352
    %v480 = vpack.c.b16 %v355, %v354
    %v481 = vpack.c.b16 %v357, %v356
    %v482 = vpack.c.b16 %v359, %v358
    %v483 = vpack.c.b16 %v361, %v360
    %v484 = vpack.c.b16 %v363, %v362
    %v485 = vpack.c.b16 %v365, %v364
    %v486 = vpack.c.b16 %v367, %v366
    %v487 = vpack.c.b16 %v369, %v368
    %v488 = vpack.c.b16 %v371, %v370
    %v489 = vpack.c.b16 %v373, %v372
    %v490 = vpack.c.b16 %v375, %v374
    %v491 = vpack.c.b16 %v377, %v376
    %v492 = vpack.c.b16 %v379, %v378
    %v493 = vpack.c.b16 %v381, %v380
    %v494 = vpack.c.b16 %v383, %v382
    %v495 = vpack.c.b16 %v385, %v384
    %v496 = vpack.c.b16 %v387, %v386
    %v497 = vpack.c.b16 %v389, %v388
    %v498 = vpack.c.b16 %v391, %v390
    %v499 = vpack.c.b16 %v393, %v392
    %v500 = vpack.c.b16 %v395, %v394
    %v501 = vpack.c.b16 %v397, %v396
    %v502 = vpack.c.b16 %v399, %v398
    %v503 = vpack.c.b16 %v401, %v400
    %v504 = vpack.c.b16 %v403, %v402
    %v505 = vpack.c.b16 %v405, %v404
    %v506 = vpack.c.b16 %v407, %v406
    %v507 = vpack.c.b16 %v409, %v408
    %v508 = vpack.c.b16 %v411, %v410
    %v509 = vpack.c.b16 %v413, %v412
    %v510 = vpack.c.b16 %v415, %v414
    %v511 = vpack.c.b16 %v417, %v416
    %v512 = vpack.c.b16 %v419, %v418
    %v513 = vpack.c.b16 %v421, %v420
    %v514 = vpack.c.b16 %v423, %v422
    %v515 = vpack.c.b16 %v425, %v424
    %v516 = vpack.c.b16 %v427, %v426
    %v517 = vpack.c.b16 %v429, %v428
    %v518 = vpack.c.b16 %v431, %v430
    %v519 = vpack.c.b16 %v433, %v432
    %v520 = vpack.c.b16 %v435, %v434
    %v521 = vpack.c.b16 %v437, %v436
    %v522 = vpack.c.b16 %v439, %v438
    %v523 = vpack.c.b16 %v441, %v440
    %v524 = vpack.c.b16 %v443, %v442
    %v525 = vpack.c.b16 %v445, %v444
    %v526 = vpack.c.b16 %v447, %v446
    %v527 = vpack.c.b16 %v449, %v448
    %v528 = vpack.c.b16 %v451, %v450
    %v529 = vpack.c.b16 %v453, %v452
    %v530 = vpack.c.b16 %v455, %v454
    %v531 = vpack.c.b16 %v457, %v456
    %v532 = vpack.c.b16 %v459, %v458
    %v533 = vpack.c.b16 %v461, %v460
    %v534 = vpack.c.b16 %v463, %v462
    %v535 = vpack.c.b16 %v465, %v464
    %v536 = vpack.c.b16 %v467, %v466
    %v537 = vpack.c.b16 %v469, %v468
    %v538 = vpack.c.b16 %v471, %v470
    %v539 = vpack.c.b16 %v473, %v472
    %v540 = vpack.c.b16 %v475, %v474
    %v541 = vpack.c.b16 %v477, %v476
    %606 = vmatprep.subr.bf16.mxu0 0
    %607 = vmatpush1.bf16.msra.mxu0 %v478
    %608 = vmatprep.subr.bf16.mxu0 0
    %609 = vmatpush1.bf16.msra.mxu0 %v479
    %610 = vmatprep.subr.bf16.mxu0 0
    %611 = vmatpush1.bf16.msra.mxu0 %v480
    %612 = vmatprep.subr.bf16.mxu0 0
    %613 = vmatpush1.bf16.msra.mxu0 %v481
    %614 = vmatprep.subr.bf16.mxu0 0
    %615 = vmatpush1.bf16.msra.mxu0 %v482
    %616 = vmatprep.subr.bf16.mxu0 0
    %617 = vmatpush1.bf16.msra.mxu0 %v483
    %618 = vmatprep.subr.bf16.mxu0 0
    %619 = vmatpush1.bf16.msra.mxu0 %v484
    %620 = vmatprep.subr.bf16.mxu0 0
    %621 = vmatpush1.bf16.msra.mxu0 %v485
    %622 = vmatprep.subr.bf16.mxu0 0
    %623 = vmatpush1.bf16.msra.mxu0 %v486
    %624 = vmatprep.subr.bf16.mxu0 0
    %625 = vmatpush1.bf16.msra.mxu0 %v487
    %626 = vmatprep.subr.bf16.mxu0 0
    %627 = vmatpush1.bf16.msra.mxu0 %v488
    %628 = vmatprep.subr.bf16.mxu0 0
    %629 = vmatpush1.bf16.msra.mxu0 %v489
    %630 = vmatprep.subr.bf16.mxu0 0
    %631 = vmatpush1.bf16.msra.mxu0 %v490
    %632 = vmatprep.subr.bf16.mxu0 0
    %633 = vmatpush1.bf16.msra.mxu0 %v491
    %634 = vmatprep.subr.bf16.mxu0 0
    %635 = vmatpush1.bf16.msra.mxu0 %v492
    %636 = vmatprep.subr.bf16.mxu0 0
    %637 = vmatpush1.bf16.msra.mxu0 %v493
    %638 = vmatprep.mubr.bf16.mxu0 %v202
    %639 = vmatmul.mubr.bf16.gmra.mrb[0].mxu0 %v188
    %v640 = vpop.f32.mrb[0].mxu0
    %v641 = vadd.f32 %v162, %v640
    %v642 = vpop.f32.mrb[0].mxu0
    %v643 = vpop.f32.mrb[0].mxu0
    %v644 = vpop.f32.mrb[0].mxu0
    %645 = vdwg.mxu0
    %646 = vmatprep.subr.bf16.mxu0 0
    %647 = vmatpush1.bf16.msra.mxu0 %v494
    %648 = vmatprep.subr.bf16.mxu0 0
    %649 = vmatpush1.bf16.msra.mxu0 %v495
    %650 = vmatprep.subr.bf16.mxu0 0
    %651 = vmatpush1.bf16.msra.mxu0 %v496
    %652 = vmatprep.subr.bf16.mxu0 0
    %653 = vmatpush1.bf16.msra.mxu0 %v497
    %654 = vmatprep.subr.bf16.mxu0 0
    %655 = vmatpush1.bf16.msra.mxu0 %v498
    %656 = vmatprep.subr.bf16.mxu0 0
    %657 = vmatpush1.bf16.msra.mxu0 %v499
    %658 = vmatprep.subr.bf16.mxu0 0
    %659 = vmatpush1.bf16.msra.mxu0 %v500
    %660 = vmatprep.subr.bf16.mxu0 0
    %661 = vmatpush1.bf16.msra.mxu0 %v501
    %662 = vmatprep.subr.bf16.mxu0 0
    %663 = vmatpush1.bf16.msra.mxu0 %v502
    %664 = vmatprep.subr.bf16.mxu0 0
    %665 = vmatpush1.bf16.msra.mxu0 %v503
    %666 = vmatprep.subr.bf16.mxu0 0
    %667 = vmatpush1.bf16.msra.mxu0 %v504
    %668 = vmatprep.subr.bf16.mxu0 0
    %669 = vmatpush1.bf16.msra.mxu0 %v505
    %670 = vmatprep.subr.bf16.mxu0 0
    %671 = vmatpush1.bf16.msra.mxu0 %v506
    %672 = vmatprep.subr.bf16.mxu0 0
    %673 = vmatpush1.bf16.msra.mxu0 %v507
    %674 = vmatprep.subr.bf16.mxu0 0
    %675 = vmatpush1.bf16.msra.mxu0 %v508
    %676 = vmatprep.subr.bf16.mxu0 0
    %677 = vmatpush1.bf16.msra.mxu0 %v509
    %678 = vmatprep.mubr.bf16.mxu0 %v212
    %679 = vmatmul.mubr.bf16.gmra.mrb[0].mxu0 %v210
    %v680 = vpop.f32.mrb[0].mxu0
    %v681 = vadd.f32 %v641, %v680
    %v682 = vpop.f32.mrb[0].mxu0
    %v683 = vpop.f32.mrb[0].mxu0
    %v684 = vpop.f32.mrb[0].mxu0
    %685 = vdwg.mxu0
    %686 = vmatprep.subr.bf16.mxu0 0
    %687 = vmatpush1.bf16.msra.mxu0 %v510
    %688 = vmatprep.subr.bf16.mxu0 0
    %689 = vmatpush1.bf16.msra.mxu0 %v511
    %690 = vmatprep.subr.bf16.mxu0 0
    %691 = vmatpush1.bf16.msra.mxu0 %v512
    %692 = vmatprep.subr.bf16.mxu0 0
    %693 = vmatpush1.bf16.msra.mxu0 %v513
    %694 = vmatprep.subr.bf16.mxu0 0
    %695 = vmatpush1.bf16.msra.mxu0 %v514
    %696 = vmatprep.subr.bf16.mxu0 0
    %697 = vmatpush1.bf16.msra.mxu0 %v515
    %698 = vmatprep.subr.bf16.mxu0 0
    %699 = vmatpush1.bf16.msra.mxu0 %v516
    %700 = vmatprep.subr.bf16.mxu0 0
    %701 = vmatpush1.bf16.msra.mxu0 %v517
    %702 = vmatprep.subr.bf16.mxu0 0
    %703 = vmatpush1.bf16.msra.mxu0 %v518
    %704 = vmatprep.subr.bf16.mxu0 0
    %705 = vmatpush1.bf16.msra.mxu0 %v519
    %706 = vmatprep.subr.bf16.mxu0 0
    %707 = vmatpush1.bf16.msra.mxu0 %v520
    %708 = vmatprep.subr.bf16.mxu0 0
    %709 = vmatpush1.bf16.msra.mxu0 %v521
    %710 = vmatprep.subr.bf16.mxu0 0
    %711 = vmatpush1.bf16.msra.mxu0 %v522
    %712 = vmatprep.subr.bf16.mxu0 0
    %713 = vmatpush1.bf16.msra.mxu0 %v523
    %714 = vmatprep.subr.bf16.mxu0 0
    %715 = vmatpush1.bf16.msra.mxu0 %v524
    %716 = vmatprep.subr.bf16.mxu0 0
    %717 = vmatpush1.bf16.msra.mxu0 %v525
    %718 = vmatprep.mubr.bf16.mxu0 %v209
    %719 = vmatmul.mubr.bf16.gmra.mrb[0].mxu0 %v195
    %v720 = vpop.f32.mrb[0].mxu0
    %v721 = vadd.f32 %v681, %v720
    %v722 = vpop.f32.mrb[0].mxu0
    %v723 = vpop.f32.mrb[0].mxu0
    %v724 = vpop.f32.mrb[0].mxu0
    %725 = vdwg.mxu0
    %726 = vmatprep.subr.bf16.mxu0 0
    %727 = vmatpush1.bf16.msra.mxu0 %v526
    %728 = vmatprep.subr.bf16.mxu0 0
    %729 = vmatpush1.bf16.msra.mxu0 %v527
    %730 = vmatprep.subr.bf16.mxu0 0
    %731 = vmatpush1.bf16.msra.mxu0 %v528
    %732 = vmatprep.subr.bf16.mxu0 0
    %733 = vmatpush1.bf16.msra.mxu0 %v529
    %734 = vmatprep.subr.bf16.mxu0 0
    %735 = vmatpush1.bf16.msra.mxu0 %v530
    %736 = vmatprep.subr.bf16.mxu0 0
    %737 = vmatpush1.bf16.msra.mxu0 %v531
    %738 = vmatprep.subr.bf16.mxu0 0
    %739 = vmatpush1.bf16.msra.mxu0 %v532
    %740 = vmatprep.subr.bf16.mxu0 0
    %741 = vmatpush1.bf16.msra.mxu0 %v533
    %742 = vmatprep.subr.bf16.mxu0 0
    %743 = vmatpush1.bf16.msra.mxu0 %v534
    %744 = vmatprep.subr.bf16.mxu0 0
    %745 = vmatpush1.bf16.msra.mxu0 %v535
    %746 = vmatprep.subr.bf16.mxu0 0
    %747 = vmatpush1.bf16.msra.mxu0 %v536
    %748 = vmatprep.subr.bf16.mxu0 0
    %749 = vmatpush1.bf16.msra.mxu0 %v537
    %750 = vmatprep.subr.bf16.mxu0 0
    %751 = vmatpush1.bf16.msra.mxu0 %v538
    %752 = vmatprep.subr.bf16.mxu0 0
    %753 = vmatpush1.bf16.msra.mxu0 %v539
    %754 = vmatprep.subr.bf16.mxu0 0
    %755 = vmatpush1.bf16.msra.mxu0 %v540
    %756 = vmatprep.subr.bf16.mxu0 0
    %757 = vmatpush1.bf16.msra.mxu0 %v541
    %758 = vmatprep.mubr.bf16.mxu0 %v213
    %759 = vmatmul.mubr.bf16.gmra.mrb[0].mxu0 %v211
    %v760 = vpop.f32.mrb[0].mxu0
    %v761 = vadd.f32 %v721, %v760
    %v762 = vpop.f32.mrb[0].mxu0
    %v763 = vpop.f32.mrb[0].mxu0
    %v764 = vpop.f32.mrb[0].mxu0
    %765 = vdwg.mxu0
    %v766 = vmax.f32 %v761, 0.0
    %v767 = vpack.c.bf16 %v766, %v766
    %v768 = vld [vmem:[%s3] sm:$0xff]
    %v769 = vld [vmem:[%s3 + $0x8] sm:$0xff]
    %v770 = vld [vmem:[%s3 + $0x10] sm:$0xff]
    %v771 = vld [vmem:[%s3 + $0x18] sm:$0xff]
    %v772 = vld [vmem:[%s3 + $0x20] sm:$0xff]
    %v773 = vld [vmem:[%s3 + $0x28] sm:$0xff]
    %v774 = vld [vmem:[%s3 + $0x30] sm:$0xff]
    %v775 = vld [vmem:[%s3 + $0x38] sm:$0xff]
    %v776 = vld [vmem:[%s3 + $0x40] sm:$0xff]
    %v777 = vld [vmem:[%s3 + $0x48] sm:$0xff]
    %v778 = vld [vmem:[%s3 + $0x50] sm:$0xff]
    %v779 = vld [vmem:[%s3 + $0x58] sm:$0xff]
    %v780 = vld [vmem:[%s3 + $0x60] sm:$0xff]
    %v781 = vld [vmem:[%s3 + $0x68] sm:$0xff]
    %v782 = vld [vmem:[%s3 + $0x70] sm:$0xff]
    %v783 = vld [vmem:[%s3 + $0x78] sm:$0xff]
    %v784 = vld [vmem:[%s4] sm:$0x3]
    %v786 = vlaneseq
    %v787 = vshrl.u32 %v786, 7
    %v788 = vsub.s32 0, %v787
    %v789 = vrot.slane %v784, %v788
    %v790 = vlaneseq
    %v791 = vshrl.u32 %v790, 7
    %v792 = vsub.s32 1, %v791
    %v793 = vrot.slane %v784, %v792
    %v812 = vunpack.c.l.b16 %v768
    %v813 = vunpack.c.h.b16 %v768
    %v814 = vunpack.c.l.b16 %v769
    %v815 = vunpack.c.h.b16 %v769
    %v816 = vunpack.c.l.b16 %v770
    %v817 = vunpack.c.h.b16 %v770
    %v818 = vunpack.c.l.b16 %v771
    %v819 = vunpack.c.h.b16 %v771
    %v820 = vunpack.c.l.b16 %v772
    %v821 = vunpack.c.h.b16 %v772
    %v822 = vunpack.c.l.b16 %v773
    %v823 = vunpack.c.h.b16 %v773
    %v824 = vunpack.c.l.b16 %v774
    %v825 = vunpack.c.h.b16 %v774
    %v826 = vunpack.c.l.b16 %v775
    %v827 = vunpack.c.h.b16 %v775
    %v828 = vunpack.c.l.b16 %v776
    %v829 = vunpack.c.h.b16 %v776
    %v830 = vunpack.c.l.b16 %v777
    %v831 = vunpack.c.h.b16 %v777
    %v832 = vunpack.c.l.b16 %v778
    %v833 = vunpack.c.h.b16 %v778
    %v834 = vunpack.c.l.b16 %v779
    %v835 = vunpack.c.h.b16 %v779
    %v836 = vunpack.c.l.b16 %v780
    %v837 = vunpack.c.h.b16 %v780
    %v838 = vunpack.c.l.b16 %v781
    %v839 = vunpack.c.h.b16 %v781
    %v840 = vunpack.c.l.b16 %v782
    %v841 = vunpack.c.h.b16 %v782
    %v842 = vunpack.c.l.b16 %v783
    %v843 = vunpack.c.h.b16 %v783
    %v844 = vpack.c.b16 %v814, %v812
    %v845 = vpack.c.b16 %v815, %v813
    %v846 = vpack.c.b16 %v818, %v816
    %v847 = vpack.c.b16 %v819, %v817
    %v848 = vpack.c.b16 %v822, %v820
    %v849 = vpack.c.b16 %v823, %v821
    %v850 = vpack.c.b16 %v826, %v824
    %v851 = vpack.c.b16 %v827, %v825
    %v852 = vpack.c.b16 %v830, %v828
    %v853 = vpack.c.b16 %v831, %v829
    %v854 = vpack.c.b16 %v834, %v832
    %v855 = vpack.c.b16 %v835, %v833
    %v856 = vpack.c.b16 %v838, %v836
    %v857 = vpack.c.b16 %v839, %v837
    %v858 = vpack.c.b16 %v842, %v840
    %v859 = vpack.c.b16 %v843, %v841
    %876 = vmatprep.subr.bf16.mxu0 %v845
    %877 = vmatpush1.bf16.msra.mxu0 %v844
    %878 = vmatprep.subr.bf16.mxu0 %v847
    %879 = vmatpush1.bf16.msra.mxu0 %v846
    %880 = vmatprep.subr.bf16.mxu0 %v849
    %881 = vmatpush1.bf16.msra.mxu0 %v848
    %882 = vmatprep.subr.bf16.mxu0 %v851
    %883 = vmatpush1.bf16.msra.mxu0 %v850
    %884 = vmatprep.subr.bf16.mxu0 %v853
    %885 = vmatpush1.bf16.msra.mxu0 %v852
    %886 = vmatprep.subr.bf16.mxu0 %v855
    %887 = vmatpush1.bf16.msra.mxu0 %v854
    %888 = vmatprep.subr.bf16.mxu0 %v857
    %889 = vmatpush1.bf16.msra.mxu0 %v856
    %890 = vmatprep.subr.bf16.mxu0 %v859
    %891 = vmatpush1.bf16.msra.mxu0 %v858
    %892 = vmatprep.subr.bf16.mxu0 0
    %893 = vmatpush1.bf16.msra.mxu0 0
    %894 = vmatprep.subr.bf16.mxu0 0
    %895 = vmatpush1.bf16.msra.mxu0 0
    %896 = vmatprep.subr.bf16.mxu0 0
    %897 = vmatpush1.bf16.msra.mxu0 0
    %898 = vmatprep.subr.bf16.mxu0 0
    %899 = vmatpush1.bf16.msra.mxu0 0
    %900 = vmatprep.subr.bf16.mxu0 0
    %901 = vmatpush1.bf16.msra.mxu0 0
    %902 = vmatprep.subr.bf16.mxu0 0
    %903 = vmatpush1.bf16.msra.mxu0 0
    %904 = vmatprep.subr.bf16.mxu0 0
    %905 = vmatpush1.bf16.msra.mxu0 0
    %906 = vmatprep.subr.bf16.mxu0 0
    %907 = vmatpush1.bf16.msra.mxu0 0
    %908 = vmatprep.mubr.bf16.mxu0 0
    %909 = vmatmul.mubr.bf16.gmra.mrb[0].mxu0 %v767
    %v910 = vpop.f32.mrb[0].mxu0
    %v911 = vadd.f32 %v789, %v910
    %v912 = vpop.f32.mrb[0].mxu0
    %v913 = vadd.f32 %v793, %v912
    %v914 = vpop.f32.mrb[0].mxu0
    %v915 = vpop.f32.mrb[0].mxu0
    %916 = vdwg.mxu0
    %v917 = vmax.f32 %v911, 0.0
    %v918 = vmax.f32 %v913, 0.0
    %v919 = vpack.c.bf16 %v917, %v917
    %v920 = vpack.c.bf16 %v918, %v918
    %v921 = vld [vmem:[%s5] sm:$0xf]
    %v922 = vld [vmem:[%s5 + $0x4] sm:$0xf]
    %v923 = vld [vmem:[%s5 + $0x8] sm:$0xf]
    %v924 = vld [vmem:[%s5 + $0xc] sm:$0xf]
    %v925 = vld [vmem:[%s5 + $0x10] sm:$0xf]
    %v926 = vld [vmem:[%s5 + $0x14] sm:$0xf]
    %v927 = vld [vmem:[%s5 + $0x18] sm:$0xf]
    %v928 = vld [vmem:[%s5 + $0x1c] sm:$0xf]
    %v929 = vld [vmem:[%s5 + $0x20] sm:$0xf]
    %v930 = vld [vmem:[%s5 + $0x24] sm:$0xf]
    %v931 = vld [vmem:[%s5 + $0x28] sm:$0xf]
    %v932 = vld [vmem:[%s5 + $0x2c] sm:$0xf]
    %v933 = vld [vmem:[%s5 + $0x30] sm:$0xf]
    %v934 = vld [vmem:[%s5 + $0x34] sm:$0xf]
    %v935 = vld [vmem:[%s5 + $0x38] sm:$0xf]
    %v936 = vld [vmem:[%s5 + $0x3c] sm:$0xf]
    %v937 = vld [vmem:[%s5 + $0x40] sm:$0xf]
    %v938 = vld [vmem:[%s5 + $0x44] sm:$0xf]
    %v939 = vld [vmem:[%s5 + $0x48] sm:$0xf]
    %v940 = vld [vmem:[%s5 + $0x4c] sm:$0xf]
    %v941 = vld [vmem:[%s5 + $0x50] sm:$0xf]
    %v942 = vld [vmem:[%s5 + $0x54] sm:$0xf]
    %v943 = vld [vmem:[%s5 + $0x58] sm:$0xf]
    %v944 = vld [vmem:[%s5 + $0x5c] sm:$0xf]
    %v945 = vld [vmem:[%s5 + $0x60] sm:$0xf]
    %v946 = vld [vmem:[%s5 + $0x64] sm:$0xf]
    %v947 = vld [vmem:[%s5 + $0x68] sm:$0xf]
    %v948 = vld [vmem:[%s5 + $0x6c] sm:$0xf]
    %v949 = vld [vmem:[%s5 + $0x70] sm:$0xf]
    %v950 = vld [vmem:[%s5 + $0x74] sm:$0xf]
    %v951 = vld [vmem:[%s5 + $0x78] sm:$0xf]
    %v952 = vld [vmem:[%s5 + $0x7c] sm:$0xf]
    %v953 = vld [vmem:[%s6] sm:$0x1]
    %v955 = vlaneseq
    %v956 = vshrl.u32 %v955, 7
    %v957 = vsub.s32 0, %v956
    %v958 = vrot.slane %v953, %v957
    %v992 = vunpack.c.l.b16 %v921
    %v993 = vunpack.c.l.b16 %v922
    %v994 = vunpack.c.l.b16 %v923
    %v995 = vunpack.c.l.b16 %v924
    %v996 = vunpack.c.l.b16 %v925
    %v997 = vunpack.c.l.b16 %v926
    %v998 = vunpack.c.l.b16 %v927
    %v999 = vunpack.c.l.b16 %v928
    %v1000 = vunpack.c.l.b16 %v929
    %v1001 = vunpack.c.l.b16 %v930
    %v1002 = vunpack.c.l.b16 %v931
    %v1003 = vunpack.c.l.b16 %v932
    %v1004 = vunpack.c.l.b16 %v933
    %v1005 = vunpack.c.l.b16 %v934
    %v1006 = vunpack.c.l.b16 %v935
    %v1007 = vunpack.c.l.b16 %v936
    %v1008 = vunpack.c.l.b16 %v937
    %v1009 = vunpack.c.l.b16 %v938
    %v1010 = vunpack.c.l.b16 %v939
    %v1011 = vunpack.c.l.b16 %v940
    %v1012 = vunpack.c.l.b16 %v941
    %v1013 = vunpack.c.l.b16 %v942
    %v1014 = vunpack.c.l.b16 %v943
    %v1015 = vunpack.c.l.b16 %v944
    %v1016 = vunpack.c.l.b16 %v945
    %v1017 = vunpack.c.l.b16 %v946
    %v1018 = vunpack.c.l.b16 %v947
    %v1019 = vunpack.c.l.b16 %v948
    %v1020 = vunpack.c.l.b16 %v949
    %v1021 = vunpack.c.l.b16 %v950
    %v1022 = vunpack.c.l.b16 %v951
    %v1023 = vunpack.c.l.b16 %v952
    %v1024 = vpack.c.b16 %v993, %v992
    %v1025 = vpack.c.b16 %v995, %v994
    %v1026 = vpack.c.b16 %v997, %v996
    %v1027 = vpack.c.b16 %v999, %v998
    %v1028 = vpack.c.b16 %v1001, %v1000
    %v1029 = vpack.c.b16 %v1003, %v1002
    %v1030 = vpack.c.b16 %v1005, %v1004
    %v1031 = vpack.c.b16 %v1007, %v1006
    %v1032 = vpack.c.b16 %v1009, %v1008
    %v1033 = vpack.c.b16 %v1011, %v1010
    %v1034 = vpack.c.b16 %v1013, %v1012
    %v1035 = vpack.c.b16 %v1015, %v1014
    %v1036 = vpack.c.b16 %v1017, %v1016
    %v1037 = vpack.c.b16 %v1019, %v1018
    %v1038 = vpack.c.b16 %v1021, %v1020
    %v1039 = vpack.c.b16 %v1023, %v1022
    %1056 = vmatprep.subr.bf16.mxu0 0
    %1057 = vmatpush1.bf16.msra.mxu0 %v1024
    %1058 = vmatprep.subr.bf16.mxu0 0
    %1059 = vmatpush1.bf16.msra.mxu0 %v1025
    %1060 = vmatprep.subr.bf16.mxu0 0
    %1061 = vmatpush1.bf16.msra.mxu0 %v1026
    %1062 = vmatprep.subr.bf16.mxu0 0
    %1063 = vmatpush1.bf16.msra.mxu0 %v1027
    %1064 = vmatprep.subr.bf16.mxu0 0
    %1065 = vmatpush1.bf16.msra.mxu0 %v1028
    %1066 = vmatprep.subr.bf16.mxu0 0
    %1067 = vmatpush1.bf16.msra.mxu0 %v1029
    %1068 = vmatprep.subr.bf16.mxu0 0
    %1069 = vmatpush1.bf16.msra.mxu0 %v1030
    %1070 = vmatprep.subr.bf16.mxu0 0
    %1071 = vmatpush1.bf16.msra.mxu0 %v1031
    %1072 = vmatprep.subr.bf16.mxu0 0
    %1073 = vmatpush1.bf16.msra.mxu0 %v1032
    %1074 = vmatprep.subr.bf16.mxu0 0
    %1075 = vmatpush1.bf16.msra.mxu0 %v1033
    %1076 = vmatprep.subr.bf16.mxu0 0
    %1077 = vmatpush1.bf16.msra.mxu0 %v1034
    %1078 = vmatprep.subr.bf16.mxu0 0
    %1079 = vmatpush1.bf16.msra.mxu0 %v1035
    %1080 = vmatprep.subr.bf16.mxu0 0
    %1081 = vmatpush1.bf16.msra.mxu0 %v1036
    %1082 = vmatprep.subr.bf16.mxu0 0
    %1083 = vmatpush1.bf16.msra.mxu0 %v1037
    %1084 = vmatprep.subr.bf16.mxu0 0
    %1085 = vmatpush1.bf16.msra.mxu0 %v1038
    %1086 = vmatprep.subr.bf16.mxu0 0
    %1087 = vmatpush1.bf16.msra.mxu0 %v1039
    %1088 = vmatprep.mubr.bf16.mxu0 %v920
    %1089 = vmatmul.mubr.bf16.gmra.mrb[0].mxu0 %v919
    %v1090 = vpop.f32.mrb[0].mxu0
    %v1091 = vadd.f32 %v958, %v1090
    %v1092 = vpop.f32.mrb[0].mxu0
    %v1093 = vpop.f32.mrb[0].mxu0
    %v1094 = vpop.f32.mrb[0].mxu0
    %1095 = vdwg.mxu0
    %vm1096 = vcmask 74752
    %1097 = vst.msk [vmem:[#allocation2] sm:$0x3] %vm1096, %v1091
    // Predicated region
    $region30: #{net_forward.7} parent=1 // pred_check
      _
    $region31: #{net_forward.7} parent=1 // pred_check_branch
      %1099 = sbr.rel (0) target = $region33
    $region32: #{net_forward.7} parent=1 // pred_region
      %s1101 = ssub.s32 32, 32
      %1102 = vsyncadd [#allocation3], %s1101
      %s1104 = sshll.u32 [#allocation2], 4
      %s1105 = int_to_ptr.vmem [resolvable:$true] %s1104
      %1107 = dma.vmem_to_hbm [thread:$0]  %s1105, 32, %s7, [#allocation3]
    $region33: #{net_forward.7} parent=1 // pred_fallthru
      _
    // Predicated region
    $region34: #{net_forward.7} parent=1 // pred_check
      _
    $region35: #{net_forward.7} parent=1 // pred_check_branch
      %1109 = sbr.rel (0) target = $region37
    $region36: #{net_forward.7} parent=1 // pred_region
      %1110 = dma.done [#allocation3], 32
    $region37: #{net_forward.7} parent=1 // pred_fallthru
      _
    %1111 = vsyncpa [#allocation3], 1

</llo_original>
